<compile_context>
chip_gen: v5e
topology: v5e:2x2
jax: 0.10.0
libtpu: 0.0.40
codegen_flags: <defaults>
</compile_context>

<pallas_src>
import functools

import jax
import jax.numpy as jnp
from jax.experimental import pallas as pl
from jax.experimental.pallas import tpu as pltpu


# ----------------------------------------------------------------------------
# Fused conv + LeakyReLU + MaxPool2d(2,2) kernel (one batch element per step)
# ----------------------------------------------------------------------------
def _conv_leaky_pool_kernel(x_ref, w_ref, b_ref, o_ref, *, H, W, KH, KW):
    """
    x_ref : (1, C, H*W)       input image, flattened spatial (lane-dense)
    w_ref : (KH*KW, OCp, C)   one (OCp, C) weight matrix per kernel offset
    b_ref : (OCp, 1)          bias
    o_ref : (1, OCp, POH*POW) pooled output, flattened spatial
    """
    OH, OW = H - KH + 1, W - KW + 1
    POH, POW = OH // 2, OW // 2
    L = OH * W - (KW - 1)          # flat accumulator length (covers all valid p)

    xf = x_ref[0]                  # (C, H*W), VMEM-resident
    OCp = w_ref.shape[1]

    # Conv as a sum of KH*KW shifted-slice matmuls; output lane axis = spatial.
    # acc[oc, oh*W + ow] = conv(oh, ow)   (columns with ow >= OW are unused).
    acc = jnp.zeros((OCp, L), jnp.float32)
    for i in range(KH):
        for j in range(KW):
            w_ij = w_ref[i * KW + j]                       # (OCp, C)
            acc += jnp.dot(w_ij, xf[:, i * W + j:i * W + j + L],
                           preferred_element_type=jnp.float32)

    acc += b_ref[...]                                      # (OCp, 1) broadcast
    acc = jnp.where(acc > 0, acc, 0.01 * acc)              # LeakyReLU(0.01)

    # 2x2 / stride-2 maxpool epilogue.  Even/odd lane compaction is done with
    # tiny 0/1 selection matmuls (robust: no strided lane loads / reshapes).
    r = jax.lax.broadcasted_iota(jnp.int32, (2 * POW, POW), 0)
    c = jax.lax.broadcasted_iota(jnp.int32, (2 * POW, POW), 1)
    s_even = (r == 2 * c).astype(jnp.float32)              # picks col 2*pw
    s_odd = (r == 2 * c + 1).astype(jnp.float32)           # picks col 2*pw+1
    for ph in range(POH):
        r0 = acc[:, (2 * ph) * W:(2 * ph) * W + 2 * POW]
        r1 = acc[:, (2 * ph + 1) * W:(2 * ph + 1) * W + 2 * POW]
        m = jnp.maximum(r0, r1)                            # vertical max
        p_even = jnp.dot(m, s_even, preferred_element_type=jnp.float32)
        p_odd = jnp.dot(m, s_odd, preferred_element_type=jnp.float32)
        o_ref[0, :, ph * POW:(ph + 1) * POW] = jnp.maximum(p_even, p_odd)


def conv_leaky_pool(x, w, b, *, H, W, KH, KW):
    """x: (N, C, H*W), w: (KH*KW, OCp, C), b: (OCp, 1) -> (N, OCp, POH*POW)."""
    N, C, _ = x.shape
    OCp = w.shape[1]
    OH, OW = H - KH + 1, W - KW + 1
    POH, POW = OH // 2, OW // 2
    flops = 2 * N * OCp * C * KH * KW * OH * W
    bytes_accessed = 4 * (x.size + w.size + b.size + N * OCp * POH * POW)
    return pl.pallas_call(
        functools.partial(_conv_leaky_pool_kernel, H=H, W=W, KH=KH, KW=KW),
        out_shape=jax.ShapeDtypeStruct((N, OCp, POH * POW), jnp.float32),
        grid=(N,),
        in_specs=[
            pl.BlockSpec((1, C, H * W), lambda n: (n, 0, 0)),
            pl.BlockSpec((KH * KW, OCp, C), lambda n: (0, 0, 0)),  # resident
            pl.BlockSpec((OCp, 1), lambda n: (0, 0)),              # resident
        ],
        out_specs=pl.BlockSpec((1, OCp, POH * POW), lambda n: (n, 0, 0)),
        compiler_params=pltpu.CompilerParams(
            dimension_semantics=("parallel",),
            vmem_limit_bytes=32 * 1024 * 1024),
        cost_estimate=pl.CostEstimate(flops=flops, transcendentals=0,
                                      bytes_accessed=bytes_accessed),
    )(x, w, b)


# ----------------------------------------------------------------------------
# Fused fc1 + ReLU + fc2 + ReLU + fc3 kernel (weights VMEM-resident)
# ----------------------------------------------------------------------------
def _fc_fused_kernel(x_ref, w1_ref, b1_ref, w2_ref, b2_ref, w3_ref, b3_ref,
                     o_ref):
    h = jnp.dot(x_ref[...], w1_ref[...], preferred_element_type=jnp.float32)
    h = jnp.maximum(h + b1_ref[...], 0.0)                  # fc1 + ReLU
    # TODO(synk): nn.Dropout(p=0.2) treated as identity (eval-mode semantics).
    h = jnp.dot(h, w2_ref[...], preferred_element_type=jnp.float32)
    h = jnp.maximum(h + b2_ref[...], 0.0)                  # fc2 + ReLU
    o = jnp.dot(h, w3_ref[...], preferred_element_type=jnp.float32)
    o_ref[...] = (o + b3_ref[...]).astype(o_ref.dtype)     # fc3


def _pick_batch_block(n):
    if n <= 512:
        return n
    for bm in (512, 256, 128, 64, 8):
        if n % bm == 0:
            return bm
    return n


def fc_fused(x, p):
    N, K = x.shape
    D1 = p["fc1_w"].shape[1]
    D2 = p["fc2_w"].shape[1]
    D3 = p["fc3_w"].shape[1]
    bm = _pick_batch_block(N)
    flops = 2 * N * (K * D1 + D1 * D2 + D2 * D3)
    bytes_accessed = 4 * (x.size + K * D1 + D1 * D2 + D2 * D3 + N * D3)
    return pl.pallas_call(
        _fc_fused_kernel,
        out_shape=jax.ShapeDtypeStruct((N, D3), jnp.float32),
        grid=(N // bm,),
        in_specs=[
            pl.BlockSpec((bm, K), lambda i: (i, 0)),
            pl.BlockSpec((K, D1), lambda i: (0, 0)),
            pl.BlockSpec((1, D1), lambda i: (0, 0)),
            pl.BlockSpec((D1, D2), lambda i: (0, 0)),
            pl.BlockSpec((1, D2), lambda i: (0, 0)),
            pl.BlockSpec((D2, D3), lambda i: (0, 0)),
            pl.BlockSpec((1, D3), lambda i: (0, 0)),
        ],
        out_specs=pl.BlockSpec((bm, D3), lambda i: (i, 0)),
        compiler_params=pltpu.CompilerParams(
            dimension_semantics=("parallel",),
            vmem_limit_bytes=32 * 1024 * 1024),
        cost_estimate=pl.CostEstimate(flops=flops, transcendentals=0,
                                      bytes_accessed=bytes_accessed),
    )(x, p["fc1_w"], p["fc1_b"], p["fc2_w"], p["fc2_b"],
      p["fc3_w"], p["fc3_b"])


# ----------------------------------------------------------------------------
# One-time parameter re-layout (padding + pre-transposes)
# ----------------------------------------------------------------------------
def prepare_params(params, out_size):
    # conv1: pad OC 6->8 with zeros; layout (KH*KW, OCp, C).
    w1 = jnp.zeros((8, 3, 3, 3), jnp.float32).at[:6].set(params["conv1_w"])
    w1 = jnp.transpose(w1, (2, 3, 0, 1)).reshape(9, 8, 3)
    b1 = jnp.zeros((8, 1), jnp.float32).at[:6, 0].set(params["conv1_b"])
    # conv2: pad IC 6->8 (padded conv1 channels are exactly zero, so exact).
    w2 = jnp.zeros((16, 8, 5, 5), jnp.float32).at[:, :6].set(params["conv2_w"])
    w2 = jnp.transpose(w2, (2, 3, 0, 1)).reshape(25, 16, 8)
    b2 = params["conv2_b"].reshape(16, 1).astype(jnp.float32)
    # fc: pre-transpose to (in, out); pad fc3 out to a multiple of 8.
    outp = -(-out_size // 8) * 8
    fc3_w = jnp.zeros((32, outp), jnp.float32).at[:, :out_size].set(
        params["fc3_w"].T)
    fc3_b = jnp.zeros((1, outp), jnp.float32).at[0, :out_size].set(
        params["fc3_b"])
    return {
        "conv1_w": w1, "conv1_b": b1,
        "conv2_w": w2, "conv2_b": b2,
        "fc1_w": params["fc1_w"].T, "fc1_b": params["fc1_b"].reshape(1, -1),
        "fc2_w": params["fc2_w"].T, "fc2_b": params["fc2_b"].reshape(1, -1),
        "fc3_w": fc3_w, "fc3_b": fc3_b,
    }


# ----------------------------------------------------------------------------
# Forward pass
# ----------------------------------------------------------------------------
def neural_net_forward(x, prepared, *, out_size):
    """x: (N, 3072) -> (N, out_size)."""
    N = x.shape[0]
    h = x.reshape(N, 3, 32 * 32)
    h = conv_leaky_pool(h, prepared["conv1_w"], prepared["conv1_b"],
                        H=32, W=32, KH=3, KW=3)            # (N, 8, 15*15)
    h = conv_leaky_pool(h, prepared["conv2_w"], prepared["conv2_b"],
                        H=15, W=15, KH=5, KW=5)            # (N, 16, 5*5)
    h = h.reshape(N, 16 * 5 * 5)                           # (N, 400)
    out = fc_fused(h, prepared)                            # (N, outp)
    return out[:, :out_size]


# ----------------------------------------------------------------------------
# Pure-JAX reference (sanity check)
# ----------------------------------------------------------------------------
def reference_forward(x, params):
    xr = x.reshape(-1, 3, 32, 32)

    def conv(h, w, b):
        y = jax.lax.conv_general_dilated(
            h, w, (1, 1), "VALID",
            dimension_numbers=("NCHW", "OIHW", "NCHW"),
            precision=jax.lax.Precision.HIGHEST)
        return y + b.reshape(1, -1, 1, 1)

    leaky = lambda z: jnp.where(z > 0, z, 0.01 * z)
    pool = lambda z: jax.lax.reduce_window(
        z, -jnp.inf, jax.lax.max, (1, 1, 2, 2), (1, 1, 2, 2), "VALID")

    h = pool(leaky(conv(xr, params["conv1_w"], params["conv1_b"])))
    h = pool(leaky(conv(h, params["conv2_w"], params["conv2_b"])))
    h = h.reshape(-1, 400)
    h = jnp.maximum(h @ params["fc1_w"].T + params["fc1_b"], 0.0)
    h = jnp.maximum(h @ params["fc2_w"].T + params["fc2_b"], 0.0)
    return h @ params["fc3_w"].T + params["fc3_b"]


# ----------------------------------------------------------------------------
# Deterministic parameter init + run
# ----------------------------------------------------------------------------
def init_params(key, out_size):
    ks = jax.random.split(key, 10)

    def w(k, shape, fan_in):
        return jax.random.normal(k, shape, jnp.float32) / jnp.sqrt(fan_in)

    return {
        "conv1_w": w(ks[0], (6, 3, 3, 3), 27),
        "conv1_b": w(ks[1], (6,), 27),
        "conv2_w": w(ks[2], (16, 6, 5, 5), 150),
        "conv2_b": w(ks[3], (16,), 150),
        "fc1_w": w(ks[4], (256, 400), 400),
        "fc1_b": w(ks[5], (256,), 400),
        "fc2_w": w(ks[6], (32, 256), 256),
        "fc2_b": w(ks[7], (32,), 256),
        "fc3_w": w(ks[8], (out_size, 32), 32),
        "fc3_b": w(ks[9], (out_size,), 32),
    }


if __name__ == "__main__":
    out_size = 4
    batch = 2
    key = jax.random.PRNGKey(0)
    kx, kp = jax.random.split(key)
    x = jax.random.normal(kx, (batch, 3 * 32 * 32), jnp.float32)
    params = init_params(kp, out_size)
    prepared = prepare_params(params, out_size)

    fwd = jax.jit(functools.partial(neural_net_forward, out_size=out_size))
    y = jax.block_until_ready(fwd(x, prepared))
    assert y.shape == (batch, out_size), y.shape

    y_ref = jax.block_until_ready(reference_forward(x, params))
    assert jnp.allclose(y, y_ref, rtol=1e-2, atol=1e-2), (y, y_ref)

    print("KERNEL_OK")
</pallas_src>

<mosaic_0001>
module attributes {stable_mosaic.version = 11 : i64} {
  func.func @_conv_leaky_pool_kernel(%arg0: i32, %arg1: memref<1x3x1024xf32, #tpu.memory_space<vmem>>, %arg2: memref<9x8x3xf32, #tpu.memory_space<vmem>>, %arg3: memref<8x1xf32, #tpu.memory_space<vmem>>, %arg4: memref<1x8x225xf32, #tpu.memory_space<vmem>>) attributes {dimension_semantics = [#tpu.dimension_semantics<parallel>], iteration_bounds = array<i64: 2>, scalar_prefetch = 0 : i64, scratch_operands = 0 : i64, tpu.core_type = #tpu.core_type<tc>, window_params = [{transform_indices = @transform_0, window_bounds = array<i64: 1, 3, 1024>}, {pipeline_mode = #tpu.pipeline_mode<synchronous>, transform_indices = @transform_1, window_bounds = array<i64: 9, 8, 3>}, {pipeline_mode = #tpu.pipeline_mode<synchronous>, transform_indices = @transform_2, window_bounds = array<i64: 8, 1>}, {transform_indices = @transform_3, window_bounds = array<i64: 1, 8, 225>}]} {
    %c0 = arith.constant 0 : index
    %c0_0 = arith.constant 0 : index
    %c0_1 = arith.constant 0 : index
    %0 = vector.load %arg1[%c0, %c0_0, %c0_1] : memref<1x3x1024xf32, #tpu.memory_space<vmem>>, vector<1x3x1024xf32>
    %1 = vector.shape_cast %0 : vector<1x3x1024xf32> to vector<3x1024xf32>
    %cst = arith.constant 0.000000e+00 : f32
    %2 = vector.broadcast %cst : f32 to vector<8x958xf32>
    %c0_2 = arith.constant 0 : index
    %c0_3 = arith.constant 0 : index
    %c0_4 = arith.constant 0 : index
    %3 = vector.load %arg2[%c0_2, %c0_3, %c0_4] : memref<9x8x3xf32, #tpu.memory_space<vmem>>, vector<1x8x3xf32>
    %4 = vector.shape_cast %3 : vector<1x8x3xf32> to vector<8x3xf32>
    %5 = vector.extract_strided_slice %1 {offsets = [0, 0], sizes = [3, 958], strides = [1, 1]} : vector<3x1024xf32> to vector<3x958xf32>
    %cst_5 = arith.constant dense<0.000000e+00> : vector<8x958xf32>
    %6 = tpu.matmul %4, %5, %cst_5 {dimension_numbers = #tpu.dot_dimension_numbers<[1], [0], [0], [1], [0, 0, 1, 1], [], []>} : vector<8x3xf32>, vector<3x958xf32>, vector<8x958xf32> -> vector<8x958xf32>
    %7 = arith.addf %2, %6 : vector<8x958xf32>
    %c1 = arith.constant 1 : index
    %c0_6 = arith.constant 0 : index
    %c0_7 = arith.constant 0 : index
    %8 = vector.load %arg2[%c1, %c0_6, %c0_7] : memref<9x8x3xf32, #tpu.memory_space<vmem>>, vector<1x8x3xf32>
    %9 = vector.shape_cast %8 : vector<1x8x3xf32> to vector<8x3xf32>
    %10 = vector.extract_strided_slice %1 {offsets = [0, 1], sizes = [3, 958], strides = [1, 1]} : vector<3x1024xf32> to vector<3x958xf32>
    %cst_8 = arith.constant dense<0.000000e+00> : vector<8x958xf32>
    %11 = tpu.matmul %9, %10, %cst_8 {dimension_numbers = #tpu.dot_dimension_numbers<[1], [0], [0], [1], [0, 0, 1, 1], [], []>} : vector<8x3xf32>, vector<3x958xf32>, vector<8x958xf32> -> vector<8x958xf32>
    %12 = arith.addf %7, %11 : vector<8x958xf32>
    %c2 = arith.constant 2 : index
    %c0_9 = arith.constant 0 : index
    %c0_10 = arith.constant 0 : index
    %13 = vector.load %arg2[%c2, %c0_9, %c0_10] : memref<9x8x3xf32, #tpu.memory_space<vmem>>, vector<1x8x3xf32>
    %14 = vector.shape_cast %13 : vector<1x8x3xf32> to vector<8x3xf32>
    %15 = vector.extract_strided_slice %1 {offsets = [0, 2], sizes = [3, 958], strides = [1, 1]} : vector<3x1024xf32> to vector<3x958xf32>
    %cst_11 = arith.constant dense<0.000000e+00> : vector<8x958xf32>
    %16 = tpu.matmul %14, %15, %cst_11 {dimension_numbers = #tpu.dot_dimension_numbers<[1], [0], [0], [1], [0, 0, 1, 1], [], []>} : vector<8x3xf32>, vector<3x958xf32>, vector<8x958xf32> -> vector<8x958xf32>
    %17 = arith.addf %12, %16 : vector<8x958xf32>
    %c3 = arith.constant 3 : index
    %c0_12 = arith.constant 0 : index
    %c0_13 = arith.constant 0 : index
    %18 = vector.load %arg2[%c3, %c0_12, %c0_13] : memref<9x8x3xf32, #tpu.memory_space<vmem>>, vector<1x8x3xf32>
    %19 = vector.shape_cast %18 : vector<1x8x3xf32> to vector<8x3xf32>
    %20 = vector.extract_strided_slice %1 {offsets = [0, 32], sizes = [3, 958], strides = [1, 1]} : vector<3x1024xf32> to vector<3x958xf32>
    %cst_14 = arith.constant dense<0.000000e+00> : vector<8x958xf32>
    %21 = tpu.matmul %19, %20, %cst_14 {dimension_numbers = #tpu.dot_dimension_numbers<[1], [0], [0], [1], [0, 0, 1, 1], [], []>} : vector<8x3xf32>, vector<3x958xf32>, vector<8x958xf32> -> vector<8x958xf32>
    %22 = arith.addf %17, %21 : vector<8x958xf32>
    %c4 = arith.constant 4 : index
    %c0_15 = arith.constant 0 : index
    %c0_16 = arith.constant 0 : index
    %23 = vector.load %arg2[%c4, %c0_15, %c0_16] : memref<9x8x3xf32, #tpu.memory_space<vmem>>, vector<1x8x3xf32>
    %24 = vector.shape_cast %23 : vector<1x8x3xf32> to vector<8x3xf32>
    %25 = vector.extract_strided_slice %1 {offsets = [0, 33], sizes = [3, 958], strides = [1, 1]} : vector<3x1024xf32> to vector<3x958xf32>
    %cst_17 = arith.constant dense<0.000000e+00> : vector<8x958xf32>
    %26 = tpu.matmul %24, %25, %cst_17 {dimension_numbers = #tpu.dot_dimension_numbers<[1], [0], [0], [1], [0, 0, 1, 1], [], []>} : vector<8x3xf32>, vector<3x958xf32>, vector<8x958xf32> -> vector<8x958xf32>
    %27 = arith.addf %22, %26 : vector<8x958xf32>
    %c5 = arith.constant 5 : index
    %c0_18 = arith.constant 0 : index
    %c0_19 = arith.constant 0 : index
    %28 = vector.load %arg2[%c5, %c0_18, %c0_19] : memref<9x8x3xf32, #tpu.memory_space<vmem>>, vector<1x8x3xf32>
    %29 = vector.shape_cast %28 : vector<1x8x3xf32> to vector<8x3xf32>
    %30 = vector.extract_strided_slice %1 {offsets = [0, 34], sizes = [3, 958], strides = [1, 1]} : vector<3x1024xf32> to vector<3x958xf32>
    %cst_20 = arith.constant dense<0.000000e+00> : vector<8x958xf32>
    %31 = tpu.matmul %29, %30, %cst_20 {dimension_numbers = #tpu.dot_dimension_numbers<[1], [0], [0], [1], [0, 0, 1, 1], [], []>} : vector<8x3xf32>, vector<3x958xf32>, vector<8x958xf32> -> vector<8x958xf32>
    %32 = arith.addf %27, %31 : vector<8x958xf32>
    %c6 = arith.constant 6 : index
    %c0_21 = arith.constant 0 : index
    %c0_22 = arith.constant 0 : index
    %33 = vector.load %arg2[%c6, %c0_21, %c0_22] : memref<9x8x3xf32, #tpu.memory_space<vmem>>, vector<1x8x3xf32>
    %34 = vector.shape_cast %33 : vector<1x8x3xf32> to vector<8x3xf32>
    %35 = vector.extract_strided_slice %1 {offsets = [0, 64], sizes = [3, 958], strides = [1, 1]} : vector<3x1024xf32> to vector<3x958xf32>
    %cst_23 = arith.constant dense<0.000000e+00> : vector<8x958xf32>
    %36 = tpu.matmul %34, %35, %cst_23 {dimension_numbers = #tpu.dot_dimension_numbers<[1], [0], [0], [1], [0, 0, 1, 1], [], []>} : vector<8x3xf32>, vector<3x958xf32>, vector<8x958xf32> -> vector<8x958xf32>
    %37 = arith.addf %32, %36 : vector<8x958xf32>
    %c7 = arith.constant 7 : index
    %c0_24 = arith.constant 0 : index
    %c0_25 = arith.constant 0 : index
    %38 = vector.load %arg2[%c7, %c0_24, %c0_25] : memref<9x8x3xf32, #tpu.memory_space<vmem>>, vector<1x8x3xf32>
    %39 = vector.shape_cast %38 : vector<1x8x3xf32> to vector<8x3xf32>
    %40 = vector.extract_strided_slice %1 {offsets = [0, 65], sizes = [3, 958], strides = [1, 1]} : vector<3x1024xf32> to vector<3x958xf32>
    %cst_26 = arith.constant dense<0.000000e+00> : vector<8x958xf32>
    %41 = tpu.matmul %39, %40, %cst_26 {dimension_numbers = #tpu.dot_dimension_numbers<[1], [0], [0], [1], [0, 0, 1, 1], [], []>} : vector<8x3xf32>, vector<3x958xf32>, vector<8x958xf32> -> vector<8x958xf32>
    %42 = arith.addf %37, %41 : vector<8x958xf32>
    %c8 = arith.constant 8 : index
    %c0_27 = arith.constant 0 : index
    %c0_28 = arith.constant 0 : index
    %43 = vector.load %arg2[%c8, %c0_27, %c0_28] : memref<9x8x3xf32, #tpu.memory_space<vmem>>, vector<1x8x3xf32>
    %44 = vector.shape_cast %43 : vector<1x8x3xf32> to vector<8x3xf32>
    %45 = vector.extract_strided_slice %1 {offsets = [0, 66], sizes = [3, 958], strides = [1, 1]} : vector<3x1024xf32> to vector<3x958xf32>
    %cst_29 = arith.constant dense<0.000000e+00> : vector<8x958xf32>
    %46 = tpu.matmul %44, %45, %cst_29 {dimension_numbers = #tpu.dot_dimension_numbers<[1], [0], [0], [1], [0, 0, 1, 1], [], []>} : vector<8x3xf32>, vector<3x958xf32>, vector<8x958xf32> -> vector<8x958xf32>
    %47 = arith.addf %42, %46 : vector<8x958xf32>
    %c0_30 = arith.constant 0 : index
    %c0_31 = arith.constant 0 : index
    %48 = vector.load %arg3[%c0_30, %c0_31] : memref<8x1xf32, #tpu.memory_space<vmem>>, vector<8x1xf32>
    %49 = vector.broadcast %48 : vector<8x1xf32> to vector<8x958xf32>
    %50 = arith.addf %47, %49 : vector<8x958xf32>
    %cst_32 = arith.constant 0.000000e+00 : f32
    %51 = vector.broadcast %cst_32 : f32 to vector<8x958xf32>
    %52 = arith.cmpf ogt, %50, %51 : vector<8x958xf32>
    %cst_33 = arith.constant 0.00999999977 : f32
    %53 = vector.broadcast %cst_33 : f32 to vector<8x958xf32>
    %54 = arith.mulf %53, %50 : vector<8x958xf32>
    %55 = arith.select %52, %50, %54 : vector<8x958xi1>, vector<8x958xf32>
    %56 = tpu.iota {dimensions = array<i32: 0>} : vector<30x15xi32>
    %57 = tpu.iota {dimensions = array<i32: 1>} : vector<30x15xi32>
    %c2_i32 = arith.constant 2 : i32
    %58 = vector.broadcast %c2_i32 : i32 to vector<30x15xi32>
    %59 = arith.muli %58, %57 : vector<30x15xi32>
    %60 = arith.cmpi eq, %56, %59 : vector<30x15xi32>
    %61 = arith.extui %60 : vector<30x15xi1> to vector<30x15xi32>
    %62 = arith.sitofp %61 : vector<30x15xi32> to vector<30x15xf32>
    %c2_i32_34 = arith.constant 2 : i32
    %63 = vector.broadcast %c2_i32_34 : i32 to vector<30x15xi32>
    %64 = arith.muli %63, %57 : vector<30x15xi32>
    %c1_i32 = arith.constant 1 : i32
    %65 = vector.broadcast %c1_i32 : i32 to vector<30x15xi32>
    %66 = arith.addi %64, %65 : vector<30x15xi32>
    %67 = arith.cmpi eq, %56, %66 : vector<30x15xi32>
    %68 = arith.extui %67 : vector<30x15xi1> to vector<30x15xi32>
    %69 = arith.sitofp %68 : vector<30x15xi32> to vector<30x15xf32>
    %70 = vector.extract_strided_slice %55 {offsets = [0, 0], sizes = [8, 30], strides = [1, 1]} : vector<8x958xf32> to vector<8x30xf32>
    %71 = vector.extract_strided_slice %55 {offsets = [0, 32], sizes = [8, 30], strides = [1, 1]} : vector<8x958xf32> to vector<8x30xf32>
    %72 = arith.maximumf %70, %71 : vector<8x30xf32>
    %cst_35 = arith.constant dense<0.000000e+00> : vector<8x15xf32>
    %73 = tpu.matmul %72, %62, %cst_35 {dimension_numbers = #tpu.dot_dimension_numbers<[1], [0], [0], [1], [0, 0, 1, 1], [], []>} : vector<8x30xf32>, vector<30x15xf32>, vector<8x15xf32> -> vector<8x15xf32>
    %cst_36 = arith.constant dense<0.000000e+00> : vector<8x15xf32>
    %74 = tpu.matmul %72, %69, %cst_36 {dimension_numbers = #tpu.dot_dimension_numbers<[1], [0], [0], [1], [0, 0, 1, 1], [], []>} : vector<8x30xf32>, vector<30x15xf32>, vector<8x15xf32> -> vector<8x15xf32>
    %75 = arith.maximumf %73, %74 : vector<8x15xf32>
    %c0_37 = arith.constant 0 : index
    %c0_38 = arith.constant 0 : index
    %c0_39 = arith.constant 0 : index
    %76 = vector.load %arg4[%c0_37, %c0_38, %c0_39] : memref<1x8x225xf32, #tpu.memory_space<vmem>>, vector<1x8x15xf32>
    %77 = vector.shape_cast %76 : vector<1x8x15xf32> to vector<8x15xf32>
    %78 = vector.shape_cast %75 : vector<8x15xf32> to vector<1x8x15xf32>
    tpu.vector_store %arg4[%c0_37, %c0_38, %c0_39], %78 {strides = array<i32>} : memref<1x8x225xf32, #tpu.memory_space<vmem>>, vector<1x8x15xf32>,
    %79 = vector.extract_strided_slice %55 {offsets = [0, 64], sizes = [8, 30], strides = [1, 1]} : vector<8x958xf32> to vector<8x30xf32>
    %80 = vector.extract_strided_slice %55 {offsets = [0, 96], sizes = [8, 30], strides = [1, 1]} : vector<8x958xf32> to vector<8x30xf32>
    %81 = arith.maximumf %79, %80 : vector<8x30xf32>
    %cst_40 = arith.constant dense<0.000000e+00> : vector<8x15xf32>
    %82 = tpu.matmul %81, %62, %cst_40 {dimension_numbers = #tpu.dot_dimension_numbers<[1], [0], [0], [1], [0, 0, 1, 1], [], []>} : vector<8x30xf32>, vector<30x15xf32>, vector<8x15xf32> -> vector<8x15xf32>
    %cst_41 = arith.constant dense<0.000000e+00> : vector<8x15xf32>
    %83 = tpu.matmul %81, %69, %cst_41 {dimension_numbers = #tpu.dot_dimension_numbers<[1], [0], [0], [1], [0, 0, 1, 1], [], []>} : vector<8x30xf32>, vector<30x15xf32>, vector<8x15xf32> -> vector<8x15xf32>
    %84 = arith.maximumf %82, %83 : vector<8x15xf32>
    %c0_42 = arith.constant 0 : index
    %c0_43 = arith.constant 0 : index
    %c15 = arith.constant 15 : index
    %85 = vector.load %arg4[%c0_42, %c0_43, %c15] : memref<1x8x225xf32, #tpu.memory_space<vmem>>, vector<1x8x15xf32>
    %86 = vector.shape_cast %85 : vector<1x8x15xf32> to vector<8x15xf32>
    %87 = vector.shape_cast %84 : vector<8x15xf32> to vector<1x8x15xf32>
    tpu.vector_store %arg4[%c0_42, %c0_43, %c15], %87 {strides = array<i32>} : memref<1x8x225xf32, #tpu.memory_space<vmem>>, vector<1x8x15xf32>,
    %88 = vector.extract_strided_slice %55 {offsets = [0, 128], sizes = [8, 30], strides = [1, 1]} : vector<8x958xf32> to vector<8x30xf32>
    %89 = vector.extract_strided_slice %55 {offsets = [0, 160], sizes = [8, 30], strides = [1, 1]} : vector<8x958xf32> to vector<8x30xf32>
    %90 = arith.maximumf %88, %89 : vector<8x30xf32>
    %cst_44 = arith.constant dense<0.000000e+00> : vector<8x15xf32>
    %91 = tpu.matmul %90, %62, %cst_44 {dimension_numbers = #tpu.dot_dimension_numbers<[1], [0], [0], [1], [0, 0, 1, 1], [], []>} : vector<8x30xf32>, vector<30x15xf32>, vector<8x15xf32> -> vector<8x15xf32>
    %cst_45 = arith.constant dense<0.000000e+00> : vector<8x15xf32>
    %92 = tpu.matmul %90, %69, %cst_45 {dimension_numbers = #tpu.dot_dimension_numbers<[1], [0], [0], [1], [0, 0, 1, 1], [], []>} : vector<8x30xf32>, vector<30x15xf32>, vector<8x15xf32> -> vector<8x15xf32>
    %93 = arith.maximumf %91, %92 : vector<8x15xf32>
    %c0_46 = arith.constant 0 : index
    %c0_47 = arith.constant 0 : index
    %c30 = arith.constant 30 : index
    %94 = vector.load %arg4[%c0_46, %c0_47, %c30] : memref<1x8x225xf32, #tpu.memory_space<vmem>>, vector<1x8x15xf32>
    %95 = vector.shape_cast %94 : vector<1x8x15xf32> to vector<8x15xf32>
    %96 = vector.shape_cast %93 : vector<8x15xf32> to vector<1x8x15xf32>
    tpu.vector_store %arg4[%c0_46, %c0_47, %c30], %96 {strides = array<i32>} : memref<1x8x225xf32, #tpu.memory_space<vmem>>, vector<1x8x15xf32>,
    %97 = vector.extract_strided_slice %55 {offsets = [0, 192], sizes = [8, 30], strides = [1, 1]} : vector<8x958xf32> to vector<8x30xf32>
    %98 = vector.extract_strided_slice %55 {offsets = [0, 224], sizes = [8, 30], strides = [1, 1]} : vector<8x958xf32> to vector<8x30xf32>
    %99 = arith.maximumf %97, %98 : vector<8x30xf32>
    %cst_48 = arith.constant dense<0.000000e+00> : vector<8x15xf32>
    %100 = tpu.matmul %99, %62, %cst_48 {dimension_numbers = #tpu.dot_dimension_numbers<[1], [0], [0], [1], [0, 0, 1, 1], [], []>} : vector<8x30xf32>, vector<30x15xf32>, vector<8x15xf32> -> vector<8x15xf32>
    %cst_49 = arith.constant dense<0.000000e+00> : vector<8x15xf32>
    %101 = tpu.matmul %99, %69, %cst_49 {dimension_numbers = #tpu.dot_dimension_numbers<[1], [0], [0], [1], [0, 0, 1, 1], [], []>} : vector<8x30xf32>, vector<30x15xf32>, vector<8x15xf32> -> vector<8x15xf32>
    %102 = arith.maximumf %100, %101 : vector<8x15xf32>
    %c0_50 = arith.constant 0 : index
    %c0_51 = arith.constant 0 : index
    %c45 = arith.constant 45 : index
    %103 = vector.load %arg4[%c0_50, %c0_51, %c45] : memref<1x8x225xf32, #tpu.memory_space<vmem>>, vector<1x8x15xf32>
    %104 = vector.shape_cast %103 : vector<1x8x15xf32> to vector<8x15xf32>
    %105 = vector.shape_cast %102 : vector<8x15xf32> to vector<1x8x15xf32>
    tpu.vector_store %arg4[%c0_50, %c0_51, %c45], %105 {strides = array<i32>} : memref<1x8x225xf32, #tpu.memory_space<vmem>>, vector<1x8x15xf32>,
    %106 = vector.extract_strided_slice %55 {offsets = [0, 256], sizes = [8, 30], strides = [1, 1]} : vector<8x958xf32> to vector<8x30xf32>
    %107 = vector.extract_strided_slice %55 {offsets = [0, 288], sizes = [8, 30], strides = [1, 1]} : vector<8x958xf32> to vector<8x30xf32>
    %108 = arith.maximumf %106, %107 : vector<8x30xf32>
    %cst_52 = arith.constant dense<0.000000e+00> : vector<8x15xf32>
    %109 = tpu.matmul %108, %62, %cst_52 {dimension_numbers = #tpu.dot_dimension_numbers<[1], [0], [0], [1], [0, 0, 1, 1], [], []>} : vector<8x30xf32>, vector<30x15xf32>, vector<8x15xf32> -> vector<8x15xf32>
    %cst_53 = arith.constant dense<0.000000e+00> : vector<8x15xf32>
    %110 = tpu.matmul %108, %69, %cst_53 {dimension_numbers = #tpu.dot_dimension_numbers<[1], [0], [0], [1], [0, 0, 1, 1], [], []>} : vector<8x30xf32>, vector<30x15xf32>, vector<8x15xf32> -> vector<8x15xf32>
    %111 = arith.maximumf %109, %110 : vector<8x15xf32>
    %c0_54 = arith.constant 0 : index
    %c0_55 = arith.constant 0 : index
    %c60 = arith.constant 60 : index
    %112 = vector.load %arg4[%c0_54, %c0_55, %c60] : memref<1x8x225xf32, #tpu.memory_space<vmem>>, vector<1x8x15xf32>
    %113 = vector.shape_cast %112 : vector<1x8x15xf32> to vector<8x15xf32>
    %114 = vector.shape_cast %111 : vector<8x15xf32> to vector<1x8x15xf32>
    tpu.vector_store %arg4[%c0_54, %c0_55, %c60], %114 {strides = array<i32>} : memref<1x8x225xf32, #tpu.memory_space<vmem>>, vector<1x8x15xf32>,
    %115 = vector.extract_strided_slice %55 {offsets = [0, 320], sizes = [8, 30], strides = [1, 1]} : vector<8x958xf32> to vector<8x30xf32>
    %116 = vector.extract_strided_slice %55 {offsets = [0, 352], sizes = [8, 30], strides = [1, 1]} : vector<8x958xf32> to vector<8x30xf32>
    %117 = arith.maximumf %115, %116 : vector<8x30xf32>
    %cst_56 = arith.constant dense<0.000000e+00> : vector<8x15xf32>
    %118 = tpu.matmul %117, %62, %cst_56 {dimension_numbers = #tpu.dot_dimension_numbers<[1], [0], [0], [1], [0, 0, 1, 1], [], []>} : vector<8x30xf32>, vector<30x15xf32>, vector<8x15xf32> -> vector<8x15xf32>
    %cst_57 = arith.constant dense<0.000000e+00> : vector<8x15xf32>
    %119 = tpu.matmul %117, %69, %cst_57 {dimension_numbers = #tpu.dot_dimension_numbers<[1], [0], [0], [1], [0, 0, 1, 1], [], []>} : vector<8x30xf32>, vector<30x15xf32>, vector<8x15xf32> -> vector<8x15xf32>
    %120 = arith.maximumf %118, %119 : vector<8x15xf32>
    %c0_58 = arith.constant 0 : index
    %c0_59 = arith.constant 0 : index
    %c75 = arith.constant 75 : index
    %121 = vector.load %arg4[%c0_58, %c0_59, %c75] : memref<1x8x225xf32, #tpu.memory_space<vmem>>, vector<1x8x15xf32>
    %122 = vector.shape_cast %121 : vector<1x8x15xf32> to vector<8x15xf32>
    %123 = vector.shape_cast %120 : vector<8x15xf32> to vector<1x8x15xf32>
    tpu.vector_store %arg4[%c0_58, %c0_59, %c75], %123 {strides = array<i32>} : memref<1x8x225xf32, #tpu.memory_space<vmem>>, vector<1x8x15xf32>,
    %124 = vector.extract_strided_slice %55 {offsets = [0, 384], sizes = [8, 30], strides = [1, 1]} : vector<8x958xf32> to vector<8x30xf32>
    %125 = vector.extract_strided_slice %55 {offsets = [0, 416], sizes = [8, 30], strides = [1, 1]} : vector<8x958xf32> to vector<8x30xf32>
    %126 = arith.maximumf %124, %125 : vector<8x30xf32>
    %cst_60 = arith.constant dense<0.000000e+00> : vector<8x15xf32>
    %127 = tpu.matmul %126, %62, %cst_60 {dimension_numbers = #tpu.dot_dimension_numbers<[1], [0], [0], [1], [0, 0, 1, 1], [], []>} : vector<8x30xf32>, vector<30x15xf32>, vector<8x15xf32> -> vector<8x15xf32>
    %cst_61 = arith.constant dense<0.000000e+00> : vector<8x15xf32>
    %128 = tpu.matmul %126, %69, %cst_61 {dimension_numbers = #tpu.dot_dimension_numbers<[1], [0], [0], [1], [0, 0, 1, 1], [], []>} : vector<8x30xf32>, vector<30x15xf32>, vector<8x15xf32> -> vector<8x15xf32>
    %129 = arith.maximumf %127, %128 : vector<8x15xf32>
    %c0_62 = arith.constant 0 : index
    %c0_63 = arith.constant 0 : index
    %c90 = arith.constant 90 : index
    %130 = vector.load %arg4[%c0_62, %c0_63, %c90] : memref<1x8x225xf32, #tpu.memory_space<vmem>>, vector<1x8x15xf32>
    %131 = vector.shape_cast %130 : vector<1x8x15xf32> to vector<8x15xf32>
    %132 = vector.shape_cast %129 : vector<8x15xf32> to vector<1x8x15xf32>
    tpu.vector_store %arg4[%c0_62, %c0_63, %c90], %132 {strides = array<i32>} : memref<1x8x225xf32, #tpu.memory_space<vmem>>, vector<1x8x15xf32>,
    %133 = vector.extract_strided_slice %55 {offsets = [0, 448], sizes = [8, 30], strides = [1, 1]} : vector<8x958xf32> to vector<8x30xf32>
    %134 = vector.extract_strided_slice %55 {offsets = [0, 480], sizes = [8, 30], strides = [1, 1]} : vector<8x958xf32> to vector<8x30xf32>
    %135 = arith.maximumf %133, %134 : vector<8x30xf32>
    %cst_64 = arith.constant dense<0.000000e+00> : vector<8x15xf32>
    %136 = tpu.matmul %135, %62, %cst_64 {dimension_numbers = #tpu.dot_dimension_numbers<[1], [0], [0], [1], [0, 0, 1, 1], [], []>} : vector<8x30xf32>, vector<30x15xf32>, vector<8x15xf32> -> vector<8x15xf32>
    %cst_65 = arith.constant dense<0.000000e+00> : vector<8x15xf32>
    %137 = tpu.matmul %135, %69, %cst_65 {dimension_numbers = #tpu.dot_dimension_numbers<[1], [0], [0], [1], [0, 0, 1, 1], [], []>} : vector<8x30xf32>, vector<30x15xf32>, vector<8x15xf32> -> vector<8x15xf32>
    %138 = arith.maximumf %136, %137 : vector<8x15xf32>
    %c0_66 = arith.constant 0 : index
    %c0_67 = arith.constant 0 : index
    %c105 = arith.constant 105 : index
    %139 = vector.load %arg4[%c0_66, %c0_67, %c105] : memref<1x8x225xf32, #tpu.memory_space<vmem>>, vector<1x8x15xf32>
    %140 = vector.shape_cast %139 : vector<1x8x15xf32> to vector<8x15xf32>
    %141 = vector.shape_cast %138 : vector<8x15xf32> to vector<1x8x15xf32>
    tpu.vector_store %arg4[%c0_66, %c0_67, %c105], %141 {strides = array<i32>} : memref<1x8x225xf32, #tpu.memory_space<vmem>>, vector<1x8x15xf32>,
    %142 = vector.extract_strided_slice %55 {offsets = [0, 512], sizes = [8, 30], strides = [1, 1]} : vector<8x958xf32> to vector<8x30xf32>
    %143 = vector.extract_strided_slice %55 {offsets = [0, 544], sizes = [8, 30], strides = [1, 1]} : vector<8x958xf32> to vector<8x30xf32>
    %144 = arith.maximumf %142, %143 : vector<8x30xf32>
    %cst_68 = arith.constant dense<0.000000e+00> : vector<8x15xf32>
    %145 = tpu.matmul %144, %62, %cst_68 {dimension_numbers = #tpu.dot_dimension_numbers<[1], [0], [0], [1], [0, 0, 1, 1], [], []>} : vector<8x30xf32>, vector<30x15xf32>, vector<8x15xf32> -> vector<8x15xf32>
    %cst_69 = arith.constant dense<0.000000e+00> : vector<8x15xf32>
    %146 = tpu.matmul %144, %69, %cst_69 {dimension_numbers = #tpu.dot_dimension_numbers<[1], [0], [0], [1], [0, 0, 1, 1], [], []>} : vector<8x30xf32>, vector<30x15xf32>, vector<8x15xf32> -> vector<8x15xf32>
    %147 = arith.maximumf %145, %146 : vector<8x15xf32>
    %c0_70 = arith.constant 0 : index
    %c0_71 = arith.constant 0 : index
    %c120 = arith.constant 120 : index
    %148 = vector.load %arg4[%c0_70, %c0_71, %c120] : memref<1x8x225xf32, #tpu.memory_space<vmem>>, vector<1x8x15xf32>
    %149 = vector.shape_cast %148 : vector<1x8x15xf32> to vector<8x15xf32>
    %150 = vector.shape_cast %147 : vector<8x15xf32> to vector<1x8x15xf32>
    tpu.vector_store %arg4[%c0_70, %c0_71, %c120], %150 {strides = array<i32>} : memref<1x8x225xf32, #tpu.memory_space<vmem>>, vector<1x8x15xf32>,
    %151 = vector.extract_strided_slice %55 {offsets = [0, 576], sizes = [8, 30], strides = [1, 1]} : vector<8x958xf32> to vector<8x30xf32>
    %152 = vector.extract_strided_slice %55 {offsets = [0, 608], sizes = [8, 30], strides = [1, 1]} : vector<8x958xf32> to vector<8x30xf32>
    %153 = arith.maximumf %151, %152 : vector<8x30xf32>
    %cst_72 = arith.constant dense<0.000000e+00> : vector<8x15xf32>
    %154 = tpu.matmul %153, %62, %cst_72 {dimension_numbers = #tpu.dot_dimension_numbers<[1], [0], [0], [1], [0, 0, 1, 1], [], []>} : vector<8x30xf32>, vector<30x15xf32>, vector<8x15xf32> -> vector<8x15xf32>
    %cst_73 = arith.constant dense<0.000000e+00> : vector<8x15xf32>
    %155 = tpu.matmul %153, %69, %cst_73 {dimension_numbers = #tpu.dot_dimension_numbers<[1], [0], [0], [1], [0, 0, 1, 1], [], []>} : vector<8x30xf32>, vector<30x15xf32>, vector<8x15xf32> -> vector<8x15xf32>
    %156 = arith.maximumf %154, %155 : vector<8x15xf32>
    %c0_74 = arith.constant 0 : index
    %c0_75 = arith.constant 0 : index
    %c135 = arith.constant 135 : index
    %157 = vector.load %arg4[%c0_74, %c0_75, %c135] : memref<1x8x225xf32, #tpu.memory_space<vmem>>, vector<1x8x15xf32>
    %158 = vector.shape_cast %157 : vector<1x8x15xf32> to vector<8x15xf32>
    %159 = vector.shape_cast %156 : vector<8x15xf32> to vector<1x8x15xf32>
    tpu.vector_store %arg4[%c0_74, %c0_75, %c135], %159 {strides = array<i32>} : memref<1x8x225xf32, #tpu.memory_space<vmem>>, vector<1x8x15xf32>,
    %160 = vector.extract_strided_slice %55 {offsets = [0, 640], sizes = [8, 30], strides = [1, 1]} : vector<8x958xf32> to vector<8x30xf32>
    %161 = vector.extract_strided_slice %55 {offsets = [0, 672], sizes = [8, 30], strides = [1, 1]} : vector<8x958xf32> to vector<8x30xf32>
    %162 = arith.maximumf %160, %161 : vector<8x30xf32>
    %cst_76 = arith.constant dense<0.000000e+00> : vector<8x15xf32>
    %163 = tpu.matmul %162, %62, %cst_76 {dimension_numbers = #tpu.dot_dimension_numbers<[1], [0], [0], [1], [0, 0, 1, 1], [], []>} : vector<8x30xf32>, vector<30x15xf32>, vector<8x15xf32> -> vector<8x15xf32>
    %cst_77 = arith.constant dense<0.000000e+00> : vector<8x15xf32>
    %164 = tpu.matmul %162, %69, %cst_77 {dimension_numbers = #tpu.dot_dimension_numbers<[1], [0], [0], [1], [0, 0, 1, 1], [], []>} : vector<8x30xf32>, vector<30x15xf32>, vector<8x15xf32> -> vector<8x15xf32>
    %165 = arith.maximumf %163, %164 : vector<8x15xf32>
    %c0_78 = arith.constant 0 : index
    %c0_79 = arith.constant 0 : index
    %c150 = arith.constant 150 : index
    %166 = vector.load %arg4[%c0_78, %c0_79, %c150] : memref<1x8x225xf32, #tpu.memory_space<vmem>>, vector<1x8x15xf32>
    %167 = vector.shape_cast %166 : vector<1x8x15xf32> to vector<8x15xf32>
    %168 = vector.shape_cast %165 : vector<8x15xf32> to vector<1x8x15xf32>
    tpu.vector_store %arg4[%c0_78, %c0_79, %c150], %168 {strides = array<i32>} : memref<1x8x225xf32, #tpu.memory_space<vmem>>, vector<1x8x15xf32>,
    %169 = vector.extract_strided_slice %55 {offsets = [0, 704], sizes = [8, 30], strides = [1, 1]} : vector<8x958xf32> to vector<8x30xf32>
    %170 = vector.extract_strided_slice %55 {offsets = [0, 736], sizes = [8, 30], strides = [1, 1]} : vector<8x958xf32> to vector<8x30xf32>
    %171 = arith.maximumf %169, %170 : vector<8x30xf32>
    %cst_80 = arith.constant dense<0.000000e+00> : vector<8x15xf32>
    %172 = tpu.matmul %171, %62, %cst_80 {dimension_numbers = #tpu.dot_dimension_numbers<[1], [0], [0], [1], [0, 0, 1, 1], [], []>} : vector<8x30xf32>, vector<30x15xf32>, vector<8x15xf32> -> vector<8x15xf32>
    %cst_81 = arith.constant dense<0.000000e+00> : vector<8x15xf32>
    %173 = tpu.matmul %171, %69, %cst_81 {dimension_numbers = #tpu.dot_dimension_numbers<[1], [0], [0], [1], [0, 0, 1, 1], [], []>} : vector<8x30xf32>, vector<30x15xf32>, vector<8x15xf32> -> vector<8x15xf32>
    %174 = arith.maximumf %172, %173 : vector<8x15xf32>
    %c0_82 = arith.constant 0 : index
    %c0_83 = arith.constant 0 : index
    %c165 = arith.constant 165 : index
    %175 = vector.load %arg4[%c0_82, %c0_83, %c165] : memref<1x8x225xf32, #tpu.memory_space<vmem>>, vector<1x8x15xf32>
    %176 = vector.shape_cast %175 : vector<1x8x15xf32> to vector<8x15xf32>
    %177 = vector.shape_cast %174 : vector<8x15xf32> to vector<1x8x15xf32>
    tpu.vector_store %arg4[%c0_82, %c0_83, %c165], %177 {strides = array<i32>} : memref<1x8x225xf32, #tpu.memory_space<vmem>>, vector<1x8x15xf32>,
    %178 = vector.extract_strided_slice %55 {offsets = [0, 768], sizes = [8, 30], strides = [1, 1]} : vector<8x958xf32> to vector<8x30xf32>
    %179 = vector.extract_strided_slice %55 {offsets = [0, 800], sizes = [8, 30], strides = [1, 1]} : vector<8x958xf32> to vector<8x30xf32>
    %180 = arith.maximumf %178, %179 : vector<8x30xf32>
    %cst_84 = arith.constant dense<0.000000e+00> : vector<8x15xf32>
    %181 = tpu.matmul %180, %62, %cst_84 {dimension_numbers = #tpu.dot_dimension_numbers<[1], [0], [0], [1], [0, 0, 1, 1], [], []>} : vector<8x30xf32>, vector<30x15xf32>, vector<8x15xf32> -> vector<8x15xf32>
    %cst_85 = arith.constant dense<0.000000e+00> : vector<8x15xf32>
    %182 = tpu.matmul %180, %69, %cst_85 {dimension_numbers = #tpu.dot_dimension_numbers<[1], [0], [0], [1], [0, 0, 1, 1], [], []>} : vector<8x30xf32>, vector<30x15xf32>, vector<8x15xf32> -> vector<8x15xf32>
    %183 = arith.maximumf %181, %182 : vector<8x15xf32>
    %c0_86 = arith.constant 0 : index
    %c0_87 = arith.constant 0 : index
    %c180 = arith.constant 180 : index
    %184 = vector.load %arg4[%c0_86, %c0_87, %c180] : memref<1x8x225xf32, #tpu.memory_space<vmem>>, vector<1x8x15xf32>
    %185 = vector.shape_cast %184 : vector<1x8x15xf32> to vector<8x15xf32>
    %186 = vector.shape_cast %183 : vector<8x15xf32> to vector<1x8x15xf32>
    tpu.vector_store %arg4[%c0_86, %c0_87, %c180], %186 {strides = array<i32>} : memref<1x8x225xf32, #tpu.memory_space<vmem>>, vector<1x8x15xf32>,
    %187 = vector.extract_strided_slice %55 {offsets = [0, 832], sizes = [8, 30], strides = [1, 1]} : vector<8x958xf32> to vector<8x30xf32>
    %188 = vector.extract_strided_slice %55 {offsets = [0, 864], sizes = [8, 30], strides = [1, 1]} : vector<8x958xf32> to vector<8x30xf32>
    %189 = arith.maximumf %187, %188 : vector<8x30xf32>
    %cst_88 = arith.constant dense<0.000000e+00> : vector<8x15xf32>
    %190 = tpu.matmul %189, %62, %cst_88 {dimension_numbers = #tpu.dot_dimension_numbers<[1], [0], [0], [1], [0, 0, 1, 1], [], []>} : vector<8x30xf32>, vector<30x15xf32>, vector<8x15xf32> -> vector<8x15xf32>
    %cst_89 = arith.constant dense<0.000000e+00> : vector<8x15xf32>
    %191 = tpu.matmul %189, %69, %cst_89 {dimension_numbers = #tpu.dot_dimension_numbers<[1], [0], [0], [1], [0, 0, 1, 1], [], []>} : vector<8x30xf32>, vector<30x15xf32>, vector<8x15xf32> -> vector<8x15xf32>
    %192 = arith.maximumf %190, %191 : vector<8x15xf32>
    %c0_90 = arith.constant 0 : index
    %c0_91 = arith.constant 0 : index
    %c195 = arith.constant 195 : index
    %193 = vector.load %arg4[%c0_90, %c0_91, %c195] : memref<1x8x225xf32, #tpu.memory_space<vmem>>, vector<1x8x15xf32>
    %194 = vector.shape_cast %193 : vector<1x8x15xf32> to vector<8x15xf32>
    %195 = vector.shape_cast %192 : vector<8x15xf32> to vector<1x8x15xf32>
    tpu.vector_store %arg4[%c0_90, %c0_91, %c195], %195 {strides = array<i32>} : memref<1x8x225xf32, #tpu.memory_space<vmem>>, vector<1x8x15xf32>,
    %196 = vector.extract_strided_slice %55 {offsets = [0, 896], sizes = [8, 30], strides = [1, 1]} : vector<8x958xf32> to vector<8x30xf32>
    %197 = vector.extract_strided_slice %55 {offsets = [0, 928], sizes = [8, 30], strides = [1, 1]} : vector<8x958xf32> to vector<8x30xf32>
    %198 = arith.maximumf %196, %197 : vector<8x30xf32>
    %cst_92 = arith.constant dense<0.000000e+00> : vector<8x15xf32>
    %199 = tpu.matmul %198, %62, %cst_92 {dimension_numbers = #tpu.dot_dimension_numbers<[1], [0], [0], [1], [0, 0, 1, 1], [], []>} : vector<8x30xf32>, vector<30x15xf32>, vector<8x15xf32> -> vector<8x15xf32>
    %cst_93 = arith.constant dense<0.000000e+00> : vector<8x15xf32>
    %200 = tpu.matmul %198, %69, %cst_93 {dimension_numbers = #tpu.dot_dimension_numbers<[1], [0], [0], [1], [0, 0, 1, 1], [], []>} : vector<8x30xf32>, vector<30x15xf32>, vector<8x15xf32> -> vector<8x15xf32>
    %201 = arith.maximumf %199, %200 : vector<8x15xf32>
    %c0_94 = arith.constant 0 : index
    %c0_95 = arith.constant 0 : index
    %c210 = arith.constant 210 : index
    %202 = vector.load %arg4[%c0_94, %c0_95, %c210] : memref<1x8x225xf32, #tpu.memory_space<vmem>>, vector<1x8x15xf32>
    %203 = vector.shape_cast %202 : vector<1x8x15xf32> to vector<8x15xf32>
    %204 = vector.shape_cast %201 : vector<8x15xf32> to vector<1x8x15xf32>
    tpu.vector_store %arg4[%c0_94, %c0_95, %c210], %204 {strides = array<i32>} : memref<1x8x225xf32, #tpu.memory_space<vmem>>, vector<1x8x15xf32>,
    return
  }
  func.func @transform_0(%arg0: i32) -> (i32, i32, i32) {
    %c0_i32 = arith.constant 0 : i32
    %c0_i32_0 = arith.constant 0 : i32
    %c0_i32_1 = arith.constant 0 : i32
    return %arg0, %c0_i32, %c0_i32_0 : i32, i32, i32
  }
  func.func @transform_1(%arg0: i32) -> (i32, i32, i32) {
    %c0_i32 = arith.constant 0 : i32
    %c0_i32_0 = arith.constant 0 : i32
    %c0_i32_1 = arith.constant 0 : i32
    %c0_i32_2 = arith.constant 0 : i32
    return %c0_i32, %c0_i32_0, %c0_i32_1 : i32, i32, i32
  }
  func.func @transform_2(%arg0: i32) -> (i32, i32) {
    %c0_i32 = arith.constant 0 : i32
    %c0_i32_0 = arith.constant 0 : i32
    %c0_i32_1 = arith.constant 0 : i32
    return %c0_i32, %c0_i32_0 : i32, i32
  }
  func.func @transform_3(%arg0: i32) -> (i32, i32, i32) {
    %c0_i32 = arith.constant 0 : i32
    %c0_i32_0 = arith.constant 0 : i32
    %c0_i32_1 = arith.constant 0 : i32
    return %arg0, %c0_i32, %c0_i32_0 : i32, i32, i32
  }
}

module attributes {stable_mosaic.version = 11 : i64} {
  func.func @_conv_leaky_pool_kernel(%arg0: i32, %arg1: memref<1x8x225xf32, #tpu.memory_space<vmem>>, %arg2: memref<25x16x8xf32, #tpu.memory_space<vmem>>, %arg3: memref<16x1xf32, #tpu.memory_space<vmem>>, %arg4: memref<1x16x25xf32, #tpu.memory_space<vmem>>) attributes {dimension_semantics = [#tpu.dimension_semantics<parallel>], iteration_bounds = array<i64: 2>, scalar_prefetch = 0 : i64, scratch_operands = 0 : i64, tpu.core_type = #tpu.core_type<tc>, window_params = [{transform_indices = @transform_0, window_bounds = array<i64: 1, 8, 225>}, {pipeline_mode = #tpu.pipeline_mode<synchronous>, transform_indices = @transform_1, window_bounds = array<i64: 25, 16, 8>}, {pipeline_mode = #tpu.pipeline_mode<synchronous>, transform_indices = @transform_2, window_bounds = array<i64: 16, 1>}, {transform_indices = @transform_3, window_bounds = array<i64: 1, 16, 25>}]} {
    %c0 = arith.constant 0 : index
    %c0_0 = arith.constant 0 : index
    %c0_1 = arith.constant 0 : index
    %0 = vector.load %arg1[%c0, %c0_0, %c0_1] : memref<1x8x225xf32, #tpu.memory_space<vmem>>, vector<1x8x225xf32>
    %1 = vector.shape_cast %0 : vector<1x8x225xf32> to vector<8x225xf32>
    %cst = arith.constant 0.000000e+00 : f32
    %2 = vector.broadcast %cst : f32 to vector<16x161xf32>
    %c0_2 = arith.constant 0 : index
    %c0_3 = arith.constant 0 : index
    %c0_4 = arith.constant 0 : index
    %3 = vector.load %arg2[%c0_2, %c0_3, %c0_4] : memref<25x16x8xf32, #tpu.memory_space<vmem>>, vector<1x16x8xf32>
    %4 = vector.shape_cast %3 : vector<1x16x8xf32> to vector<16x8xf32>
    %5 = vector.extract_strided_slice %1 {offsets = [0, 0], sizes = [8, 161], strides = [1, 1]} : vector<8x225xf32> to vector<8x161xf32>
    %cst_5 = arith.constant dense<0.000000e+00> : vector<16x161xf32>
    %6 = tpu.matmul %4, %5, %cst_5 {dimension_numbers = #tpu.dot_dimension_numbers<[1], [0], [0], [1], [0, 0, 1, 1], [], []>} : vector<16x8xf32>, vector<8x161xf32>, vector<16x161xf32> -> vector<16x161xf32>
    %7 = arith.addf %2, %6 : vector<16x161xf32>
    %c1 = arith.constant 1 : index
    %c0_6 = arith.constant 0 : index
    %c0_7 = arith.constant 0 : index
    %8 = vector.load %arg2[%c1, %c0_6, %c0_7] : memref<25x16x8xf32, #tpu.memory_space<vmem>>, vector<1x16x8xf32>
    %9 = vector.shape_cast %8 : vector<1x16x8xf32> to vector<16x8xf32>
    %10 = vector.extract_strided_slice %1 {offsets = [0, 1], sizes = [8, 161], strides = [1, 1]} : vector<8x225xf32> to vector<8x161xf32>
    %cst_8 = arith.constant dense<0.000000e+00> : vector<16x161xf32>
    %11 = tpu.matmul %9, %10, %cst_8 {dimension_numbers = #tpu.dot_dimension_numbers<[1], [0], [0], [1], [0, 0, 1, 1], [], []>} : vector<16x8xf32>, vector<8x161xf32>, vector<16x161xf32> -> vector<16x161xf32>
    %12 = arith.addf %7, %11 : vector<16x161xf32>
    %c2 = arith.constant 2 : index
    %c0_9 = arith.constant 0 : index
    %c0_10 = arith.constant 0 : index
    %13 = vector.load %arg2[%c2, %c0_9, %c0_10] : memref<25x16x8xf32, #tpu.memory_space<vmem>>, vector<1x16x8xf32>
    %14 = vector.shape_cast %13 : vector<1x16x8xf32> to vector<16x8xf32>
    %15 = vector.extract_strided_slice %1 {offsets = [0, 2], sizes = [8, 161], strides = [1, 1]} : vector<8x225xf32> to vector<8x161xf32>
    %cst_11 = arith.constant dense<0.000000e+00> : vector<16x161xf32>
    %16 = tpu.matmul %14, %15, %cst_11 {dimension_numbers = #tpu.dot_dimension_numbers<[1], [0], [0], [1], [0, 0, 1, 1], [], []>} : vector<16x8xf32>, vector<8x161xf32>, vector<16x161xf32> -> vector<16x161xf32>
    %17 = arith.addf %12, %16 : vector<16x161xf32>
    %c3 = arith.constant 3 : index
    %c0_12 = arith.constant 0 : index
    %c0_13 = arith.constant 0 : index
    %18 = vector.load %arg2[%c3, %c0_12, %c0_13] : memref<25x16x8xf32, #tpu.memory_space<vmem>>, vector<1x16x8xf32>
    %19 = vector.shape_cast %18 : vector<1x16x8xf32> to vector<16x8xf32>
    %20 = vector.extract_strided_slice %1 {offsets = [0, 3], sizes = [8, 161], strides = [1, 1]} : vector<8x225xf32> to vector<8x161xf32>
    %cst_14 = arith.constant dense<0.000000e+00> : vector<16x161xf32>
    %21 = tpu.matmul %19, %20, %cst_14 {dimension_numbers = #tpu.dot_dimension_numbers<[1], [0], [0], [1], [0, 0, 1, 1], [], []>} : vector<16x8xf32>, vector<8x161xf32>, vector<16x161xf32> -> vector<16x161xf32>
    %22 = arith.addf %17, %21 : vector<16x161xf32>
    %c4 = arith.constant 4 : index
    %c0_15 = arith.constant 0 : index
    %c0_16 = arith.constant 0 : index
    %23 = vector.load %arg2[%c4, %c0_15, %c0_16] : memref<25x16x8xf32, #tpu.memory_space<vmem>>, vector<1x16x8xf32>
    %24 = vector.shape_cast %23 : vector<1x16x8xf32> to vector<16x8xf32>
    %25 = vector.extract_strided_slice %1 {offsets = [0, 4], sizes = [8, 161], strides = [1, 1]} : vector<8x225xf32> to vector<8x161xf32>
    %cst_17 = arith.constant dense<0.000000e+00> : vector<16x161xf32>
    %26 = tpu.matmul %24, %25, %cst_17 {dimension_numbers = #tpu.dot_dimension_numbers<[1], [0], [0], [1], [0, 0, 1, 1], [], []>} : vector<16x8xf32>, vector<8x161xf32>, vector<16x161xf32> -> vector<16x161xf32>
    %27 = arith.addf %22, %26 : vector<16x161xf32>
    %c5 = arith.constant 5 : index
    %c0_18 = arith.constant 0 : index
    %c0_19 = arith.constant 0 : index
    %28 = vector.load %arg2[%c5, %c0_18, %c0_19] : memref<25x16x8xf32, #tpu.memory_space<vmem>>, vector<1x16x8xf32>
    %29 = vector.shape_cast %28 : vector<1x16x8xf32> to vector<16x8xf32>
    %30 = vector.extract_strided_slice %1 {offsets = [0, 15], sizes = [8, 161], strides = [1, 1]} : vector<8x225xf32> to vector<8x161xf32>
    %cst_20 = arith.constant dense<0.000000e+00> : vector<16x161xf32>
    %31 = tpu.matmul %29, %30, %cst_20 {dimension_numbers = #tpu.dot_dimension_numbers<[1], [0], [0], [1], [0, 0, 1, 1], [], []>} : vector<16x8xf32>, vector<8x161xf32>, vector<16x161xf32> -> vector<16x161xf32>
    %32 = arith.addf %27, %31 : vector<16x161xf32>
    %c6 = arith.constant 6 : index
    %c0_21 = arith.constant 0 : index
    %c0_22 = arith.constant 0 : index
    %33 = vector.load %arg2[%c6, %c0_21, %c0_22] : memref<25x16x8xf32, #tpu.memory_space<vmem>>, vector<1x16x8xf32>
    %34 = vector.shape_cast %33 : vector<1x16x8xf32> to vector<16x8xf32>
    %35 = vector.extract_strided_slice %1 {offsets = [0, 16], sizes = [8, 161], strides = [1, 1]} : vector<8x225xf32> to vector<8x161xf32>
    %cst_23 = arith.constant dense<0.000000e+00> : vector<16x161xf32>
    %36 = tpu.matmul %34, %35, %cst_23 {dimension_numbers = #tpu.dot_dimension_numbers<[1], [0], [0], [1], [0, 0, 1, 1], [], []>} : vector<16x8xf32>, vector<8x161xf32>, vector<16x161xf32> -> vector<16x161xf32>
    %37 = arith.addf %32, %36 : vector<16x161xf32>
    %c7 = arith.constant 7 : index
    %c0_24 = arith.constant 0 : index
    %c0_25 = arith.constant 0 : index
    %38 = vector.load %arg2[%c7, %c0_24, %c0_25] : memref<25x16x8xf32, #tpu.memory_space<vmem>>, vector<1x16x8xf32>
    %39 = vector.shape_cast %38 : vector<1x16x8xf32> to vector<16x8xf32>
    %40 = vector.extract_strided_slice %1 {offsets = [0, 17], sizes = [8, 161], strides = [1, 1]} : vector<8x225xf32> to vector<8x161xf32>
    %cst_26 = arith.constant dense<0.000000e+00> : vector<16x161xf32>
    %41 = tpu.matmul %39, %40, %cst_26 {dimension_numbers = #tpu.dot_dimension_numbers<[1], [0], [0], [1], [0, 0, 1, 1], [], []>} : vector<16x8xf32>, vector<8x161xf32>, vector<16x161xf32> -> vector<16x161xf32>
    %42 = arith.addf %37, %41 : vector<16x161xf32>
    %c8 = arith.constant 8 : index
    %c0_27 = arith.constant 0 : index
    %c0_28 = arith.constant 0 : index
    %43 = vector.load %arg2[%c8, %c0_27, %c0_28] : memref<25x16x8xf32, #tpu.memory_space<vmem>>, vector<1x16x8xf32>
    %44 = vector.shape_cast %43 : vector<1x16x8xf32> to vector<16x8xf32>
    %45 = vector.extract_strided_slice %1 {offsets = [0, 18], sizes = [8, 161], strides = [1, 1]} : vector<8x225xf32> to vector<8x161xf32>
    %cst_29 = arith.constant dense<0.000000e+00> : vector<16x161xf32>
    %46 = tpu.matmul %44, %45, %cst_29 {dimension_numbers = #tpu.dot_dimension_numbers<[1], [0], [0], [1], [0, 0, 1, 1], [], []>} : vector<16x8xf32>, vector<8x161xf32>, vector<16x161xf32> -> vector<16x161xf32>
    %47 = arith.addf %42, %46 : vector<16x161xf32>
    %c9 = arith.constant 9 : index
    %c0_30 = arith.constant 0 : index
    %c0_31 = arith.constant 0 : index
    %48 = vector.load %arg2[%c9, %c0_30, %c0_31] : memref<25x16x8xf32, #tpu.memory_space<vmem>>, vector<1x16x8xf32>
    %49 = vector.shape_cast %48 : vector<1x16x8xf32> to vector<16x8xf32>
    %50 = vector.extract_strided_slice %1 {offsets = [0, 19], sizes = [8, 161], strides = [1, 1]} : vector<8x225xf32> to vector<8x161xf32>
    %cst_32 = arith.constant dense<0.000000e+00> : vector<16x161xf32>
    %51 = tpu.matmul %49, %50, %cst_32 {dimension_numbers = #tpu.dot_dimension_numbers<[1], [0], [0], [1], [0, 0, 1, 1], [], []>} : vector<16x8xf32>, vector<8x161xf32>, vector<16x161xf32> -> vector<16x161xf32>
    %52 = arith.addf %47, %51 : vector<16x161xf32>
    %c10 = arith.constant 10 : index
    %c0_33 = arith.constant 0 : index
    %c0_34 = arith.constant 0 : index
    %53 = vector.load %arg2[%c10, %c0_33, %c0_34] : memref<25x16x8xf32, #tpu.memory_space<vmem>>, vector<1x16x8xf32>
    %54 = vector.shape_cast %53 : vector<1x16x8xf32> to vector<16x8xf32>
    %55 = vector.extract_strided_slice %1 {offsets = [0, 30], sizes = [8, 161], strides = [1, 1]} : vector<8x225xf32> to vector<8x161xf32>
    %cst_35 = arith.constant dense<0.000000e+00> : vector<16x161xf32>
    %56 = tpu.matmul %54, %55, %cst_35 {dimension_numbers = #tpu.dot_dimension_numbers<[1], [0], [0], [1], [0, 0, 1, 1], [], []>} : vector<16x8xf32>, vector<8x161xf32>, vector<16x161xf32> -> vector<16x161xf32>
    %57 = arith.addf %52, %56 : vector<16x161xf32>
    %c11 = arith.constant 11 : index
    %c0_36 = arith.constant 0 : index
    %c0_37 = arith.constant 0 : index
    %58 = vector.load %arg2[%c11, %c0_36, %c0_37] : memref<25x16x8xf32, #tpu.memory_space<vmem>>, vector<1x16x8xf32>
    %59 = vector.shape_cast %58 : vector<1x16x8xf32> to vector<16x8xf32>
    %60 = vector.extract_strided_slice %1 {offsets = [0, 31], sizes = [8, 161], strides = [1, 1]} : vector<8x225xf32> to vector<8x161xf32>
    %cst_38 = arith.constant dense<0.000000e+00> : vector<16x161xf32>
    %61 = tpu.matmul %59, %60, %cst_38 {dimension_numbers = #tpu.dot_dimension_numbers<[1], [0], [0], [1], [0, 0, 1, 1], [], []>} : vector<16x8xf32>, vector<8x161xf32>, vector<16x161xf32> -> vector<16x161xf32>
    %62 = arith.addf %57, %61 : vector<16x161xf32>
    %c12 = arith.constant 12 : index
    %c0_39 = arith.constant 0 : index
    %c0_40 = arith.constant 0 : index
    %63 = vector.load %arg2[%c12, %c0_39, %c0_40] : memref<25x16x8xf32, #tpu.memory_space<vmem>>, vector<1x16x8xf32>
    %64 = vector.shape_cast %63 : vector<1x16x8xf32> to vector<16x8xf32>
    %65 = vector.extract_strided_slice %1 {offsets = [0, 32], sizes = [8, 161], strides = [1, 1]} : vector<8x225xf32> to vector<8x161xf32>
    %cst_41 = arith.constant dense<0.000000e+00> : vector<16x161xf32>
    %66 = tpu.matmul %64, %65, %cst_41 {dimension_numbers = #tpu.dot_dimension_numbers<[1], [0], [0], [1], [0, 0, 1, 1], [], []>} : vector<16x8xf32>, vector<8x161xf32>, vector<16x161xf32> -> vector<16x161xf32>
    %67 = arith.addf %62, %66 : vector<16x161xf32>
    %c13 = arith.constant 13 : index
    %c0_42 = arith.constant 0 : index
    %c0_43 = arith.constant 0 : index
    %68 = vector.load %arg2[%c13, %c0_42, %c0_43] : memref<25x16x8xf32, #tpu.memory_space<vmem>>, vector<1x16x8xf32>
    %69 = vector.shape_cast %68 : vector<1x16x8xf32> to vector<16x8xf32>
    %70 = vector.extract_strided_slice %1 {offsets = [0, 33], sizes = [8, 161], strides = [1, 1]} : vector<8x225xf32> to vector<8x161xf32>
    %cst_44 = arith.constant dense<0.000000e+00> : vector<16x161xf32>
    %71 = tpu.matmul %69, %70, %cst_44 {dimension_numbers = #tpu.dot_dimension_numbers<[1], [0], [0], [1], [0, 0, 1, 1], [], []>} : vector<16x8xf32>, vector<8x161xf32>, vector<16x161xf32> -> vector<16x161xf32>
    %72 = arith.addf %67, %71 : vector<16x161xf32>
    %c14 = arith.constant 14 : index
    %c0_45 = arith.constant 0 : index
    %c0_46 = arith.constant 0 : index
    %73 = vector.load %arg2[%c14, %c0_45, %c0_46] : memref<25x16x8xf32, #tpu.memory_space<vmem>>, vector<1x16x8xf32>
    %74 = vector.shape_cast %73 : vector<1x16x8xf32> to vector<16x8xf32>
    %75 = vector.extract_strided_slice %1 {offsets = [0, 34], sizes = [8, 161], strides = [1, 1]} : vector<8x225xf32> to vector<8x161xf32>
    %cst_47 = arith.constant dense<0.000000e+00> : vector<16x161xf32>
    %76 = tpu.matmul %74, %75, %cst_47 {dimension_numbers = #tpu.dot_dimension_numbers<[1], [0], [0], [1], [0, 0, 1, 1], [], []>} : vector<16x8xf32>, vector<8x161xf32>, vector<16x161xf32> -> vector<16x161xf32>
    %77 = arith.addf %72, %76 : vector<16x161xf32>
    %c15 = arith.constant 15 : index
    %c0_48 = arith.constant 0 : index
    %c0_49 = arith.constant 0 : index
    %78 = vector.load %arg2[%c15, %c0_48, %c0_49] : memref<25x16x8xf32, #tpu.memory_space<vmem>>, vector<1x16x8xf32>
    %79 = vector.shape_cast %78 : vector<1x16x8xf32> to vector<16x8xf32>
    %80 = vector.extract_strided_slice %1 {offsets = [0, 45], sizes = [8, 161], strides = [1, 1]} : vector<8x225xf32> to vector<8x161xf32>
    %cst_50 = arith.constant dense<0.000000e+00> : vector<16x161xf32>
    %81 = tpu.matmul %79, %80, %cst_50 {dimension_numbers = #tpu.dot_dimension_numbers<[1], [0], [0], [1], [0, 0, 1, 1], [], []>} : vector<16x8xf32>, vector<8x161xf32>, vector<16x161xf32> -> vector<16x161xf32>
    %82 = arith.addf %77, %81 : vector<16x161xf32>
    %c16 = arith.constant 16 : index
    %c0_51 = arith.constant 0 : index
    %c0_52 = arith.constant 0 : index
    %83 = vector.load %arg2[%c16, %c0_51, %c0_52] : memref<25x16x8xf32, #tpu.memory_space<vmem>>, vector<1x16x8xf32>
    %84 = vector.shape_cast %83 : vector<1x16x8xf32> to vector<16x8xf32>
    %85 = vector.extract_strided_slice %1 {offsets = [0, 46], sizes = [8, 161], strides = [1, 1]} : vector<8x225xf32> to vector<8x161xf32>
    %cst_53 = arith.constant dense<0.000000e+00> : vector<16x161xf32>
    %86 = tpu.matmul %84, %85, %cst_53 {dimension_numbers = #tpu.dot_dimension_numbers<[1], [0], [0], [1], [0, 0, 1, 1], [], []>} : vector<16x8xf32>, vector<8x161xf32>, vector<16x161xf32> -> vector<16x161xf32>
    %87 = arith.addf %82, %86 : vector<16x161xf32>
    %c17 = arith.constant 17 : index
    %c0_54 = arith.constant 0 : index
    %c0_55 = arith.constant 0 : index
    %88 = vector.load %arg2[%c17, %c0_54, %c0_55] : memref<25x16x8xf32, #tpu.memory_space<vmem>>, vector<1x16x8xf32>
    %89 = vector.shape_cast %88 : vector<1x16x8xf32> to vector<16x8xf32>
    %90 = vector.extract_strided_slice %1 {offsets = [0, 47], sizes = [8, 161], strides = [1, 1]} : vector<8x225xf32> to vector<8x161xf32>
    %cst_56 = arith.constant dense<0.000000e+00> : vector<16x161xf32>
    %91 = tpu.matmul %89, %90, %cst_56 {dimension_numbers = #tpu.dot_dimension_numbers<[1], [0], [0], [1], [0, 0, 1, 1], [], []>} : vector<16x8xf32>, vector<8x161xf32>, vector<16x161xf32> -> vector<16x161xf32>
    %92 = arith.addf %87, %91 : vector<16x161xf32>
    %c18 = arith.constant 18 : index
    %c0_57 = arith.constant 0 : index
    %c0_58 = arith.constant 0 : index
    %93 = vector.load %arg2[%c18, %c0_57, %c0_58] : memref<25x16x8xf32, #tpu.memory_space<vmem>>, vector<1x16x8xf32>
    %94 = vector.shape_cast %93 : vector<1x16x8xf32> to vector<16x8xf32>
    %95 = vector.extract_strided_slice %1 {offsets = [0, 48], sizes = [8, 161], strides = [1, 1]} : vector<8x225xf32> to vector<8x161xf32>
    %cst_59 = arith.constant dense<0.000000e+00> : vector<16x161xf32>
    %96 = tpu.matmul %94, %95, %cst_59 {dimension_numbers = #tpu.dot_dimension_numbers<[1], [0], [0], [1], [0, 0, 1, 1], [], []>} : vector<16x8xf32>, vector<8x161xf32>, vector<16x161xf32> -> vector<16x161xf32>
    %97 = arith.addf %92, %96 : vector<16x161xf32>
    %c19 = arith.constant 19 : index
    %c0_60 = arith.constant 0 : index
    %c0_61 = arith.constant 0 : index
    %98 = vector.load %arg2[%c19, %c0_60, %c0_61] : memref<25x16x8xf32, #tpu.memory_space<vmem>>, vector<1x16x8xf32>
    %99 = vector.shape_cast %98 : vector<1x16x8xf32> to vector<16x8xf32>
    %100 = vector.extract_strided_slice %1 {offsets = [0, 49], sizes = [8, 161], strides = [1, 1]} : vector<8x225xf32> to vector<8x161xf32>
    %cst_62 = arith.constant dense<0.000000e+00> : vector<16x161xf32>
    %101 = tpu.matmul %99, %100, %cst_62 {dimension_numbers = #tpu.dot_dimension_numbers<[1], [0], [0], [1], [0, 0, 1, 1], [], []>} : vector<16x8xf32>, vector<8x161xf32>, vector<16x161xf32> -> vector<16x161xf32>
    %102 = arith.addf %97, %101 : vector<16x161xf32>
    %c20 = arith.constant 20 : index
    %c0_63 = arith.constant 0 : index
    %c0_64 = arith.constant 0 : index
    %103 = vector.load %arg2[%c20, %c0_63, %c0_64] : memref<25x16x8xf32, #tpu.memory_space<vmem>>, vector<1x16x8xf32>
    %104 = vector.shape_cast %103 : vector<1x16x8xf32> to vector<16x8xf32>
    %105 = vector.extract_strided_slice %1 {offsets = [0, 60], sizes = [8, 161], strides = [1, 1]} : vector<8x225xf32> to vector<8x161xf32>
    %cst_65 = arith.constant dense<0.000000e+00> : vector<16x161xf32>
    %106 = tpu.matmul %104, %105, %cst_65 {dimension_numbers = #tpu.dot_dimension_numbers<[1], [0], [0], [1], [0, 0, 1, 1], [], []>} : vector<16x8xf32>, vector<8x161xf32>, vector<16x161xf32> -> vector<16x161xf32>
    %107 = arith.addf %102, %106 : vector<16x161xf32>
    %c21 = arith.constant 21 : index
    %c0_66 = arith.constant 0 : index
    %c0_67 = arith.constant 0 : index
    %108 = vector.load %arg2[%c21, %c0_66, %c0_67] : memref<25x16x8xf32, #tpu.memory_space<vmem>>, vector<1x16x8xf32>
    %109 = vector.shape_cast %108 : vector<1x16x8xf32> to vector<16x8xf32>
    %110 = vector.extract_strided_slice %1 {offsets = [0, 61], sizes = [8, 161], strides = [1, 1]} : vector<8x225xf32> to vector<8x161xf32>
    %cst_68 = arith.constant dense<0.000000e+00> : vector<16x161xf32>
    %111 = tpu.matmul %109, %110, %cst_68 {dimension_numbers = #tpu.dot_dimension_numbers<[1], [0], [0], [1], [0, 0, 1, 1], [], []>} : vector<16x8xf32>, vector<8x161xf32>, vector<16x161xf32> -> vector<16x161xf32>
    %112 = arith.addf %107, %111 : vector<16x161xf32>
    %c22 = arith.constant 22 : index
    %c0_69 = arith.constant 0 : index
    %c0_70 = arith.constant 0 : index
    %113 = vector.load %arg2[%c22, %c0_69, %c0_70] : memref<25x16x8xf32, #tpu.memory_space<vmem>>, vector<1x16x8xf32>
    %114 = vector.shape_cast %113 : vector<1x16x8xf32> to vector<16x8xf32>
    %115 = vector.extract_strided_slice %1 {offsets = [0, 62], sizes = [8, 161], strides = [1, 1]} : vector<8x225xf32> to vector<8x161xf32>
    %cst_71 = arith.constant dense<0.000000e+00> : vector<16x161xf32>
    %116 = tpu.matmul %114, %115, %cst_71 {dimension_numbers = #tpu.dot_dimension_numbers<[1], [0], [0], [1], [0, 0, 1, 1], [], []>} : vector<16x8xf32>, vector<8x161xf32>, vector<16x161xf32> -> vector<16x161xf32>
    %117 = arith.addf %112, %116 : vector<16x161xf32>
    %c23 = arith.constant 23 : index
    %c0_72 = arith.constant 0 : index
    %c0_73 = arith.constant 0 : index
    %118 = vector.load %arg2[%c23, %c0_72, %c0_73] : memref<25x16x8xf32, #tpu.memory_space<vmem>>, vector<1x16x8xf32>
    %119 = vector.shape_cast %118 : vector<1x16x8xf32> to vector<16x8xf32>
    %120 = vector.extract_strided_slice %1 {offsets = [0, 63], sizes = [8, 161], strides = [1, 1]} : vector<8x225xf32> to vector<8x161xf32>
    %cst_74 = arith.constant dense<0.000000e+00> : vector<16x161xf32>
    %121 = tpu.matmul %119, %120, %cst_74 {dimension_numbers = #tpu.dot_dimension_numbers<[1], [0], [0], [1], [0, 0, 1, 1], [], []>} : vector<16x8xf32>, vector<8x161xf32>, vector<16x161xf32> -> vector<16x161xf32>
    %122 = arith.addf %117, %121 : vector<16x161xf32>
    %c24 = arith.constant 24 : index
    %c0_75 = arith.constant 0 : index
    %c0_76 = arith.constant 0 : index
    %123 = vector.load %arg2[%c24, %c0_75, %c0_76] : memref<25x16x8xf32, #tpu.memory_space<vmem>>, vector<1x16x8xf32>
    %124 = vector.shape_cast %123 : vector<1x16x8xf32> to vector<16x8xf32>
    %125 = vector.extract_strided_slice %1 {offsets = [0, 64], sizes = [8, 161], strides = [1, 1]} : vector<8x225xf32> to vector<8x161xf32>
    %cst_77 = arith.constant dense<0.000000e+00> : vector<16x161xf32>
    %126 = tpu.matmul %124, %125, %cst_77 {dimension_numbers = #tpu.dot_dimension_numbers<[1], [0], [0], [1], [0, 0, 1, 1], [], []>} : vector<16x8xf32>, vector<8x161xf32>, vector<16x161xf32> -> vector<16x161xf32>
    %127 = arith.addf %122, %126 : vector<16x161xf32>
    %c0_78 = arith.constant 0 : index
    %c0_79 = arith.constant 0 : index
    %128 = vector.load %arg3[%c0_78, %c0_79] : memref<16x1xf32, #tpu.memory_space<vmem>>, vector<16x1xf32>
    %129 = vector.broadcast %128 : vector<16x1xf32> to vector<16x161xf32>
    %130 = arith.addf %127, %129 : vector<16x161xf32>
    %cst_80 = arith.constant 0.000000e+00 : f32
    %131 = vector.broadcast %cst_80 : f32 to vector<16x161xf32>
    %132 = arith.cmpf ogt, %130, %131 : vector<16x161xf32>
    %cst_81 = arith.constant 0.00999999977 : f32
    %133 = vector.broadcast %cst_81 : f32 to vector<16x161xf32>
    %134 = arith.mulf %133, %130 : vector<16x161xf32>
    %135 = arith.select %132, %130, %134 : vector<16x161xi1>, vector<16x161xf32>
    %136 = tpu.iota {dimensions = array<i32: 0>} : vector<10x5xi32>
    %137 = tpu.iota {dimensions = array<i32: 1>} : vector<10x5xi32>
    %c2_i32 = arith.constant 2 : i32
    %138 = vector.broadcast %c2_i32 : i32 to vector<10x5xi32>
    %139 = arith.muli %138, %137 : vector<10x5xi32>
    %140 = arith.cmpi eq, %136, %139 : vector<10x5xi32>
    %141 = arith.extui %140 : vector<10x5xi1> to vector<10x5xi32>
    %142 = arith.sitofp %141 : vector<10x5xi32> to vector<10x5xf32>
    %c2_i32_82 = arith.constant 2 : i32
    %143 = vector.broadcast %c2_i32_82 : i32 to vector<10x5xi32>
    %144 = arith.muli %143, %137 : vector<10x5xi32>
    %c1_i32 = arith.constant 1 : i32
    %145 = vector.broadcast %c1_i32 : i32 to vector<10x5xi32>
    %146 = arith.addi %144, %145 : vector<10x5xi32>
    %147 = arith.cmpi eq, %136, %146 : vector<10x5xi32>
    %148 = arith.extui %147 : vector<10x5xi1> to vector<10x5xi32>
    %149 = arith.sitofp %148 : vector<10x5xi32> to vector<10x5xf32>
    %150 = vector.extract_strided_slice %135 {offsets = [0, 0], sizes = [16, 10], strides = [1, 1]} : vector<16x161xf32> to vector<16x10xf32>
    %151 = vector.extract_strided_slice %135 {offsets = [0, 15], sizes = [16, 10], strides = [1, 1]} : vector<16x161xf32> to vector<16x10xf32>
    %152 = arith.maximumf %150, %151 : vector<16x10xf32>
    %cst_83 = arith.constant dense<0.000000e+00> : vector<16x5xf32>
    %153 = tpu.matmul %152, %142, %cst_83 {dimension_numbers = #tpu.dot_dimension_numbers<[1], [0], [0], [1], [0, 0, 1, 1], [], []>} : vector<16x10xf32>, vector<10x5xf32>, vector<16x5xf32> -> vector<16x5xf32>
    %cst_84 = arith.constant dense<0.000000e+00> : vector<16x5xf32>
    %154 = tpu.matmul %152, %149, %cst_84 {dimension_numbers = #tpu.dot_dimension_numbers<[1], [0], [0], [1], [0, 0, 1, 1], [], []>} : vector<16x10xf32>, vector<10x5xf32>, vector<16x5xf32> -> vector<16x5xf32>
    %155 = arith.maximumf %153, %154 : vector<16x5xf32>
    %c0_85 = arith.constant 0 : index
    %c0_86 = arith.constant 0 : index
    %c0_87 = arith.constant 0 : index
    %156 = vector.load %arg4[%c0_85, %c0_86, %c0_87] : memref<1x16x25xf32, #tpu.memory_space<vmem>>, vector<1x16x5xf32>
    %157 = vector.shape_cast %156 : vector<1x16x5xf32> to vector<16x5xf32>
    %158 = vector.shape_cast %155 : vector<16x5xf32> to vector<1x16x5xf32>
    tpu.vector_store %arg4[%c0_85, %c0_86, %c0_87], %158 {strides = array<i32>} : memref<1x16x25xf32, #tpu.memory_space<vmem>>, vector<1x16x5xf32>,
    %159 = vector.extract_strided_slice %135 {offsets = [0, 30], sizes = [16, 10], strides = [1, 1]} : vector<16x161xf32> to vector<16x10xf32>
    %160 = vector.extract_strided_slice %135 {offsets = [0, 45], sizes = [16, 10], strides = [1, 1]} : vector<16x161xf32> to vector<16x10xf32>
    %161 = arith.maximumf %159, %160 : vector<16x10xf32>
    %cst_88 = arith.constant dense<0.000000e+00> : vector<16x5xf32>
    %162 = tpu.matmul %161, %142, %cst_88 {dimension_numbers = #tpu.dot_dimension_numbers<[1], [0], [0], [1], [0, 0, 1, 1], [], []>} : vector<16x10xf32>, vector<10x5xf32>, vector<16x5xf32> -> vector<16x5xf32>
    %cst_89 = arith.constant dense<0.000000e+00> : vector<16x5xf32>
    %163 = tpu.matmul %161, %149, %cst_89 {dimension_numbers = #tpu.dot_dimension_numbers<[1], [0], [0], [1], [0, 0, 1, 1], [], []>} : vector<16x10xf32>, vector<10x5xf32>, vector<16x5xf32> -> vector<16x5xf32>
    %164 = arith.maximumf %162, %163 : vector<16x5xf32>
    %c0_90 = arith.constant 0 : index
    %c0_91 = arith.constant 0 : index
    %c5_92 = arith.constant 5 : index
    %165 = vector.load %arg4[%c0_90, %c0_91, %c5_92] : memref<1x16x25xf32, #tpu.memory_space<vmem>>, vector<1x16x5xf32>
    %166 = vector.shape_cast %165 : vector<1x16x5xf32> to vector<16x5xf32>
    %167 = vector.shape_cast %164 : vector<16x5xf32> to vector<1x16x5xf32>
    tpu.vector_store %arg4[%c0_90, %c0_91, %c5_92], %167 {strides = array<i32>} : memref<1x16x25xf32, #tpu.memory_space<vmem>>, vector<1x16x5xf32>,
    %168 = vector.extract_strided_slice %135 {offsets = [0, 60], sizes = [16, 10], strides = [1, 1]} : vector<16x161xf32> to vector<16x10xf32>
    %169 = vector.extract_strided_slice %135 {offsets = [0, 75], sizes = [16, 10], strides = [1, 1]} : vector<16x161xf32> to vector<16x10xf32>
    %170 = arith.maximumf %168, %169 : vector<16x10xf32>
    %cst_93 = arith.constant dense<0.000000e+00> : vector<16x5xf32>
    %171 = tpu.matmul %170, %142, %cst_93 {dimension_numbers = #tpu.dot_dimension_numbers<[1], [0], [0], [1], [0, 0, 1, 1], [], []>} : vector<16x10xf32>, vector<10x5xf32>, vector<16x5xf32> -> vector<16x5xf32>
    %cst_94 = arith.constant dense<0.000000e+00> : vector<16x5xf32>
    %172 = tpu.matmul %170, %149, %cst_94 {dimension_numbers = #tpu.dot_dimension_numbers<[1], [0], [0], [1], [0, 0, 1, 1], [], []>} : vector<16x10xf32>, vector<10x5xf32>, vector<16x5xf32> -> vector<16x5xf32>
    %173 = arith.maximumf %171, %172 : vector<16x5xf32>
    %c0_95 = arith.constant 0 : index
    %c0_96 = arith.constant 0 : index
    %c10_97 = arith.constant 10 : index
    %174 = vector.load %arg4[%c0_95, %c0_96, %c10_97] : memref<1x16x25xf32, #tpu.memory_space<vmem>>, vector<1x16x5xf32>
    %175 = vector.shape_cast %174 : vector<1x16x5xf32> to vector<16x5xf32>
    %176 = vector.shape_cast %173 : vector<16x5xf32> to vector<1x16x5xf32>
    tpu.vector_store %arg4[%c0_95, %c0_96, %c10_97], %176 {strides = array<i32>} : memref<1x16x25xf32, #tpu.memory_space<vmem>>, vector<1x16x5xf32>,
    %177 = vector.extract_strided_slice %135 {offsets = [0, 90], sizes = [16, 10], strides = [1, 1]} : vector<16x161xf32> to vector<16x10xf32>
    %178 = vector.extract_strided_slice %135 {offsets = [0, 105], sizes = [16, 10], strides = [1, 1]} : vector<16x161xf32> to vector<16x10xf32>
    %179 = arith.maximumf %177, %178 : vector<16x10xf32>
    %cst_98 = arith.constant dense<0.000000e+00> : vector<16x5xf32>
    %180 = tpu.matmul %179, %142, %cst_98 {dimension_numbers = #tpu.dot_dimension_numbers<[1], [0], [0], [1], [0, 0, 1, 1], [], []>} : vector<16x10xf32>, vector<10x5xf32>, vector<16x5xf32> -> vector<16x5xf32>
    %cst_99 = arith.constant dense<0.000000e+00> : vector<16x5xf32>
    %181 = tpu.matmul %179, %149, %cst_99 {dimension_numbers = #tpu.dot_dimension_numbers<[1], [0], [0], [1], [0, 0, 1, 1], [], []>} : vector<16x10xf32>, vector<10x5xf32>, vector<16x5xf32> -> vector<16x5xf32>
    %182 = arith.maximumf %180, %181 : vector<16x5xf32>
    %c0_100 = arith.constant 0 : index
    %c0_101 = arith.constant 0 : index
    %c15_102 = arith.constant 15 : index
    %183 = vector.load %arg4[%c0_100, %c0_101, %c15_102] : memref<1x16x25xf32, #tpu.memory_space<vmem>>, vector<1x16x5xf32>
    %184 = vector.shape_cast %183 : vector<1x16x5xf32> to vector<16x5xf32>
    %185 = vector.shape_cast %182 : vector<16x5xf32> to vector<1x16x5xf32>
    tpu.vector_store %arg4[%c0_100, %c0_101, %c15_102], %185 {strides = array<i32>} : memref<1x16x25xf32, #tpu.memory_space<vmem>>, vector<1x16x5xf32>,
    %186 = vector.extract_strided_slice %135 {offsets = [0, 120], sizes = [16, 10], strides = [1, 1]} : vector<16x161xf32> to vector<16x10xf32>
    %187 = vector.extract_strided_slice %135 {offsets = [0, 135], sizes = [16, 10], strides = [1, 1]} : vector<16x161xf32> to vector<16x10xf32>
    %188 = arith.maximumf %186, %187 : vector<16x10xf32>
    %cst_103 = arith.constant dense<0.000000e+00> : vector<16x5xf32>
    %189 = tpu.matmul %188, %142, %cst_103 {dimension_numbers = #tpu.dot_dimension_numbers<[1], [0], [0], [1], [0, 0, 1, 1], [], []>} : vector<16x10xf32>, vector<10x5xf32>, vector<16x5xf32> -> vector<16x5xf32>
    %cst_104 = arith.constant dense<0.000000e+00> : vector<16x5xf32>
    %190 = tpu.matmul %188, %149, %cst_104 {dimension_numbers = #tpu.dot_dimension_numbers<[1], [0], [0], [1], [0, 0, 1, 1], [], []>} : vector<16x10xf32>, vector<10x5xf32>, vector<16x5xf32> -> vector<16x5xf32>
    %191 = arith.maximumf %189, %190 : vector<16x5xf32>
    %c0_105 = arith.constant 0 : index
    %c0_106 = arith.constant 0 : index
    %c20_107 = arith.constant 20 : index
    %192 = vector.load %arg4[%c0_105, %c0_106, %c20_107] : memref<1x16x25xf32, #tpu.memory_space<vmem>>, vector<1x16x5xf32>
    %193 = vector.shape_cast %192 : vector<1x16x5xf32> to vector<16x5xf32>
    %194 = vector.shape_cast %191 : vector<16x5xf32> to vector<1x16x5xf32>
    tpu.vector_store %arg4[%c0_105, %c0_106, %c20_107], %194 {strides = array<i32>} : memref<1x16x25xf32, #tpu.memory_space<vmem>>, vector<1x16x5xf32>,
    return
  }
  func.func @transform_0(%arg0: i32) -> (i32, i32, i32) {
    %c0_i32 = arith.constant 0 : i32
    %c0_i32_0 = arith.constant 0 : i32
    %c0_i32_1 = arith.constant 0 : i32
    return %arg0, %c0_i32, %c0_i32_0 : i32, i32, i32
  }
  func.func @transform_1(%arg0: i32) -> (i32, i32, i32) {
    %c0_i32 = arith.constant 0 : i32
    %c0_i32_0 = arith.constant 0 : i32
    %c0_i32_1 = arith.constant 0 : i32
    %c0_i32_2 = arith.constant 0 : i32
    return %c0_i32, %c0_i32_0, %c0_i32_1 : i32, i32, i32
  }
  func.func @transform_2(%arg0: i32) -> (i32, i32) {
    %c0_i32 = arith.constant 0 : i32
    %c0_i32_0 = arith.constant 0 : i32
    %c0_i32_1 = arith.constant 0 : i32
    return %c0_i32, %c0_i32_0 : i32, i32
  }
  func.func @transform_3(%arg0: i32) -> (i32, i32, i32) {
    %c0_i32 = arith.constant 0 : i32
    %c0_i32_0 = arith.constant 0 : i32
    %c0_i32_1 = arith.constant 0 : i32
    return %arg0, %c0_i32, %c0_i32_0 : i32, i32, i32
  }
}

module attributes {stable_mosaic.version = 11 : i64} {
  func.func @_fc_fused_kernel(%arg0: i32, %arg1: memref<2x400xf32, #tpu.memory_space<vmem>>, %arg2: memref<400x256xf32, #tpu.memory_space<vmem>>, %arg3: memref<1x256xf32, #tpu.memory_space<vmem>>, %arg4: memref<256x32xf32, #tpu.memory_space<vmem>>, %arg5: memref<1x32xf32, #tpu.memory_space<vmem>>, %arg6: memref<32x8xf32, #tpu.memory_space<vmem>>, %arg7: memref<1x8xf32, #tpu.memory_space<vmem>>, %arg8: memref<2x8xf32, #tpu.memory_space<vmem>>) attributes {dimension_semantics = [#tpu.dimension_semantics<parallel>], iteration_bounds = array<i64: 1>, scalar_prefetch = 0 : i64, scratch_operands = 0 : i64, tpu.core_type = #tpu.core_type<tc>, window_params = [{transform_indices = @transform_0, window_bounds = array<i64: 2, 400>}, {pipeline_mode = #tpu.pipeline_mode<synchronous>, transform_indices = @transform_1, window_bounds = array<i64: 400, 256>}, {pipeline_mode = #tpu.pipeline_mode<synchronous>, transform_indices = @transform_2, window_bounds = array<i64: 1, 256>}, {pipeline_mode = #tpu.pipeline_mode<synchronous>, transform_indices = @transform_3, window_bounds = array<i64: 256, 32>}, {pipeline_mode = #tpu.pipeline_mode<synchronous>, transform_indices = @transform_4, window_bounds = array<i64: 1, 32>}, {pipeline_mode = #tpu.pipeline_mode<synchronous>, transform_indices = @transform_5, window_bounds = array<i64: 32, 8>}, {pipeline_mode = #tpu.pipeline_mode<synchronous>, transform_indices = @transform_6, window_bounds = array<i64: 1, 8>}, {transform_indices = @transform_7, window_bounds = array<i64: 2, 8>}]} {
    %c0 = arith.constant 0 : index
    %c0_0 = arith.constant 0 : index
    %0 = vector.load %arg1[%c0, %c0_0] : memref<2x400xf32, #tpu.memory_space<vmem>>, vector<2x400xf32>
    %c0_1 = arith.constant 0 : index
    %c0_2 = arith.constant 0 : index
    %1 = vector.load %arg2[%c0_1, %c0_2] : memref<400x256xf32, #tpu.memory_space<vmem>>, vector<400x256xf32>
    %cst = arith.constant dense<0.000000e+00> : vector<2x256xf32>
    %2 = tpu.matmul %0, %1, %cst {dimension_numbers = #tpu.dot_dimension_numbers<[1], [0], [0], [1], [0, 0, 1, 1], [], []>} : vector<2x400xf32>, vector<400x256xf32>, vector<2x256xf32> -> vector<2x256xf32>
    %c0_3 = arith.constant 0 : index
    %c0_4 = arith.constant 0 : index
    %3 = vector.load %arg3[%c0_3, %c0_4] : memref<1x256xf32, #tpu.memory_space<vmem>>, vector<1x256xf32>
    %4 = vector.broadcast %3 : vector<1x256xf32> to vector<2x256xf32>
    %5 = arith.addf %2, %4 : vector<2x256xf32>
    %cst_5 = arith.constant 0.000000e+00 : f32
    %6 = vector.broadcast %cst_5 : f32 to vector<2x256xf32>
    %7 = arith.maximumf %5, %6 : vector<2x256xf32>
    %c0_6 = arith.constant 0 : index
    %c0_7 = arith.constant 0 : index
    %8 = vector.load %arg4[%c0_6, %c0_7] : memref<256x32xf32, #tpu.memory_space<vmem>>, vector<256x32xf32>
    %cst_8 = arith.constant dense<0.000000e+00> : vector<2x32xf32>
    %9 = tpu.matmul %7, %8, %cst_8 {dimension_numbers = #tpu.dot_dimension_numbers<[1], [0], [0], [1], [0, 0, 1, 1], [], []>} : vector<2x256xf32>, vector<256x32xf32>, vector<2x32xf32> -> vector<2x32xf32>
    %c0_9 = arith.constant 0 : index
    %c0_10 = arith.constant 0 : index
    %10 = vector.load %arg5[%c0_9, %c0_10] : memref<1x32xf32, #tpu.memory_space<vmem>>, vector<1x32xf32>
    %11 = vector.broadcast %10 : vector<1x32xf32> to vector<2x32xf32>
    %12 = arith.addf %9, %11 : vector<2x32xf32>
    %cst_11 = arith.constant 0.000000e+00 : f32
    %13 = vector.broadcast %cst_11 : f32 to vector<2x32xf32>
    %14 = arith.maximumf %12, %13 : vector<2x32xf32>
    %c0_12 = arith.constant 0 : index
    %c0_13 = arith.constant 0 : index
    %15 = vector.load %arg6[%c0_12, %c0_13] : memref<32x8xf32, #tpu.memory_space<vmem>>, vector<32x8xf32>
    %cst_14 = arith.constant dense<0.000000e+00> : vector<2x8xf32>
    %16 = tpu.matmul %14, %15, %cst_14 {dimension_numbers = #tpu.dot_dimension_numbers<[1], [0], [0], [1], [0, 0, 1, 1], [], []>} : vector<2x32xf32>, vector<32x8xf32>, vector<2x8xf32> -> vector<2x8xf32>
    %c0_15 = arith.constant 0 : index
    %c0_16 = arith.constant 0 : index
    %17 = vector.load %arg7[%c0_15, %c0_16] : memref<1x8xf32, #tpu.memory_space<vmem>>, vector<1x8xf32>
    %18 = vector.broadcast %17 : vector<1x8xf32> to vector<2x8xf32>
    %19 = arith.addf %16, %18 : vector<2x8xf32>
    %c0_17 = arith.constant 0 : index
    %c0_18 = arith.constant 0 : index
    %20 = vector.load %arg8[%c0_17, %c0_18] : memref<2x8xf32, #tpu.memory_space<vmem>>, vector<2x8xf32>
    tpu.vector_store %arg8[%c0_17, %c0_18], %19 {strides = array<i32>} : memref<2x8xf32, #tpu.memory_space<vmem>>, vector<2x8xf32>,
    return
  }
  func.func @transform_0(%arg0: i32) -> (i32, i32) {
    %c0_i32 = arith.constant 0 : i32
    %c0_i32_0 = arith.constant 0 : i32
    return %arg0, %c0_i32 : i32, i32
  }
  func.func @transform_1(%arg0: i32) -> (i32, i32) {
    %c0_i32 = arith.constant 0 : i32
    %c0_i32_0 = arith.constant 0 : i32
    %c0_i32_1 = arith.constant 0 : i32
    return %c0_i32, %c0_i32_0 : i32, i32
  }
  func.func @transform_2(%arg0: i32) -> (i32, i32) {
    %c0_i32 = arith.constant 0 : i32
    %c0_i32_0 = arith.constant 0 : i32
    %c0_i32_1 = arith.constant 0 : i32
    return %c0_i32, %c0_i32_0 : i32, i32
  }
  func.func @transform_3(%arg0: i32) -> (i32, i32) {
    %c0_i32 = arith.constant 0 : i32
    %c0_i32_0 = arith.constant 0 : i32
    %c0_i32_1 = arith.constant 0 : i32
    return %c0_i32, %c0_i32_0 : i32, i32
  }
  func.func @transform_4(%arg0: i32) -> (i32, i32) {
    %c0_i32 = arith.constant 0 : i32
    %c0_i32_0 = arith.constant 0 : i32
    %c0_i32_1 = arith.constant 0 : i32
    return %c0_i32, %c0_i32_0 : i32, i32
  }
  func.func @transform_5(%arg0: i32) -> (i32, i32) {
    %c0_i32 = arith.constant 0 : i32
    %c0_i32_0 = arith.constant 0 : i32
    %c0_i32_1 = arith.constant 0 : i32
    return %c0_i32, %c0_i32_0 : i32, i32
  }
  func.func @transform_6(%arg0: i32) -> (i32, i32) {
    %c0_i32 = arith.constant 0 : i32
    %c0_i32_0 = arith.constant 0 : i32
    %c0_i32_1 = arith.constant 0 : i32
    return %c0_i32, %c0_i32_0 : i32, i32
  }
  func.func @transform_7(%arg0: i32) -> (i32, i32) {
    %c0_i32 = arith.constant 0 : i32
    %c0_i32_0 = arith.constant 0 : i32
    return %arg0, %c0_i32 : i32, i32
  }
}

</mosaic_0001>

<llo_original>
// kernel: neural_net_forward.5
$region0: #{neural_net_forward.5}
  #allocation0 [shape = 'u32[]', space=smem, size = 0x4, offset = 0x4, fixed_abs, tag = 'smem constant byte address 0x4 - core index']
  #allocation1 [shape = 'u32[72,128]{1,0:T(1,128)}', space=vmem, size = 0x9000, scoped, tag = 'internal scratch']
  %s0 = inlined_call_operand.vmem [shape: f32[2,400], index: 0, kind: input, shape index: {}]
  %s1 = inlined_call_operand.vmem [shape: f32[400,256], index: 1, kind: input, shape index: {}]
  %s2 = inlined_call_operand.vmem [shape: f32[1,256], index: 2, kind: input, shape index: {}]
  %s3 = inlined_call_operand.vmem [shape: f32[256,32], index: 3, kind: input, shape index: {}]
  %s4 = inlined_call_operand.vmem [shape: f32[1,32], index: 4, kind: input, shape index: {}]
  %s5 = inlined_call_operand.vmem [shape: f32[32,8], index: 5, kind: input, shape index: {}]
  %s6 = inlined_call_operand.vmem [shape: f32[1,8], index: 6, kind: input, shape index: {}]
  %s7 = inlined_call_operand.hbm [shape: f32[2,8], index: 7, kind: output, shape index: {}]
  %s8 = sld [smem:[#allocation0]]
  $region38: #{neural_net_forward.5} parent=0
    _
  %s10 = ssub.s32 1, %s8
  %s11 = scalar_select 0, %s10, %s8
  $region1: #{neural_net_forward.5} parent=0
    #allocation2 [shape = 'u8[1024]{0}', space=vmem, size = 0x400, scoped, tag = 'output window, operand 0, single buffered']
    #allocation3 [shape = 's32[1]{0}', space=sflag, size = 0x4, scoped, tag = 'scoped memory for neural_net_forward.5']
    %12 = vsyncpa [#allocation3], 0
    // Predicated region
    $region2: #{neural_net_forward.5} parent=1 // pred_check
      _
    $region3: #{neural_net_forward.5} parent=1 // pred_check_branch
      %14 = sbr.rel (0) target = $region5
    $region4: #{neural_net_forward.5} parent=1 // pred_region
      _
    $region5: #{neural_net_forward.5} parent=1 // pred_fallthru
      _
    // Predicated region
    $region6: #{neural_net_forward.5} parent=1 // pred_check
      _
    $region7: #{neural_net_forward.5} parent=1 // pred_check_branch
      %16 = sbr.rel (0) target = $region9
    $region8: #{neural_net_forward.5} parent=1 // pred_region
      _
    $region9: #{neural_net_forward.5} parent=1 // pred_fallthru
      _
    // Predicated region
    $region10: #{neural_net_forward.5} parent=1 // pred_check
      _
    $region11: #{neural_net_forward.5} parent=1 // pred_check_branch
      %18 = sbr.rel (0) target = $region13
    $region12: #{neural_net_forward.5} parent=1 // pred_region
      _
    $region13: #{neural_net_forward.5} parent=1 // pred_fallthru
      _
    // Predicated region
    $region14: #{neural_net_forward.5} parent=1 // pred_check
      _
    $region15: #{neural_net_forward.5} parent=1 // pred_check_branch
      %20 = sbr.rel (0) target = $region17
    $region16: #{neural_net_forward.5} parent=1 // pred_region
      _
    $region17: #{neural_net_forward.5} parent=1 // pred_fallthru
      _
    // Predicated region
    $region18: #{neural_net_forward.5} parent=1 // pred_check
      _
    $region19: #{neural_net_forward.5} parent=1 // pred_check_branch
      %22 = sbr.rel (0) target = $region21
    $region20: #{neural_net_forward.5} parent=1 // pred_region
      _
    $region21: #{neural_net_forward.5} parent=1 // pred_fallthru
      _
    // Predicated region
    $region22: #{neural_net_forward.5} parent=1 // pred_check
      _
    $region23: #{neural_net_forward.5} parent=1 // pred_check_branch
      %24 = sbr.rel (0) target = $region25
    $region24: #{neural_net_forward.5} parent=1 // pred_region
      _
    $region25: #{neural_net_forward.5} parent=1 // pred_fallthru
      _
    // Predicated region
    $region26: #{neural_net_forward.5} parent=1 // pred_check
      _
    $region27: #{neural_net_forward.5} parent=1 // pred_check_branch
      %26 = sbr.rel (0) target = $region29
    $region28: #{neural_net_forward.5} parent=1 // pred_region
      _
    $region29: #{neural_net_forward.5} parent=1 // pred_fallthru
      _
    %v27 = vld [vmem:[%s0] sm:$0xff]
    %v28 = vld [vmem:[%s1] sm:$0xff]
    %v29 = vld [vmem:[%s1 + $0x8] sm:$0xff]
    %v30 = vld [vmem:[%s1 + $0x10] sm:$0xff]
    %v31 = vld [vmem:[%s1 + $0x18] sm:$0xff]
    %v32 = vld [vmem:[%s1 + $0x20] sm:$0xff]
    %v33 = vld [vmem:[%s1 + $0x28] sm:$0xff]
    %v34 = vld [vmem:[%s1 + $0x30] sm:$0xff]
    %v35 = vld [vmem:[%s1 + $0x38] sm:$0xff]
    %v36 = vld [vmem:[%s1 + $0x40] sm:$0xff]
    %v37 = vld [vmem:[%s1 + $0x48] sm:$0xff]
    %v38 = vld [vmem:[%s1 + $0x50] sm:$0xff]
    %v39 = vld [vmem:[%s1 + $0x58] sm:$0xff]
    %v40 = vld [vmem:[%s1 + $0x60] sm:$0xff]
    %v41 = vld [vmem:[%s1 + $0x68] sm:$0xff]
    %v42 = vld [vmem:[%s1 + $0x70] sm:$0xff]
    %v43 = vld [vmem:[%s1 + $0x78] sm:$0xff]
    %v44 = vld [vmem:[%s1 + $0x80] sm:$0xff]
    %v45 = vld [vmem:[%s1 + $0x88] sm:$0xff]
    %v46 = vld [vmem:[%s1 + $0x90] sm:$0xff]
    %v47 = vld [vmem:[%s1 + $0x98] sm:$0xff]
    %v48 = vld [vmem:[%s1 + $0xa0] sm:$0xff]
    %v49 = vld [vmem:[%s1 + $0xa8] sm:$0xff]
    %v50 = vld [vmem:[%s1 + $0xb0] sm:$0xff]
    %v51 = vld [vmem:[%s1 + $0xb8] sm:$0xff]
    %v52 = vld [vmem:[%s1 + $0xc0] sm:$0xff]
    %v53 = vld [vmem:[%s1 + $0xc8] sm:$0xff]
    %v54 = vld [vmem:[%s1 + $0xd0] sm:$0xff]
    %v55 = vld [vmem:[%s1 + $0xd8] sm:$0xff]
    %v56 = vld [vmem:[%s1 + $0xe0] sm:$0xff]
    %v57 = vld [vmem:[%s1 + $0xe8] sm:$0xff]
    %v58 = vld [vmem:[%s1 + $0xf0] sm:$0xff]
    %v59 = vld [vmem:[%s1 + $0xf8] sm:$0xff]
    %v60 = vld [vmem:[%s1 + $0x100] sm:$0xff]
    %v61 = vld [vmem:[%s1 + $0x108] sm:$0xff]
    %v62 = vld [vmem:[%s1 + $0x110] sm:$0xff]
    %v63 = vld [vmem:[%s1 + $0x118] sm:$0xff]
    %v64 = vld [vmem:[%s1 + $0x120] sm:$0xff]
    %v65 = vld [vmem:[%s1 + $0x128] sm:$0xff]
    %v66 = vld [vmem:[%s1 + $0x130] sm:$0xff]
    %v67 = vld [vmem:[%s1 + $0x138] sm:$0xff]
    %v68 = vld [vmem:[%s1 + $0x140] sm:$0xff]
    %v69 = vld [vmem:[%s1 + $0x148] sm:$0xff]
    %v70 = vld [vmem:[%s1 + $0x150] sm:$0xff]
    %v71 = vld [vmem:[%s1 + $0x158] sm:$0xff]
    %v72 = vld [vmem:[%s1 + $0x160] sm:$0xff]
    %v73 = vld [vmem:[%s1 + $0x168] sm:$0xff]
    %v74 = vld [vmem:[%s1 + $0x170] sm:$0xff]
    %v75 = vld [vmem:[%s1 + $0x178] sm:$0xff]
    %v76 = vld [vmem:[%s1 + $0x180] sm:$0xff]
    %v77 = vld [vmem:[%s1 + $0x188] sm:$0xff]
    %v78 = vld [vmem:[%s1 + $0x190] sm:$0xff]
    %v79 = vld [vmem:[%s1 + $0x198] sm:$0xff]
    %v80 = vld [vmem:[%s1 + $0x1a0] sm:$0xff]
    %v81 = vld [vmem:[%s1 + $0x1a8] sm:$0xff]
    %v82 = vld [vmem:[%s1 + $0x1b0] sm:$0xff]
    %v83 = vld [vmem:[%s1 + $0x1b8] sm:$0xff]
    %v84 = vld [vmem:[%s1 + $0x1c0] sm:$0xff]
    %v85 = vld [vmem:[%s1 + $0x1c8] sm:$0xff]
    %v86 = vld [vmem:[%s1 + $0x1d0] sm:$0xff]
    %v87 = vld [vmem:[%s1 + $0x1d8] sm:$0xff]
    %v88 = vld [vmem:[%s1 + $0x1e0] sm:$0xff]
    %v89 = vld [vmem:[%s1 + $0x1e8] sm:$0xff]
    %v90 = vld [vmem:[%s1 + $0x1f0] sm:$0xff]
    %v91 = vld [vmem:[%s1 + $0x1f8] sm:$0xff]
    %v92 = vld [vmem:[%s1 + $0x200] sm:$0xff]
    %v93 = vld [vmem:[%s1 + $0x208] sm:$0xff]
    %v94 = vld [vmem:[%s1 + $0x210] sm:$0xff]
    %v95 = vld [vmem:[%s1 + $0x218] sm:$0xff]
    %v96 = vld [vmem:[%s1 + $0x220] sm:$0xff]
    %v97 = vld [vmem:[%s1 + $0x228] sm:$0xff]
    %v98 = vld [vmem:[%s1 + $0x230] sm:$0xff]
    %v99 = vld [vmem:[%s1 + $0x238] sm:$0xff]
    %v100 = vld [vmem:[%s1 + $0x240] sm:$0xff]
    %v101 = vld [vmem:[%s1 + $0x248] sm:$0xff]
    %v102 = vld [vmem:[%s1 + $0x250] sm:$0xff]
    %v103 = vld [vmem:[%s1 + $0x258] sm:$0xff]
    %v104 = vld [vmem:[%s1 + $0x260] sm:$0xff]
    %v105 = vld [vmem:[%s1 + $0x268] sm:$0xff]
    %v106 = vld [vmem:[%s1 + $0x270] sm:$0xff]
    %v107 = vld [vmem:[%s1 + $0x278] sm:$0xff]
    %v108 = vld [vmem:[%s1 + $0x280] sm:$0xff]
    %v109 = vld [vmem:[%s1 + $0x288] sm:$0xff]
    %v110 = vld [vmem:[%s1 + $0x290] sm:$0xff]
    %v111 = vld [vmem:[%s1 + $0x298] sm:$0xff]
    %v112 = vld [vmem:[%s1 + $0x2a0] sm:$0xff]
    %v113 = vld [vmem:[%s1 + $0x2a8] sm:$0xff]
    %v114 = vld [vmem:[%s1 + $0x2b0] sm:$0xff]
    %v115 = vld [vmem:[%s1 + $0x2b8] sm:$0xff]
    %v116 = vld [vmem:[%s1 + $0x2c0] sm:$0xff]
    %v117 = vld [vmem:[%s1 + $0x2c8] sm:$0xff]
    %v118 = vld [vmem:[%s1 + $0x2d0] sm:$0xff]
    %v119 = vld [vmem:[%s1 + $0x2d8] sm:$0xff]
    %v120 = vld [vmem:[%s1 + $0x2e0] sm:$0xff]
    %v121 = vld [vmem:[%s1 + $0x2e8] sm:$0xff]
    %v122 = vld [vmem:[%s1 + $0x2f0] sm:$0xff]
    %v123 = vld [vmem:[%s1 + $0x2f8] sm:$0xff]
    %v124 = vld [vmem:[%s1 + $0x300] sm:$0xff]
    %v125 = vld [vmem:[%s1 + $0x308] sm:$0xff]
    %v126 = vld [vmem:[%s1 + $0x310] sm:$0xff]
    %v127 = vld [vmem:[%s1 + $0x318] sm:$0xff]
    %v128 = vld [vmem:[%s2] sm:$0x3]
    %v130 = vperm.slane %v128, 0
    %v131 = vperm.slane %v128, 1
    %135 = vst [vmem:[#allocation1] ss:$4 sm:$0xff] %v27
    %v136 = vld.sshfl [vmem:[#allocation1] sm:$0xff pattern:$0x73625140]
    %v137 = vld.sshfl [vmem:[#allocation1 + $0x8] sm:$0xff pattern:$0x73625140]
    %v138 = vld.sshfl [vmem:[#allocation1 + $0x10] sm:$0xff pattern:$0x73625140]
    %v139 = vld.sshfl [vmem:[#allocation1 + $0x18] sm:$0xff pattern:$0x73625140]
    %vm143 = vcmask 130048
    %v144 = vsel %vm143, %v139, 0
    %146 = vmatpush.msra.mxu0 %v58
    %147 = vmatpush.msra.mxu0 %v56
    %148 = vmatpush.msra.mxu0 %v54
    %149 = vmatpush.msra.mxu0 %v52
    %150 = vmatpush.msra.mxu0 %v50
    %151 = vmatpush.msra.mxu0 %v48
    %152 = vmatpush.msra.mxu0 %v46
    %153 = vmatpush.msra.mxu0 %v44
    %154 = vmatpush.msra.mxu0 %v42
    %155 = vmatpush.msra.mxu0 %v40
    %156 = vmatpush.msra.mxu0 %v38
    %157 = vmatpush.msra.mxu0 %v36
    %158 = vmatpush.msra.mxu0 %v34
    %159 = vmatpush.msra.mxu0 %v32
    %160 = vmatpush.msra.mxu0 %v30
    %161 = vmatpush.msra.mxu0 %v28
    %162 = vmatmul.f32.gmra.mxu0 %v136
    %v163 = vpop.f32.mrf.mxu0
    %v164 = vadd.f32 %v130, %v163
    %165 = vdwg.mxu0
    %166 = vmatpush.msra.mxu0 %v90
    %167 = vmatpush.msra.mxu0 %v88
    %168 = vmatpush.msra.mxu0 %v86
    %169 = vmatpush.msra.mxu0 %v84
    %170 = vmatpush.msra.mxu0 %v82
    %171 = vmatpush.msra.mxu0 %v80
    %172 = vmatpush.msra.mxu0 %v78
    %173 = vmatpush.msra.mxu0 %v76
    %174 = vmatpush.msra.mxu0 %v74
    %175 = vmatpush.msra.mxu0 %v72
    %176 = vmatpush.msra.mxu0 %v70
    %177 = vmatpush.msra.mxu0 %v68
    %178 = vmatpush.msra.mxu0 %v66
    %179 = vmatpush.msra.mxu0 %v64
    %180 = vmatpush.msra.mxu0 %v62
    %181 = vmatpush.msra.mxu0 %v60
    %182 = vmatmul.f32.gmra.mxu0 %v137
    %v183 = vpop.f32.mrf.mxu0
    %v184 = vadd.f32 %v164, %v183
    %185 = vdwg.mxu0
    %186 = vmatpush.msra.mxu0 %v122
    %187 = vmatpush.msra.mxu0 %v120
    %188 = vmatpush.msra.mxu0 %v118
    %189 = vmatpush.msra.mxu0 %v116
    %190 = vmatpush.msra.mxu0 %v114
    %191 = vmatpush.msra.mxu0 %v112
    %192 = vmatpush.msra.mxu0 %v110
    %193 = vmatpush.msra.mxu0 %v108
    %194 = vmatpush.msra.mxu0 %v106
    %195 = vmatpush.msra.mxu0 %v104
    %196 = vmatpush.msra.mxu0 %v102
    %197 = vmatpush.msra.mxu0 %v100
    %198 = vmatpush.msra.mxu0 %v98
    %199 = vmatpush.msra.mxu0 %v96
    %200 = vmatpush.msra.mxu0 %v94
    %201 = vmatpush.msra.mxu0 %v92
    %202 = vmatmul.f32.gmra.mxu0 %v138
    %v203 = vpop.f32.mrf.mxu0
    %v204 = vadd.f32 %v184, %v203
    %205 = vdwg.mxu0
    %206 = vmatpush.msra.mxu0 0.0
    %207 = vmatpush.msra.mxu0 0.0
    %208 = vmatpush.msra.mxu0 0.0
    %209 = vmatpush.msra.mxu0 0.0
    %210 = vmatpush.msra.mxu0 0.0
    %211 = vmatpush.msra.mxu0 0.0
    %212 = vmatpush.msra.mxu0 0.0
    %213 = vmatpush.msra.mxu0 0.0
    %214 = vmatpush.msra.mxu0 0.0
    %215 = vmatpush.msra.mxu0 0.0
    %216 = vmatpush.msra.mxu0 0.0
    %217 = vmatpush.msra.mxu0 0.0
    %218 = vmatpush.msra.mxu0 0.0
    %219 = vmatpush.msra.mxu0 0.0
    %220 = vmatpush.msra.mxu0 %v126
    %221 = vmatpush.msra.mxu0 %v124
    %222 = vmatmul.f32.gmra.mxu0 %v144
    %v223 = vpop.f32.mrf.mxu0
    %v224 = vadd.f32 %v204, %v223
    %225 = vdwg.mxu0
    %226 = vmatpush.msra.mxu0 %v59
    %227 = vmatpush.msra.mxu0 %v57
    %228 = vmatpush.msra.mxu0 %v55
    %229 = vmatpush.msra.mxu0 %v53
    %230 = vmatpush.msra.mxu0 %v51
    %231 = vmatpush.msra.mxu0 %v49
    %232 = vmatpush.msra.mxu0 %v47
    %233 = vmatpush.msra.mxu0 %v45
    %234 = vmatpush.msra.mxu0 %v43
    %235 = vmatpush.msra.mxu0 %v41
    %236 = vmatpush.msra.mxu0 %v39
    %237 = vmatpush.msra.mxu0 %v37
    %238 = vmatpush.msra.mxu0 %v35
    %239 = vmatpush.msra.mxu0 %v33
    %240 = vmatpush.msra.mxu0 %v31
    %241 = vmatpush.msra.mxu0 %v29
    %242 = vmatmul.f32.gmra.mxu0 %v136
    %v243 = vpop.f32.mrf.mxu0
    %v244 = vadd.f32 %v131, %v243
    %245 = vdwg.mxu0
    %246 = vmatpush.msra.mxu0 %v91
    %247 = vmatpush.msra.mxu0 %v89
    %248 = vmatpush.msra.mxu0 %v87
    %249 = vmatpush.msra.mxu0 %v85
    %250 = vmatpush.msra.mxu0 %v83
    %251 = vmatpush.msra.mxu0 %v81
    %252 = vmatpush.msra.mxu0 %v79
    %253 = vmatpush.msra.mxu0 %v77
    %254 = vmatpush.msra.mxu0 %v75
    %255 = vmatpush.msra.mxu0 %v73
    %256 = vmatpush.msra.mxu0 %v71
    %257 = vmatpush.msra.mxu0 %v69
    %258 = vmatpush.msra.mxu0 %v67
    %259 = vmatpush.msra.mxu0 %v65
    %260 = vmatpush.msra.mxu0 %v63
    %261 = vmatpush.msra.mxu0 %v61
    %262 = vmatmul.f32.gmra.mxu0 %v137
    %v263 = vpop.f32.mrf.mxu0
    %v264 = vadd.f32 %v244, %v263
    %265 = vdwg.mxu0
    %266 = vmatpush.msra.mxu0 %v123
    %267 = vmatpush.msra.mxu0 %v121
    %268 = vmatpush.msra.mxu0 %v119
    %269 = vmatpush.msra.mxu0 %v117
    %270 = vmatpush.msra.mxu0 %v115
    %271 = vmatpush.msra.mxu0 %v113
    %272 = vmatpush.msra.mxu0 %v111
    %273 = vmatpush.msra.mxu0 %v109
    %274 = vmatpush.msra.mxu0 %v107
    %275 = vmatpush.msra.mxu0 %v105
    %276 = vmatpush.msra.mxu0 %v103
    %277 = vmatpush.msra.mxu0 %v101
    %278 = vmatpush.msra.mxu0 %v99
    %279 = vmatpush.msra.mxu0 %v97
    %280 = vmatpush.msra.mxu0 %v95
    %281 = vmatpush.msra.mxu0 %v93
    %282 = vmatmul.f32.gmra.mxu0 %v138
    %v283 = vpop.f32.mrf.mxu0
    %v284 = vadd.f32 %v264, %v283
    %285 = vdwg.mxu0
    %286 = vmatpush.msra.mxu0 0.0
    %287 = vmatpush.msra.mxu0 0.0
    %288 = vmatpush.msra.mxu0 0.0
    %289 = vmatpush.msra.mxu0 0.0
    %290 = vmatpush.msra.mxu0 0.0
    %291 = vmatpush.msra.mxu0 0.0
    %292 = vmatpush.msra.mxu0 0.0
    %293 = vmatpush.msra.mxu0 0.0
    %294 = vmatpush.msra.mxu0 0.0
    %295 = vmatpush.msra.mxu0 0.0
    %296 = vmatpush.msra.mxu0 0.0
    %297 = vmatpush.msra.mxu0 0.0
    %298 = vmatpush.msra.mxu0 0.0
    %299 = vmatpush.msra.mxu0 0.0
    %300 = vmatpush.msra.mxu0 %v127
    %301 = vmatpush.msra.mxu0 %v125
    %302 = vmatmul.f32.gmra.mxu0 %v144
    %v303 = vpop.f32.mrf.mxu0
    %v304 = vadd.f32 %v284, %v303
    %305 = vdwg.mxu0
    %v306 = vmax.f32 %v224, 0.0
    %v307 = vmax.f32 %v304, 0.0
    %v308 = vld [vmem:[%s3] sm:$0xff]
    %v309 = vld [vmem:[%s3 + $0x8] sm:$0xff]
    %v310 = vld [vmem:[%s3 + $0x10] sm:$0xff]
    %v311 = vld [vmem:[%s3 + $0x18] sm:$0xff]
    %v312 = vld [vmem:[%s3 + $0x20] sm:$0xff]
    %v313 = vld [vmem:[%s3 + $0x28] sm:$0xff]
    %v314 = vld [vmem:[%s3 + $0x30] sm:$0xff]
    %v315 = vld [vmem:[%s3 + $0x38] sm:$0xff]
    %v316 = vld [vmem:[%s3 + $0x40] sm:$0xff]
    %v317 = vld [vmem:[%s3 + $0x48] sm:$0xff]
    %v318 = vld [vmem:[%s3 + $0x50] sm:$0xff]
    %v319 = vld [vmem:[%s3 + $0x58] sm:$0xff]
    %v320 = vld [vmem:[%s3 + $0x60] sm:$0xff]
    %v321 = vld [vmem:[%s3 + $0x68] sm:$0xff]
    %v322 = vld [vmem:[%s3 + $0x70] sm:$0xff]
    %v323 = vld [vmem:[%s3 + $0x78] sm:$0xff]
    %v324 = vld [vmem:[%s3 + $0x80] sm:$0xff]
    %v325 = vld [vmem:[%s3 + $0x88] sm:$0xff]
    %v326 = vld [vmem:[%s3 + $0x90] sm:$0xff]
    %v327 = vld [vmem:[%s3 + $0x98] sm:$0xff]
    %v328 = vld [vmem:[%s3 + $0xa0] sm:$0xff]
    %v329 = vld [vmem:[%s3 + $0xa8] sm:$0xff]
    %v330 = vld [vmem:[%s3 + $0xb0] sm:$0xff]
    %v331 = vld [vmem:[%s3 + $0xb8] sm:$0xff]
    %v332 = vld [vmem:[%s3 + $0xc0] sm:$0xff]
    %v333 = vld [vmem:[%s3 + $0xc8] sm:$0xff]
    %v334 = vld [vmem:[%s3 + $0xd0] sm:$0xff]
    %v335 = vld [vmem:[%s3 + $0xd8] sm:$0xff]
    %v336 = vld [vmem:[%s3 + $0xe0] sm:$0xff]
    %v337 = vld [vmem:[%s3 + $0xe8] sm:$0xff]
    %v338 = vld [vmem:[%s3 + $0xf0] sm:$0xff]
    %v339 = vld [vmem:[%s3 + $0xf8] sm:$0xff]
    %v340 = vld [vmem:[%s4] sm:$0x1]
    %v342 = vperm.slane %v340, 0
    %344 = vmatpush.msra.mxu0 %v323
    %345 = vmatpush.msra.mxu0 %v322
    %346 = vmatpush.msra.mxu0 %v321
    %347 = vmatpush.msra.mxu0 %v320
    %348 = vmatpush.msra.mxu0 %v319
    %349 = vmatpush.msra.mxu0 %v318
    %350 = vmatpush.msra.mxu0 %v317
    %351 = vmatpush.msra.mxu0 %v316
    %352 = vmatpush.msra.mxu0 %v315
    %353 = vmatpush.msra.mxu0 %v314
    %354 = vmatpush.msra.mxu0 %v313
    %355 = vmatpush.msra.mxu0 %v312
    %356 = vmatpush.msra.mxu0 %v311
    %357 = vmatpush.msra.mxu0 %v310
    %358 = vmatpush.msra.mxu0 %v309
    %359 = vmatpush.msra.mxu0 %v308
    %360 = vmatmul.f32.gmra.mxu0 %v306
    %v361 = vpop.f32.mrf.mxu0
    %v362 = vadd.f32 %v342, %v361
    %363 = vdwg.mxu0
    %364 = vmatpush.msra.mxu0 %v339
    %365 = vmatpush.msra.mxu0 %v338
    %366 = vmatpush.msra.mxu0 %v337
    %367 = vmatpush.msra.mxu0 %v336
    %368 = vmatpush.msra.mxu0 %v335
    %369 = vmatpush.msra.mxu0 %v334
    %370 = vmatpush.msra.mxu0 %v333
    %371 = vmatpush.msra.mxu0 %v332
    %372 = vmatpush.msra.mxu0 %v331
    %373 = vmatpush.msra.mxu0 %v330
    %374 = vmatpush.msra.mxu0 %v329
    %375 = vmatpush.msra.mxu0 %v328
    %376 = vmatpush.msra.mxu0 %v327
    %377 = vmatpush.msra.mxu0 %v326
    %378 = vmatpush.msra.mxu0 %v325
    %379 = vmatpush.msra.mxu0 %v324
    %380 = vmatmul.f32.gmra.mxu0 %v307
    %v381 = vpop.f32.mrf.mxu0
    %v382 = vadd.f32 %v362, %v381
    %383 = vdwg.mxu0
    %v384 = vmax.f32 %v382, 0.0
    %v385 = vld [vmem:[%s5] sm:$0xff]
    %v386 = vld [vmem:[%s5 + $0x8] sm:$0xff]
    %v387 = vld [vmem:[%s5 + $0x10] sm:$0xff]
    %v388 = vld [vmem:[%s5 + $0x18] sm:$0xff]
    %v389 = vld [vmem:[%s6] sm:$0x1]
    %v391 = vperm.slane %v389, 0
    %vm393 = vcmask 261120
    %v395 = vsel %vm393, %v384, 0
    %397 = vmatpush.msra.mxu0 0.0
    %398 = vmatpush.msra.mxu0 0.0
    %399 = vmatpush.msra.mxu0 0.0
    %400 = vmatpush.msra.mxu0 0.0
    %401 = vmatpush.msra.mxu0 0.0
    %402 = vmatpush.msra.mxu0 0.0
    %403 = vmatpush.msra.mxu0 0.0
    %404 = vmatpush.msra.mxu0 0.0
    %405 = vmatpush.msra.mxu0 0.0
    %406 = vmatpush.msra.mxu0 0.0
    %407 = vmatpush.msra.mxu0 0.0
    %408 = vmatpush.msra.mxu0 0.0
    %409 = vmatpush.msra.mxu0 %v388
    %410 = vmatpush.msra.mxu0 %v387
    %411 = vmatpush.msra.mxu0 %v386
    %412 = vmatpush.msra.mxu0 %v385
    %413 = vmatmul.f32.gmra.mxu0 %v395
    %v414 = vpop.f32.mrf.mxu0
    %v415 = vadd.f32 %v391, %v414
    %416 = vdwg.mxu0
    %vm417 = vcmask 58368
    %418 = vst.msk [vmem:[#allocation2] sm:$0x3] %vm417, %v415
    // Predicated region
    $region30: #{neural_net_forward.5} parent=1 // pred_check
      _
    $region31: #{neural_net_forward.5} parent=1 // pred_check_branch
      %420 = sbr.rel (0) target = $region33
    $region32: #{neural_net_forward.5} parent=1 // pred_region
      %422 = vsyncadd [#allocation3], 0
      %s424 = sshll.u32 [#allocation2], 4
      %s425 = int_to_ptr.vmem [resolvable:$true] %s424
      %s426 = sshll.u32 %s7, 4
      %s427 = int_to_ptr.hbm [resolvable:$true] %s426
      %429 = dma.vmem_to_hbm [thread:$0]  %s425, 32, %s427, [#allocation3]
    $region33: #{neural_net_forward.5} parent=1 // pred_fallthru
      _
    // Predicated region
    $region34: #{neural_net_forward.5} parent=1 // pred_check
      _
    $region35: #{neural_net_forward.5} parent=1 // pred_check_branch
      %431 = sbr.rel (0) target = $region37
    $region36: #{neural_net_forward.5} parent=1 // pred_region
      %433 = dma.done [#allocation3], 32
    $region37: #{neural_net_forward.5} parent=1 // pred_fallthru
      _
    %434 = vsyncpa [#allocation3], 1

// kernel: neural_net_forward.3
$region0: #{neural_net_forward.3}
  #allocation0 [shape = 'u32[]', space=smem, size = 0x4, offset = 0x4, fixed_abs, tag = 'smem constant byte address 0x4 - core index']
  #allocation1 [shape = 'u32[72,128]{1,0:T(1,128)}', space=vmem, size = 0x9000, scoped, tag = 'internal scratch']
  %s0 = inlined_call_operand.vmem [shape: f32[2,3,1024], index: 0, kind: input, shape index: {}]
  %s1 = inlined_call_operand.vmem [shape: f32[9,8,3], index: 1, kind: input, shape index: {}]
  %s2 = inlined_call_operand.vmem [shape: f32[8,1], index: 2, kind: input, shape index: {}]
  %s3 = inlined_call_operand.vmem [shape: f32[2,8,225], index: 3, kind: output, shape index: {}]
  %s4 = sld [smem:[#allocation0]]
  $region45: #{neural_net_forward.3} parent=0
    _
  %s6 = ssub.s32 1, %s4
  %s7 = scalar_select 0, %s6, %s4
  loop: start=0, step=1, limit=4
  $region2: #{neural_net_forward.3} parent=0 // loop_pre_header
    _
  $region3: #{neural_net_forward.3} parent=0 // loop_header
    %s9 = sphi 0, %s13
    %p10 = scmp.ge.s32.totalorder %s9, 4
    %s19 = sphi 0, %s21
    %s22 = sphi 0, %s19
    %s23 = sphi 0, %s22
    %s39 = sphi 0, %s23
    %s43 = sphi 0, %s43
    %s45 = sphi 0, %s43
    %s46 = sphi 0, %s45
    %s60 = sphi 0, %s46
    %s64 = sphi 0, %s64
    %s66 = sphi 0, %s64
    %s67 = sphi 0, %s66
    %s81 = sphi 0, %s67
    %s87 = sphi 0, %s89
    %s90 = sphi 0, %s87
    %s91 = sphi 0, %s90
    %s107 = sphi 0, %s91
  $region4: #{neural_net_forward.3} parent=0 // loop_header_branch
    %12 = sbr.rel (%p10) target = $region8
  $region5: #{neural_net_forward.3} parent=0 // loop_body
    %s14 = ssub.s32 %s9, 1
    %s15 = ssub.s32 %s9, 2
    %s16 = sadd.s32 %s9, 1
    %s17 = ssub.s32 %s9, %s16
    %p18 = scmp.eq.s32.totalorder %s17, 0
    %s20 = sadd.s32 %s19, 1
    %s21 = scalar_select %p18, %s19, %s20
    %p24 = pneg %p18
    %p25 = scmp.eq.s32.totalorder %s9, 1
    %p26 = por %p24, %p25
    %p27 = scmp.ne.s32.totalorder %s19, %s22
    %p28 = scmp.eq.s32.totalorder %s9, 0
    %p29 = por %p27, %p28
    %p30 = scmp.ne.s32.totalorder %s19, %s22
    %p31 = scmp.eq.s32.totalorder %s14, 1
    %p32 = por %p30, %p31
    %p33 = scmp.ne.s32.totalorder %s22, %s23
    %p34 = scmp.eq.s32.totalorder %s14, 0
    %p35 = por %p33, %p34
    %p36 = scmp.ne.s32.totalorder %s22, %s23
    %p37 = scmp.eq.s32.totalorder %s15, 1
    %p38 = por %p36, %p37
    %p40 = scmp.ne.s32.totalorder %s23, %s39
    %p41 = scmp.eq.s32.totalorder %s15, 0
    %p42 = por %p40, %p41
    %s44 = sadd.s32 %s43, 1
    %p47 = scmp.eq.s32.totalorder %s9, 1
    %p48 = scmp.ne.s32.totalorder %s43, %s45
    %p49 = scmp.eq.s32.totalorder %s9, 0
    %p50 = por %p48, %p49
    %p51 = scmp.ne.s32.totalorder %s43, %s45
    %p52 = scmp.eq.s32.totalorder %s14, 1
    %p53 = por %p51, %p52
    %p54 = scmp.ne.s32.totalorder %s45, %s46
    %p55 = scmp.eq.s32.totalorder %s14, 0
    %p56 = por %p54, %p55
    %p57 = scmp.ne.s32.totalorder %s45, %s46
    %p58 = scmp.eq.s32.totalorder %s15, 1
    %p59 = por %p57, %p58
    %p61 = scmp.ne.s32.totalorder %s46, %s60
    %p62 = scmp.eq.s32.totalorder %s15, 0
    %p63 = por %p61, %p62
    %s65 = sadd.s32 %s64, 1
    %p68 = scmp.eq.s32.totalorder %s9, 1
    %p69 = scmp.ne.s32.totalorder %s64, %s66
    %p70 = scmp.eq.s32.totalorder %s9, 0
    %p71 = por %p69, %p70
    %p72 = scmp.ne.s32.totalorder %s64, %s66
    %p73 = scmp.eq.s32.totalorder %s14, 1
    %p74 = por %p72, %p73
    %p75 = scmp.ne.s32.totalorder %s66, %s67
    %p76 = scmp.eq.s32.totalorder %s14, 0
    %p77 = por %p75, %p76
    %p78 = scmp.ne.s32.totalorder %s66, %s67
    %p79 = scmp.eq.s32.totalorder %s15, 1
    %p80 = por %p78, %p79
    %p82 = scmp.ne.s32.totalorder %s67, %s81
    %p83 = scmp.eq.s32.totalorder %s15, 0
    %p84 = por %p82, %p83
    %s85 = ssub.s32 %s9, %s16
    %p86 = scmp.eq.s32.totalorder %s85, 0
    %s88 = sadd.s32 %s87, 1
    %s89 = scalar_select %p86, %s87, %s88
    %p92 = pneg %p86
    %p93 = scmp.eq.s32.totalorder %s9, 1
    %p94 = por %p92, %p93
    %p95 = scmp.ne.s32.totalorder %s87, %s90
    %p96 = scmp.eq.s32.totalorder %s9, 0
    %p97 = por %p95, %p96
    %p98 = scmp.ne.s32.totalorder %s87, %s90
    %p99 = scmp.eq.s32.totalorder %s14, 1
    %p100 = por %p98, %p99
    %p101 = scmp.ne.s32.totalorder %s90, %s91
    %p102 = scmp.eq.s32.totalorder %s14, 0
    %p103 = por %p101, %p102
    %p104 = scmp.ne.s32.totalorder %s90, %s91
    %p105 = scmp.eq.s32.totalorder %s15, 1
    %p106 = por %p104, %p105
    %p108 = scmp.ne.s32.totalorder %s91, %s107
    %p109 = scmp.eq.s32.totalorder %s15, 0
    %p110 = por %p108, %p109
    %p111 = scmp.le.s32.totalorder 1, %s9
    %p112 = scmp.lt.s32.totalorder %s9, 3
    %p113 = pnand %p111, %p112
    %p114 = pneg %p113
    // Predicated region
    $region9: #{neural_net_forward.3} parent=5 // pred_check
      _
    $region10: #{neural_net_forward.3} parent=5 // pred_check_branch
      %116 = sbr.rel (%p113) target = $region12
    $region11: #{neural_net_forward.3} parent=5 // pred_region
      %s117 = ssub.s32 %s9, 1
      // Predicated region
      $region13: #{neural_net_forward.3} parent=11 // pred_check
        %p118 = pneg %p56
      $region14: #{neural_net_forward.3} parent=11 // pred_check_branch
        %120 = sbr.rel (%p118) target = $region16
      $region15: #{neural_net_forward.3} parent=11 // pred_region
        _
      $region16: #{neural_net_forward.3} parent=11 // pred_fallthru
        _
      // Predicated region
      $region17: #{neural_net_forward.3} parent=11 // pred_check
        %p121 = pneg %p77
      $region18: #{neural_net_forward.3} parent=11 // pred_check_branch
        %123 = sbr.rel (%p121) target = $region20
      $region19: #{neural_net_forward.3} parent=11 // pred_region
        _
      $region20: #{neural_net_forward.3} parent=11 // pred_fallthru
        _
    $region12: #{neural_net_forward.3} parent=5 // pred_fallthru
      _
    %p124 = scmp.lt.s32.totalorder %s9, 2
    // Predicated region
    $region21: #{neural_net_forward.3} parent=5 // pred_check
      %p125 = pneg %p124
    $region22: #{neural_net_forward.3} parent=5 // pred_check_branch
      %127 = sbr.rel (%p125) target = $region24
    $region23: #{neural_net_forward.3} parent=5 // pred_region
      // Predicated region
      $region25: #{neural_net_forward.3} parent=23 // pred_check
        %p128 = pneg %p29
      $region26: #{neural_net_forward.3} parent=23 // pred_check_branch
        %130 = sbr.rel (%p128) target = $region28
      $region27: #{neural_net_forward.3} parent=23 // pred_region
        %p131 = scmp.lt.s32.totalorder %s9, 1
        %s132 = scalar_select %p131, %s9, 1
        %s133 = smul.addr %s132, 8
        %s134 = smul.addr %s133, 4
        %s135 = scalar_lea.vmem %s0, %s134
      $region28: #{neural_net_forward.3} parent=23 // pred_fallthru
        _
    $region24: #{neural_net_forward.3} parent=5 // pred_fallthru
      _
    %p136 = scmp.le.s32.totalorder 1, %s9
    %p137 = scmp.lt.s32.totalorder %s9, 3
    %p138 = pnand %p136, %p137
    %p139 = pneg %p138
    // Predicated region
    $region29: #{neural_net_forward.3} parent=5 // pred_check
      _
    $region30: #{neural_net_forward.3} parent=5 // pred_check_branch
      %141 = sbr.rel (%p138) target = $region32
    $region31: #{neural_net_forward.3} parent=5 // pred_region
      %s142 = ssub.s32 %s9, 1
      %p143 = scmp.lt.s32.totalorder %s14, 1
      %s144 = scalar_select %p143, %s14, 1
      %s145 = smul.addr %s144, 8
      %s146 = smul.addr %s145, 4
      %s147 = scalar_lea.vmem %s0, %s146
      %p148 = pneg %p35
      %p149 = pneg %p32
      %p150 = pneg %p56
      %p151 = pneg %p53
      %p152 = pneg %p77
      %p153 = pneg %p74
      %p154 = pneg %p103
      %p155 = pneg %p100
      %p156 = scmp.lt.s32.totalorder %s14, 1
      %s157 = scalar_select %p156, %s14, 1
      %s158 = smul.addr %s157, 2
      %s159 = smul.addr %s158, 8
      %s160 = scalar_lea.vmem %s3, %s159
      %p161 = scmp.lt.s32.totalorder %s14, 1
      %s162 = scalar_select %p161, %s14, 1
      %s163 = smul.addr %s162, 8
      %s164 = smul.addr %s163, 4
      %s165 = scalar_lea.vmem %s0, %s164
      %p166 = scmp.lt.s32.totalorder %s14, 1
      %s167 = scalar_select %p166, %s14, 1
      %s168 = smul.addr %s167, 2
      %s169 = smul.addr %s168, 8
      %s170 = scalar_lea.vmem %s3, %s169
      %v171 = vld [vmem:[%s165] sm:$0x77]
      %v172 = vld [vmem:[%s165 + $0x8] sm:$0x77]
      %v173 = vld [vmem:[%s165 + $0x10] sm:$0x77]
      %v174 = vld [vmem:[%s165 + $0x18] sm:$0x77]
      %v175 = vld [vmem:[%s1] sm:$0xff]
      %s176 = scalar_lea.vmem %s1, 8
      %v177 = vld [vmem:[%s176] sm:$0xff]
      %182 = vst [vmem:[#allocation1] ss:$2 sm:$0xff] %v171
      %s183 = scalar_lea.vmem [#allocation1], 16
      %184 = vst [vmem:[%s183] ss:$2 sm:$0xff] %v172
      %s185 = scalar_lea.vmem [#allocation1], 32
      %186 = vst [vmem:[%s185] ss:$2 sm:$0xff] %v173
      %s187 = scalar_lea.vmem [#allocation1], 48
      %188 = vst [vmem:[%s187] ss:$2 sm:$0xff] %v174
      %v189 = vld.sshfl [vmem:[#allocation1] sm:$0xff pattern:$0x75316420]
      %v190 = vld.sshfl [vmem:[#allocation1 + $0x8] sm:$0xff pattern:$0x75316420]
      %v191 = vld.sshfl [vmem:[#allocation1 + $0x10] sm:$0xff pattern:$0x75316420]
      %v192 = vld.sshfl [vmem:[#allocation1 + $0x18] sm:$0xff pattern:$0x75316420]
      %v193 = vld.sshfl [vmem:[#allocation1 + $0x20] sm:$0xff pattern:$0x75316420]
      %v194 = vld.sshfl [vmem:[#allocation1 + $0x28] sm:$0xff pattern:$0x75316420]
      %v195 = vld.sshfl [vmem:[#allocation1 + $0x30] sm:$0xff pattern:$0x75316420]
      %v196 = vld.sshfl [vmem:[#allocation1 + $0x38] sm:$0xff pattern:$0x75316420]
      %197 = vrot.lane.b32.xlu0 %v189, 127
      %v198 = vpop.permute.xlu0 %197
      %199 = vrot.lane.b32.xlu0 %v190, 127
      %v200 = vpop.permute.xlu0 %199
      %201 = vrot.lane.b32.xlu0 %v191, 127
      %v202 = vpop.permute.xlu0 %201
      %203 = vrot.lane.b32.xlu0 %v192, 127
      %v204 = vpop.permute.xlu0 %203
      %205 = vrot.lane.b32.xlu0 %v193, 127
      %v206 = vpop.permute.xlu0 %205
      %207 = vrot.lane.b32.xlu0 %v194, 127
      %v208 = vpop.permute.xlu0 %207
      %209 = vrot.lane.b32.xlu0 %v195, 127
      %v210 = vpop.permute.xlu0 %209
      %211 = vrot.lane.b32.xlu0 %v196, 127
      %v212 = vpop.permute.xlu0 %211
      %vm213 = vcmask 1039360
      %v214 = vsel %vm213, %v198, %v200
      %v215 = vsel %vm213, %v200, %v202
      %v216 = vsel %vm213, %v202, %v204
      %v217 = vsel %vm213, %v204, %v206
      %v218 = vsel %vm213, %v206, %v208
      %v219 = vsel %vm213, %v208, %v210
      %v220 = vsel %vm213, %v210, %v212
      %vm221 = vcmask 23552
      %v223 = vsel %vm221, %v177, 0
      %vm225 = vcmask 1042432
      %v226 = vsel %vm225, %v214, 0
      %v228 = vsel %vm225, %v215, 0
      %v230 = vsel %vm225, %v216, 0
      %v232 = vsel %vm225, %v217, 0
      %v234 = vsel %vm225, %v218, 0
      %v236 = vsel %vm225, %v219, 0
      %v238 = vsel %vm225, %v220, 0
      %v240 = vsel %vm225, %v212, 0
      %242 = vmatpush.msra.mxu0 0.0
      %243 = vmatpush.msra.mxu0 0.0
      %244 = vmatpush.msra.mxu0 0.0
      %245 = vmatpush.msra.mxu0 0.0
      %246 = vmatpush.msra.mxu0 0.0
      %247 = vmatpush.msra.mxu0 0.0
      %248 = vmatpush.msra.mxu0 0.0
      %249 = vmatpush.msra.mxu0 0.0
      %250 = vmatpush.msra.mxu0 0.0
      %251 = vmatpush.msra.mxu0 0.0
      %252 = vmatpush.msra.mxu0 0.0
      %253 = vmatpush.msra.mxu0 0.0
      %254 = vmatpush.msra.mxu0 0.0
      %255 = vmatpush.msra.mxu0 0.0
      %256 = vmatpush.msra.mxu0 0.0
      %257 = vmatpush.msra.mxu0 %v226
      %258 = vmatmul.f32.gmra.mxu0 %v223
      %v259 = vpop.f32.mrf.mxu0
      %v260 = vadd.f32 0.0, %v259
      %261 = vdwg.mxu0
      %262 = vmatpush.msra.mxu0 0.0
      %263 = vmatpush.msra.mxu0 0.0
      %264 = vmatpush.msra.mxu0 0.0
      %265 = vmatpush.msra.mxu0 0.0
      %266 = vmatpush.msra.mxu0 0.0
      %267 = vmatpush.msra.mxu0 0.0
      %268 = vmatpush.msra.mxu0 0.0
      %269 = vmatpush.msra.mxu0 0.0
      %270 = vmatpush.msra.mxu0 0.0
      %271 = vmatpush.msra.mxu0 0.0
      %272 = vmatpush.msra.mxu0 0.0
      %273 = vmatpush.msra.mxu0 0.0
      %274 = vmatpush.msra.mxu0 0.0
      %275 = vmatpush.msra.mxu0 0.0
      %276 = vmatpush.msra.mxu0 0.0
      %277 = vmatpush.msra.mxu0 %v228
      %278 = vmatmul.f32.gmra.mxu0 %v223
      %v279 = vpop.f32.mrf.mxu0
      %v280 = vadd.f32 0.0, %v279
      %281 = vdwg.mxu0
      %282 = vmatpush.msra.mxu0 0.0
      %283 = vmatpush.msra.mxu0 0.0
      %284 = vmatpush.msra.mxu0 0.0
      %285 = vmatpush.msra.mxu0 0.0
      %286 = vmatpush.msra.mxu0 0.0
      %287 = vmatpush.msra.mxu0 0.0
      %288 = vmatpush.msra.mxu0 0.0
      %289 = vmatpush.msra.mxu0 0.0
      %290 = vmatpush.msra.mxu0 0.0
      %291 = vmatpush.msra.mxu0 0.0
      %292 = vmatpush.msra.mxu0 0.0
      %293 = vmatpush.msra.mxu0 0.0
      %294 = vmatpush.msra.mxu0 0.0
      %295 = vmatpush.msra.mxu0 0.0
      %296 = vmatpush.msra.mxu0 0.0
      %297 = vmatpush.msra.mxu0 %v230
      %298 = vmatmul.f32.gmra.mxu0 %v223
      %v299 = vpop.f32.mrf.mxu0
      %v300 = vadd.f32 0.0, %v299
      %301 = vdwg.mxu0
      %302 = vmatpush.msra.mxu0 0.0
      %303 = vmatpush.msra.mxu0 0.0
      %304 = vmatpush.msra.mxu0 0.0
      %305 = vmatpush.msra.mxu0 0.0
      %306 = vmatpush.msra.mxu0 0.0
      %307 = vmatpush.msra.mxu0 0.0
      %308 = vmatpush.msra.mxu0 0.0
      %309 = vmatpush.msra.mxu0 0.0
      %310 = vmatpush.msra.mxu0 0.0
      %311 = vmatpush.msra.mxu0 0.0
      %312 = vmatpush.msra.mxu0 0.0
      %313 = vmatpush.msra.mxu0 0.0
      %314 = vmatpush.msra.mxu0 0.0
      %315 = vmatpush.msra.mxu0 0.0
      %316 = vmatpush.msra.mxu0 0.0
      %317 = vmatpush.msra.mxu0 %v232
      %318 = vmatmul.f32.gmra.mxu0 %v223
      %v319 = vpop.f32.mrf.mxu0
      %v320 = vadd.f32 0.0, %v319
      %321 = vdwg.mxu0
      %322 = vmatpush.msra.mxu0 0.0
      %323 = vmatpush.msra.mxu0 0.0
      %324 = vmatpush.msra.mxu0 0.0
      %325 = vmatpush.msra.mxu0 0.0
      %326 = vmatpush.msra.mxu0 0.0
      %327 = vmatpush.msra.mxu0 0.0
      %328 = vmatpush.msra.mxu0 0.0
      %329 = vmatpush.msra.mxu0 0.0
      %330 = vmatpush.msra.mxu0 0.0
      %331 = vmatpush.msra.mxu0 0.0
      %332 = vmatpush.msra.mxu0 0.0
      %333 = vmatpush.msra.mxu0 0.0
      %334 = vmatpush.msra.mxu0 0.0
      %335 = vmatpush.msra.mxu0 0.0
      %336 = vmatpush.msra.mxu0 0.0
      %337 = vmatpush.msra.mxu0 %v234
      %338 = vmatmul.f32.gmra.mxu0 %v223
      %v339 = vpop.f32.mrf.mxu0
      %v340 = vadd.f32 0.0, %v339
      %341 = vdwg.mxu0
      %342 = vmatpush.msra.mxu0 0.0
      %343 = vmatpush.msra.mxu0 0.0
      %344 = vmatpush.msra.mxu0 0.0
      %345 = vmatpush.msra.mxu0 0.0
      %346 = vmatpush.msra.mxu0 0.0
      %347 = vmatpush.msra.mxu0 0.0
      %348 = vmatpush.msra.mxu0 0.0
      %349 = vmatpush.msra.mxu0 0.0
      %350 = vmatpush.msra.mxu0 0.0
      %351 = vmatpush.msra.mxu0 0.0
      %352 = vmatpush.msra.mxu0 0.0
      %353 = vmatpush.msra.mxu0 0.0
      %354 = vmatpush.msra.mxu0 0.0
      %355 = vmatpush.msra.mxu0 0.0
      %356 = vmatpush.msra.mxu0 0.0
      %357 = vmatpush.msra.mxu0 %v236
      %358 = vmatmul.f32.gmra.mxu0 %v223
      %v359 = vpop.f32.mrf.mxu0
      %v360 = vadd.f32 0.0, %v359
      %361 = vdwg.mxu0
      %362 = vmatpush.msra.mxu0 0.0
      %363 = vmatpush.msra.mxu0 0.0
      %364 = vmatpush.msra.mxu0 0.0
      %365 = vmatpush.msra.mxu0 0.0
      %366 = vmatpush.msra.mxu0 0.0
      %367 = vmatpush.msra.mxu0 0.0
      %368 = vmatpush.msra.mxu0 0.0
      %369 = vmatpush.msra.mxu0 0.0
      %370 = vmatpush.msra.mxu0 0.0
      %371 = vmatpush.msra.mxu0 0.0
      %372 = vmatpush.msra.mxu0 0.0
      %373 = vmatpush.msra.mxu0 0.0
      %374 = vmatpush.msra.mxu0 0.0
      %375 = vmatpush.msra.mxu0 0.0
      %376 = vmatpush.msra.mxu0 0.0
      %377 = vmatpush.msra.mxu0 %v238
      %378 = vmatmul.f32.gmra.mxu0 %v223
      %v379 = vpop.f32.mrf.mxu0
      %v380 = vadd.f32 0.0, %v379
      %381 = vdwg.mxu0
      %382 = vmatpush.msra.mxu0 0.0
      %383 = vmatpush.msra.mxu0 0.0
      %384 = vmatpush.msra.mxu0 0.0
      %385 = vmatpush.msra.mxu0 0.0
      %386 = vmatpush.msra.mxu0 0.0
      %387 = vmatpush.msra.mxu0 0.0
      %388 = vmatpush.msra.mxu0 0.0
      %389 = vmatpush.msra.mxu0 0.0
      %390 = vmatpush.msra.mxu0 0.0
      %391 = vmatpush.msra.mxu0 0.0
      %392 = vmatpush.msra.mxu0 0.0
      %393 = vmatpush.msra.mxu0 0.0
      %394 = vmatpush.msra.mxu0 0.0
      %395 = vmatpush.msra.mxu0 0.0
      %396 = vmatpush.msra.mxu0 0.0
      %397 = vmatpush.msra.mxu0 %v240
      %398 = vmatmul.f32.gmra.mxu0 %v223
      %v399 = vpop.f32.mrf.mxu0
      %v400 = vadd.f32 0.0, %v399
      %401 = vdwg.mxu0
      %402 = vst [vmem:[#allocation1] ss:$2 sm:$0xff] %v171
      %s403 = scalar_lea.vmem [#allocation1], 16
      %404 = vst [vmem:[%s403] ss:$2 sm:$0xff] %v172
      %s405 = scalar_lea.vmem [#allocation1], 32
      %406 = vst [vmem:[%s405] ss:$2 sm:$0xff] %v173
      %s407 = scalar_lea.vmem [#allocation1], 48
      %408 = vst [vmem:[%s407] ss:$2 sm:$0xff] %v174
      %v409 = vld.sshfl [vmem:[#allocation1] sm:$0xff pattern:$0x75316420]
      %v410 = vld.sshfl [vmem:[#allocation1 + $0x8] sm:$0xff pattern:$0x75316420]
      %v411 = vld.sshfl [vmem:[#allocation1 + $0x10] sm:$0xff pattern:$0x75316420]
      %v412 = vld.sshfl [vmem:[#allocation1 + $0x18] sm:$0xff pattern:$0x75316420]
      %v413 = vld.sshfl [vmem:[#allocation1 + $0x20] sm:$0xff pattern:$0x75316420]
      %v414 = vld.sshfl [vmem:[#allocation1 + $0x28] sm:$0xff pattern:$0x75316420]
      %v415 = vld.sshfl [vmem:[#allocation1 + $0x30] sm:$0xff pattern:$0x75316420]
      %v416 = vld.sshfl [vmem:[#allocation1 + $0x38] sm:$0xff pattern:$0x75316420]
      %v418 = vsel %vm221, %v175, 0
      %v420 = vsel %vm225, %v409, 0
      %v422 = vsel %vm225, %v410, 0
      %v424 = vsel %vm225, %v411, 0
      %v426 = vsel %vm225, %v412, 0
      %v428 = vsel %vm225, %v413, 0
      %v430 = vsel %vm225, %v414, 0
      %v432 = vsel %vm225, %v415, 0
      %v434 = vsel %vm225, %v416, 0
      %436 = vmatpush.msra.mxu0 0.0
      %437 = vmatpush.msra.mxu0 0.0
      %438 = vmatpush.msra.mxu0 0.0
      %439 = vmatpush.msra.mxu0 0.0
      %440 = vmatpush.msra.mxu0 0.0
      %441 = vmatpush.msra.mxu0 0.0
      %442 = vmatpush.msra.mxu0 0.0
      %443 = vmatpush.msra.mxu0 0.0
      %444 = vmatpush.msra.mxu0 0.0
      %445 = vmatpush.msra.mxu0 0.0
      %446 = vmatpush.msra.mxu0 0.0
      %447 = vmatpush.msra.mxu0 0.0
      %448 = vmatpush.msra.mxu0 0.0
      %449 = vmatpush.msra.mxu0 0.0
      %450 = vmatpush.msra.mxu0 0.0
      %451 = vmatpush.msra.mxu0 %v420
      %452 = vmatmul.f32.gmra.mxu0 %v418
      %v453 = vpop.f32.mrf.mxu0
      %v454 = vadd.f32 %v260, %v453
      %455 = vdwg.mxu0
      %456 = vmatpush.msra.mxu0 0.0
      %457 = vmatpush.msra.mxu0 0.0
      %458 = vmatpush.msra.mxu0 0.0
      %459 = vmatpush.msra.mxu0 0.0
      %460 = vmatpush.msra.mxu0 0.0
      %461 = vmatpush.msra.mxu0 0.0
      %462 = vmatpush.msra.mxu0 0.0
      %463 = vmatpush.msra.mxu0 0.0
      %464 = vmatpush.msra.mxu0 0.0
      %465 = vmatpush.msra.mxu0 0.0
      %466 = vmatpush.msra.mxu0 0.0
      %467 = vmatpush.msra.mxu0 0.0
      %468 = vmatpush.msra.mxu0 0.0
      %469 = vmatpush.msra.mxu0 0.0
      %470 = vmatpush.msra.mxu0 0.0
      %471 = vmatpush.msra.mxu0 %v422
      %472 = vmatmul.f32.gmra.mxu0 %v418
      %v473 = vpop.f32.mrf.mxu0
      %v474 = vadd.f32 %v280, %v473
      %475 = vdwg.mxu0
      %476 = vmatpush.msra.mxu0 0.0
      %477 = vmatpush.msra.mxu0 0.0
      %478 = vmatpush.msra.mxu0 0.0
      %479 = vmatpush.msra.mxu0 0.0
      %480 = vmatpush.msra.mxu0 0.0
      %481 = vmatpush.msra.mxu0 0.0
      %482 = vmatpush.msra.mxu0 0.0
      %483 = vmatpush.msra.mxu0 0.0
      %484 = vmatpush.msra.mxu0 0.0
      %485 = vmatpush.msra.mxu0 0.0
      %486 = vmatpush.msra.mxu0 0.0
      %487 = vmatpush.msra.mxu0 0.0
      %488 = vmatpush.msra.mxu0 0.0
      %489 = vmatpush.msra.mxu0 0.0
      %490 = vmatpush.msra.mxu0 0.0
      %491 = vmatpush.msra.mxu0 %v424
      %492 = vmatmul.f32.gmra.mxu0 %v418
      %v493 = vpop.f32.mrf.mxu0
      %v494 = vadd.f32 %v300, %v493
      %495 = vdwg.mxu0
      %496 = vmatpush.msra.mxu0 0.0
      %497 = vmatpush.msra.mxu0 0.0
      %498 = vmatpush.msra.mxu0 0.0
      %499 = vmatpush.msra.mxu0 0.0
      %500 = vmatpush.msra.mxu0 0.0
      %501 = vmatpush.msra.mxu0 0.0
      %502 = vmatpush.msra.mxu0 0.0
      %503 = vmatpush.msra.mxu0 0.0
      %504 = vmatpush.msra.mxu0 0.0
      %505 = vmatpush.msra.mxu0 0.0
      %506 = vmatpush.msra.mxu0 0.0
      %507 = vmatpush.msra.mxu0 0.0
      %508 = vmatpush.msra.mxu0 0.0
      %509 = vmatpush.msra.mxu0 0.0
      %510 = vmatpush.msra.mxu0 0.0
      %511 = vmatpush.msra.mxu0 %v426
      %512 = vmatmul.f32.gmra.mxu0 %v418
      %v513 = vpop.f32.mrf.mxu0
      %v514 = vadd.f32 %v320, %v513
      %515 = vdwg.mxu0
      %516 = vmatpush.msra.mxu0 0.0
      %517 = vmatpush.msra.mxu0 0.0
      %518 = vmatpush.msra.mxu0 0.0
      %519 = vmatpush.msra.mxu0 0.0
      %520 = vmatpush.msra.mxu0 0.0
      %521 = vmatpush.msra.mxu0 0.0
      %522 = vmatpush.msra.mxu0 0.0
      %523 = vmatpush.msra.mxu0 0.0
      %524 = vmatpush.msra.mxu0 0.0
      %525 = vmatpush.msra.mxu0 0.0
      %526 = vmatpush.msra.mxu0 0.0
      %527 = vmatpush.msra.mxu0 0.0
      %528 = vmatpush.msra.mxu0 0.0
      %529 = vmatpush.msra.mxu0 0.0
      %530 = vmatpush.msra.mxu0 0.0
      %531 = vmatpush.msra.mxu0 %v428
      %532 = vmatmul.f32.gmra.mxu0 %v418
      %v533 = vpop.f32.mrf.mxu0
      %v534 = vadd.f32 %v340, %v533
      %535 = vdwg.mxu0
      %536 = vmatpush.msra.mxu0 0.0
      %537 = vmatpush.msra.mxu0 0.0
      %538 = vmatpush.msra.mxu0 0.0
      %539 = vmatpush.msra.mxu0 0.0
      %540 = vmatpush.msra.mxu0 0.0
      %541 = vmatpush.msra.mxu0 0.0
      %542 = vmatpush.msra.mxu0 0.0
      %543 = vmatpush.msra.mxu0 0.0
      %544 = vmatpush.msra.mxu0 0.0
      %545 = vmatpush.msra.mxu0 0.0
      %546 = vmatpush.msra.mxu0 0.0
      %547 = vmatpush.msra.mxu0 0.0
      %548 = vmatpush.msra.mxu0 0.0
      %549 = vmatpush.msra.mxu0 0.0
      %550 = vmatpush.msra.mxu0 0.0
      %551 = vmatpush.msra.mxu0 %v430
      %552 = vmatmul.f32.gmra.mxu0 %v418
      %v553 = vpop.f32.mrf.mxu0
      %v554 = vadd.f32 %v360, %v553
      %555 = vdwg.mxu0
      %556 = vmatpush.msra.mxu0 0.0
      %557 = vmatpush.msra.mxu0 0.0
      %558 = vmatpush.msra.mxu0 0.0
      %559 = vmatpush.msra.mxu0 0.0
      %560 = vmatpush.msra.mxu0 0.0
      %561 = vmatpush.msra.mxu0 0.0
      %562 = vmatpush.msra.mxu0 0.0
      %563 = vmatpush.msra.mxu0 0.0
      %564 = vmatpush.msra.mxu0 0.0
      %565 = vmatpush.msra.mxu0 0.0
      %566 = vmatpush.msra.mxu0 0.0
      %567 = vmatpush.msra.mxu0 0.0
      %568 = vmatpush.msra.mxu0 0.0
      %569 = vmatpush.msra.mxu0 0.0
      %570 = vmatpush.msra.mxu0 0.0
      %571 = vmatpush.msra.mxu0 %v432
      %572 = vmatmul.f32.gmra.mxu0 %v418
      %v573 = vpop.f32.mrf.mxu0
      %v574 = vadd.f32 %v380, %v573
      %575 = vdwg.mxu0
      %576 = vmatpush.msra.mxu0 0.0
      %577 = vmatpush.msra.mxu0 0.0
      %578 = vmatpush.msra.mxu0 0.0
      %579 = vmatpush.msra.mxu0 0.0
      %580 = vmatpush.msra.mxu0 0.0
      %581 = vmatpush.msra.mxu0 0.0
      %582 = vmatpush.msra.mxu0 0.0
      %583 = vmatpush.msra.mxu0 0.0
      %584 = vmatpush.msra.mxu0 0.0
      %585 = vmatpush.msra.mxu0 0.0
      %586 = vmatpush.msra.mxu0 0.0
      %587 = vmatpush.msra.mxu0 0.0
      %588 = vmatpush.msra.mxu0 0.0
      %589 = vmatpush.msra.mxu0 0.0
      %590 = vmatpush.msra.mxu0 0.0
      %591 = vmatpush.msra.mxu0 %v434
      %592 = vmatmul.f32.gmra.mxu0 %v418
      %v593 = vpop.f32.mrf.mxu0
      %v594 = vadd.f32 %v400, %v593
      %595 = vdwg.mxu0
      %s596 = scalar_lea.vmem %s1, 16
      %v597 = vld [vmem:[%s596] sm:$0xff]
      %598 = vst [vmem:[#allocation1] ss:$2 sm:$0xff] %v171
      %s599 = scalar_lea.vmem [#allocation1], 16
      %600 = vst [vmem:[%s599] ss:$2 sm:$0xff] %v172
      %s601 = scalar_lea.vmem [#allocation1], 32
      %602 = vst [vmem:[%s601] ss:$2 sm:$0xff] %v173
      %s603 = scalar_lea.vmem [#allocation1], 48
      %604 = vst [vmem:[%s603] ss:$2 sm:$0xff] %v174
      %v605 = vld.sshfl [vmem:[#allocation1] sm:$0xff pattern:$0x75316420]
      %v606 = vld.sshfl [vmem:[#allocation1 + $0x8] sm:$0xff pattern:$0x75316420]
      %v607 = vld.sshfl [vmem:[#allocation1 + $0x10] sm:$0xff pattern:$0x75316420]
      %v608 = vld.sshfl [vmem:[#allocation1 + $0x18] sm:$0xff pattern:$0x75316420]
      %v609 = vld.sshfl [vmem:[#allocation1 + $0x20] sm:$0xff pattern:$0x75316420]
      %v610 = vld.sshfl [vmem:[#allocation1 + $0x28] sm:$0xff pattern:$0x75316420]
      %v611 = vld.sshfl [vmem:[#allocation1 + $0x30] sm:$0xff pattern:$0x75316420]
      %v612 = vld.sshfl [vmem:[#allocation1 + $0x38] sm:$0xff pattern:$0x75316420]
      %613 = vrot.lane.b32.xlu0 %v605, 126
      %v614 = vpop.permute.xlu0 %613
      %615 = vrot.lane.b32.xlu0 %v606, 126
      %v616 = vpop.permute.xlu0 %615
      %617 = vrot.lane.b32.xlu0 %v607, 126
      %v618 = vpop.permute.xlu0 %617
      %619 = vrot.lane.b32.xlu0 %v608, 126
      %v620 = vpop.permute.xlu0 %619
      %621 = vrot.lane.b32.xlu0 %v609, 126
      %v622 = vpop.permute.xlu0 %621
      %623 = vrot.lane.b32.xlu0 %v610, 126
      %v624 = vpop.permute.xlu0 %623
      %625 = vrot.lane.b32.xlu0 %v611, 126
      %v626 = vpop.permute.xlu0 %625
      %627 = vrot.lane.b32.xlu0 %v612, 126
      %v628 = vpop.permute.xlu0 %627
      %vm629 = vcmask 1031168
      %v630 = vsel %vm629, %v614, %v616
      %v631 = vsel %vm629, %v616, %v618
      %v632 = vsel %vm629, %v618, %v620
      %v633 = vsel %vm629, %v620, %v622
      %v634 = vsel %vm629, %v622, %v624
      %v635 = vsel %vm629, %v624, %v626
      %v636 = vsel %vm629, %v626, %v628
      %v638 = vsel %vm221, %v597, 0
      %v640 = vsel %vm225, %v630, 0
      %v642 = vsel %vm225, %v631, 0
      %v644 = vsel %vm225, %v632, 0
      %v646 = vsel %vm225, %v633, 0
      %v648 = vsel %vm225, %v634, 0
      %v650 = vsel %vm225, %v635, 0
      %v652 = vsel %vm225, %v636, 0
      %v654 = vsel %vm225, %v628, 0
      %656 = vmatpush.msra.mxu0 0.0
      %657 = vmatpush.msra.mxu0 0.0
      %658 = vmatpush.msra.mxu0 0.0
      %659 = vmatpush.msra.mxu0 0.0
      %660 = vmatpush.msra.mxu0 0.0
      %661 = vmatpush.msra.mxu0 0.0
      %662 = vmatpush.msra.mxu0 0.0
      %663 = vmatpush.msra.mxu0 0.0
      %664 = vmatpush.msra.mxu0 0.0
      %665 = vmatpush.msra.mxu0 0.0
      %666 = vmatpush.msra.mxu0 0.0
      %667 = vmatpush.msra.mxu0 0.0
      %668 = vmatpush.msra.mxu0 0.0
      %669 = vmatpush.msra.mxu0 0.0
      %670 = vmatpush.msra.mxu0 0.0
      %671 = vmatpush.msra.mxu0 %v640
      %672 = vmatmul.f32.gmra.mxu0 %v638
      %v673 = vpop.f32.mrf.mxu0
      %v674 = vadd.f32 0.0, %v673
      %675 = vdwg.mxu0
      %676 = vmatpush.msra.mxu0 0.0
      %677 = vmatpush.msra.mxu0 0.0
      %678 = vmatpush.msra.mxu0 0.0
      %679 = vmatpush.msra.mxu0 0.0
      %680 = vmatpush.msra.mxu0 0.0
      %681 = vmatpush.msra.mxu0 0.0
      %682 = vmatpush.msra.mxu0 0.0
      %683 = vmatpush.msra.mxu0 0.0
      %684 = vmatpush.msra.mxu0 0.0
      %685 = vmatpush.msra.mxu0 0.0
      %686 = vmatpush.msra.mxu0 0.0
      %687 = vmatpush.msra.mxu0 0.0
      %688 = vmatpush.msra.mxu0 0.0
      %689 = vmatpush.msra.mxu0 0.0
      %690 = vmatpush.msra.mxu0 0.0
      %691 = vmatpush.msra.mxu0 %v642
      %692 = vmatmul.f32.gmra.mxu0 %v638
      %v693 = vpop.f32.mrf.mxu0
      %v694 = vadd.f32 0.0, %v693
      %695 = vdwg.mxu0
      %696 = vmatpush.msra.mxu0 0.0
      %697 = vmatpush.msra.mxu0 0.0
      %698 = vmatpush.msra.mxu0 0.0
      %699 = vmatpush.msra.mxu0 0.0
      %700 = vmatpush.msra.mxu0 0.0
      %701 = vmatpush.msra.mxu0 0.0
      %702 = vmatpush.msra.mxu0 0.0
      %703 = vmatpush.msra.mxu0 0.0
      %704 = vmatpush.msra.mxu0 0.0
      %705 = vmatpush.msra.mxu0 0.0
      %706 = vmatpush.msra.mxu0 0.0
      %707 = vmatpush.msra.mxu0 0.0
      %708 = vmatpush.msra.mxu0 0.0
      %709 = vmatpush.msra.mxu0 0.0
      %710 = vmatpush.msra.mxu0 0.0
      %711 = vmatpush.msra.mxu0 %v644
      %712 = vmatmul.f32.gmra.mxu0 %v638
      %v713 = vpop.f32.mrf.mxu0
      %v714 = vadd.f32 0.0, %v713
      %715 = vdwg.mxu0
      %716 = vmatpush.msra.mxu0 0.0
      %717 = vmatpush.msra.mxu0 0.0
      %718 = vmatpush.msra.mxu0 0.0
      %719 = vmatpush.msra.mxu0 0.0
      %720 = vmatpush.msra.mxu0 0.0
      %721 = vmatpush.msra.mxu0 0.0
      %722 = vmatpush.msra.mxu0 0.0
      %723 = vmatpush.msra.mxu0 0.0
      %724 = vmatpush.msra.mxu0 0.0
      %725 = vmatpush.msra.mxu0 0.0
      %726 = vmatpush.msra.mxu0 0.0
      %727 = vmatpush.msra.mxu0 0.0
      %728 = vmatpush.msra.mxu0 0.0
      %729 = vmatpush.msra.mxu0 0.0
      %730 = vmatpush.msra.mxu0 0.0
      %731 = vmatpush.msra.mxu0 %v646
      %732 = vmatmul.f32.gmra.mxu0 %v638
      %v733 = vpop.f32.mrf.mxu0
      %v734 = vadd.f32 0.0, %v733
      %735 = vdwg.mxu0
      %736 = vmatpush.msra.mxu0 0.0
      %737 = vmatpush.msra.mxu0 0.0
      %738 = vmatpush.msra.mxu0 0.0
      %739 = vmatpush.msra.mxu0 0.0
      %740 = vmatpush.msra.mxu0 0.0
      %741 = vmatpush.msra.mxu0 0.0
      %742 = vmatpush.msra.mxu0 0.0
      %743 = vmatpush.msra.mxu0 0.0
      %744 = vmatpush.msra.mxu0 0.0
      %745 = vmatpush.msra.mxu0 0.0
      %746 = vmatpush.msra.mxu0 0.0
      %747 = vmatpush.msra.mxu0 0.0
      %748 = vmatpush.msra.mxu0 0.0
      %749 = vmatpush.msra.mxu0 0.0
      %750 = vmatpush.msra.mxu0 0.0
      %751 = vmatpush.msra.mxu0 %v648
      %752 = vmatmul.f32.gmra.mxu0 %v638
      %v753 = vpop.f32.mrf.mxu0
      %v754 = vadd.f32 0.0, %v753
      %755 = vdwg.mxu0
      %756 = vmatpush.msra.mxu0 0.0
      %757 = vmatpush.msra.mxu0 0.0
      %758 = vmatpush.msra.mxu0 0.0
      %759 = vmatpush.msra.mxu0 0.0
      %760 = vmatpush.msra.mxu0 0.0
      %761 = vmatpush.msra.mxu0 0.0
      %762 = vmatpush.msra.mxu0 0.0
      %763 = vmatpush.msra.mxu0 0.0
      %764 = vmatpush.msra.mxu0 0.0
      %765 = vmatpush.msra.mxu0 0.0
      %766 = vmatpush.msra.mxu0 0.0
      %767 = vmatpush.msra.mxu0 0.0
      %768 = vmatpush.msra.mxu0 0.0
      %769 = vmatpush.msra.mxu0 0.0
      %770 = vmatpush.msra.mxu0 0.0
      %771 = vmatpush.msra.mxu0 %v650
      %772 = vmatmul.f32.gmra.mxu0 %v638
      %v773 = vpop.f32.mrf.mxu0
      %v774 = vadd.f32 0.0, %v773
      %775 = vdwg.mxu0
      %776 = vmatpush.msra.mxu0 0.0
      %777 = vmatpush.msra.mxu0 0.0
      %778 = vmatpush.msra.mxu0 0.0
      %779 = vmatpush.msra.mxu0 0.0
      %780 = vmatpush.msra.mxu0 0.0
      %781 = vmatpush.msra.mxu0 0.0
      %782 = vmatpush.msra.mxu0 0.0
      %783 = vmatpush.msra.mxu0 0.0
      %784 = vmatpush.msra.mxu0 0.0
      %785 = vmatpush.msra.mxu0 0.0
      %786 = vmatpush.msra.mxu0 0.0
      %787 = vmatpush.msra.mxu0 0.0
      %788 = vmatpush.msra.mxu0 0.0
      %789 = vmatpush.msra.mxu0 0.0
      %790 = vmatpush.msra.mxu0 0.0
      %791 = vmatpush.msra.mxu0 %v652
      %792 = vmatmul.f32.gmra.mxu0 %v638
      %v793 = vpop.f32.mrf.mxu0
      %v794 = vadd.f32 0.0, %v793
      %795 = vdwg.mxu0
      %796 = vmatpush.msra.mxu0 0.0
      %797 = vmatpush.msra.mxu0 0.0
      %798 = vmatpush.msra.mxu0 0.0
      %799 = vmatpush.msra.mxu0 0.0
      %800 = vmatpush.msra.mxu0 0.0
      %801 = vmatpush.msra.mxu0 0.0
      %802 = vmatpush.msra.mxu0 0.0
      %803 = vmatpush.msra.mxu0 0.0
      %804 = vmatpush.msra.mxu0 0.0
      %805 = vmatpush.msra.mxu0 0.0
      %806 = vmatpush.msra.mxu0 0.0
      %807 = vmatpush.msra.mxu0 0.0
      %808 = vmatpush.msra.mxu0 0.0
      %809 = vmatpush.msra.mxu0 0.0
      %810 = vmatpush.msra.mxu0 0.0
      %811 = vmatpush.msra.mxu0 %v654
      %812 = vmatmul.f32.gmra.mxu0 %v638
      %v813 = vpop.f32.mrf.mxu0
      %v814 = vadd.f32 0.0, %v813
      %815 = vdwg.mxu0
      %v816 = vadd.f32 %v454, %v674
      %v817 = vadd.f32 %v474, %v694
      %v818 = vadd.f32 %v494, %v714
      %v819 = vadd.f32 %v514, %v734
      %v820 = vadd.f32 %v534, %v754
      %v821 = vadd.f32 %v554, %v774
      %v822 = vadd.f32 %v574, %v794
      %v823 = vadd.f32 %v594, %v814
      %s824 = scalar_lea.vmem %s1, 24
      %v825 = vld [vmem:[%s824] sm:$0xff]
      %826 = vst [vmem:[#allocation1] ss:$2 sm:$0xff] %v171
      %s827 = scalar_lea.vmem [#allocation1], 16
      %828 = vst [vmem:[%s827] ss:$2 sm:$0xff] %v172
      %s829 = scalar_lea.vmem [#allocation1], 32
      %830 = vst [vmem:[%s829] ss:$2 sm:$0xff] %v173
      %s831 = scalar_lea.vmem [#allocation1], 48
      %832 = vst [vmem:[%s831] ss:$2 sm:$0xff] %v174
      %v833 = vld.sshfl [vmem:[#allocation1] sm:$0xff pattern:$0x75316420]
      %v834 = vld.sshfl [vmem:[#allocation1 + $0x8] sm:$0xff pattern:$0x75316420]
      %v835 = vld.sshfl [vmem:[#allocation1 + $0x10] sm:$0xff pattern:$0x75316420]
      %v836 = vld.sshfl [vmem:[#allocation1 + $0x18] sm:$0xff pattern:$0x75316420]
      %v837 = vld.sshfl [vmem:[#allocation1 + $0x20] sm:$0xff pattern:$0x75316420]
      %v838 = vld.sshfl [vmem:[#allocation1 + $0x28] sm:$0xff pattern:$0x75316420]
      %v839 = vld.sshfl [vmem:[#allocation1 + $0x30] sm:$0xff pattern:$0x75316420]
      %v840 = vld.sshfl [vmem:[#allocation1 + $0x38] sm:$0xff pattern:$0x75316420]
      %841 = vrot.lane.b32.xlu0 %v833, 96
      %v842 = vpop.permute.xlu0 %841
      %843 = vrot.lane.b32.xlu0 %v834, 96
      %v844 = vpop.permute.xlu0 %843
      %845 = vrot.lane.b32.xlu0 %v835, 96
      %v846 = vpop.permute.xlu0 %845
      %847 = vrot.lane.b32.xlu0 %v836, 96
      %v848 = vpop.permute.xlu0 %847
      %849 = vrot.lane.b32.xlu0 %v837, 96
      %v850 = vpop.permute.xlu0 %849
      %851 = vrot.lane.b32.xlu0 %v838, 96
      %v852 = vpop.permute.xlu0 %851
      %853 = vrot.lane.b32.xlu0 %v839, 96
      %v854 = vpop.permute.xlu0 %853
      %855 = vrot.lane.b32.xlu0 %v840, 96
      %v856 = vpop.permute.xlu0 %855
      %vm857 = vcmask 785408
      %v858 = vsel %vm857, %v842, %v844
      %v859 = vsel %vm857, %v844, %v846
      %v860 = vsel %vm857, %v846, %v848
      %v861 = vsel %vm857, %v848, %v850
      %v862 = vsel %vm857, %v850, %v852
      %v863 = vsel %vm857, %v852, %v854
      %v864 = vsel %vm857, %v854, %v856
      %v866 = vsel %vm221, %v825, 0
      %v868 = vsel %vm225, %v858, 0
      %v870 = vsel %vm225, %v859, 0
      %v872 = vsel %vm225, %v860, 0
      %v874 = vsel %vm225, %v861, 0
      %v876 = vsel %vm225, %v862, 0
      %v878 = vsel %vm225, %v863, 0
      %v880 = vsel %vm225, %v864, 0
      %v882 = vsel %vm225, %v856, 0
      %884 = vmatpush.msra.mxu0 0.0
      %885 = vmatpush.msra.mxu0 0.0
      %886 = vmatpush.msra.mxu0 0.0
      %887 = vmatpush.msra.mxu0 0.0
      %888 = vmatpush.msra.mxu0 0.0
      %889 = vmatpush.msra.mxu0 0.0
      %890 = vmatpush.msra.mxu0 0.0
      %891 = vmatpush.msra.mxu0 0.0
      %892 = vmatpush.msra.mxu0 0.0
      %893 = vmatpush.msra.mxu0 0.0
      %894 = vmatpush.msra.mxu0 0.0
      %895 = vmatpush.msra.mxu0 0.0
      %896 = vmatpush.msra.mxu0 0.0
      %897 = vmatpush.msra.mxu0 0.0
      %898 = vmatpush.msra.mxu0 0.0
      %899 = vmatpush.msra.mxu0 %v868
      %900 = vmatmul.f32.gmra.mxu0 %v866
      %v901 = vpop.f32.mrf.mxu0
      %v902 = vadd.f32 0.0, %v901
      %903 = vdwg.mxu0
      %904 = vmatpush.msra.mxu0 0.0
      %905 = vmatpush.msra.mxu0 0.0
      %906 = vmatpush.msra.mxu0 0.0
      %907 = vmatpush.msra.mxu0 0.0
      %908 = vmatpush.msra.mxu0 0.0
      %909 = vmatpush.msra.mxu0 0.0
      %910 = vmatpush.msra.mxu0 0.0
      %911 = vmatpush.msra.mxu0 0.0
      %912 = vmatpush.msra.mxu0 0.0
      %913 = vmatpush.msra.mxu0 0.0
      %914 = vmatpush.msra.mxu0 0.0
      %915 = vmatpush.msra.mxu0 0.0
      %916 = vmatpush.msra.mxu0 0.0
      %917 = vmatpush.msra.mxu0 0.0
      %918 = vmatpush.msra.mxu0 0.0
      %919 = vmatpush.msra.mxu0 %v870
      %920 = vmatmul.f32.gmra.mxu0 %v866
      %v921 = vpop.f32.mrf.mxu0
      %v922 = vadd.f32 0.0, %v921
      %923 = vdwg.mxu0
      %924 = vmatpush.msra.mxu0 0.0
      %925 = vmatpush.msra.mxu0 0.0
      %926 = vmatpush.msra.mxu0 0.0
      %927 = vmatpush.msra.mxu0 0.0
      %928 = vmatpush.msra.mxu0 0.0
      %929 = vmatpush.msra.mxu0 0.0
      %930 = vmatpush.msra.mxu0 0.0
      %931 = vmatpush.msra.mxu0 0.0
      %932 = vmatpush.msra.mxu0 0.0
      %933 = vmatpush.msra.mxu0 0.0
      %934 = vmatpush.msra.mxu0 0.0
      %935 = vmatpush.msra.mxu0 0.0
      %936 = vmatpush.msra.mxu0 0.0
      %937 = vmatpush.msra.mxu0 0.0
      %938 = vmatpush.msra.mxu0 0.0
      %939 = vmatpush.msra.mxu0 %v872
      %940 = vmatmul.f32.gmra.mxu0 %v866
      %v941 = vpop.f32.mrf.mxu0
      %v942 = vadd.f32 0.0, %v941
      %943 = vdwg.mxu0
      %944 = vmatpush.msra.mxu0 0.0
      %945 = vmatpush.msra.mxu0 0.0
      %946 = vmatpush.msra.mxu0 0.0
      %947 = vmatpush.msra.mxu0 0.0
      %948 = vmatpush.msra.mxu0 0.0
      %949 = vmatpush.msra.mxu0 0.0
      %950 = vmatpush.msra.mxu0 0.0
      %951 = vmatpush.msra.mxu0 0.0
      %952 = vmatpush.msra.mxu0 0.0
      %953 = vmatpush.msra.mxu0 0.0
      %954 = vmatpush.msra.mxu0 0.0
      %955 = vmatpush.msra.mxu0 0.0
      %956 = vmatpush.msra.mxu0 0.0
      %957 = vmatpush.msra.mxu0 0.0
      %958 = vmatpush.msra.mxu0 0.0
      %959 = vmatpush.msra.mxu0 %v874
      %960 = vmatmul.f32.gmra.mxu0 %v866
      %v961 = vpop.f32.mrf.mxu0
      %v962 = vadd.f32 0.0, %v961
      %963 = vdwg.mxu0
      %964 = vmatpush.msra.mxu0 0.0
      %965 = vmatpush.msra.mxu0 0.0
      %966 = vmatpush.msra.mxu0 0.0
      %967 = vmatpush.msra.mxu0 0.0
      %968 = vmatpush.msra.mxu0 0.0
      %969 = vmatpush.msra.mxu0 0.0
      %970 = vmatpush.msra.mxu0 0.0
      %971 = vmatpush.msra.mxu0 0.0
      %972 = vmatpush.msra.mxu0 0.0
      %973 = vmatpush.msra.mxu0 0.0
      %974 = vmatpush.msra.mxu0 0.0
      %975 = vmatpush.msra.mxu0 0.0
      %976 = vmatpush.msra.mxu0 0.0
      %977 = vmatpush.msra.mxu0 0.0
      %978 = vmatpush.msra.mxu0 0.0
      %979 = vmatpush.msra.mxu0 %v876
      %980 = vmatmul.f32.gmra.mxu0 %v866
      %v981 = vpop.f32.mrf.mxu0
      %v982 = vadd.f32 0.0, %v981
      %983 = vdwg.mxu0
      %984 = vmatpush.msra.mxu0 0.0
      %985 = vmatpush.msra.mxu0 0.0
      %986 = vmatpush.msra.mxu0 0.0
      %987 = vmatpush.msra.mxu0 0.0
      %988 = vmatpush.msra.mxu0 0.0
      %989 = vmatpush.msra.mxu0 0.0
      %990 = vmatpush.msra.mxu0 0.0
      %991 = vmatpush.msra.mxu0 0.0
      %992 = vmatpush.msra.mxu0 0.0
      %993 = vmatpush.msra.mxu0 0.0
      %994 = vmatpush.msra.mxu0 0.0
      %995 = vmatpush.msra.mxu0 0.0
      %996 = vmatpush.msra.mxu0 0.0
      %997 = vmatpush.msra.mxu0 0.0
      %998 = vmatpush.msra.mxu0 0.0
      %999 = vmatpush.msra.mxu0 %v878
      %1000 = vmatmul.f32.gmra.mxu0 %v866
      %v1001 = vpop.f32.mrf.mxu0
      %v1002 = vadd.f32 0.0, %v1001
      %1003 = vdwg.mxu0
      %1004 = vmatpush.msra.mxu0 0.0
      %1005 = vmatpush.msra.mxu0 0.0
      %1006 = vmatpush.msra.mxu0 0.0
      %1007 = vmatpush.msra.mxu0 0.0
      %1008 = vmatpush.msra.mxu0 0.0
      %1009 = vmatpush.msra.mxu0 0.0
      %1010 = vmatpush.msra.mxu0 0.0
      %1011 = vmatpush.msra.mxu0 0.0
      %1012 = vmatpush.msra.mxu0 0.0
      %1013 = vmatpush.msra.mxu0 0.0
      %1014 = vmatpush.msra.mxu0 0.0
      %1015 = vmatpush.msra.mxu0 0.0
      %1016 = vmatpush.msra.mxu0 0.0
      %1017 = vmatpush.msra.mxu0 0.0
      %1018 = vmatpush.msra.mxu0 0.0
      %1019 = vmatpush.msra.mxu0 %v880
      %1020 = vmatmul.f32.gmra.mxu0 %v866
      %v1021 = vpop.f32.mrf.mxu0
      %v1022 = vadd.f32 0.0, %v1021
      %1023 = vdwg.mxu0
      %1024 = vmatpush.msra.mxu0 0.0
      %1025 = vmatpush.msra.mxu0 0.0
      %1026 = vmatpush.msra.mxu0 0.0
      %1027 = vmatpush.msra.mxu0 0.0
      %1028 = vmatpush.msra.mxu0 0.0
      %1029 = vmatpush.msra.mxu0 0.0
      %1030 = vmatpush.msra.mxu0 0.0
      %1031 = vmatpush.msra.mxu0 0.0
      %1032 = vmatpush.msra.mxu0 0.0
      %1033 = vmatpush.msra.mxu0 0.0
      %1034 = vmatpush.msra.mxu0 0.0
      %1035 = vmatpush.msra.mxu0 0.0
      %1036 = vmatpush.msra.mxu0 0.0
      %1037 = vmatpush.msra.mxu0 0.0
      %1038 = vmatpush.msra.mxu0 0.0
      %1039 = vmatpush.msra.mxu0 %v882
      %1040 = vmatmul.f32.gmra.mxu0 %v866
      %v1041 = vpop.f32.mrf.mxu0
      %v1042 = vadd.f32 0.0, %v1041
      %1043 = vdwg.mxu0
      %v1044 = vadd.f32 %v816, %v902
      %v1045 = vadd.f32 %v817, %v922
      %v1046 = vadd.f32 %v818, %v942
      %v1047 = vadd.f32 %v819, %v962
      %v1048 = vadd.f32 %v820, %v982
      %v1049 = vadd.f32 %v821, %v1002
      %v1050 = vadd.f32 %v822, %v1022
      %v1051 = vadd.f32 %v823, %v1042
      %s1052 = scalar_lea.vmem %s1, 32
      %v1053 = vld [vmem:[%s1052] sm:$0xff]
      %1054 = vst [vmem:[#allocation1] ss:$2 sm:$0xff] %v171
      %s1055 = scalar_lea.vmem [#allocation1], 16
      %1056 = vst [vmem:[%s1055] ss:$2 sm:$0xff] %v172
      %s1057 = scalar_lea.vmem [#allocation1], 32
      %1058 = vst [vmem:[%s1057] ss:$2 sm:$0xff] %v173
      %s1059 = scalar_lea.vmem [#allocation1], 48
      %1060 = vst [vmem:[%s1059] ss:$2 sm:$0xff] %v174
      %v1061 = vld.sshfl [vmem:[#allocation1] sm:$0xff pattern:$0x75316420]
      %v1062 = vld.sshfl [vmem:[#allocation1 + $0x8] sm:$0xff pattern:$0x75316420]
      %v1063 = vld.sshfl [vmem:[#allocation1 + $0x10] sm:$0xff pattern:$0x75316420]
      %v1064 = vld.sshfl [vmem:[#allocation1 + $0x18] sm:$0xff pattern:$0x75316420]
      %v1065 = vld.sshfl [vmem:[#allocation1 + $0x20] sm:$0xff pattern:$0x75316420]
      %v1066 = vld.sshfl [vmem:[#allocation1 + $0x28] sm:$0xff pattern:$0x75316420]
      %v1067 = vld.sshfl [vmem:[#allocation1 + $0x30] sm:$0xff pattern:$0x75316420]
      %v1068 = vld.sshfl [vmem:[#allocation1 + $0x38] sm:$0xff pattern:$0x75316420]
      %1069 = vrot.lane.b32.xlu0 %v1061, 95
      %v1070 = vpop.permute.xlu0 %1069
      %1071 = vrot.lane.b32.xlu0 %v1062, 95
      %v1072 = vpop.permute.xlu0 %1071
      %1073 = vrot.lane.b32.xlu0 %v1063, 95
      %v1074 = vpop.permute.xlu0 %1073
      %1075 = vrot.lane.b32.xlu0 %v1064, 95
      %v1076 = vpop.permute.xlu0 %1075
      %1077 = vrot.lane.b32.xlu0 %v1065, 95
      %v1078 = vpop.permute.xlu0 %1077
      %1079 = vrot.lane.b32.xlu0 %v1066, 95
      %v1080 = vpop.permute.xlu0 %1079
      %1081 = vrot.lane.b32.xlu0 %v1067, 95
      %v1082 = vpop.permute.xlu0 %1081
      %1083 = vrot.lane.b32.xlu0 %v1068, 95
      %v1084 = vpop.permute.xlu0 %1083
      %vm1085 = vcmask 777216
      %v1086 = vsel %vm1085, %v1070, %v1072
      %v1087 = vsel %vm1085, %v1072, %v1074
      %v1088 = vsel %vm1085, %v1074, %v1076
      %v1089 = vsel %vm1085, %v1076, %v1078
      %v1090 = vsel %vm1085, %v1078, %v1080
      %v1091 = vsel %vm1085, %v1080, %v1082
      %v1092 = vsel %vm1085, %v1082, %v1084
      %v1094 = vsel %vm221, %v1053, 0
      %v1096 = vsel %vm225, %v1086, 0
      %v1098 = vsel %vm225, %v1087, 0
      %v1100 = vsel %vm225, %v1088, 0
      %v1102 = vsel %vm225, %v1089, 0
      %v1104 = vsel %vm225, %v1090, 0
      %v1106 = vsel %vm225, %v1091, 0
      %v1108 = vsel %vm225, %v1092, 0
      %v1110 = vsel %vm225, %v1084, 0
      %1112 = vmatpush.msra.mxu0 0.0
      %1113 = vmatpush.msra.mxu0 0.0
      %1114 = vmatpush.msra.mxu0 0.0
      %1115 = vmatpush.msra.mxu0 0.0
      %1116 = vmatpush.msra.mxu0 0.0
      %1117 = vmatpush.msra.mxu0 0.0
      %1118 = vmatpush.msra.mxu0 0.0
      %1119 = vmatpush.msra.mxu0 0.0
      %1120 = vmatpush.msra.mxu0 0.0
      %1121 = vmatpush.msra.mxu0 0.0
      %1122 = vmatpush.msra.mxu0 0.0
      %1123 = vmatpush.msra.mxu0 0.0
      %1124 = vmatpush.msra.mxu0 0.0
      %1125 = vmatpush.msra.mxu0 0.0
      %1126 = vmatpush.msra.mxu0 0.0
      %1127 = vmatpush.msra.mxu0 %v1096
      %1128 = vmatmul.f32.gmra.mxu0 %v1094
      %v1129 = vpop.f32.mrf.mxu0
      %v1130 = vadd.f32 0.0, %v1129
      %1131 = vdwg.mxu0
      %1132 = vmatpush.msra.mxu0 0.0
      %1133 = vmatpush.msra.mxu0 0.0
      %1134 = vmatpush.msra.mxu0 0.0
      %1135 = vmatpush.msra.mxu0 0.0
      %1136 = vmatpush.msra.mxu0 0.0
      %1137 = vmatpush.msra.mxu0 0.0
      %1138 = vmatpush.msra.mxu0 0.0
      %1139 = vmatpush.msra.mxu0 0.0
      %1140 = vmatpush.msra.mxu0 0.0
      %1141 = vmatpush.msra.mxu0 0.0
      %1142 = vmatpush.msra.mxu0 0.0
      %1143 = vmatpush.msra.mxu0 0.0
      %1144 = vmatpush.msra.mxu0 0.0
      %1145 = vmatpush.msra.mxu0 0.0
      %1146 = vmatpush.msra.mxu0 0.0
      %1147 = vmatpush.msra.mxu0 %v1098
      %1148 = vmatmul.f32.gmra.mxu0 %v1094
      %v1149 = vpop.f32.mrf.mxu0
      %v1150 = vadd.f32 0.0, %v1149
      %1151 = vdwg.mxu0
      %1152 = vmatpush.msra.mxu0 0.0
      %1153 = vmatpush.msra.mxu0 0.0
      %1154 = vmatpush.msra.mxu0 0.0
      %1155 = vmatpush.msra.mxu0 0.0
      %1156 = vmatpush.msra.mxu0 0.0
      %1157 = vmatpush.msra.mxu0 0.0
      %1158 = vmatpush.msra.mxu0 0.0
      %1159 = vmatpush.msra.mxu0 0.0
      %1160 = vmatpush.msra.mxu0 0.0
      %1161 = vmatpush.msra.mxu0 0.0
      %1162 = vmatpush.msra.mxu0 0.0
      %1163 = vmatpush.msra.mxu0 0.0
      %1164 = vmatpush.msra.mxu0 0.0
      %1165 = vmatpush.msra.mxu0 0.0
      %1166 = vmatpush.msra.mxu0 0.0
      %1167 = vmatpush.msra.mxu0 %v1100
      %1168 = vmatmul.f32.gmra.mxu0 %v1094
      %v1169 = vpop.f32.mrf.mxu0
      %v1170 = vadd.f32 0.0, %v1169
      %1171 = vdwg.mxu0
      %1172 = vmatpush.msra.mxu0 0.0
      %1173 = vmatpush.msra.mxu0 0.0
      %1174 = vmatpush.msra.mxu0 0.0
      %1175 = vmatpush.msra.mxu0 0.0
      %1176 = vmatpush.msra.mxu0 0.0
      %1177 = vmatpush.msra.mxu0 0.0
      %1178 = vmatpush.msra.mxu0 0.0
      %1179 = vmatpush.msra.mxu0 0.0
      %1180 = vmatpush.msra.mxu0 0.0
      %1181 = vmatpush.msra.mxu0 0.0
      %1182 = vmatpush.msra.mxu0 0.0
      %1183 = vmatpush.msra.mxu0 0.0
      %1184 = vmatpush.msra.mxu0 0.0
      %1185 = vmatpush.msra.mxu0 0.0
      %1186 = vmatpush.msra.mxu0 0.0
      %1187 = vmatpush.msra.mxu0 %v1102
      %1188 = vmatmul.f32.gmra.mxu0 %v1094
      %v1189 = vpop.f32.mrf.mxu0
      %v1190 = vadd.f32 0.0, %v1189
      %1191 = vdwg.mxu0
      %1192 = vmatpush.msra.mxu0 0.0
      %1193 = vmatpush.msra.mxu0 0.0
      %1194 = vmatpush.msra.mxu0 0.0
      %1195 = vmatpush.msra.mxu0 0.0
      %1196 = vmatpush.msra.mxu0 0.0
      %1197 = vmatpush.msra.mxu0 0.0
      %1198 = vmatpush.msra.mxu0 0.0
      %1199 = vmatpush.msra.mxu0 0.0
      %1200 = vmatpush.msra.mxu0 0.0
      %1201 = vmatpush.msra.mxu0 0.0
      %1202 = vmatpush.msra.mxu0 0.0
      %1203 = vmatpush.msra.mxu0 0.0
      %1204 = vmatpush.msra.mxu0 0.0
      %1205 = vmatpush.msra.mxu0 0.0
      %1206 = vmatpush.msra.mxu0 0.0
      %1207 = vmatpush.msra.mxu0 %v1104
      %1208 = vmatmul.f32.gmra.mxu0 %v1094
      %v1209 = vpop.f32.mrf.mxu0
      %v1210 = vadd.f32 0.0, %v1209
      %1211 = vdwg.mxu0
      %1212 = vmatpush.msra.mxu0 0.0
      %1213 = vmatpush.msra.mxu0 0.0
      %1214 = vmatpush.msra.mxu0 0.0
      %1215 = vmatpush.msra.mxu0 0.0
      %1216 = vmatpush.msra.mxu0 0.0
      %1217 = vmatpush.msra.mxu0 0.0
      %1218 = vmatpush.msra.mxu0 0.0
      %1219 = vmatpush.msra.mxu0 0.0
      %1220 = vmatpush.msra.mxu0 0.0
      %1221 = vmatpush.msra.mxu0 0.0
      %1222 = vmatpush.msra.mxu0 0.0
      %1223 = vmatpush.msra.mxu0 0.0
      %1224 = vmatpush.msra.mxu0 0.0
      %1225 = vmatpush.msra.mxu0 0.0
      %1226 = vmatpush.msra.mxu0 0.0
      %1227 = vmatpush.msra.mxu0 %v1106
      %1228 = vmatmul.f32.gmra.mxu0 %v1094
      %v1229 = vpop.f32.mrf.mxu0
      %v1230 = vadd.f32 0.0, %v1229
      %1231 = vdwg.mxu0
      %1232 = vmatpush.msra.mxu0 0.0
      %1233 = vmatpush.msra.mxu0 0.0
      %1234 = vmatpush.msra.mxu0 0.0
      %1235 = vmatpush.msra.mxu0 0.0
      %1236 = vmatpush.msra.mxu0 0.0
      %1237 = vmatpush.msra.mxu0 0.0
      %1238 = vmatpush.msra.mxu0 0.0
      %1239 = vmatpush.msra.mxu0 0.0
      %1240 = vmatpush.msra.mxu0 0.0
      %1241 = vmatpush.msra.mxu0 0.0
      %1242 = vmatpush.msra.mxu0 0.0
      %1243 = vmatpush.msra.mxu0 0.0
      %1244 = vmatpush.msra.mxu0 0.0
      %1245 = vmatpush.msra.mxu0 0.0
      %1246 = vmatpush.msra.mxu0 0.0
      %1247 = vmatpush.msra.mxu0 %v1108
      %1248 = vmatmul.f32.gmra.mxu0 %v1094
      %v1249 = vpop.f32.mrf.mxu0
      %v1250 = vadd.f32 0.0, %v1249
      %1251 = vdwg.mxu0
      %1252 = vmatpush.msra.mxu0 0.0
      %1253 = vmatpush.msra.mxu0 0.0
      %1254 = vmatpush.msra.mxu0 0.0
      %1255 = vmatpush.msra.mxu0 0.0
      %1256 = vmatpush.msra.mxu0 0.0
      %1257 = vmatpush.msra.mxu0 0.0
      %1258 = vmatpush.msra.mxu0 0.0
      %1259 = vmatpush.msra.mxu0 0.0
      %1260 = vmatpush.msra.mxu0 0.0
      %1261 = vmatpush.msra.mxu0 0.0
      %1262 = vmatpush.msra.mxu0 0.0
      %1263 = vmatpush.msra.mxu0 0.0
      %1264 = vmatpush.msra.mxu0 0.0
      %1265 = vmatpush.msra.mxu0 0.0
      %1266 = vmatpush.msra.mxu0 0.0
      %1267 = vmatpush.msra.mxu0 %v1110
      %1268 = vmatmul.f32.gmra.mxu0 %v1094
      %v1269 = vpop.f32.mrf.mxu0
      %v1270 = vadd.f32 0.0, %v1269
      %1271 = vdwg.mxu0
      %v1272 = vadd.f32 %v1044, %v1130
      %v1273 = vadd.f32 %v1045, %v1150
      %v1274 = vadd.f32 %v1046, %v1170
      %v1275 = vadd.f32 %v1047, %v1190
      %v1276 = vadd.f32 %v1048, %v1210
      %v1277 = vadd.f32 %v1049, %v1230
      %v1278 = vadd.f32 %v1050, %v1250
      %v1279 = vadd.f32 %v1051, %v1270
      %s1280 = scalar_lea.vmem %s1, 40
      %v1281 = vld [vmem:[%s1280] sm:$0xff]
      %1282 = vst [vmem:[#allocation1] ss:$2 sm:$0xff] %v171
      %s1283 = scalar_lea.vmem [#allocation1], 16
      %1284 = vst [vmem:[%s1283] ss:$2 sm:$0xff] %v172
      %s1285 = scalar_lea.vmem [#allocation1], 32
      %1286 = vst [vmem:[%s1285] ss:$2 sm:$0xff] %v173
      %s1287 = scalar_lea.vmem [#allocation1], 48
      %1288 = vst [vmem:[%s1287] ss:$2 sm:$0xff] %v174
      %v1289 = vld.sshfl [vmem:[#allocation1] sm:$0xff pattern:$0x75316420]
      %v1290 = vld.sshfl [vmem:[#allocation1 + $0x8] sm:$0xff pattern:$0x75316420]
      %v1291 = vld.sshfl [vmem:[#allocation1 + $0x10] sm:$0xff pattern:$0x75316420]
      %v1292 = vld.sshfl [vmem:[#allocation1 + $0x18] sm:$0xff pattern:$0x75316420]
      %v1293 = vld.sshfl [vmem:[#allocation1 + $0x20] sm:$0xff pattern:$0x75316420]
      %v1294 = vld.sshfl [vmem:[#allocation1 + $0x28] sm:$0xff pattern:$0x75316420]
      %v1295 = vld.sshfl [vmem:[#allocation1 + $0x30] sm:$0xff pattern:$0x75316420]
      %v1296 = vld.sshfl [vmem:[#allocation1 + $0x38] sm:$0xff pattern:$0x75316420]
      %1297 = vrot.lane.b32.xlu0 %v1289, 94
      %v1298 = vpop.permute.xlu0 %1297
      %1299 = vrot.lane.b32.xlu0 %v1290, 94
      %v1300 = vpop.permute.xlu0 %1299
      %1301 = vrot.lane.b32.xlu0 %v1291, 94
      %v1302 = vpop.permute.xlu0 %1301
      %1303 = vrot.lane.b32.xlu0 %v1292, 94
      %v1304 = vpop.permute.xlu0 %1303
      %1305 = vrot.lane.b32.xlu0 %v1293, 94
      %v1306 = vpop.permute.xlu0 %1305
      %1307 = vrot.lane.b32.xlu0 %v1294, 94
      %v1308 = vpop.permute.xlu0 %1307
      %1309 = vrot.lane.b32.xlu0 %v1295, 94
      %v1310 = vpop.permute.xlu0 %1309
      %1311 = vrot.lane.b32.xlu0 %v1296, 94
      %v1312 = vpop.permute.xlu0 %1311
      %vm1313 = vcmask 769024
      %v1314 = vsel %vm1313, %v1298, %v1300
      %v1315 = vsel %vm1313, %v1300, %v1302
      %v1316 = vsel %vm1313, %v1302, %v1304
      %v1317 = vsel %vm1313, %v1304, %v1306
      %v1318 = vsel %vm1313, %v1306, %v1308
      %v1319 = vsel %vm1313, %v1308, %v1310
      %v1320 = vsel %vm1313, %v1310, %v1312
      %v1322 = vsel %vm221, %v1281, 0
      %v1324 = vsel %vm225, %v1314, 0
      %v1326 = vsel %vm225, %v1315, 0
      %v1328 = vsel %vm225, %v1316, 0
      %v1330 = vsel %vm225, %v1317, 0
      %v1332 = vsel %vm225, %v1318, 0
      %v1334 = vsel %vm225, %v1319, 0
      %v1336 = vsel %vm225, %v1320, 0
      %v1338 = vsel %vm225, %v1312, 0
      %1340 = vmatpush.msra.mxu0 0.0
      %1341 = vmatpush.msra.mxu0 0.0
      %1342 = vmatpush.msra.mxu0 0.0
      %1343 = vmatpush.msra.mxu0 0.0
      %1344 = vmatpush.msra.mxu0 0.0
      %1345 = vmatpush.msra.mxu0 0.0
      %1346 = vmatpush.msra.mxu0 0.0
      %1347 = vmatpush.msra.mxu0 0.0
      %1348 = vmatpush.msra.mxu0 0.0
      %1349 = vmatpush.msra.mxu0 0.0
      %1350 = vmatpush.msra.mxu0 0.0
      %1351 = vmatpush.msra.mxu0 0.0
      %1352 = vmatpush.msra.mxu0 0.0
      %1353 = vmatpush.msra.mxu0 0.0
      %1354 = vmatpush.msra.mxu0 0.0
      %1355 = vmatpush.msra.mxu0 %v1324
      %1356 = vmatmul.f32.gmra.mxu0 %v1322
      %v1357 = vpop.f32.mrf.mxu0
      %v1358 = vadd.f32 0.0, %v1357
      %1359 = vdwg.mxu0
      %1360 = vmatpush.msra.mxu0 0.0
      %1361 = vmatpush.msra.mxu0 0.0
      %1362 = vmatpush.msra.mxu0 0.0
      %1363 = vmatpush.msra.mxu0 0.0
      %1364 = vmatpush.msra.mxu0 0.0
      %1365 = vmatpush.msra.mxu0 0.0
      %1366 = vmatpush.msra.mxu0 0.0
      %1367 = vmatpush.msra.mxu0 0.0
      %1368 = vmatpush.msra.mxu0 0.0
      %1369 = vmatpush.msra.mxu0 0.0
      %1370 = vmatpush.msra.mxu0 0.0
      %1371 = vmatpush.msra.mxu0 0.0
      %1372 = vmatpush.msra.mxu0 0.0
      %1373 = vmatpush.msra.mxu0 0.0
      %1374 = vmatpush.msra.mxu0 0.0
      %1375 = vmatpush.msra.mxu0 %v1326
      %1376 = vmatmul.f32.gmra.mxu0 %v1322
      %v1377 = vpop.f32.mrf.mxu0
      %v1378 = vadd.f32 0.0, %v1377
      %1379 = vdwg.mxu0
      %1380 = vmatpush.msra.mxu0 0.0
      %1381 = vmatpush.msra.mxu0 0.0
      %1382 = vmatpush.msra.mxu0 0.0
      %1383 = vmatpush.msra.mxu0 0.0
      %1384 = vmatpush.msra.mxu0 0.0
      %1385 = vmatpush.msra.mxu0 0.0
      %1386 = vmatpush.msra.mxu0 0.0
      %1387 = vmatpush.msra.mxu0 0.0
      %1388 = vmatpush.msra.mxu0 0.0
      %1389 = vmatpush.msra.mxu0 0.0
      %1390 = vmatpush.msra.mxu0 0.0
      %1391 = vmatpush.msra.mxu0 0.0
      %1392 = vmatpush.msra.mxu0 0.0
      %1393 = vmatpush.msra.mxu0 0.0
      %1394 = vmatpush.msra.mxu0 0.0
      %1395 = vmatpush.msra.mxu0 %v1328
      %1396 = vmatmul.f32.gmra.mxu0 %v1322
      %v1397 = vpop.f32.mrf.mxu0
      %v1398 = vadd.f32 0.0, %v1397
      %1399 = vdwg.mxu0
      %1400 = vmatpush.msra.mxu0 0.0
      %1401 = vmatpush.msra.mxu0 0.0
      %1402 = vmatpush.msra.mxu0 0.0
      %1403 = vmatpush.msra.mxu0 0.0
      %1404 = vmatpush.msra.mxu0 0.0
      %1405 = vmatpush.msra.mxu0 0.0
      %1406 = vmatpush.msra.mxu0 0.0
      %1407 = vmatpush.msra.mxu0 0.0
      %1408 = vmatpush.msra.mxu0 0.0
      %1409 = vmatpush.msra.mxu0 0.0
      %1410 = vmatpush.msra.mxu0 0.0
      %1411 = vmatpush.msra.mxu0 0.0
      %1412 = vmatpush.msra.mxu0 0.0
      %1413 = vmatpush.msra.mxu0 0.0
      %1414 = vmatpush.msra.mxu0 0.0
      %1415 = vmatpush.msra.mxu0 %v1330
      %1416 = vmatmul.f32.gmra.mxu0 %v1322
      %v1417 = vpop.f32.mrf.mxu0
      %v1418 = vadd.f32 0.0, %v1417
      %1419 = vdwg.mxu0
      %1420 = vmatpush.msra.mxu0 0.0
      %1421 = vmatpush.msra.mxu0 0.0
      %1422 = vmatpush.msra.mxu0 0.0
      %1423 = vmatpush.msra.mxu0 0.0
      %1424 = vmatpush.msra.mxu0 0.0
      %1425 = vmatpush.msra.mxu0 0.0
      %1426 = vmatpush.msra.mxu0 0.0
      %1427 = vmatpush.msra.mxu0 0.0
      %1428 = vmatpush.msra.mxu0 0.0
      %1429 = vmatpush.msra.mxu0 0.0
      %1430 = vmatpush.msra.mxu0 0.0
      %1431 = vmatpush.msra.mxu0 0.0
      %1432 = vmatpush.msra.mxu0 0.0
      %1433 = vmatpush.msra.mxu0 0.0
      %1434 = vmatpush.msra.mxu0 0.0
      %1435 = vmatpush.msra.mxu0 %v1332
      %1436 = vmatmul.f32.gmra.mxu0 %v1322
      %v1437 = vpop.f32.mrf.mxu0
      %v1438 = vadd.f32 0.0, %v1437
      %1439 = vdwg.mxu0
      %1440 = vmatpush.msra.mxu0 0.0
      %1441 = vmatpush.msra.mxu0 0.0
      %1442 = vmatpush.msra.mxu0 0.0
      %1443 = vmatpush.msra.mxu0 0.0
      %1444 = vmatpush.msra.mxu0 0.0
      %1445 = vmatpush.msra.mxu0 0.0
      %1446 = vmatpush.msra.mxu0 0.0
      %1447 = vmatpush.msra.mxu0 0.0
      %1448 = vmatpush.msra.mxu0 0.0
      %1449 = vmatpush.msra.mxu0 0.0
      %1450 = vmatpush.msra.mxu0 0.0
      %1451 = vmatpush.msra.mxu0 0.0
      %1452 = vmatpush.msra.mxu0 0.0
      %1453 = vmatpush.msra.mxu0 0.0
      %1454 = vmatpush.msra.mxu0 0.0
      %1455 = vmatpush.msra.mxu0 %v1334
      %1456 = vmatmul.f32.gmra.mxu0 %v1322
      %v1457 = vpop.f32.mrf.mxu0
      %v1458 = vadd.f32 0.0, %v1457
      %1459 = vdwg.mxu0
      %1460 = vmatpush.msra.mxu0 0.0
      %1461 = vmatpush.msra.mxu0 0.0
      %1462 = vmatpush.msra.mxu0 0.0
      %1463 = vmatpush.msra.mxu0 0.0
      %1464 = vmatpush.msra.mxu0 0.0
      %1465 = vmatpush.msra.mxu0 0.0
      %1466 = vmatpush.msra.mxu0 0.0
      %1467 = vmatpush.msra.mxu0 0.0
      %1468 = vmatpush.msra.mxu0 0.0
      %1469 = vmatpush.msra.mxu0 0.0
      %1470 = vmatpush.msra.mxu0 0.0
      %1471 = vmatpush.msra.mxu0 0.0
      %1472 = vmatpush.msra.mxu0 0.0
      %1473 = vmatpush.msra.mxu0 0.0
      %1474 = vmatpush.msra.mxu0 0.0
      %1475 = vmatpush.msra.mxu0 %v1336
      %1476 = vmatmul.f32.gmra.mxu0 %v1322
      %v1477 = vpop.f32.mrf.mxu0
      %v1478 = vadd.f32 0.0, %v1477
      %1479 = vdwg.mxu0
      %1480 = vmatpush.msra.mxu0 0.0
      %1481 = vmatpush.msra.mxu0 0.0
      %1482 = vmatpush.msra.mxu0 0.0
      %1483 = vmatpush.msra.mxu0 0.0
      %1484 = vmatpush.msra.mxu0 0.0
      %1485 = vmatpush.msra.mxu0 0.0
      %1486 = vmatpush.msra.mxu0 0.0
      %1487 = vmatpush.msra.mxu0 0.0
      %1488 = vmatpush.msra.mxu0 0.0
      %1489 = vmatpush.msra.mxu0 0.0
      %1490 = vmatpush.msra.mxu0 0.0
      %1491 = vmatpush.msra.mxu0 0.0
      %1492 = vmatpush.msra.mxu0 0.0
      %1493 = vmatpush.msra.mxu0 0.0
      %1494 = vmatpush.msra.mxu0 0.0
      %1495 = vmatpush.msra.mxu0 %v1338
      %1496 = vmatmul.f32.gmra.mxu0 %v1322
      %v1497 = vpop.f32.mrf.mxu0
      %v1498 = vadd.f32 0.0, %v1497
      %1499 = vdwg.mxu0
      %v1500 = vadd.f32 %v1272, %v1358
      %v1501 = vadd.f32 %v1273, %v1378
      %v1502 = vadd.f32 %v1274, %v1398
      %v1503 = vadd.f32 %v1275, %v1418
      %v1504 = vadd.f32 %v1276, %v1438
      %v1505 = vadd.f32 %v1277, %v1458
      %v1506 = vadd.f32 %v1278, %v1478
      %v1507 = vadd.f32 %v1279, %v1498
      %s1508 = scalar_lea.vmem %s1, 48
      %v1509 = vld [vmem:[%s1508] sm:$0xff]
      %1510 = vst [vmem:[#allocation1] ss:$2 sm:$0xff] %v171
      %s1511 = scalar_lea.vmem [#allocation1], 16
      %1512 = vst [vmem:[%s1511] ss:$2 sm:$0xff] %v172
      %s1513 = scalar_lea.vmem [#allocation1], 32
      %1514 = vst [vmem:[%s1513] ss:$2 sm:$0xff] %v173
      %s1515 = scalar_lea.vmem [#allocation1], 48
      %1516 = vst [vmem:[%s1515] ss:$2 sm:$0xff] %v174
      %v1517 = vld.sshfl [vmem:[#allocation1] sm:$0xff pattern:$0x75316420]
      %v1518 = vld.sshfl [vmem:[#allocation1 + $0x8] sm:$0xff pattern:$0x75316420]
      %v1519 = vld.sshfl [vmem:[#allocation1 + $0x10] sm:$0xff pattern:$0x75316420]
      %v1520 = vld.sshfl [vmem:[#allocation1 + $0x18] sm:$0xff pattern:$0x75316420]
      %v1521 = vld.sshfl [vmem:[#allocation1 + $0x20] sm:$0xff pattern:$0x75316420]
      %v1522 = vld.sshfl [vmem:[#allocation1 + $0x28] sm:$0xff pattern:$0x75316420]
      %v1523 = vld.sshfl [vmem:[#allocation1 + $0x30] sm:$0xff pattern:$0x75316420]
      %v1524 = vld.sshfl [vmem:[#allocation1 + $0x38] sm:$0xff pattern:$0x75316420]
      %1525 = vrot.lane.b32.xlu0 %v1517, 64
      %v1526 = vpop.permute.xlu0 %1525
      %1527 = vrot.lane.b32.xlu0 %v1518, 64
      %v1528 = vpop.permute.xlu0 %1527
      %1529 = vrot.lane.b32.xlu0 %v1519, 64
      %v1530 = vpop.permute.xlu0 %1529
      %1531 = vrot.lane.b32.xlu0 %v1520, 64
      %v1532 = vpop.permute.xlu0 %1531
      %1533 = vrot.lane.b32.xlu0 %v1521, 64
      %v1534 = vpop.permute.xlu0 %1533
      %1535 = vrot.lane.b32.xlu0 %v1522, 64
      %v1536 = vpop.permute.xlu0 %1535
      %1537 = vrot.lane.b32.xlu0 %v1523, 64
      %v1538 = vpop.permute.xlu0 %1537
      %1539 = vrot.lane.b32.xlu0 %v1524, 64
      %v1540 = vpop.permute.xlu0 %1539
      %vm1541 = vcmask 523264
      %v1542 = vsel %vm1541, %v1526, %v1528
      %v1543 = vsel %vm1541, %v1528, %v1530
      %v1544 = vsel %vm1541, %v1530, %v1532
      %v1545 = vsel %vm1541, %v1532, %v1534
      %v1546 = vsel %vm1541, %v1534, %v1536
      %v1547 = vsel %vm1541, %v1536, %v1538
      %v1548 = vsel %vm1541, %v1538, %v1540
      %v1550 = vsel %vm221, %v1509, 0
      %v1552 = vsel %vm225, %v1542, 0
      %v1554 = vsel %vm225, %v1543, 0
      %v1556 = vsel %vm225, %v1544, 0
      %v1558 = vsel %vm225, %v1545, 0
      %v1560 = vsel %vm225, %v1546, 0
      %v1562 = vsel %vm225, %v1547, 0
      %v1564 = vsel %vm225, %v1548, 0
      %v1566 = vsel %vm225, %v1540, 0
      %1568 = vmatpush.msra.mxu0 0.0
      %1569 = vmatpush.msra.mxu0 0.0
      %1570 = vmatpush.msra.mxu0 0.0
      %1571 = vmatpush.msra.mxu0 0.0
      %1572 = vmatpush.msra.mxu0 0.0
      %1573 = vmatpush.msra.mxu0 0.0
      %1574 = vmatpush.msra.mxu0 0.0
      %1575 = vmatpush.msra.mxu0 0.0
      %1576 = vmatpush.msra.mxu0 0.0
      %1577 = vmatpush.msra.mxu0 0.0
      %1578 = vmatpush.msra.mxu0 0.0
      %1579 = vmatpush.msra.mxu0 0.0
      %1580 = vmatpush.msra.mxu0 0.0
      %1581 = vmatpush.msra.mxu0 0.0
      %1582 = vmatpush.msra.mxu0 0.0
      %1583 = vmatpush.msra.mxu0 %v1552
      %1584 = vmatmul.f32.gmra.mxu0 %v1550
      %v1585 = vpop.f32.mrf.mxu0
      %v1586 = vadd.f32 0.0, %v1585
      %1587 = vdwg.mxu0
      %1588 = vmatpush.msra.mxu0 0.0
      %1589 = vmatpush.msra.mxu0 0.0
      %1590 = vmatpush.msra.mxu0 0.0
      %1591 = vmatpush.msra.mxu0 0.0
      %1592 = vmatpush.msra.mxu0 0.0
      %1593 = vmatpush.msra.mxu0 0.0
      %1594 = vmatpush.msra.mxu0 0.0
      %1595 = vmatpush.msra.mxu0 0.0
      %1596 = vmatpush.msra.mxu0 0.0
      %1597 = vmatpush.msra.mxu0 0.0
      %1598 = vmatpush.msra.mxu0 0.0
      %1599 = vmatpush.msra.mxu0 0.0
      %1600 = vmatpush.msra.mxu0 0.0
      %1601 = vmatpush.msra.mxu0 0.0
      %1602 = vmatpush.msra.mxu0 0.0
      %1603 = vmatpush.msra.mxu0 %v1554
      %1604 = vmatmul.f32.gmra.mxu0 %v1550
      %v1605 = vpop.f32.mrf.mxu0
      %v1606 = vadd.f32 0.0, %v1605
      %1607 = vdwg.mxu0
      %1608 = vmatpush.msra.mxu0 0.0
      %1609 = vmatpush.msra.mxu0 0.0
      %1610 = vmatpush.msra.mxu0 0.0
      %1611 = vmatpush.msra.mxu0 0.0
      %1612 = vmatpush.msra.mxu0 0.0
      %1613 = vmatpush.msra.mxu0 0.0
      %1614 = vmatpush.msra.mxu0 0.0
      %1615 = vmatpush.msra.mxu0 0.0
      %1616 = vmatpush.msra.mxu0 0.0
      %1617 = vmatpush.msra.mxu0 0.0
      %1618 = vmatpush.msra.mxu0 0.0
      %1619 = vmatpush.msra.mxu0 0.0
      %1620 = vmatpush.msra.mxu0 0.0
      %1621 = vmatpush.msra.mxu0 0.0
      %1622 = vmatpush.msra.mxu0 0.0
      %1623 = vmatpush.msra.mxu0 %v1556
      %1624 = vmatmul.f32.gmra.mxu0 %v1550
      %v1625 = vpop.f32.mrf.mxu0
      %v1626 = vadd.f32 0.0, %v1625
      %1627 = vdwg.mxu0
      %1628 = vmatpush.msra.mxu0 0.0
      %1629 = vmatpush.msra.mxu0 0.0
      %1630 = vmatpush.msra.mxu0 0.0
      %1631 = vmatpush.msra.mxu0 0.0
      %1632 = vmatpush.msra.mxu0 0.0
      %1633 = vmatpush.msra.mxu0 0.0
      %1634 = vmatpush.msra.mxu0 0.0
      %1635 = vmatpush.msra.mxu0 0.0
      %1636 = vmatpush.msra.mxu0 0.0
      %1637 = vmatpush.msra.mxu0 0.0
      %1638 = vmatpush.msra.mxu0 0.0
      %1639 = vmatpush.msra.mxu0 0.0
      %1640 = vmatpush.msra.mxu0 0.0
      %1641 = vmatpush.msra.mxu0 0.0
      %1642 = vmatpush.msra.mxu0 0.0
      %1643 = vmatpush.msra.mxu0 %v1558
      %1644 = vmatmul.f32.gmra.mxu0 %v1550
      %v1645 = vpop.f32.mrf.mxu0
      %v1646 = vadd.f32 0.0, %v1645
      %1647 = vdwg.mxu0
      %1648 = vmatpush.msra.mxu0 0.0
      %1649 = vmatpush.msra.mxu0 0.0
      %1650 = vmatpush.msra.mxu0 0.0
      %1651 = vmatpush.msra.mxu0 0.0
      %1652 = vmatpush.msra.mxu0 0.0
      %1653 = vmatpush.msra.mxu0 0.0
      %1654 = vmatpush.msra.mxu0 0.0
      %1655 = vmatpush.msra.mxu0 0.0
      %1656 = vmatpush.msra.mxu0 0.0
      %1657 = vmatpush.msra.mxu0 0.0
      %1658 = vmatpush.msra.mxu0 0.0
      %1659 = vmatpush.msra.mxu0 0.0
      %1660 = vmatpush.msra.mxu0 0.0
      %1661 = vmatpush.msra.mxu0 0.0
      %1662 = vmatpush.msra.mxu0 0.0
      %1663 = vmatpush.msra.mxu0 %v1560
      %1664 = vmatmul.f32.gmra.mxu0 %v1550
      %v1665 = vpop.f32.mrf.mxu0
      %v1666 = vadd.f32 0.0, %v1665
      %1667 = vdwg.mxu0
      %1668 = vmatpush.msra.mxu0 0.0
      %1669 = vmatpush.msra.mxu0 0.0
      %1670 = vmatpush.msra.mxu0 0.0
      %1671 = vmatpush.msra.mxu0 0.0
      %1672 = vmatpush.msra.mxu0 0.0
      %1673 = vmatpush.msra.mxu0 0.0
      %1674 = vmatpush.msra.mxu0 0.0
      %1675 = vmatpush.msra.mxu0 0.0
      %1676 = vmatpush.msra.mxu0 0.0
      %1677 = vmatpush.msra.mxu0 0.0
      %1678 = vmatpush.msra.mxu0 0.0
      %1679 = vmatpush.msra.mxu0 0.0
      %1680 = vmatpush.msra.mxu0 0.0
      %1681 = vmatpush.msra.mxu0 0.0
      %1682 = vmatpush.msra.mxu0 0.0
      %1683 = vmatpush.msra.mxu0 %v1562
      %1684 = vmatmul.f32.gmra.mxu0 %v1550
      %v1685 = vpop.f32.mrf.mxu0
      %v1686 = vadd.f32 0.0, %v1685
      %1687 = vdwg.mxu0
      %1688 = vmatpush.msra.mxu0 0.0
      %1689 = vmatpush.msra.mxu0 0.0
      %1690 = vmatpush.msra.mxu0 0.0
      %1691 = vmatpush.msra.mxu0 0.0
      %1692 = vmatpush.msra.mxu0 0.0
      %1693 = vmatpush.msra.mxu0 0.0
      %1694 = vmatpush.msra.mxu0 0.0
      %1695 = vmatpush.msra.mxu0 0.0
      %1696 = vmatpush.msra.mxu0 0.0
      %1697 = vmatpush.msra.mxu0 0.0
      %1698 = vmatpush.msra.mxu0 0.0
      %1699 = vmatpush.msra.mxu0 0.0
      %1700 = vmatpush.msra.mxu0 0.0
      %1701 = vmatpush.msra.mxu0 0.0
      %1702 = vmatpush.msra.mxu0 0.0
      %1703 = vmatpush.msra.mxu0 %v1564
      %1704 = vmatmul.f32.gmra.mxu0 %v1550
      %v1705 = vpop.f32.mrf.mxu0
      %v1706 = vadd.f32 0.0, %v1705
      %1707 = vdwg.mxu0
      %1708 = vmatpush.msra.mxu0 0.0
      %1709 = vmatpush.msra.mxu0 0.0
      %1710 = vmatpush.msra.mxu0 0.0
      %1711 = vmatpush.msra.mxu0 0.0
      %1712 = vmatpush.msra.mxu0 0.0
      %1713 = vmatpush.msra.mxu0 0.0
      %1714 = vmatpush.msra.mxu0 0.0
      %1715 = vmatpush.msra.mxu0 0.0
      %1716 = vmatpush.msra.mxu0 0.0
      %1717 = vmatpush.msra.mxu0 0.0
      %1718 = vmatpush.msra.mxu0 0.0
      %1719 = vmatpush.msra.mxu0 0.0
      %1720 = vmatpush.msra.mxu0 0.0
      %1721 = vmatpush.msra.mxu0 0.0
      %1722 = vmatpush.msra.mxu0 0.0
      %1723 = vmatpush.msra.mxu0 %v1566
      %1724 = vmatmul.f32.gmra.mxu0 %v1550
      %v1725 = vpop.f32.mrf.mxu0
      %v1726 = vadd.f32 0.0, %v1725
      %1727 = vdwg.mxu0
      %v1728 = vadd.f32 %v1500, %v1586
      %v1729 = vadd.f32 %v1501, %v1606
      %v1730 = vadd.f32 %v1502, %v1626
      %v1731 = vadd.f32 %v1503, %v1646
      %v1732 = vadd.f32 %v1504, %v1666
      %v1733 = vadd.f32 %v1505, %v1686
      %v1734 = vadd.f32 %v1506, %v1706
      %v1735 = vadd.f32 %v1507, %v1726
      %s1736 = scalar_lea.vmem %s1, 56
      %v1737 = vld [vmem:[%s1736] sm:$0xff]
      %1738 = vst [vmem:[#allocation1] ss:$2 sm:$0xff] %v171
      %s1739 = scalar_lea.vmem [#allocation1], 16
      %1740 = vst [vmem:[%s1739] ss:$2 sm:$0xff] %v172
      %s1741 = scalar_lea.vmem [#allocation1], 32
      %1742 = vst [vmem:[%s1741] ss:$2 sm:$0xff] %v173
      %s1743 = scalar_lea.vmem [#allocation1], 48
      %1744 = vst [vmem:[%s1743] ss:$2 sm:$0xff] %v174
      %v1745 = vld.sshfl [vmem:[#allocation1] sm:$0xff pattern:$0x75316420]
      %v1746 = vld.sshfl [vmem:[#allocation1 + $0x8] sm:$0xff pattern:$0x75316420]
      %v1747 = vld.sshfl [vmem:[#allocation1 + $0x10] sm:$0xff pattern:$0x75316420]
      %v1748 = vld.sshfl [vmem:[#allocation1 + $0x18] sm:$0xff pattern:$0x75316420]
      %v1749 = vld.sshfl [vmem:[#allocation1 + $0x20] sm:$0xff pattern:$0x75316420]
      %v1750 = vld.sshfl [vmem:[#allocation1 + $0x28] sm:$0xff pattern:$0x75316420]
      %v1751 = vld.sshfl [vmem:[#allocation1 + $0x30] sm:$0xff pattern:$0x75316420]
      %v1752 = vld.sshfl [vmem:[#allocation1 + $0x38] sm:$0xff pattern:$0x75316420]
      %1753 = vrot.lane.b32.xlu0 %v1745, 63
      %v1754 = vpop.permute.xlu0 %1753
      %1755 = vrot.lane.b32.xlu0 %v1746, 63
      %v1756 = vpop.permute.xlu0 %1755
      %1757 = vrot.lane.b32.xlu0 %v1747, 63
      %v1758 = vpop.permute.xlu0 %1757
      %1759 = vrot.lane.b32.xlu0 %v1748, 63
      %v1760 = vpop.permute.xlu0 %1759
      %1761 = vrot.lane.b32.xlu0 %v1749, 63
      %v1762 = vpop.permute.xlu0 %1761
      %1763 = vrot.lane.b32.xlu0 %v1750, 63
      %v1764 = vpop.permute.xlu0 %1763
      %1765 = vrot.lane.b32.xlu0 %v1751, 63
      %v1766 = vpop.permute.xlu0 %1765
      %1767 = vrot.lane.b32.xlu0 %v1752, 63
      %v1768 = vpop.permute.xlu0 %1767
      %vm1769 = vcmask 515072
      %v1770 = vsel %vm1769, %v1754, %v1756
      %v1771 = vsel %vm1769, %v1756, %v1758
      %v1772 = vsel %vm1769, %v1758, %v1760
      %v1773 = vsel %vm1769, %v1760, %v1762
      %v1774 = vsel %vm1769, %v1762, %v1764
      %v1775 = vsel %vm1769, %v1764, %v1766
      %v1776 = vsel %vm1769, %v1766, %v1768
      %v1778 = vsel %vm221, %v1737, 0
      %v1780 = vsel %vm225, %v1770, 0
      %v1782 = vsel %vm225, %v1771, 0
      %v1784 = vsel %vm225, %v1772, 0
      %v1786 = vsel %vm225, %v1773, 0
      %v1788 = vsel %vm225, %v1774, 0
      %v1790 = vsel %vm225, %v1775, 0
      %v1792 = vsel %vm225, %v1776, 0
      %v1794 = vsel %vm225, %v1768, 0
      %1796 = vmatpush.msra.mxu0 0.0
      %1797 = vmatpush.msra.mxu0 0.0
      %1798 = vmatpush.msra.mxu0 0.0
      %1799 = vmatpush.msra.mxu0 0.0
      %1800 = vmatpush.msra.mxu0 0.0
      %1801 = vmatpush.msra.mxu0 0.0
      %1802 = vmatpush.msra.mxu0 0.0
      %1803 = vmatpush.msra.mxu0 0.0
      %1804 = vmatpush.msra.mxu0 0.0
      %1805 = vmatpush.msra.mxu0 0.0
      %1806 = vmatpush.msra.mxu0 0.0
      %1807 = vmatpush.msra.mxu0 0.0
      %1808 = vmatpush.msra.mxu0 0.0
      %1809 = vmatpush.msra.mxu0 0.0
      %1810 = vmatpush.msra.mxu0 0.0
      %1811 = vmatpush.msra.mxu0 %v1780
      %1812 = vmatmul.f32.gmra.mxu0 %v1778
      %v1813 = vpop.f32.mrf.mxu0
      %v1814 = vadd.f32 0.0, %v1813
      %1815 = vdwg.mxu0
      %1816 = vmatpush.msra.mxu0 0.0
      %1817 = vmatpush.msra.mxu0 0.0
      %1818 = vmatpush.msra.mxu0 0.0
      %1819 = vmatpush.msra.mxu0 0.0
      %1820 = vmatpush.msra.mxu0 0.0
      %1821 = vmatpush.msra.mxu0 0.0
      %1822 = vmatpush.msra.mxu0 0.0
      %1823 = vmatpush.msra.mxu0 0.0
      %1824 = vmatpush.msra.mxu0 0.0
      %1825 = vmatpush.msra.mxu0 0.0
      %1826 = vmatpush.msra.mxu0 0.0
      %1827 = vmatpush.msra.mxu0 0.0
      %1828 = vmatpush.msra.mxu0 0.0
      %1829 = vmatpush.msra.mxu0 0.0
      %1830 = vmatpush.msra.mxu0 0.0
      %1831 = vmatpush.msra.mxu0 %v1782
      %1832 = vmatmul.f32.gmra.mxu0 %v1778
      %v1833 = vpop.f32.mrf.mxu0
      %v1834 = vadd.f32 0.0, %v1833
      %1835 = vdwg.mxu0
      %1836 = vmatpush.msra.mxu0 0.0
      %1837 = vmatpush.msra.mxu0 0.0
      %1838 = vmatpush.msra.mxu0 0.0
      %1839 = vmatpush.msra.mxu0 0.0
      %1840 = vmatpush.msra.mxu0 0.0
      %1841 = vmatpush.msra.mxu0 0.0
      %1842 = vmatpush.msra.mxu0 0.0
      %1843 = vmatpush.msra.mxu0 0.0
      %1844 = vmatpush.msra.mxu0 0.0
      %1845 = vmatpush.msra.mxu0 0.0
      %1846 = vmatpush.msra.mxu0 0.0
      %1847 = vmatpush.msra.mxu0 0.0
      %1848 = vmatpush.msra.mxu0 0.0
      %1849 = vmatpush.msra.mxu0 0.0
      %1850 = vmatpush.msra.mxu0 0.0
      %1851 = vmatpush.msra.mxu0 %v1784
      %1852 = vmatmul.f32.gmra.mxu0 %v1778
      %v1853 = vpop.f32.mrf.mxu0
      %v1854 = vadd.f32 0.0, %v1853
      %1855 = vdwg.mxu0
      %1856 = vmatpush.msra.mxu0 0.0
      %1857 = vmatpush.msra.mxu0 0.0
      %1858 = vmatpush.msra.mxu0 0.0
      %1859 = vmatpush.msra.mxu0 0.0
      %1860 = vmatpush.msra.mxu0 0.0
      %1861 = vmatpush.msra.mxu0 0.0
      %1862 = vmatpush.msra.mxu0 0.0
      %1863 = vmatpush.msra.mxu0 0.0
      %1864 = vmatpush.msra.mxu0 0.0
      %1865 = vmatpush.msra.mxu0 0.0
      %1866 = vmatpush.msra.mxu0 0.0
      %1867 = vmatpush.msra.mxu0 0.0
      %1868 = vmatpush.msra.mxu0 0.0
      %1869 = vmatpush.msra.mxu0 0.0
      %1870 = vmatpush.msra.mxu0 0.0
      %1871 = vmatpush.msra.mxu0 %v1786
      %1872 = vmatmul.f32.gmra.mxu0 %v1778
      %v1873 = vpop.f32.mrf.mxu0
      %v1874 = vadd.f32 0.0, %v1873
      %1875 = vdwg.mxu0
      %1876 = vmatpush.msra.mxu0 0.0
      %1877 = vmatpush.msra.mxu0 0.0
      %1878 = vmatpush.msra.mxu0 0.0
      %1879 = vmatpush.msra.mxu0 0.0
      %1880 = vmatpush.msra.mxu0 0.0
      %1881 = vmatpush.msra.mxu0 0.0
      %1882 = vmatpush.msra.mxu0 0.0
      %1883 = vmatpush.msra.mxu0 0.0
      %1884 = vmatpush.msra.mxu0 0.0
      %1885 = vmatpush.msra.mxu0 0.0
      %1886 = vmatpush.msra.mxu0 0.0
      %1887 = vmatpush.msra.mxu0 0.0
      %1888 = vmatpush.msra.mxu0 0.0
      %1889 = vmatpush.msra.mxu0 0.0
      %1890 = vmatpush.msra.mxu0 0.0
      %1891 = vmatpush.msra.mxu0 %v1788
      %1892 = vmatmul.f32.gmra.mxu0 %v1778
      %v1893 = vpop.f32.mrf.mxu0
      %v1894 = vadd.f32 0.0, %v1893
      %1895 = vdwg.mxu0
      %1896 = vmatpush.msra.mxu0 0.0
      %1897 = vmatpush.msra.mxu0 0.0
      %1898 = vmatpush.msra.mxu0 0.0
      %1899 = vmatpush.msra.mxu0 0.0
      %1900 = vmatpush.msra.mxu0 0.0
      %1901 = vmatpush.msra.mxu0 0.0
      %1902 = vmatpush.msra.mxu0 0.0
      %1903 = vmatpush.msra.mxu0 0.0
      %1904 = vmatpush.msra.mxu0 0.0
      %1905 = vmatpush.msra.mxu0 0.0
      %1906 = vmatpush.msra.mxu0 0.0
      %1907 = vmatpush.msra.mxu0 0.0
      %1908 = vmatpush.msra.mxu0 0.0
      %1909 = vmatpush.msra.mxu0 0.0
      %1910 = vmatpush.msra.mxu0 0.0
      %1911 = vmatpush.msra.mxu0 %v1790
      %1912 = vmatmul.f32.gmra.mxu0 %v1778
      %v1913 = vpop.f32.mrf.mxu0
      %v1914 = vadd.f32 0.0, %v1913
      %1915 = vdwg.mxu0
      %1916 = vmatpush.msra.mxu0 0.0
      %1917 = vmatpush.msra.mxu0 0.0
      %1918 = vmatpush.msra.mxu0 0.0
      %1919 = vmatpush.msra.mxu0 0.0
      %1920 = vmatpush.msra.mxu0 0.0
      %1921 = vmatpush.msra.mxu0 0.0
      %1922 = vmatpush.msra.mxu0 0.0
      %1923 = vmatpush.msra.mxu0 0.0
      %1924 = vmatpush.msra.mxu0 0.0
      %1925 = vmatpush.msra.mxu0 0.0
      %1926 = vmatpush.msra.mxu0 0.0
      %1927 = vmatpush.msra.mxu0 0.0
      %1928 = vmatpush.msra.mxu0 0.0
      %1929 = vmatpush.msra.mxu0 0.0
      %1930 = vmatpush.msra.mxu0 0.0
      %1931 = vmatpush.msra.mxu0 %v1792
      %1932 = vmatmul.f32.gmra.mxu0 %v1778
      %v1933 = vpop.f32.mrf.mxu0
      %v1934 = vadd.f32 0.0, %v1933
      %1935 = vdwg.mxu0
      %1936 = vmatpush.msra.mxu0 0.0
      %1937 = vmatpush.msra.mxu0 0.0
      %1938 = vmatpush.msra.mxu0 0.0
      %1939 = vmatpush.msra.mxu0 0.0
      %1940 = vmatpush.msra.mxu0 0.0
      %1941 = vmatpush.msra.mxu0 0.0
      %1942 = vmatpush.msra.mxu0 0.0
      %1943 = vmatpush.msra.mxu0 0.0
      %1944 = vmatpush.msra.mxu0 0.0
      %1945 = vmatpush.msra.mxu0 0.0
      %1946 = vmatpush.msra.mxu0 0.0
      %1947 = vmatpush.msra.mxu0 0.0
      %1948 = vmatpush.msra.mxu0 0.0
      %1949 = vmatpush.msra.mxu0 0.0
      %1950 = vmatpush.msra.mxu0 0.0
      %1951 = vmatpush.msra.mxu0 %v1794
      %1952 = vmatmul.f32.gmra.mxu0 %v1778
      %v1953 = vpop.f32.mrf.mxu0
      %v1954 = vadd.f32 0.0, %v1953
      %1955 = vdwg.mxu0
      %v1956 = vadd.f32 %v1728, %v1814
      %v1957 = vadd.f32 %v1729, %v1834
      %v1958 = vadd.f32 %v1730, %v1854
      %v1959 = vadd.f32 %v1731, %v1874
      %v1960 = vadd.f32 %v1732, %v1894
      %v1961 = vadd.f32 %v1733, %v1914
      %v1962 = vadd.f32 %v1734, %v1934
      %v1963 = vadd.f32 %v1735, %v1954
      %s1964 = scalar_lea.vmem %s1, 64
      %v1965 = vld [vmem:[%s1964] sm:$0xff]
      %1966 = vst [vmem:[#allocation1] ss:$2 sm:$0xff] %v171
      %s1967 = scalar_lea.vmem [#allocation1], 16
      %1968 = vst [vmem:[%s1967] ss:$2 sm:$0xff] %v172
      %s1969 = scalar_lea.vmem [#allocation1], 32
      %1970 = vst [vmem:[%s1969] ss:$2 sm:$0xff] %v173
      %s1971 = scalar_lea.vmem [#allocation1], 48
      %1972 = vst [vmem:[%s1971] ss:$2 sm:$0xff] %v174
      %v1973 = vld.sshfl [vmem:[#allocation1] sm:$0xff pattern:$0x75316420]
      %v1974 = vld.sshfl [vmem:[#allocation1 + $0x8] sm:$0xff pattern:$0x75316420]
      %v1975 = vld.sshfl [vmem:[#allocation1 + $0x10] sm:$0xff pattern:$0x75316420]
      %v1976 = vld.sshfl [vmem:[#allocation1 + $0x18] sm:$0xff pattern:$0x75316420]
      %v1977 = vld.sshfl [vmem:[#allocation1 + $0x20] sm:$0xff pattern:$0x75316420]
      %v1978 = vld.sshfl [vmem:[#allocation1 + $0x28] sm:$0xff pattern:$0x75316420]
      %v1979 = vld.sshfl [vmem:[#allocation1 + $0x30] sm:$0xff pattern:$0x75316420]
      %v1980 = vld.sshfl [vmem:[#allocation1 + $0x38] sm:$0xff pattern:$0x75316420]
      %1981 = vrot.lane.b32.xlu0 %v1973, 62
      %v1982 = vpop.permute.xlu0 %1981
      %1983 = vrot.lane.b32.xlu0 %v1974, 62
      %v1984 = vpop.permute.xlu0 %1983
      %1985 = vrot.lane.b32.xlu0 %v1975, 62
      %v1986 = vpop.permute.xlu0 %1985
      %1987 = vrot.lane.b32.xlu0 %v1976, 62
      %v1988 = vpop.permute.xlu0 %1987
      %1989 = vrot.lane.b32.xlu0 %v1977, 62
      %v1990 = vpop.permute.xlu0 %1989
      %1991 = vrot.lane.b32.xlu0 %v1978, 62
      %v1992 = vpop.permute.xlu0 %1991
      %1993 = vrot.lane.b32.xlu0 %v1979, 62
      %v1994 = vpop.permute.xlu0 %1993
      %1995 = vrot.lane.b32.xlu0 %v1980, 62
      %v1996 = vpop.permute.xlu0 %1995
      %vm1997 = vcmask 506880
      %v1998 = vsel %vm1997, %v1982, %v1984
      %v1999 = vsel %vm1997, %v1984, %v1986
      %v2000 = vsel %vm1997, %v1986, %v1988
      %v2001 = vsel %vm1997, %v1988, %v1990
      %v2002 = vsel %vm1997, %v1990, %v1992
      %v2003 = vsel %vm1997, %v1992, %v1994
      %v2004 = vsel %vm1997, %v1994, %v1996
      %v2006 = vsel %vm221, %v1965, 0
      %v2008 = vsel %vm225, %v1998, 0
      %v2010 = vsel %vm225, %v1999, 0
      %v2012 = vsel %vm225, %v2000, 0
      %v2014 = vsel %vm225, %v2001, 0
      %v2016 = vsel %vm225, %v2002, 0
      %v2018 = vsel %vm225, %v2003, 0
      %v2020 = vsel %vm225, %v2004, 0
      %v2022 = vsel %vm225, %v1996, 0
      %2024 = vmatpush.msra.mxu0 0.0
      %2025 = vmatpush.msra.mxu0 0.0
      %2026 = vmatpush.msra.mxu0 0.0
      %2027 = vmatpush.msra.mxu0 0.0
      %2028 = vmatpush.msra.mxu0 0.0
      %2029 = vmatpush.msra.mxu0 0.0
      %2030 = vmatpush.msra.mxu0 0.0
      %2031 = vmatpush.msra.mxu0 0.0
      %2032 = vmatpush.msra.mxu0 0.0
      %2033 = vmatpush.msra.mxu0 0.0
      %2034 = vmatpush.msra.mxu0 0.0
      %2035 = vmatpush.msra.mxu0 0.0
      %2036 = vmatpush.msra.mxu0 0.0
      %2037 = vmatpush.msra.mxu0 0.0
      %2038 = vmatpush.msra.mxu0 0.0
      %2039 = vmatpush.msra.mxu0 %v2008
      %2040 = vmatmul.f32.gmra.mxu0 %v2006
      %v2041 = vpop.f32.mrf.mxu0
      %v2042 = vadd.f32 0.0, %v2041
      %2043 = vdwg.mxu0
      %2044 = vmatpush.msra.mxu0 0.0
      %2045 = vmatpush.msra.mxu0 0.0
      %2046 = vmatpush.msra.mxu0 0.0
      %2047 = vmatpush.msra.mxu0 0.0
      %2048 = vmatpush.msra.mxu0 0.0
      %2049 = vmatpush.msra.mxu0 0.0
      %2050 = vmatpush.msra.mxu0 0.0
      %2051 = vmatpush.msra.mxu0 0.0
      %2052 = vmatpush.msra.mxu0 0.0
      %2053 = vmatpush.msra.mxu0 0.0
      %2054 = vmatpush.msra.mxu0 0.0
      %2055 = vmatpush.msra.mxu0 0.0
      %2056 = vmatpush.msra.mxu0 0.0
      %2057 = vmatpush.msra.mxu0 0.0
      %2058 = vmatpush.msra.mxu0 0.0
      %2059 = vmatpush.msra.mxu0 %v2010
      %2060 = vmatmul.f32.gmra.mxu0 %v2006
      %v2061 = vpop.f32.mrf.mxu0
      %v2062 = vadd.f32 0.0, %v2061
      %2063 = vdwg.mxu0
      %2064 = vmatpush.msra.mxu0 0.0
      %2065 = vmatpush.msra.mxu0 0.0
      %2066 = vmatpush.msra.mxu0 0.0
      %2067 = vmatpush.msra.mxu0 0.0
      %2068 = vmatpush.msra.mxu0 0.0
      %2069 = vmatpush.msra.mxu0 0.0
      %2070 = vmatpush.msra.mxu0 0.0
      %2071 = vmatpush.msra.mxu0 0.0
      %2072 = vmatpush.msra.mxu0 0.0
      %2073 = vmatpush.msra.mxu0 0.0
      %2074 = vmatpush.msra.mxu0 0.0
      %2075 = vmatpush.msra.mxu0 0.0
      %2076 = vmatpush.msra.mxu0 0.0
      %2077 = vmatpush.msra.mxu0 0.0
      %2078 = vmatpush.msra.mxu0 0.0
      %2079 = vmatpush.msra.mxu0 %v2012
      %2080 = vmatmul.f32.gmra.mxu0 %v2006
      %v2081 = vpop.f32.mrf.mxu0
      %v2082 = vadd.f32 0.0, %v2081
      %2083 = vdwg.mxu0
      %2084 = vmatpush.msra.mxu0 0.0
      %2085 = vmatpush.msra.mxu0 0.0
      %2086 = vmatpush.msra.mxu0 0.0
      %2087 = vmatpush.msra.mxu0 0.0
      %2088 = vmatpush.msra.mxu0 0.0
      %2089 = vmatpush.msra.mxu0 0.0
      %2090 = vmatpush.msra.mxu0 0.0
      %2091 = vmatpush.msra.mxu0 0.0
      %2092 = vmatpush.msra.mxu0 0.0
      %2093 = vmatpush.msra.mxu0 0.0
      %2094 = vmatpush.msra.mxu0 0.0
      %2095 = vmatpush.msra.mxu0 0.0
      %2096 = vmatpush.msra.mxu0 0.0
      %2097 = vmatpush.msra.mxu0 0.0
      %2098 = vmatpush.msra.mxu0 0.0
      %2099 = vmatpush.msra.mxu0 %v2014
      %2100 = vmatmul.f32.gmra.mxu0 %v2006
      %v2101 = vpop.f32.mrf.mxu0
      %v2102 = vadd.f32 0.0, %v2101
      %2103 = vdwg.mxu0
      %2104 = vmatpush.msra.mxu0 0.0
      %2105 = vmatpush.msra.mxu0 0.0
      %2106 = vmatpush.msra.mxu0 0.0
      %2107 = vmatpush.msra.mxu0 0.0
      %2108 = vmatpush.msra.mxu0 0.0
      %2109 = vmatpush.msra.mxu0 0.0
      %2110 = vmatpush.msra.mxu0 0.0
      %2111 = vmatpush.msra.mxu0 0.0
      %2112 = vmatpush.msra.mxu0 0.0
      %2113 = vmatpush.msra.mxu0 0.0
      %2114 = vmatpush.msra.mxu0 0.0
      %2115 = vmatpush.msra.mxu0 0.0
      %2116 = vmatpush.msra.mxu0 0.0
      %2117 = vmatpush.msra.mxu0 0.0
      %2118 = vmatpush.msra.mxu0 0.0
      %2119 = vmatpush.msra.mxu0 %v2016
      %2120 = vmatmul.f32.gmra.mxu0 %v2006
      %v2121 = vpop.f32.mrf.mxu0
      %v2122 = vadd.f32 0.0, %v2121
      %2123 = vdwg.mxu0
      %2124 = vmatpush.msra.mxu0 0.0
      %2125 = vmatpush.msra.mxu0 0.0
      %2126 = vmatpush.msra.mxu0 0.0
      %2127 = vmatpush.msra.mxu0 0.0
      %2128 = vmatpush.msra.mxu0 0.0
      %2129 = vmatpush.msra.mxu0 0.0
      %2130 = vmatpush.msra.mxu0 0.0
      %2131 = vmatpush.msra.mxu0 0.0
      %2132 = vmatpush.msra.mxu0 0.0
      %2133 = vmatpush.msra.mxu0 0.0
      %2134 = vmatpush.msra.mxu0 0.0
      %2135 = vmatpush.msra.mxu0 0.0
      %2136 = vmatpush.msra.mxu0 0.0
      %2137 = vmatpush.msra.mxu0 0.0
      %2138 = vmatpush.msra.mxu0 0.0
      %2139 = vmatpush.msra.mxu0 %v2018
      %2140 = vmatmul.f32.gmra.mxu0 %v2006
      %v2141 = vpop.f32.mrf.mxu0
      %v2142 = vadd.f32 0.0, %v2141
      %2143 = vdwg.mxu0
      %2144 = vmatpush.msra.mxu0 0.0
      %2145 = vmatpush.msra.mxu0 0.0
      %2146 = vmatpush.msra.mxu0 0.0
      %2147 = vmatpush.msra.mxu0 0.0
      %2148 = vmatpush.msra.mxu0 0.0
      %2149 = vmatpush.msra.mxu0 0.0
      %2150 = vmatpush.msra.mxu0 0.0
      %2151 = vmatpush.msra.mxu0 0.0
      %2152 = vmatpush.msra.mxu0 0.0
      %2153 = vmatpush.msra.mxu0 0.0
      %2154 = vmatpush.msra.mxu0 0.0
      %2155 = vmatpush.msra.mxu0 0.0
      %2156 = vmatpush.msra.mxu0 0.0
      %2157 = vmatpush.msra.mxu0 0.0
      %2158 = vmatpush.msra.mxu0 0.0
      %2159 = vmatpush.msra.mxu0 %v2020
      %2160 = vmatmul.f32.gmra.mxu0 %v2006
      %v2161 = vpop.f32.mrf.mxu0
      %v2162 = vadd.f32 0.0, %v2161
      %2163 = vdwg.mxu0
      %2164 = vmatpush.msra.mxu0 0.0
      %2165 = vmatpush.msra.mxu0 0.0
      %2166 = vmatpush.msra.mxu0 0.0
      %2167 = vmatpush.msra.mxu0 0.0
      %2168 = vmatpush.msra.mxu0 0.0
      %2169 = vmatpush.msra.mxu0 0.0
      %2170 = vmatpush.msra.mxu0 0.0
      %2171 = vmatpush.msra.mxu0 0.0
      %2172 = vmatpush.msra.mxu0 0.0
      %2173 = vmatpush.msra.mxu0 0.0
      %2174 = vmatpush.msra.mxu0 0.0
      %2175 = vmatpush.msra.mxu0 0.0
      %2176 = vmatpush.msra.mxu0 0.0
      %2177 = vmatpush.msra.mxu0 0.0
      %2178 = vmatpush.msra.mxu0 0.0
      %2179 = vmatpush.msra.mxu0 %v2022
      %2180 = vmatmul.f32.gmra.mxu0 %v2006
      %v2181 = vpop.f32.mrf.mxu0
      %v2182 = vadd.f32 0.0, %v2181
      %2183 = vdwg.mxu0
      %v2184 = vadd.f32 %v1956, %v2042
      %v2185 = vadd.f32 %v1957, %v2062
      %v2186 = vadd.f32 %v1958, %v2082
      %v2187 = vadd.f32 %v1959, %v2102
      %v2188 = vadd.f32 %v1960, %v2122
      %v2189 = vadd.f32 %v1961, %v2142
      %v2190 = vadd.f32 %v1962, %v2162
      %v2191 = vadd.f32 %v1963, %v2182
      %v2192 = vld [vmem:[%s2] sm:$0xff]
      %2194 = vset.pattern.permute.xlu0 0
      %2195 = vperm.xlu0 %2194, %v2192
      %v2196 = vpop.permute.xlu0 %2195
      %v2198 = vadd.f32 %v2184, %v2196
      %v2199 = vadd.f32 %v2185, %v2196
      %v2200 = vadd.f32 %v2186, %v2196
      %v2201 = vadd.f32 %v2187, %v2196
      %v2202 = vadd.f32 %v2188, %v2196
      %v2203 = vadd.f32 %v2189, %v2196
      %v2204 = vadd.f32 %v2190, %v2196
      %v2205 = vadd.f32 %v2191, %v2196
      %vm2206 = vcmp.gt.f32.partialorder %v2198, 0.0
      %vm2207 = vcmp.gt.f32.partialorder %v2199, 0.0
      %vm2208 = vcmp.gt.f32.partialorder %v2200, 0.0
      %vm2209 = vcmp.gt.f32.partialorder %v2201, 0.0
      %vm2210 = vcmp.gt.f32.partialorder %v2202, 0.0
      %vm2211 = vcmp.gt.f32.partialorder %v2203, 0.0
      %vm2212 = vcmp.gt.f32.partialorder %v2204, 0.0
      %vm2213 = vcmp.gt.f32.partialorder %v2205, 0.0
      %v2214 = vmul.f32 %v2198, 0.01
      %v2215 = vmul.f32 %v2199, 0.01
      %v2216 = vmul.f32 %v2200, 0.01
      %v2217 = vmul.f32 %v2201, 0.01
      %v2218 = vmul.f32 %v2202, 0.01
      %v2219 = vmul.f32 %v2203, 0.01
      %v2220 = vmul.f32 %v2204, 0.01
      %v2221 = vmul.f32 %v2205, 0.01
      %v2222 = vsel %vm2206, %v2198, %v2214
      %v2223 = vsel %vm2207, %v2199, %v2215
      %v2224 = vsel %vm2208, %v2200, %v2216
      %v2225 = vsel %vm2209, %v2201, %v2217
      %v2226 = vsel %vm2210, %v2202, %v2218
      %v2227 = vsel %vm2211, %v2203, %v2219
      %v2228 = vsel %vm2212, %v2204, %v2220
      %v2229 = vsel %vm2213, %v2205, %v2221
      %v2230 = vlaneseq
      %v2231 = vshrl.u32 %v2230, 7
      %v2232 = vadd.s32 %v2231, 8
      %v2233 = vadd.s32 %v2231, 16
      %v2234 = vadd.s32 %v2231, 24
      %v2235 = vlaneseq
      %v2236 = vand.u32 %v2235, 127
      %v2237 = vmul.u32 %v2236, 2
      %vm2238 = vcmp.eq.s32.totalorder %v2231, %v2237
      %vm2239 = vcmp.eq.s32.totalorder %v2232, %v2237
      %vm2240 = vcmp.eq.s32.totalorder %v2233, %v2237
      %vm2241 = vcmp.eq.s32.totalorder %v2234, %v2237
      %v2242 = vsel %vm2238, 1, 0
      %v2243 = vsel %vm2239, 1, 0
      %v2244 = vsel %vm2240, 1, 0
      %v2245 = vsel %vm2241, 1, 0
      %v2246 = vcvt.s32.f32 %v2242
      %v2247 = vcvt.s32.f32 %v2243
      %v2248 = vcvt.s32.f32 %v2244
      %v2249 = vcvt.s32.f32 %v2245
      %v2250 = vadd.s32 %v2237, 1
      %vm2251 = vcmp.eq.s32.totalorder %v2231, %v2250
      %vm2252 = vcmp.eq.s32.totalorder %v2232, %v2250
      %vm2253 = vcmp.eq.s32.totalorder %v2233, %v2250
      %vm2254 = vcmp.eq.s32.totalorder %v2234, %v2250
      %v2255 = vsel %vm2251, 1, 0
      %v2256 = vsel %vm2252, 1, 0
      %v2257 = vsel %vm2253, 1, 0
      %v2258 = vsel %vm2254, 1, 0
      %v2259 = vcvt.s32.f32 %v2255
      %v2260 = vcvt.s32.f32 %v2256
      %v2261 = vcvt.s32.f32 %v2257
      %v2262 = vcvt.s32.f32 %v2258
      %2264 = vrot.lane.b32.xlu0 %v2222, 96
      %v2265 = vpop.permute.xlu0 %2264
      %v2267 = vmax.f32 %v2222, %v2265
      %vm2268 = vcmask 244736
      %v2270 = vsel %vm2268, %v2267, 0
      %vm2272 = vcmask 1045504
      %v2274 = vsel %vm2272, %v2249, 0
      %2276 = vmatpush.msra.mxu0 0.0
      %2277 = vmatpush.msra.mxu0 0.0
      %2278 = vmatpush.msra.mxu0 0.0
      %2279 = vmatpush.msra.mxu0 0.0
      %2280 = vmatpush.msra.mxu0 0.0
      %2281 = vmatpush.msra.mxu0 0.0
      %2282 = vmatpush.msra.mxu0 0.0
      %2283 = vmatpush.msra.mxu0 0.0
      %2284 = vmatpush.msra.mxu0 0.0
      %2285 = vmatpush.msra.mxu0 0.0
      %2286 = vmatpush.msra.mxu0 0.0
      %2287 = vmatpush.msra.mxu0 0.0
      %2288 = vmatpush.msra.mxu0 %v2274
      %2289 = vmatpush.msra.mxu0 %v2248
      %2290 = vmatpush.msra.mxu0 %v2247
      %2291 = vmatpush.msra.mxu0 %v2246
      %2292 = vmatmul.f32.gmra.mxu0 %v2270
      %v2293 = vpop.f32.mrf.mxu0
      %v2294 = vadd.f32 0.0, %v2293
      %2295 = vdwg.mxu0
      %v2297 = vsel %vm2272, %v2262, 0
      %2299 = vmatpush.msra.mxu0 0.0
      %2300 = vmatpush.msra.mxu0 0.0
      %2301 = vmatpush.msra.mxu0 0.0
      %2302 = vmatpush.msra.mxu0 0.0
      %2303 = vmatpush.msra.mxu0 0.0
      %2304 = vmatpush.msra.mxu0 0.0
      %2305 = vmatpush.msra.mxu0 0.0
      %2306 = vmatpush.msra.mxu0 0.0
      %2307 = vmatpush.msra.mxu0 0.0
      %2308 = vmatpush.msra.mxu0 0.0
      %2309 = vmatpush.msra.mxu0 0.0
      %2310 = vmatpush.msra.mxu0 0.0
      %2311 = vmatpush.msra.mxu0 %v2297
      %2312 = vmatpush.msra.mxu0 %v2261
      %2313 = vmatpush.msra.mxu0 %v2260
      %2314 = vmatpush.msra.mxu0 %v2259
      %2315 = vmatmul.f32.gmra.mxu0 %v2270
      %v2316 = vpop.f32.mrf.mxu0
      %v2317 = vadd.f32 0.0, %v2316
      %2318 = vdwg.mxu0
      %v2319 = vmax.f32 %v2294, %v2317
      %vm2320 = vcmask 121856
      %2321 = vst.msk [vmem:[%s170] sm:$0xff] %vm2320, %v2319
      %2322 = vrot.lane.b32.xlu0 %v2267, 64
      %v2323 = vpop.permute.xlu0 %2322
      %v2324 = vsel %vm2268, %v2323, 0
      %2326 = vmatpush.msra.mxu0 0.0
      %2327 = vmatpush.msra.mxu0 0.0
      %2328 = vmatpush.msra.mxu0 0.0
      %2329 = vmatpush.msra.mxu0 0.0
      %2330 = vmatpush.msra.mxu0 0.0
      %2331 = vmatpush.msra.mxu0 0.0
      %2332 = vmatpush.msra.mxu0 0.0
      %2333 = vmatpush.msra.mxu0 0.0
      %2334 = vmatpush.msra.mxu0 0.0
      %2335 = vmatpush.msra.mxu0 0.0
      %2336 = vmatpush.msra.mxu0 0.0
      %2337 = vmatpush.msra.mxu0 0.0
      %2338 = vmatpush.msra.mxu0 %v2274
      %2339 = vmatpush.msra.mxu0 %v2248
      %2340 = vmatpush.msra.mxu0 %v2247
      %2341 = vmatpush.msra.mxu0 %v2246
      %2342 = vmatmul.f32.gmra.mxu0 %v2324
      %v2343 = vpop.f32.mrf.mxu0
      %v2344 = vadd.f32 0.0, %v2343
      %2345 = vdwg.mxu0
      %2346 = vmatpush.msra.mxu0 0.0
      %2347 = vmatpush.msra.mxu0 0.0
      %2348 = vmatpush.msra.mxu0 0.0
      %2349 = vmatpush.msra.mxu0 0.0
      %2350 = vmatpush.msra.mxu0 0.0
      %2351 = vmatpush.msra.mxu0 0.0
      %2352 = vmatpush.msra.mxu0 0.0
      %2353 = vmatpush.msra.mxu0 0.0
      %2354 = vmatpush.msra.mxu0 0.0
      %2355 = vmatpush.msra.mxu0 0.0
      %2356 = vmatpush.msra.mxu0 0.0
      %2357 = vmatpush.msra.mxu0 0.0
      %2358 = vmatpush.msra.mxu0 %v2297
      %2359 = vmatpush.msra.mxu0 %v2261
      %2360 = vmatpush.msra.mxu0 %v2260
      %2361 = vmatpush.msra.mxu0 %v2259
      %2362 = vmatmul.f32.gmra.mxu0 %v2324
      %v2363 = vpop.f32.mrf.mxu0
      %v2364 = vadd.f32 0.0, %v2363
      %2365 = vdwg.mxu0
      %v2366 = vmax.f32 %v2344, %v2364
      %2368 = vrot.lane.b32.xlu0 %v2366, 15
      %v2369 = vpop.permute.xlu0 %2368
      %vm2371 = vcmask 244856
      %2372 = vst.msk [vmem:[%s170] sm:$0xff] %vm2371, %v2369
      %2374 = vrot.lane.b32.xlu0 %v2223, 96
      %v2375 = vpop.permute.xlu0 %2374
      %v2377 = vmax.f32 %v2223, %v2375
      %v2379 = vsel %vm2268, %v2377, 0
      %2381 = vmatpush.msra.mxu0 0.0
      %2382 = vmatpush.msra.mxu0 0.0
      %2383 = vmatpush.msra.mxu0 0.0
      %2384 = vmatpush.msra.mxu0 0.0
      %2385 = vmatpush.msra.mxu0 0.0
      %2386 = vmatpush.msra.mxu0 0.0
      %2387 = vmatpush.msra.mxu0 0.0
      %2388 = vmatpush.msra.mxu0 0.0
      %2389 = vmatpush.msra.mxu0 0.0
      %2390 = vmatpush.msra.mxu0 0.0
      %2391 = vmatpush.msra.mxu0 0.0
      %2392 = vmatpush.msra.mxu0 0.0
      %2393 = vmatpush.msra.mxu0 %v2274
      %2394 = vmatpush.msra.mxu0 %v2248
      %2395 = vmatpush.msra.mxu0 %v2247
      %2396 = vmatpush.msra.mxu0 %v2246
      %2397 = vmatmul.f32.gmra.mxu0 %v2379
      %v2398 = vpop.f32.mrf.mxu0
      %v2399 = vadd.f32 0.0, %v2398
      %2400 = vdwg.mxu0
      %2401 = vmatpush.msra.mxu0 0.0
      %2402 = vmatpush.msra.mxu0 0.0
      %2403 = vmatpush.msra.mxu0 0.0
      %2404 = vmatpush.msra.mxu0 0.0
      %2405 = vmatpush.msra.mxu0 0.0
      %2406 = vmatpush.msra.mxu0 0.0
      %2407 = vmatpush.msra.mxu0 0.0
      %2408 = vmatpush.msra.mxu0 0.0
      %2409 = vmatpush.msra.mxu0 0.0
      %2410 = vmatpush.msra.mxu0 0.0
      %2411 = vmatpush.msra.mxu0 0.0
      %2412 = vmatpush.msra.mxu0 0.0
      %2413 = vmatpush.msra.mxu0 %v2297
      %2414 = vmatpush.msra.mxu0 %v2261
      %2415 = vmatpush.msra.mxu0 %v2260
      %2416 = vmatpush.msra.mxu0 %v2259
      %2417 = vmatmul.f32.gmra.mxu0 %v2379
      %v2418 = vpop.f32.mrf.mxu0
      %v2419 = vadd.f32 0.0, %v2418
      %2420 = vdwg.mxu0
      %v2421 = vmax.f32 %v2399, %v2419
      %2423 = vrot.lane.b32.xlu0 %v2421, 30
      %v2424 = vpop.permute.xlu0 %2423
      %vm2426 = vcmask 367856
      %2427 = vst.msk [vmem:[%s170] sm:$0xff] %vm2426, %v2424
      %2428 = vrot.lane.b32.xlu0 %v2377, 64
      %v2429 = vpop.permute.xlu0 %2428
      %v2430 = vsel %vm2268, %v2429, 0
      %2432 = vmatpush.msra.mxu0 0.0
      %2433 = vmatpush.msra.mxu0 0.0
      %2434 = vmatpush.msra.mxu0 0.0
      %2435 = vmatpush.msra.mxu0 0.0
      %2436 = vmatpush.msra.mxu0 0.0
      %2437 = vmatpush.msra.mxu0 0.0
      %2438 = vmatpush.msra.mxu0 0.0
      %2439 = vmatpush.msra.mxu0 0.0
      %2440 = vmatpush.msra.mxu0 0.0
      %2441 = vmatpush.msra.mxu0 0.0
      %2442 = vmatpush.msra.mxu0 0.0
      %2443 = vmatpush.msra.mxu0 0.0
      %2444 = vmatpush.msra.mxu0 %v2274
      %2445 = vmatpush.msra.mxu0 %v2248
      %2446 = vmatpush.msra.mxu0 %v2247
      %2447 = vmatpush.msra.mxu0 %v2246
      %2448 = vmatmul.f32.gmra.mxu0 %v2430
      %v2449 = vpop.f32.mrf.mxu0
      %v2450 = vadd.f32 0.0, %v2449
      %2451 = vdwg.mxu0
      %2452 = vmatpush.msra.mxu0 0.0
      %2453 = vmatpush.msra.mxu0 0.0
      %2454 = vmatpush.msra.mxu0 0.0
      %2455 = vmatpush.msra.mxu0 0.0
      %2456 = vmatpush.msra.mxu0 0.0
      %2457 = vmatpush.msra.mxu0 0.0
      %2458 = vmatpush.msra.mxu0 0.0
      %2459 = vmatpush.msra.mxu0 0.0
      %2460 = vmatpush.msra.mxu0 0.0
      %2461 = vmatpush.msra.mxu0 0.0
      %2462 = vmatpush.msra.mxu0 0.0
      %2463 = vmatpush.msra.mxu0 0.0
      %2464 = vmatpush.msra.mxu0 %v2297
      %2465 = vmatpush.msra.mxu0 %v2261
      %2466 = vmatpush.msra.mxu0 %v2260
      %2467 = vmatpush.msra.mxu0 %v2259
      %2468 = vmatmul.f32.gmra.mxu0 %v2430
      %v2469 = vpop.f32.mrf.mxu0
      %v2470 = vadd.f32 0.0, %v2469
      %2471 = vdwg.mxu0
      %v2472 = vmax.f32 %v2450, %v2470
      %2474 = vrot.lane.b32.xlu0 %v2472, 45
      %v2475 = vpop.permute.xlu0 %2474
      %vm2477 = vcmask 490856
      %2478 = vst.msk [vmem:[%s170] sm:$0xff] %vm2477, %v2475
      %2480 = vrot.lane.b32.xlu0 %v2224, 96
      %v2481 = vpop.permute.xlu0 %2480
      %v2483 = vmax.f32 %v2224, %v2481
      %v2485 = vsel %vm2268, %v2483, 0
      %2487 = vmatpush.msra.mxu0 0.0
      %2488 = vmatpush.msra.mxu0 0.0
      %2489 = vmatpush.msra.mxu0 0.0
      %2490 = vmatpush.msra.mxu0 0.0
      %2491 = vmatpush.msra.mxu0 0.0
      %2492 = vmatpush.msra.mxu0 0.0
      %2493 = vmatpush.msra.mxu0 0.0
      %2494 = vmatpush.msra.mxu0 0.0
      %2495 = vmatpush.msra.mxu0 0.0
      %2496 = vmatpush.msra.mxu0 0.0
      %2497 = vmatpush.msra.mxu0 0.0
      %2498 = vmatpush.msra.mxu0 0.0
      %2499 = vmatpush.msra.mxu0 %v2274
      %2500 = vmatpush.msra.mxu0 %v2248
      %2501 = vmatpush.msra.mxu0 %v2247
      %2502 = vmatpush.msra.mxu0 %v2246
      %2503 = vmatmul.f32.gmra.mxu0 %v2485
      %v2504 = vpop.f32.mrf.mxu0
      %v2505 = vadd.f32 0.0, %v2504
      %2506 = vdwg.mxu0
      %2507 = vmatpush.msra.mxu0 0.0
      %2508 = vmatpush.msra.mxu0 0.0
      %2509 = vmatpush.msra.mxu0 0.0
      %2510 = vmatpush.msra.mxu0 0.0
      %2511 = vmatpush.msra.mxu0 0.0
      %2512 = vmatpush.msra.mxu0 0.0
      %2513 = vmatpush.msra.mxu0 0.0
      %2514 = vmatpush.msra.mxu0 0.0
      %2515 = vmatpush.msra.mxu0 0.0
      %2516 = vmatpush.msra.mxu0 0.0
      %2517 = vmatpush.msra.mxu0 0.0
      %2518 = vmatpush.msra.mxu0 0.0
      %2519 = vmatpush.msra.mxu0 %v2297
      %2520 = vmatpush.msra.mxu0 %v2261
      %2521 = vmatpush.msra.mxu0 %v2260
      %2522 = vmatpush.msra.mxu0 %v2259
      %2523 = vmatmul.f32.gmra.mxu0 %v2485
      %v2524 = vpop.f32.mrf.mxu0
      %v2525 = vadd.f32 0.0, %v2524
      %2526 = vdwg.mxu0
      %v2527 = vmax.f32 %v2505, %v2525
      %2529 = vrot.lane.b32.xlu0 %v2527, 60
      %v2530 = vpop.permute.xlu0 %2529
      %vm2532 = vcmask 613856
      %2533 = vst.msk [vmem:[%s170] sm:$0xff] %vm2532, %v2530
      %2534 = vrot.lane.b32.xlu0 %v2483, 64
      %v2535 = vpop.permute.xlu0 %2534
      %v2536 = vsel %vm2268, %v2535, 0
      %2538 = vmatpush.msra.mxu0 0.0
      %2539 = vmatpush.msra.mxu0 0.0
      %2540 = vmatpush.msra.mxu0 0.0
      %2541 = vmatpush.msra.mxu0 0.0
      %2542 = vmatpush.msra.mxu0 0.0
      %2543 = vmatpush.msra.mxu0 0.0
      %2544 = vmatpush.msra.mxu0 0.0
      %2545 = vmatpush.msra.mxu0 0.0
      %2546 = vmatpush.msra.mxu0 0.0
      %2547 = vmatpush.msra.mxu0 0.0
      %2548 = vmatpush.msra.mxu0 0.0
      %2549 = vmatpush.msra.mxu0 0.0
      %2550 = vmatpush.msra.mxu0 %v2274
      %2551 = vmatpush.msra.mxu0 %v2248
      %2552 = vmatpush.msra.mxu0 %v2247
      %2553 = vmatpush.msra.mxu0 %v2246
      %2554 = vmatmul.f32.gmra.mxu0 %v2536
      %v2555 = vpop.f32.mrf.mxu0
      %v2556 = vadd.f32 0.0, %v2555
      %2557 = vdwg.mxu0
      %2558 = vmatpush.msra.mxu0 0.0
      %2559 = vmatpush.msra.mxu0 0.0
      %2560 = vmatpush.msra.mxu0 0.0
      %2561 = vmatpush.msra.mxu0 0.0
      %2562 = vmatpush.msra.mxu0 0.0
      %2563 = vmatpush.msra.mxu0 0.0
      %2564 = vmatpush.msra.mxu0 0.0
      %2565 = vmatpush.msra.mxu0 0.0
      %2566 = vmatpush.msra.mxu0 0.0
      %2567 = vmatpush.msra.mxu0 0.0
      %2568 = vmatpush.msra.mxu0 0.0
      %2569 = vmatpush.msra.mxu0 0.0
      %2570 = vmatpush.msra.mxu0 %v2297
      %2571 = vmatpush.msra.mxu0 %v2261
      %2572 = vmatpush.msra.mxu0 %v2260
      %2573 = vmatpush.msra.mxu0 %v2259
      %2574 = vmatmul.f32.gmra.mxu0 %v2536
      %v2575 = vpop.f32.mrf.mxu0
      %v2576 = vadd.f32 0.0, %v2575
      %2577 = vdwg.mxu0
      %v2578 = vmax.f32 %v2556, %v2576
      %2580 = vrot.lane.b32.xlu0 %v2578, 75
      %v2581 = vpop.permute.xlu0 %2580
      %vm2583 = vcmask 736856
      %2584 = vst.msk [vmem:[%s170] sm:$0xff] %vm2583, %v2581
      %2586 = vrot.lane.b32.xlu0 %v2225, 96
      %v2587 = vpop.permute.xlu0 %2586
      %v2589 = vmax.f32 %v2225, %v2587
      %v2591 = vsel %vm2268, %v2589, 0
      %2593 = vmatpush.msra.mxu0 0.0
      %2594 = vmatpush.msra.mxu0 0.0
      %2595 = vmatpush.msra.mxu0 0.0
      %2596 = vmatpush.msra.mxu0 0.0
      %2597 = vmatpush.msra.mxu0 0.0
      %2598 = vmatpush.msra.mxu0 0.0
      %2599 = vmatpush.msra.mxu0 0.0
      %2600 = vmatpush.msra.mxu0 0.0
      %2601 = vmatpush.msra.mxu0 0.0
      %2602 = vmatpush.msra.mxu0 0.0
      %2603 = vmatpush.msra.mxu0 0.0
      %2604 = vmatpush.msra.mxu0 0.0
      %2605 = vmatpush.msra.mxu0 %v2274
      %2606 = vmatpush.msra.mxu0 %v2248
      %2607 = vmatpush.msra.mxu0 %v2247
      %2608 = vmatpush.msra.mxu0 %v2246
      %2609 = vmatmul.f32.gmra.mxu0 %v2591
      %v2610 = vpop.f32.mrf.mxu0
      %v2611 = vadd.f32 0.0, %v2610
      %2612 = vdwg.mxu0
      %2613 = vmatpush.msra.mxu0 0.0
      %2614 = vmatpush.msra.mxu0 0.0
      %2615 = vmatpush.msra.mxu0 0.0
      %2616 = vmatpush.msra.mxu0 0.0
      %2617 = vmatpush.msra.mxu0 0.0
      %2618 = vmatpush.msra.mxu0 0.0
      %2619 = vmatpush.msra.mxu0 0.0
      %2620 = vmatpush.msra.mxu0 0.0
      %2621 = vmatpush.msra.mxu0 0.0
      %2622 = vmatpush.msra.mxu0 0.0
      %2623 = vmatpush.msra.mxu0 0.0
      %2624 = vmatpush.msra.mxu0 0.0
      %2625 = vmatpush.msra.mxu0 %v2297
      %2626 = vmatpush.msra.mxu0 %v2261
      %2627 = vmatpush.msra.mxu0 %v2260
      %2628 = vmatpush.msra.mxu0 %v2259
      %2629 = vmatmul.f32.gmra.mxu0 %v2591
      %v2630 = vpop.f32.mrf.mxu0
      %v2631 = vadd.f32 0.0, %v2630
      %2632 = vdwg.mxu0
      %v2633 = vmax.f32 %v2611, %v2631
      %2635 = vrot.lane.b32.xlu0 %v2633, 90
      %v2636 = vpop.permute.xlu0 %2635
      %vm2638 = vcmask 859856
      %2639 = vst.msk [vmem:[%s170] sm:$0xff] %vm2638, %v2636
      %2640 = vrot.lane.b32.xlu0 %v2589, 64
      %v2641 = vpop.permute.xlu0 %2640
      %v2642 = vsel %vm2268, %v2641, 0
      %2644 = vmatpush.msra.mxu0 0.0
      %2645 = vmatpush.msra.mxu0 0.0
      %2646 = vmatpush.msra.mxu0 0.0
      %2647 = vmatpush.msra.mxu0 0.0
      %2648 = vmatpush.msra.mxu0 0.0
      %2649 = vmatpush.msra.mxu0 0.0
      %2650 = vmatpush.msra.mxu0 0.0
      %2651 = vmatpush.msra.mxu0 0.0
      %2652 = vmatpush.msra.mxu0 0.0
      %2653 = vmatpush.msra.mxu0 0.0
      %2654 = vmatpush.msra.mxu0 0.0
      %2655 = vmatpush.msra.mxu0 0.0
      %2656 = vmatpush.msra.mxu0 %v2274
      %2657 = vmatpush.msra.mxu0 %v2248
      %2658 = vmatpush.msra.mxu0 %v2247
      %2659 = vmatpush.msra.mxu0 %v2246
      %2660 = vmatmul.f32.gmra.mxu0 %v2642
      %v2661 = vpop.f32.mrf.mxu0
      %v2662 = vadd.f32 0.0, %v2661
      %2663 = vdwg.mxu0
      %2664 = vmatpush.msra.mxu0 0.0
      %2665 = vmatpush.msra.mxu0 0.0
      %2666 = vmatpush.msra.mxu0 0.0
      %2667 = vmatpush.msra.mxu0 0.0
      %2668 = vmatpush.msra.mxu0 0.0
      %2669 = vmatpush.msra.mxu0 0.0
      %2670 = vmatpush.msra.mxu0 0.0
      %2671 = vmatpush.msra.mxu0 0.0
      %2672 = vmatpush.msra.mxu0 0.0
      %2673 = vmatpush.msra.mxu0 0.0
      %2674 = vmatpush.msra.mxu0 0.0
      %2675 = vmatpush.msra.mxu0 0.0
      %2676 = vmatpush.msra.mxu0 %v2297
      %2677 = vmatpush.msra.mxu0 %v2261
      %2678 = vmatpush.msra.mxu0 %v2260
      %2679 = vmatpush.msra.mxu0 %v2259
      %2680 = vmatmul.f32.gmra.mxu0 %v2642
      %v2681 = vpop.f32.mrf.mxu0
      %v2682 = vadd.f32 0.0, %v2681
      %2683 = vdwg.mxu0
      %v2684 = vmax.f32 %v2662, %v2682
      %2686 = vrot.lane.b32.xlu0 %v2684, 105
      %v2687 = vpop.permute.xlu0 %2686
      %vm2689 = vcmask 982856
      %2690 = vst.msk [vmem:[%s170] sm:$0xff] %vm2689, %v2687
      %2692 = vrot.lane.b32.xlu0 %v2226, 96
      %v2693 = vpop.permute.xlu0 %2692
      %v2695 = vmax.f32 %v2226, %v2693
      %v2697 = vsel %vm2268, %v2695, 0
      %2699 = vmatpush.msra.mxu0 0.0
      %2700 = vmatpush.msra.mxu0 0.0
      %2701 = vmatpush.msra.mxu0 0.0
      %2702 = vmatpush.msra.mxu0 0.0
      %2703 = vmatpush.msra.mxu0 0.0
      %2704 = vmatpush.msra.mxu0 0.0
      %2705 = vmatpush.msra.mxu0 0.0
      %2706 = vmatpush.msra.mxu0 0.0
      %2707 = vmatpush.msra.mxu0 0.0
      %2708 = vmatpush.msra.mxu0 0.0
      %2709 = vmatpush.msra.mxu0 0.0
      %2710 = vmatpush.msra.mxu0 0.0
      %2711 = vmatpush.msra.mxu0 %v2274
      %2712 = vmatpush.msra.mxu0 %v2248
      %2713 = vmatpush.msra.mxu0 %v2247
      %2714 = vmatpush.msra.mxu0 %v2246
      %2715 = vmatmul.f32.gmra.mxu0 %v2697
      %v2716 = vpop.f32.mrf.mxu0
      %v2717 = vadd.f32 0.0, %v2716
      %2718 = vdwg.mxu0
      %2719 = vmatpush.msra.mxu0 0.0
      %2720 = vmatpush.msra.mxu0 0.0
      %2721 = vmatpush.msra.mxu0 0.0
      %2722 = vmatpush.msra.mxu0 0.0
      %2723 = vmatpush.msra.mxu0 0.0
      %2724 = vmatpush.msra.mxu0 0.0
      %2725 = vmatpush.msra.mxu0 0.0
      %2726 = vmatpush.msra.mxu0 0.0
      %2727 = vmatpush.msra.mxu0 0.0
      %2728 = vmatpush.msra.mxu0 0.0
      %2729 = vmatpush.msra.mxu0 0.0
      %2730 = vmatpush.msra.mxu0 0.0
      %2731 = vmatpush.msra.mxu0 %v2297
      %2732 = vmatpush.msra.mxu0 %v2261
      %2733 = vmatpush.msra.mxu0 %v2260
      %2734 = vmatpush.msra.mxu0 %v2259
      %2735 = vmatmul.f32.gmra.mxu0 %v2697
      %v2736 = vpop.f32.mrf.mxu0
      %v2737 = vadd.f32 0.0, %v2736
      %2738 = vdwg.mxu0
      %v2739 = vmax.f32 %v2717, %v2737
      %2741 = vrot.lane.b32.xlu0 %v2739, 120
      %v2742 = vpop.permute.xlu0 %2741
      %vm2744 = vcmask 1048512
      %2745 = vst.msk [vmem:[%s170] sm:$0xff] %vm2744, %v2742
      %vm2746 = vcmask 56320
      %2747 = vst.msk [vmem:[%s170 + $0x8] sm:$0xff] %vm2746, %v2742
      %2748 = vrot.lane.b32.xlu0 %v2695, 64
      %v2749 = vpop.permute.xlu0 %2748
      %v2750 = vsel %vm2268, %v2749, 0
      %2752 = vmatpush.msra.mxu0 0.0
      %2753 = vmatpush.msra.mxu0 0.0
      %2754 = vmatpush.msra.mxu0 0.0
      %2755 = vmatpush.msra.mxu0 0.0
      %2756 = vmatpush.msra.mxu0 0.0
      %2757 = vmatpush.msra.mxu0 0.0
      %2758 = vmatpush.msra.mxu0 0.0
      %2759 = vmatpush.msra.mxu0 0.0
      %2760 = vmatpush.msra.mxu0 0.0
      %2761 = vmatpush.msra.mxu0 0.0
      %2762 = vmatpush.msra.mxu0 0.0
      %2763 = vmatpush.msra.mxu0 0.0
      %2764 = vmatpush.msra.mxu0 %v2274
      %2765 = vmatpush.msra.mxu0 %v2248
      %2766 = vmatpush.msra.mxu0 %v2247
      %2767 = vmatpush.msra.mxu0 %v2246
      %2768 = vmatmul.f32.gmra.mxu0 %v2750
      %v2769 = vpop.f32.mrf.mxu0
      %v2770 = vadd.f32 0.0, %v2769
      %2771 = vdwg.mxu0
      %2772 = vmatpush.msra.mxu0 0.0
      %2773 = vmatpush.msra.mxu0 0.0
      %2774 = vmatpush.msra.mxu0 0.0
      %2775 = vmatpush.msra.mxu0 0.0
      %2776 = vmatpush.msra.mxu0 0.0
      %2777 = vmatpush.msra.mxu0 0.0
      %2778 = vmatpush.msra.mxu0 0.0
      %2779 = vmatpush.msra.mxu0 0.0
      %2780 = vmatpush.msra.mxu0 0.0
      %2781 = vmatpush.msra.mxu0 0.0
      %2782 = vmatpush.msra.mxu0 0.0
      %2783 = vmatpush.msra.mxu0 0.0
      %2784 = vmatpush.msra.mxu0 %v2297
      %2785 = vmatpush.msra.mxu0 %v2261
      %2786 = vmatpush.msra.mxu0 %v2260
      %2787 = vmatpush.msra.mxu0 %v2259
      %2788 = vmatmul.f32.gmra.mxu0 %v2750
      %v2789 = vpop.f32.mrf.mxu0
      %v2790 = vadd.f32 0.0, %v2789
      %2791 = vdwg.mxu0
      %v2792 = vmax.f32 %v2770, %v2790
      %2794 = vrot.lane.b32.xlu0 %v2792, 7
      %v2795 = vpop.permute.xlu0 %2794
      %vm2797 = vcmask 179256
      %2798 = vst.msk [vmem:[%s170 + $0x8] sm:$0xff] %vm2797, %v2795
      %2800 = vrot.lane.b32.xlu0 %v2227, 96
      %v2801 = vpop.permute.xlu0 %2800
      %v2803 = vmax.f32 %v2227, %v2801
      %v2805 = vsel %vm2268, %v2803, 0
      %2807 = vmatpush.msra.mxu0 0.0
      %2808 = vmatpush.msra.mxu0 0.0
      %2809 = vmatpush.msra.mxu0 0.0
      %2810 = vmatpush.msra.mxu0 0.0
      %2811 = vmatpush.msra.mxu0 0.0
      %2812 = vmatpush.msra.mxu0 0.0
      %2813 = vmatpush.msra.mxu0 0.0
      %2814 = vmatpush.msra.mxu0 0.0
      %2815 = vmatpush.msra.mxu0 0.0
      %2816 = vmatpush.msra.mxu0 0.0
      %2817 = vmatpush.msra.mxu0 0.0
      %2818 = vmatpush.msra.mxu0 0.0
      %2819 = vmatpush.msra.mxu0 %v2274
      %2820 = vmatpush.msra.mxu0 %v2248
      %2821 = vmatpush.msra.mxu0 %v2247
      %2822 = vmatpush.msra.mxu0 %v2246
      %2823 = vmatmul.f32.gmra.mxu0 %v2805
      %v2824 = vpop.f32.mrf.mxu0
      %v2825 = vadd.f32 0.0, %v2824
      %2826 = vdwg.mxu0
      %2827 = vmatpush.msra.mxu0 0.0
      %2828 = vmatpush.msra.mxu0 0.0
      %2829 = vmatpush.msra.mxu0 0.0
      %2830 = vmatpush.msra.mxu0 0.0
      %2831 = vmatpush.msra.mxu0 0.0
      %2832 = vmatpush.msra.mxu0 0.0
      %2833 = vmatpush.msra.mxu0 0.0
      %2834 = vmatpush.msra.mxu0 0.0
      %2835 = vmatpush.msra.mxu0 0.0
      %2836 = vmatpush.msra.mxu0 0.0
      %2837 = vmatpush.msra.mxu0 0.0
      %2838 = vmatpush.msra.mxu0 0.0
      %2839 = vmatpush.msra.mxu0 %v2297
      %2840 = vmatpush.msra.mxu0 %v2261
      %2841 = vmatpush.msra.mxu0 %v2260
      %2842 = vmatpush.msra.mxu0 %v2259
      %2843 = vmatmul.f32.gmra.mxu0 %v2805
      %v2844 = vpop.f32.mrf.mxu0
      %v2845 = vadd.f32 0.0, %v2844
      %2846 = vdwg.mxu0
      %v2847 = vmax.f32 %v2825, %v2845
      %2849 = vrot.lane.b32.xlu0 %v2847, 22
      %v2850 = vpop.permute.xlu0 %2849
      %vm2852 = vcmask 302256
      %2853 = vst.msk [vmem:[%s170 + $0x8] sm:$0xff] %vm2852, %v2850
      %2854 = vrot.lane.b32.xlu0 %v2803, 64
      %v2855 = vpop.permute.xlu0 %2854
      %v2856 = vsel %vm2268, %v2855, 0
      %2858 = vmatpush.msra.mxu0 0.0
      %2859 = vmatpush.msra.mxu0 0.0
      %2860 = vmatpush.msra.mxu0 0.0
      %2861 = vmatpush.msra.mxu0 0.0
      %2862 = vmatpush.msra.mxu0 0.0
      %2863 = vmatpush.msra.mxu0 0.0
      %2864 = vmatpush.msra.mxu0 0.0
      %2865 = vmatpush.msra.mxu0 0.0
      %2866 = vmatpush.msra.mxu0 0.0
      %2867 = vmatpush.msra.mxu0 0.0
      %2868 = vmatpush.msra.mxu0 0.0
      %2869 = vmatpush.msra.mxu0 0.0
      %2870 = vmatpush.msra.mxu0 %v2274
      %2871 = vmatpush.msra.mxu0 %v2248
      %2872 = vmatpush.msra.mxu0 %v2247
      %2873 = vmatpush.msra.mxu0 %v2246
      %2874 = vmatmul.f32.gmra.mxu0 %v2856
      %v2875 = vpop.f32.mrf.mxu0
      %v2876 = vadd.f32 0.0, %v2875
      %2877 = vdwg.mxu0
      %2878 = vmatpush.msra.mxu0 0.0
      %2879 = vmatpush.msra.mxu0 0.0
      %2880 = vmatpush.msra.mxu0 0.0
      %2881 = vmatpush.msra.mxu0 0.0
      %2882 = vmatpush.msra.mxu0 0.0
      %2883 = vmatpush.msra.mxu0 0.0
      %2884 = vmatpush.msra.mxu0 0.0
      %2885 = vmatpush.msra.mxu0 0.0
      %2886 = vmatpush.msra.mxu0 0.0
      %2887 = vmatpush.msra.mxu0 0.0
      %2888 = vmatpush.msra.mxu0 0.0
      %2889 = vmatpush.msra.mxu0 0.0
      %2890 = vmatpush.msra.mxu0 %v2297
      %2891 = vmatpush.msra.mxu0 %v2261
      %2892 = vmatpush.msra.mxu0 %v2260
      %2893 = vmatpush.msra.mxu0 %v2259
      %2894 = vmatmul.f32.gmra.mxu0 %v2856
      %v2895 = vpop.f32.mrf.mxu0
      %v2896 = vadd.f32 0.0, %v2895
      %2897 = vdwg.mxu0
      %v2898 = vmax.f32 %v2876, %v2896
      %2900 = vrot.lane.b32.xlu0 %v2898, 37
      %v2901 = vpop.permute.xlu0 %2900
      %vm2903 = vcmask 425256
      %2904 = vst.msk [vmem:[%s170 + $0x8] sm:$0xff] %vm2903, %v2901
      %2906 = vrot.lane.b32.xlu0 %v2228, 96
      %v2907 = vpop.permute.xlu0 %2906
      %v2909 = vmax.f32 %v2228, %v2907
      %v2911 = vsel %vm2268, %v2909, 0
      %2913 = vmatpush.msra.mxu0 0.0
      %2914 = vmatpush.msra.mxu0 0.0
      %2915 = vmatpush.msra.mxu0 0.0
      %2916 = vmatpush.msra.mxu0 0.0
      %2917 = vmatpush.msra.mxu0 0.0
      %2918 = vmatpush.msra.mxu0 0.0
      %2919 = vmatpush.msra.mxu0 0.0
      %2920 = vmatpush.msra.mxu0 0.0
      %2921 = vmatpush.msra.mxu0 0.0
      %2922 = vmatpush.msra.mxu0 0.0
      %2923 = vmatpush.msra.mxu0 0.0
      %2924 = vmatpush.msra.mxu0 0.0
      %2925 = vmatpush.msra.mxu0 %v2274
      %2926 = vmatpush.msra.mxu0 %v2248
      %2927 = vmatpush.msra.mxu0 %v2247
      %2928 = vmatpush.msra.mxu0 %v2246
      %2929 = vmatmul.f32.gmra.mxu0 %v2911
      %v2930 = vpop.f32.mrf.mxu0
      %v2931 = vadd.f32 0.0, %v2930
      %2932 = vdwg.mxu0
      %2933 = vmatpush.msra.mxu0 0.0
      %2934 = vmatpush.msra.mxu0 0.0
      %2935 = vmatpush.msra.mxu0 0.0
      %2936 = vmatpush.msra.mxu0 0.0
      %2937 = vmatpush.msra.mxu0 0.0
      %2938 = vmatpush.msra.mxu0 0.0
      %2939 = vmatpush.msra.mxu0 0.0
      %2940 = vmatpush.msra.mxu0 0.0
      %2941 = vmatpush.msra.mxu0 0.0
      %2942 = vmatpush.msra.mxu0 0.0
      %2943 = vmatpush.msra.mxu0 0.0
      %2944 = vmatpush.msra.mxu0 0.0
      %2945 = vmatpush.msra.mxu0 %v2297
      %2946 = vmatpush.msra.mxu0 %v2261
      %2947 = vmatpush.msra.mxu0 %v2260
      %2948 = vmatpush.msra.mxu0 %v2259
      %2949 = vmatmul.f32.gmra.mxu0 %v2911
      %v2950 = vpop.f32.mrf.mxu0
      %v2951 = vadd.f32 0.0, %v2950
      %2952 = vdwg.mxu0
      %v2953 = vmax.f32 %v2931, %v2951
      %2955 = vrot.lane.b32.xlu0 %v2953, 52
      %v2956 = vpop.permute.xlu0 %2955
      %vm2958 = vcmask 548256
      %2959 = vst.msk [vmem:[%s170 + $0x8] sm:$0xff] %vm2958, %v2956
      %2960 = vrot.lane.b32.xlu0 %v2909, 64
      %v2961 = vpop.permute.xlu0 %2960
      %v2962 = vsel %vm2268, %v2961, 0
      %2964 = vmatpush.msra.mxu0 0.0
      %2965 = vmatpush.msra.mxu0 0.0
      %2966 = vmatpush.msra.mxu0 0.0
      %2967 = vmatpush.msra.mxu0 0.0
      %2968 = vmatpush.msra.mxu0 0.0
      %2969 = vmatpush.msra.mxu0 0.0
      %2970 = vmatpush.msra.mxu0 0.0
      %2971 = vmatpush.msra.mxu0 0.0
      %2972 = vmatpush.msra.mxu0 0.0
      %2973 = vmatpush.msra.mxu0 0.0
      %2974 = vmatpush.msra.mxu0 0.0
      %2975 = vmatpush.msra.mxu0 0.0
      %2976 = vmatpush.msra.mxu0 %v2274
      %2977 = vmatpush.msra.mxu0 %v2248
      %2978 = vmatpush.msra.mxu0 %v2247
      %2979 = vmatpush.msra.mxu0 %v2246
      %2980 = vmatmul.f32.gmra.mxu0 %v2962
      %v2981 = vpop.f32.mrf.mxu0
      %v2982 = vadd.f32 0.0, %v2981
      %2983 = vdwg.mxu0
      %2984 = vmatpush.msra.mxu0 0.0
      %2985 = vmatpush.msra.mxu0 0.0
      %2986 = vmatpush.msra.mxu0 0.0
      %2987 = vmatpush.msra.mxu0 0.0
      %2988 = vmatpush.msra.mxu0 0.0
      %2989 = vmatpush.msra.mxu0 0.0
      %2990 = vmatpush.msra.mxu0 0.0
      %2991 = vmatpush.msra.mxu0 0.0
      %2992 = vmatpush.msra.mxu0 0.0
      %2993 = vmatpush.msra.mxu0 0.0
      %2994 = vmatpush.msra.mxu0 0.0
      %2995 = vmatpush.msra.mxu0 0.0
      %2996 = vmatpush.msra.mxu0 %v2297
      %2997 = vmatpush.msra.mxu0 %v2261
      %2998 = vmatpush.msra.mxu0 %v2260
      %2999 = vmatpush.msra.mxu0 %v2259
      %3000 = vmatmul.f32.gmra.mxu0 %v2962
      %v3001 = vpop.f32.mrf.mxu0
      %v3002 = vadd.f32 0.0, %v3001
      %3003 = vdwg.mxu0
      %v3004 = vmax.f32 %v2982, %v3002
      %3006 = vrot.lane.b32.xlu0 %v3004, 67
      %v3007 = vpop.permute.xlu0 %3006
      %vm3009 = vcmask 671256
      %3010 = vst.msk [vmem:[%s170 + $0x8] sm:$0xff] %vm3009, %v3007
      %3012 = vrot.lane.b32.xlu0 %v2229, 96
      %v3013 = vpop.permute.xlu0 %3012
      %v3015 = vmax.f32 %v2229, %v3013
      %v3017 = vsel %vm2268, %v3015, 0
      %3019 = vmatpush.msra.mxu0 0.0
      %3020 = vmatpush.msra.mxu0 0.0
      %3021 = vmatpush.msra.mxu0 0.0
      %3022 = vmatpush.msra.mxu0 0.0
      %3023 = vmatpush.msra.mxu0 0.0
      %3024 = vmatpush.msra.mxu0 0.0
      %3025 = vmatpush.msra.mxu0 0.0
      %3026 = vmatpush.msra.mxu0 0.0
      %3027 = vmatpush.msra.mxu0 0.0
      %3028 = vmatpush.msra.mxu0 0.0
      %3029 = vmatpush.msra.mxu0 0.0
      %3030 = vmatpush.msra.mxu0 0.0
      %3031 = vmatpush.msra.mxu0 %v2274
      %3032 = vmatpush.msra.mxu0 %v2248
      %3033 = vmatpush.msra.mxu0 %v2247
      %3034 = vmatpush.msra.mxu0 %v2246
      %3035 = vmatmul.f32.gmra.mxu0 %v3017
      %v3036 = vpop.f32.mrf.mxu0
      %v3037 = vadd.f32 0.0, %v3036
      %3038 = vdwg.mxu0
      %3039 = vmatpush.msra.mxu0 0.0
      %3040 = vmatpush.msra.mxu0 0.0
      %3041 = vmatpush.msra.mxu0 0.0
      %3042 = vmatpush.msra.mxu0 0.0
      %3043 = vmatpush.msra.mxu0 0.0
      %3044 = vmatpush.msra.mxu0 0.0
      %3045 = vmatpush.msra.mxu0 0.0
      %3046 = vmatpush.msra.mxu0 0.0
      %3047 = vmatpush.msra.mxu0 0.0
      %3048 = vmatpush.msra.mxu0 0.0
      %3049 = vmatpush.msra.mxu0 0.0
      %3050 = vmatpush.msra.mxu0 0.0
      %3051 = vmatpush.msra.mxu0 %v2297
      %3052 = vmatpush.msra.mxu0 %v2261
      %3053 = vmatpush.msra.mxu0 %v2260
      %3054 = vmatpush.msra.mxu0 %v2259
      %3055 = vmatmul.f32.gmra.mxu0 %v3017
      %v3056 = vpop.f32.mrf.mxu0
      %v3057 = vadd.f32 0.0, %v3056
      %3058 = vdwg.mxu0
      %v3059 = vmax.f32 %v3037, %v3057
      %3061 = vrot.lane.b32.xlu0 %v3059, 82
      %v3062 = vpop.permute.xlu0 %3061
      %vm3064 = vcmask 794256
      %3065 = vst.msk [vmem:[%s170 + $0x8] sm:$0xff] %vm3064, %v3062
      %p3066 = scmp.lt.s32.totalorder %s14, 1
      %s3067 = scalar_select %p3066, %s14, 1
      %s3068 = smul.addr %s3067, 2
      %s3069 = smul.addr %s3068, 8
      %s3070 = scalar_lea.vmem %s3, %s3069
      // Predicated region
      $region33: #{neural_net_forward.3} parent=31 // pred_check
        %p3071 = pneg %p100
      $region34: #{neural_net_forward.3} parent=31 // pred_check_branch
        %3073 = sbr.rel (%p3071) target = $region36
      $region35: #{neural_net_forward.3} parent=31 // pred_region
        _
      $region36: #{neural_net_forward.3} parent=31 // pred_fallthru
        _
    $region32: #{neural_net_forward.3} parent=5 // pred_fallthru
      _
    %p3074 = scmp.le.s32.totalorder 2, %s9
    // Predicated region
    $region37: #{neural_net_forward.3} parent=5 // pred_check
      %p3075 = pneg %p3074
    $region38: #{neural_net_forward.3} parent=5 // pred_check_branch
      %3077 = sbr.rel (%p3075) target = $region40
    $region39: #{neural_net_forward.3} parent=5 // pred_region
      %s3078 = ssub.s32 %s9, 2
      // Predicated region
      $region41: #{neural_net_forward.3} parent=39 // pred_check
        %p3079 = pneg %p106
      $region42: #{neural_net_forward.3} parent=39 // pred_check_branch
        %3081 = sbr.rel (%p3079) target = $region44
      $region43: #{neural_net_forward.3} parent=39 // pred_region
        %p3082 = scmp.lt.s32.totalorder %s15, 1
        %s3083 = scalar_select %p3082, %s15, 1
        %s3084 = smul.addr %s3083, 2
        %s3085 = smul.addr %s3084, 8
        %s3086 = scalar_lea.vmem %s3, %s3085
      $region44: #{neural_net_forward.3} parent=39 // pred_fallthru
        _
    $region40: #{neural_net_forward.3} parent=5 // pred_fallthru
      _
  $region6: #{neural_net_forward.3} parent=0 // loop_footer
    %s13 = sadd.s32 1, %s9
  $region7: #{neural_net_forward.3} parent=0 // loop_footer_branch
    %8 = sbr.rel target = $region3
  $region8: #{neural_net_forward.3} parent=0 // loop_exit
    _

// kernel: neural_net_forward.4
$region0: #{neural_net_forward.4}
  #allocation0 [shape = 'u32[]', space=smem, size = 0x4, offset = 0x4, fixed_abs, tag = 'smem constant byte address 0x4 - core index']
  #allocation1 [shape = 'u32[72,128]{1,0:T(1,128)}', space=vmem, size = 0x9000, scoped, tag = 'internal scratch']
  %s0 = inlined_call_operand.vmem [shape: f32[2,8,225], index: 0, kind: input, shape index: {}]
  %s1 = inlined_call_operand.vmem [shape: f32[25,16,8], index: 1, kind: input, shape index: {}]
  %s2 = inlined_call_operand.vmem [shape: f32[16,1], index: 2, kind: input, shape index: {}]
  %s3 = inlined_call_operand.vmem [shape: f32[2,16,25], index: 3, kind: output, shape index: {}]
  %s4 = sld [smem:[#allocation0]]
  $region45: #{neural_net_forward.4} parent=0
    _
  %s6 = ssub.s32 1, %s4
  %s7 = scalar_select 0, %s6, %s4
  loop: start=0, step=1, limit=4
  $region2: #{neural_net_forward.4} parent=0 // loop_pre_header
    _
  $region3: #{neural_net_forward.4} parent=0 // loop_header
    %s9 = sphi 0, %s13
    %p10 = scmp.ge.s32.totalorder %s9, 4
    %s19 = sphi 0, %s21
    %s22 = sphi 0, %s19
    %s23 = sphi 0, %s22
    %s39 = sphi 0, %s23
    %s43 = sphi 0, %s43
    %s45 = sphi 0, %s43
    %s46 = sphi 0, %s45
    %s60 = sphi 0, %s46
    %s64 = sphi 0, %s64
    %s66 = sphi 0, %s64
    %s67 = sphi 0, %s66
    %s81 = sphi 0, %s67
    %s87 = sphi 0, %s89
    %s90 = sphi 0, %s87
    %s91 = sphi 0, %s90
    %s107 = sphi 0, %s91
  $region4: #{neural_net_forward.4} parent=0 // loop_header_branch
    %12 = sbr.rel (%p10) target = $region8
  $region5: #{neural_net_forward.4} parent=0 // loop_body
    %s14 = ssub.s32 %s9, 1
    %s15 = ssub.s32 %s9, 2
    %s16 = sadd.s32 %s9, 1
    %s17 = ssub.s32 %s9, %s16
    %p18 = scmp.eq.s32.totalorder %s17, 0
    %s20 = sadd.s32 %s19, 1
    %s21 = scalar_select %p18, %s19, %s20
    %p24 = pneg %p18
    %p25 = scmp.eq.s32.totalorder %s9, 1
    %p26 = por %p24, %p25
    %p27 = scmp.ne.s32.totalorder %s19, %s22
    %p28 = scmp.eq.s32.totalorder %s9, 0
    %p29 = por %p27, %p28
    %p30 = scmp.ne.s32.totalorder %s19, %s22
    %p31 = scmp.eq.s32.totalorder %s14, 1
    %p32 = por %p30, %p31
    %p33 = scmp.ne.s32.totalorder %s22, %s23
    %p34 = scmp.eq.s32.totalorder %s14, 0
    %p35 = por %p33, %p34
    %p36 = scmp.ne.s32.totalorder %s22, %s23
    %p37 = scmp.eq.s32.totalorder %s15, 1
    %p38 = por %p36, %p37
    %p40 = scmp.ne.s32.totalorder %s23, %s39
    %p41 = scmp.eq.s32.totalorder %s15, 0
    %p42 = por %p40, %p41
    %s44 = sadd.s32 %s43, 1
    %p47 = scmp.eq.s32.totalorder %s9, 1
    %p48 = scmp.ne.s32.totalorder %s43, %s45
    %p49 = scmp.eq.s32.totalorder %s9, 0
    %p50 = por %p48, %p49
    %p51 = scmp.ne.s32.totalorder %s43, %s45
    %p52 = scmp.eq.s32.totalorder %s14, 1
    %p53 = por %p51, %p52
    %p54 = scmp.ne.s32.totalorder %s45, %s46
    %p55 = scmp.eq.s32.totalorder %s14, 0
    %p56 = por %p54, %p55
    %p57 = scmp.ne.s32.totalorder %s45, %s46
    %p58 = scmp.eq.s32.totalorder %s15, 1
    %p59 = por %p57, %p58
    %p61 = scmp.ne.s32.totalorder %s46, %s60
    %p62 = scmp.eq.s32.totalorder %s15, 0
    %p63 = por %p61, %p62
    %s65 = sadd.s32 %s64, 1
    %p68 = scmp.eq.s32.totalorder %s9, 1
    %p69 = scmp.ne.s32.totalorder %s64, %s66
    %p70 = scmp.eq.s32.totalorder %s9, 0
    %p71 = por %p69, %p70
    %p72 = scmp.ne.s32.totalorder %s64, %s66
    %p73 = scmp.eq.s32.totalorder %s14, 1
    %p74 = por %p72, %p73
    %p75 = scmp.ne.s32.totalorder %s66, %s67
    %p76 = scmp.eq.s32.totalorder %s14, 0
    %p77 = por %p75, %p76
    %p78 = scmp.ne.s32.totalorder %s66, %s67
    %p79 = scmp.eq.s32.totalorder %s15, 1
    %p80 = por %p78, %p79
    %p82 = scmp.ne.s32.totalorder %s67, %s81
    %p83 = scmp.eq.s32.totalorder %s15, 0
    %p84 = por %p82, %p83
    %s85 = ssub.s32 %s9, %s16
    %p86 = scmp.eq.s32.totalorder %s85, 0
    %s88 = sadd.s32 %s87, 1
    %s89 = scalar_select %p86, %s87, %s88
    %p92 = pneg %p86
    %p93 = scmp.eq.s32.totalorder %s9, 1
    %p94 = por %p92, %p93
    %p95 = scmp.ne.s32.totalorder %s87, %s90
    %p96 = scmp.eq.s32.totalorder %s9, 0
    %p97 = por %p95, %p96
    %p98 = scmp.ne.s32.totalorder %s87, %s90
    %p99 = scmp.eq.s32.totalorder %s14, 1
    %p100 = por %p98, %p99
    %p101 = scmp.ne.s32.totalorder %s90, %s91
    %p102 = scmp.eq.s32.totalorder %s14, 0
    %p103 = por %p101, %p102
    %p104 = scmp.ne.s32.totalorder %s90, %s91
    %p105 = scmp.eq.s32.totalorder %s15, 1
    %p106 = por %p104, %p105
    %p108 = scmp.ne.s32.totalorder %s91, %s107
    %p109 = scmp.eq.s32.totalorder %s15, 0
    %p110 = por %p108, %p109
    %p111 = scmp.le.s32.totalorder 1, %s9
    %p112 = scmp.lt.s32.totalorder %s9, 3
    %p113 = pnand %p111, %p112
    %p114 = pneg %p113
    // Predicated region
    $region9: #{neural_net_forward.4} parent=5 // pred_check
      _
    $region10: #{neural_net_forward.4} parent=5 // pred_check_branch
      %116 = sbr.rel (%p113) target = $region12
    $region11: #{neural_net_forward.4} parent=5 // pred_region
      %s117 = ssub.s32 %s9, 1
      // Predicated region
      $region13: #{neural_net_forward.4} parent=11 // pred_check
        %p118 = pneg %p56
      $region14: #{neural_net_forward.4} parent=11 // pred_check_branch
        %120 = sbr.rel (%p118) target = $region16
      $region15: #{neural_net_forward.4} parent=11 // pred_region
        _
      $region16: #{neural_net_forward.4} parent=11 // pred_fallthru
        _
      // Predicated region
      $region17: #{neural_net_forward.4} parent=11 // pred_check
        %p121 = pneg %p77
      $region18: #{neural_net_forward.4} parent=11 // pred_check_branch
        %123 = sbr.rel (%p121) target = $region20
      $region19: #{neural_net_forward.4} parent=11 // pred_region
        _
      $region20: #{neural_net_forward.4} parent=11 // pred_fallthru
        _
    $region12: #{neural_net_forward.4} parent=5 // pred_fallthru
      _
    %p124 = scmp.lt.s32.totalorder %s9, 2
    // Predicated region
    $region21: #{neural_net_forward.4} parent=5 // pred_check
      %p125 = pneg %p124
    $region22: #{neural_net_forward.4} parent=5 // pred_check_branch
      %127 = sbr.rel (%p125) target = $region24
    $region23: #{neural_net_forward.4} parent=5 // pred_region
      // Predicated region
      $region25: #{neural_net_forward.4} parent=23 // pred_check
        %p128 = pneg %p29
      $region26: #{neural_net_forward.4} parent=23 // pred_check_branch
        %130 = sbr.rel (%p128) target = $region28
      $region27: #{neural_net_forward.4} parent=23 // pred_region
        %p131 = scmp.lt.s32.totalorder %s9, 1
        %s132 = scalar_select %p131, %s9, 1
        %s133 = smul.addr %s132, 2
        %s134 = smul.addr %s133, 8
        %s135 = scalar_lea.vmem %s0, %s134
      $region28: #{neural_net_forward.4} parent=23 // pred_fallthru
        _
    $region24: #{neural_net_forward.4} parent=5 // pred_fallthru
      _
    %p136 = scmp.le.s32.totalorder 1, %s9
    %p137 = scmp.lt.s32.totalorder %s9, 3
    %p138 = pnand %p136, %p137
    %p139 = pneg %p138
    // Predicated region
    $region29: #{neural_net_forward.4} parent=5 // pred_check
      _
    $region30: #{neural_net_forward.4} parent=5 // pred_check_branch
      %141 = sbr.rel (%p138) target = $region32
    $region31: #{neural_net_forward.4} parent=5 // pred_region
      %s142 = ssub.s32 %s9, 1
      %p143 = scmp.lt.s32.totalorder %s14, 1
      %s144 = scalar_select %p143, %s14, 1
      %s145 = smul.addr %s144, 2
      %s146 = smul.addr %s145, 8
      %s147 = scalar_lea.vmem %s0, %s146
      %p148 = pneg %p35
      %p149 = pneg %p32
      %p150 = pneg %p56
      %p151 = pneg %p53
      %p152 = pneg %p77
      %p153 = pneg %p74
      %p154 = pneg %p103
      %p155 = pneg %p100
      %p156 = scmp.lt.s32.totalorder %s14, 1
      %s157 = scalar_select %p156, %s14, 1
      %s158 = smul.addr %s157, 2
      %s159 = smul.addr %s158, 8
      %s160 = scalar_lea.vmem %s3, %s159
      %p161 = scmp.lt.s32.totalorder %s14, 1
      %s162 = scalar_select %p161, %s14, 1
      %s163 = smul.addr %s162, 2
      %s164 = smul.addr %s163, 8
      %s165 = scalar_lea.vmem %s0, %s164
      %p166 = scmp.lt.s32.totalorder %s14, 1
      %s167 = scalar_select %p166, %s14, 1
      %s168 = smul.addr %s167, 2
      %s169 = smul.addr %s168, 8
      %s170 = scalar_lea.vmem %s3, %s169
      %v171 = vld [vmem:[%s165] sm:$0xff]
      %v172 = vld [vmem:[%s165 + $0x8] sm:$0xff]
      %v173 = vld [vmem:[%s1] sm:$0xff]
      %v174 = vld [vmem:[%s1 + $0x8] sm:$0xff]
      %s175 = scalar_lea.vmem %s1, 16
      %v176 = vld [vmem:[%s175] sm:$0xff]
      %v177 = vld [vmem:[%s175 + $0x8] sm:$0xff]
      %180 = vrot.lane.b32.xlu0 %v171, 127
      %v181 = vpop.permute.xlu0 %180
      %182 = vrot.lane.b32.xlu0 %v172, 127
      %v183 = vpop.permute.xlu0 %182
      %vm184 = vcmask 1039360
      %v185 = vsel %vm184, %v181, %v183
      %vm188 = vcmask 64512
      %v190 = vsel %vm188, %v176, 0
      %v193 = vsel %vm188, %v177, 0
      %195 = vmatpush.msra.mxu0 0.0
      %196 = vmatpush.msra.mxu0 0.0
      %197 = vmatpush.msra.mxu0 0.0
      %198 = vmatpush.msra.mxu0 0.0
      %199 = vmatpush.msra.mxu0 0.0
      %200 = vmatpush.msra.mxu0 0.0
      %201 = vmatpush.msra.mxu0 0.0
      %202 = vmatpush.msra.mxu0 0.0
      %203 = vmatpush.msra.mxu0 0.0
      %204 = vmatpush.msra.mxu0 0.0
      %205 = vmatpush.msra.mxu0 0.0
      %206 = vmatpush.msra.mxu0 0.0
      %207 = vmatpush.msra.mxu0 0.0
      %208 = vmatpush.msra.mxu0 0.0
      %209 = vmatpush.msra.mxu0 0.0
      %210 = vmatpush.msra.mxu0 %v185
      %211 = vmatmul.f32.gmra.mxu0 %v190
      %v212 = vpop.f32.mrf.mxu0
      %v213 = vadd.f32 0.0, %v212
      %214 = vmatmul.f32.gmra.mxu0 %v193
      %v215 = vpop.f32.mrf.mxu0
      %v216 = vadd.f32 0.0, %v215
      %217 = vdwg.mxu0
      %218 = vmatpush.msra.mxu0 0.0
      %219 = vmatpush.msra.mxu0 0.0
      %220 = vmatpush.msra.mxu0 0.0
      %221 = vmatpush.msra.mxu0 0.0
      %222 = vmatpush.msra.mxu0 0.0
      %223 = vmatpush.msra.mxu0 0.0
      %224 = vmatpush.msra.mxu0 0.0
      %225 = vmatpush.msra.mxu0 0.0
      %226 = vmatpush.msra.mxu0 0.0
      %227 = vmatpush.msra.mxu0 0.0
      %228 = vmatpush.msra.mxu0 0.0
      %229 = vmatpush.msra.mxu0 0.0
      %230 = vmatpush.msra.mxu0 0.0
      %231 = vmatpush.msra.mxu0 0.0
      %232 = vmatpush.msra.mxu0 0.0
      %233 = vmatpush.msra.mxu0 %v183
      %234 = vmatmul.f32.gmra.mxu0 %v190
      %v235 = vpop.f32.mrf.mxu0
      %v236 = vadd.f32 0.0, %v235
      %237 = vmatmul.f32.gmra.mxu0 %v193
      %v238 = vpop.f32.mrf.mxu0
      %v239 = vadd.f32 0.0, %v238
      %240 = vdwg.mxu0
      %v242 = vsel %vm188, %v173, 0
      %v245 = vsel %vm188, %v174, 0
      %247 = vmatpush.msra.mxu0 0.0
      %248 = vmatpush.msra.mxu0 0.0
      %249 = vmatpush.msra.mxu0 0.0
      %250 = vmatpush.msra.mxu0 0.0
      %251 = vmatpush.msra.mxu0 0.0
      %252 = vmatpush.msra.mxu0 0.0
      %253 = vmatpush.msra.mxu0 0.0
      %254 = vmatpush.msra.mxu0 0.0
      %255 = vmatpush.msra.mxu0 0.0
      %256 = vmatpush.msra.mxu0 0.0
      %257 = vmatpush.msra.mxu0 0.0
      %258 = vmatpush.msra.mxu0 0.0
      %259 = vmatpush.msra.mxu0 0.0
      %260 = vmatpush.msra.mxu0 0.0
      %261 = vmatpush.msra.mxu0 0.0
      %262 = vmatpush.msra.mxu0 %v171
      %263 = vmatmul.f32.gmra.mxu0 %v242
      %v264 = vpop.f32.mrf.mxu0
      %v265 = vadd.f32 %v213, %v264
      %266 = vmatmul.f32.gmra.mxu0 %v245
      %v267 = vpop.f32.mrf.mxu0
      %v268 = vadd.f32 %v216, %v267
      %269 = vdwg.mxu0
      %270 = vmatpush.msra.mxu0 0.0
      %271 = vmatpush.msra.mxu0 0.0
      %272 = vmatpush.msra.mxu0 0.0
      %273 = vmatpush.msra.mxu0 0.0
      %274 = vmatpush.msra.mxu0 0.0
      %275 = vmatpush.msra.mxu0 0.0
      %276 = vmatpush.msra.mxu0 0.0
      %277 = vmatpush.msra.mxu0 0.0
      %278 = vmatpush.msra.mxu0 0.0
      %279 = vmatpush.msra.mxu0 0.0
      %280 = vmatpush.msra.mxu0 0.0
      %281 = vmatpush.msra.mxu0 0.0
      %282 = vmatpush.msra.mxu0 0.0
      %283 = vmatpush.msra.mxu0 0.0
      %284 = vmatpush.msra.mxu0 0.0
      %285 = vmatpush.msra.mxu0 %v172
      %286 = vmatmul.f32.gmra.mxu0 %v242
      %v287 = vpop.f32.mrf.mxu0
      %v288 = vadd.f32 %v236, %v287
      %289 = vmatmul.f32.gmra.mxu0 %v245
      %v290 = vpop.f32.mrf.mxu0
      %v291 = vadd.f32 %v239, %v290
      %292 = vdwg.mxu0
      %s293 = scalar_lea.vmem %s1, 32
      %v294 = vld [vmem:[%s293] sm:$0xff]
      %v295 = vld [vmem:[%s293 + $0x8] sm:$0xff]
      %296 = vrot.lane.b32.xlu0 %v171, 126
      %v297 = vpop.permute.xlu0 %296
      %298 = vrot.lane.b32.xlu0 %v172, 126
      %v299 = vpop.permute.xlu0 %298
      %vm300 = vcmask 1031168
      %v301 = vsel %vm300, %v297, %v299
      %v305 = vsel %vm188, %v294, 0
      %v308 = vsel %vm188, %v295, 0
      %310 = vmatpush.msra.mxu0 0.0
      %311 = vmatpush.msra.mxu0 0.0
      %312 = vmatpush.msra.mxu0 0.0
      %313 = vmatpush.msra.mxu0 0.0
      %314 = vmatpush.msra.mxu0 0.0
      %315 = vmatpush.msra.mxu0 0.0
      %316 = vmatpush.msra.mxu0 0.0
      %317 = vmatpush.msra.mxu0 0.0
      %318 = vmatpush.msra.mxu0 0.0
      %319 = vmatpush.msra.mxu0 0.0
      %320 = vmatpush.msra.mxu0 0.0
      %321 = vmatpush.msra.mxu0 0.0
      %322 = vmatpush.msra.mxu0 0.0
      %323 = vmatpush.msra.mxu0 0.0
      %324 = vmatpush.msra.mxu0 0.0
      %325 = vmatpush.msra.mxu0 %v301
      %326 = vmatmul.f32.gmra.mxu0 %v305
      %v327 = vpop.f32.mrf.mxu0
      %v328 = vadd.f32 0.0, %v327
      %329 = vmatmul.f32.gmra.mxu0 %v308
      %v330 = vpop.f32.mrf.mxu0
      %v331 = vadd.f32 0.0, %v330
      %332 = vdwg.mxu0
      %333 = vmatpush.msra.mxu0 0.0
      %334 = vmatpush.msra.mxu0 0.0
      %335 = vmatpush.msra.mxu0 0.0
      %336 = vmatpush.msra.mxu0 0.0
      %337 = vmatpush.msra.mxu0 0.0
      %338 = vmatpush.msra.mxu0 0.0
      %339 = vmatpush.msra.mxu0 0.0
      %340 = vmatpush.msra.mxu0 0.0
      %341 = vmatpush.msra.mxu0 0.0
      %342 = vmatpush.msra.mxu0 0.0
      %343 = vmatpush.msra.mxu0 0.0
      %344 = vmatpush.msra.mxu0 0.0
      %345 = vmatpush.msra.mxu0 0.0
      %346 = vmatpush.msra.mxu0 0.0
      %347 = vmatpush.msra.mxu0 0.0
      %348 = vmatpush.msra.mxu0 %v299
      %349 = vmatmul.f32.gmra.mxu0 %v305
      %v350 = vpop.f32.mrf.mxu0
      %v351 = vadd.f32 0.0, %v350
      %352 = vmatmul.f32.gmra.mxu0 %v308
      %v353 = vpop.f32.mrf.mxu0
      %v354 = vadd.f32 0.0, %v353
      %355 = vdwg.mxu0
      %v356 = vadd.f32 %v265, %v328
      %v357 = vadd.f32 %v288, %v351
      %v358 = vadd.f32 %v268, %v331
      %v359 = vadd.f32 %v291, %v354
      %s360 = scalar_lea.vmem %s1, 48
      %v361 = vld [vmem:[%s360] sm:$0xff]
      %v362 = vld [vmem:[%s360 + $0x8] sm:$0xff]
      %363 = vrot.lane.b32.xlu0 %v171, 125
      %v364 = vpop.permute.xlu0 %363
      %365 = vrot.lane.b32.xlu0 %v172, 125
      %v366 = vpop.permute.xlu0 %365
      %vm367 = vcmask 1022976
      %v368 = vsel %vm367, %v364, %v366
      %v372 = vsel %vm188, %v361, 0
      %v375 = vsel %vm188, %v362, 0
      %377 = vmatpush.msra.mxu0 0.0
      %378 = vmatpush.msra.mxu0 0.0
      %379 = vmatpush.msra.mxu0 0.0
      %380 = vmatpush.msra.mxu0 0.0
      %381 = vmatpush.msra.mxu0 0.0
      %382 = vmatpush.msra.mxu0 0.0
      %383 = vmatpush.msra.mxu0 0.0
      %384 = vmatpush.msra.mxu0 0.0
      %385 = vmatpush.msra.mxu0 0.0
      %386 = vmatpush.msra.mxu0 0.0
      %387 = vmatpush.msra.mxu0 0.0
      %388 = vmatpush.msra.mxu0 0.0
      %389 = vmatpush.msra.mxu0 0.0
      %390 = vmatpush.msra.mxu0 0.0
      %391 = vmatpush.msra.mxu0 0.0
      %392 = vmatpush.msra.mxu0 %v368
      %393 = vmatmul.f32.gmra.mxu0 %v372
      %v394 = vpop.f32.mrf.mxu0
      %v395 = vadd.f32 0.0, %v394
      %396 = vmatmul.f32.gmra.mxu0 %v375
      %v397 = vpop.f32.mrf.mxu0
      %v398 = vadd.f32 0.0, %v397
      %399 = vdwg.mxu0
      %400 = vmatpush.msra.mxu0 0.0
      %401 = vmatpush.msra.mxu0 0.0
      %402 = vmatpush.msra.mxu0 0.0
      %403 = vmatpush.msra.mxu0 0.0
      %404 = vmatpush.msra.mxu0 0.0
      %405 = vmatpush.msra.mxu0 0.0
      %406 = vmatpush.msra.mxu0 0.0
      %407 = vmatpush.msra.mxu0 0.0
      %408 = vmatpush.msra.mxu0 0.0
      %409 = vmatpush.msra.mxu0 0.0
      %410 = vmatpush.msra.mxu0 0.0
      %411 = vmatpush.msra.mxu0 0.0
      %412 = vmatpush.msra.mxu0 0.0
      %413 = vmatpush.msra.mxu0 0.0
      %414 = vmatpush.msra.mxu0 0.0
      %415 = vmatpush.msra.mxu0 %v366
      %416 = vmatmul.f32.gmra.mxu0 %v372
      %v417 = vpop.f32.mrf.mxu0
      %v418 = vadd.f32 0.0, %v417
      %419 = vmatmul.f32.gmra.mxu0 %v375
      %v420 = vpop.f32.mrf.mxu0
      %v421 = vadd.f32 0.0, %v420
      %422 = vdwg.mxu0
      %v423 = vadd.f32 %v356, %v395
      %v424 = vadd.f32 %v357, %v418
      %v425 = vadd.f32 %v358, %v398
      %v426 = vadd.f32 %v359, %v421
      %s427 = scalar_lea.vmem %s1, 64
      %v428 = vld [vmem:[%s427] sm:$0xff]
      %v429 = vld [vmem:[%s427 + $0x8] sm:$0xff]
      %430 = vrot.lane.b32.xlu0 %v171, 124
      %v431 = vpop.permute.xlu0 %430
      %432 = vrot.lane.b32.xlu0 %v172, 124
      %v433 = vpop.permute.xlu0 %432
      %vm434 = vcmask 1014784
      %v435 = vsel %vm434, %v431, %v433
      %v439 = vsel %vm188, %v428, 0
      %v442 = vsel %vm188, %v429, 0
      %444 = vmatpush.msra.mxu0 0.0
      %445 = vmatpush.msra.mxu0 0.0
      %446 = vmatpush.msra.mxu0 0.0
      %447 = vmatpush.msra.mxu0 0.0
      %448 = vmatpush.msra.mxu0 0.0
      %449 = vmatpush.msra.mxu0 0.0
      %450 = vmatpush.msra.mxu0 0.0
      %451 = vmatpush.msra.mxu0 0.0
      %452 = vmatpush.msra.mxu0 0.0
      %453 = vmatpush.msra.mxu0 0.0
      %454 = vmatpush.msra.mxu0 0.0
      %455 = vmatpush.msra.mxu0 0.0
      %456 = vmatpush.msra.mxu0 0.0
      %457 = vmatpush.msra.mxu0 0.0
      %458 = vmatpush.msra.mxu0 0.0
      %459 = vmatpush.msra.mxu0 %v435
      %460 = vmatmul.f32.gmra.mxu0 %v439
      %v461 = vpop.f32.mrf.mxu0
      %v462 = vadd.f32 0.0, %v461
      %463 = vmatmul.f32.gmra.mxu0 %v442
      %v464 = vpop.f32.mrf.mxu0
      %v465 = vadd.f32 0.0, %v464
      %466 = vdwg.mxu0
      %467 = vmatpush.msra.mxu0 0.0
      %468 = vmatpush.msra.mxu0 0.0
      %469 = vmatpush.msra.mxu0 0.0
      %470 = vmatpush.msra.mxu0 0.0
      %471 = vmatpush.msra.mxu0 0.0
      %472 = vmatpush.msra.mxu0 0.0
      %473 = vmatpush.msra.mxu0 0.0
      %474 = vmatpush.msra.mxu0 0.0
      %475 = vmatpush.msra.mxu0 0.0
      %476 = vmatpush.msra.mxu0 0.0
      %477 = vmatpush.msra.mxu0 0.0
      %478 = vmatpush.msra.mxu0 0.0
      %479 = vmatpush.msra.mxu0 0.0
      %480 = vmatpush.msra.mxu0 0.0
      %481 = vmatpush.msra.mxu0 0.0
      %482 = vmatpush.msra.mxu0 %v433
      %483 = vmatmul.f32.gmra.mxu0 %v439
      %v484 = vpop.f32.mrf.mxu0
      %v485 = vadd.f32 0.0, %v484
      %486 = vmatmul.f32.gmra.mxu0 %v442
      %v487 = vpop.f32.mrf.mxu0
      %v488 = vadd.f32 0.0, %v487
      %489 = vdwg.mxu0
      %v490 = vadd.f32 %v423, %v462
      %v491 = vadd.f32 %v424, %v485
      %v492 = vadd.f32 %v425, %v465
      %v493 = vadd.f32 %v426, %v488
      %s494 = scalar_lea.vmem %s1, 80
      %v495 = vld [vmem:[%s494] sm:$0xff]
      %v496 = vld [vmem:[%s494 + $0x8] sm:$0xff]
      %497 = vrot.lane.b32.xlu0 %v171, 113
      %v498 = vpop.permute.xlu0 %497
      %499 = vrot.lane.b32.xlu0 %v172, 113
      %v500 = vpop.permute.xlu0 %499
      %vm501 = vcmask 924672
      %v502 = vsel %vm501, %v498, %v500
      %v506 = vsel %vm188, %v495, 0
      %v509 = vsel %vm188, %v496, 0
      %511 = vmatpush.msra.mxu0 0.0
      %512 = vmatpush.msra.mxu0 0.0
      %513 = vmatpush.msra.mxu0 0.0
      %514 = vmatpush.msra.mxu0 0.0
      %515 = vmatpush.msra.mxu0 0.0
      %516 = vmatpush.msra.mxu0 0.0
      %517 = vmatpush.msra.mxu0 0.0
      %518 = vmatpush.msra.mxu0 0.0
      %519 = vmatpush.msra.mxu0 0.0
      %520 = vmatpush.msra.mxu0 0.0
      %521 = vmatpush.msra.mxu0 0.0
      %522 = vmatpush.msra.mxu0 0.0
      %523 = vmatpush.msra.mxu0 0.0
      %524 = vmatpush.msra.mxu0 0.0
      %525 = vmatpush.msra.mxu0 0.0
      %526 = vmatpush.msra.mxu0 %v502
      %527 = vmatmul.f32.gmra.mxu0 %v506
      %v528 = vpop.f32.mrf.mxu0
      %v529 = vadd.f32 0.0, %v528
      %530 = vmatmul.f32.gmra.mxu0 %v509
      %v531 = vpop.f32.mrf.mxu0
      %v532 = vadd.f32 0.0, %v531
      %533 = vdwg.mxu0
      %534 = vmatpush.msra.mxu0 0.0
      %535 = vmatpush.msra.mxu0 0.0
      %536 = vmatpush.msra.mxu0 0.0
      %537 = vmatpush.msra.mxu0 0.0
      %538 = vmatpush.msra.mxu0 0.0
      %539 = vmatpush.msra.mxu0 0.0
      %540 = vmatpush.msra.mxu0 0.0
      %541 = vmatpush.msra.mxu0 0.0
      %542 = vmatpush.msra.mxu0 0.0
      %543 = vmatpush.msra.mxu0 0.0
      %544 = vmatpush.msra.mxu0 0.0
      %545 = vmatpush.msra.mxu0 0.0
      %546 = vmatpush.msra.mxu0 0.0
      %547 = vmatpush.msra.mxu0 0.0
      %548 = vmatpush.msra.mxu0 0.0
      %549 = vmatpush.msra.mxu0 %v500
      %550 = vmatmul.f32.gmra.mxu0 %v506
      %v551 = vpop.f32.mrf.mxu0
      %v552 = vadd.f32 0.0, %v551
      %553 = vmatmul.f32.gmra.mxu0 %v509
      %v554 = vpop.f32.mrf.mxu0
      %v555 = vadd.f32 0.0, %v554
      %556 = vdwg.mxu0
      %v557 = vadd.f32 %v490, %v529
      %v558 = vadd.f32 %v491, %v552
      %v559 = vadd.f32 %v492, %v532
      %v560 = vadd.f32 %v493, %v555
      %s561 = scalar_lea.vmem %s1, 96
      %v562 = vld [vmem:[%s561] sm:$0xff]
      %v563 = vld [vmem:[%s561 + $0x8] sm:$0xff]
      %564 = vrot.lane.b32.xlu0 %v171, 112
      %v565 = vpop.permute.xlu0 %564
      %566 = vrot.lane.b32.xlu0 %v172, 112
      %v567 = vpop.permute.xlu0 %566
      %vm568 = vcmask 916480
      %v569 = vsel %vm568, %v565, %v567
      %v573 = vsel %vm188, %v562, 0
      %v576 = vsel %vm188, %v563, 0
      %578 = vmatpush.msra.mxu0 0.0
      %579 = vmatpush.msra.mxu0 0.0
      %580 = vmatpush.msra.mxu0 0.0
      %581 = vmatpush.msra.mxu0 0.0
      %582 = vmatpush.msra.mxu0 0.0
      %583 = vmatpush.msra.mxu0 0.0
      %584 = vmatpush.msra.mxu0 0.0
      %585 = vmatpush.msra.mxu0 0.0
      %586 = vmatpush.msra.mxu0 0.0
      %587 = vmatpush.msra.mxu0 0.0
      %588 = vmatpush.msra.mxu0 0.0
      %589 = vmatpush.msra.mxu0 0.0
      %590 = vmatpush.msra.mxu0 0.0
      %591 = vmatpush.msra.mxu0 0.0
      %592 = vmatpush.msra.mxu0 0.0
      %593 = vmatpush.msra.mxu0 %v569
      %594 = vmatmul.f32.gmra.mxu0 %v573
      %v595 = vpop.f32.mrf.mxu0
      %v596 = vadd.f32 0.0, %v595
      %597 = vmatmul.f32.gmra.mxu0 %v576
      %v598 = vpop.f32.mrf.mxu0
      %v599 = vadd.f32 0.0, %v598
      %600 = vdwg.mxu0
      %601 = vmatpush.msra.mxu0 0.0
      %602 = vmatpush.msra.mxu0 0.0
      %603 = vmatpush.msra.mxu0 0.0
      %604 = vmatpush.msra.mxu0 0.0
      %605 = vmatpush.msra.mxu0 0.0
      %606 = vmatpush.msra.mxu0 0.0
      %607 = vmatpush.msra.mxu0 0.0
      %608 = vmatpush.msra.mxu0 0.0
      %609 = vmatpush.msra.mxu0 0.0
      %610 = vmatpush.msra.mxu0 0.0
      %611 = vmatpush.msra.mxu0 0.0
      %612 = vmatpush.msra.mxu0 0.0
      %613 = vmatpush.msra.mxu0 0.0
      %614 = vmatpush.msra.mxu0 0.0
      %615 = vmatpush.msra.mxu0 0.0
      %616 = vmatpush.msra.mxu0 %v567
      %617 = vmatmul.f32.gmra.mxu0 %v573
      %v618 = vpop.f32.mrf.mxu0
      %v619 = vadd.f32 0.0, %v618
      %620 = vmatmul.f32.gmra.mxu0 %v576
      %v621 = vpop.f32.mrf.mxu0
      %v622 = vadd.f32 0.0, %v621
      %623 = vdwg.mxu0
      %v624 = vadd.f32 %v557, %v596
      %v625 = vadd.f32 %v558, %v619
      %v626 = vadd.f32 %v559, %v599
      %v627 = vadd.f32 %v560, %v622
      %s628 = scalar_lea.vmem %s1, 112
      %v629 = vld [vmem:[%s628] sm:$0xff]
      %v630 = vld [vmem:[%s628 + $0x8] sm:$0xff]
      %631 = vrot.lane.b32.xlu0 %v171, 111
      %v632 = vpop.permute.xlu0 %631
      %633 = vrot.lane.b32.xlu0 %v172, 111
      %v634 = vpop.permute.xlu0 %633
      %vm635 = vcmask 908288
      %v636 = vsel %vm635, %v632, %v634
      %v640 = vsel %vm188, %v629, 0
      %v643 = vsel %vm188, %v630, 0
      %645 = vmatpush.msra.mxu0 0.0
      %646 = vmatpush.msra.mxu0 0.0
      %647 = vmatpush.msra.mxu0 0.0
      %648 = vmatpush.msra.mxu0 0.0
      %649 = vmatpush.msra.mxu0 0.0
      %650 = vmatpush.msra.mxu0 0.0
      %651 = vmatpush.msra.mxu0 0.0
      %652 = vmatpush.msra.mxu0 0.0
      %653 = vmatpush.msra.mxu0 0.0
      %654 = vmatpush.msra.mxu0 0.0
      %655 = vmatpush.msra.mxu0 0.0
      %656 = vmatpush.msra.mxu0 0.0
      %657 = vmatpush.msra.mxu0 0.0
      %658 = vmatpush.msra.mxu0 0.0
      %659 = vmatpush.msra.mxu0 0.0
      %660 = vmatpush.msra.mxu0 %v636
      %661 = vmatmul.f32.gmra.mxu0 %v640
      %v662 = vpop.f32.mrf.mxu0
      %v663 = vadd.f32 0.0, %v662
      %664 = vmatmul.f32.gmra.mxu0 %v643
      %v665 = vpop.f32.mrf.mxu0
      %v666 = vadd.f32 0.0, %v665
      %667 = vdwg.mxu0
      %668 = vmatpush.msra.mxu0 0.0
      %669 = vmatpush.msra.mxu0 0.0
      %670 = vmatpush.msra.mxu0 0.0
      %671 = vmatpush.msra.mxu0 0.0
      %672 = vmatpush.msra.mxu0 0.0
      %673 = vmatpush.msra.mxu0 0.0
      %674 = vmatpush.msra.mxu0 0.0
      %675 = vmatpush.msra.mxu0 0.0
      %676 = vmatpush.msra.mxu0 0.0
      %677 = vmatpush.msra.mxu0 0.0
      %678 = vmatpush.msra.mxu0 0.0
      %679 = vmatpush.msra.mxu0 0.0
      %680 = vmatpush.msra.mxu0 0.0
      %681 = vmatpush.msra.mxu0 0.0
      %682 = vmatpush.msra.mxu0 0.0
      %683 = vmatpush.msra.mxu0 %v634
      %684 = vmatmul.f32.gmra.mxu0 %v640
      %v685 = vpop.f32.mrf.mxu0
      %v686 = vadd.f32 0.0, %v685
      %687 = vmatmul.f32.gmra.mxu0 %v643
      %v688 = vpop.f32.mrf.mxu0
      %v689 = vadd.f32 0.0, %v688
      %690 = vdwg.mxu0
      %v691 = vadd.f32 %v624, %v663
      %v692 = vadd.f32 %v625, %v686
      %v693 = vadd.f32 %v626, %v666
      %v694 = vadd.f32 %v627, %v689
      %s695 = scalar_lea.vmem %s1, 128
      %v696 = vld [vmem:[%s695] sm:$0xff]
      %v697 = vld [vmem:[%s695 + $0x8] sm:$0xff]
      %698 = vrot.lane.b32.xlu0 %v171, 110
      %v699 = vpop.permute.xlu0 %698
      %700 = vrot.lane.b32.xlu0 %v172, 110
      %v701 = vpop.permute.xlu0 %700
      %vm702 = vcmask 900096
      %v703 = vsel %vm702, %v699, %v701
      %v707 = vsel %vm188, %v696, 0
      %v710 = vsel %vm188, %v697, 0
      %712 = vmatpush.msra.mxu0 0.0
      %713 = vmatpush.msra.mxu0 0.0
      %714 = vmatpush.msra.mxu0 0.0
      %715 = vmatpush.msra.mxu0 0.0
      %716 = vmatpush.msra.mxu0 0.0
      %717 = vmatpush.msra.mxu0 0.0
      %718 = vmatpush.msra.mxu0 0.0
      %719 = vmatpush.msra.mxu0 0.0
      %720 = vmatpush.msra.mxu0 0.0
      %721 = vmatpush.msra.mxu0 0.0
      %722 = vmatpush.msra.mxu0 0.0
      %723 = vmatpush.msra.mxu0 0.0
      %724 = vmatpush.msra.mxu0 0.0
      %725 = vmatpush.msra.mxu0 0.0
      %726 = vmatpush.msra.mxu0 0.0
      %727 = vmatpush.msra.mxu0 %v703
      %728 = vmatmul.f32.gmra.mxu0 %v707
      %v729 = vpop.f32.mrf.mxu0
      %v730 = vadd.f32 0.0, %v729
      %731 = vmatmul.f32.gmra.mxu0 %v710
      %v732 = vpop.f32.mrf.mxu0
      %v733 = vadd.f32 0.0, %v732
      %734 = vdwg.mxu0
      %735 = vmatpush.msra.mxu0 0.0
      %736 = vmatpush.msra.mxu0 0.0
      %737 = vmatpush.msra.mxu0 0.0
      %738 = vmatpush.msra.mxu0 0.0
      %739 = vmatpush.msra.mxu0 0.0
      %740 = vmatpush.msra.mxu0 0.0
      %741 = vmatpush.msra.mxu0 0.0
      %742 = vmatpush.msra.mxu0 0.0
      %743 = vmatpush.msra.mxu0 0.0
      %744 = vmatpush.msra.mxu0 0.0
      %745 = vmatpush.msra.mxu0 0.0
      %746 = vmatpush.msra.mxu0 0.0
      %747 = vmatpush.msra.mxu0 0.0
      %748 = vmatpush.msra.mxu0 0.0
      %749 = vmatpush.msra.mxu0 0.0
      %750 = vmatpush.msra.mxu0 %v701
      %751 = vmatmul.f32.gmra.mxu0 %v707
      %v752 = vpop.f32.mrf.mxu0
      %v753 = vadd.f32 0.0, %v752
      %754 = vmatmul.f32.gmra.mxu0 %v710
      %v755 = vpop.f32.mrf.mxu0
      %v756 = vadd.f32 0.0, %v755
      %757 = vdwg.mxu0
      %v758 = vadd.f32 %v691, %v730
      %v759 = vadd.f32 %v692, %v753
      %v760 = vadd.f32 %v693, %v733
      %v761 = vadd.f32 %v694, %v756
      %s762 = scalar_lea.vmem %s1, 144
      %v763 = vld [vmem:[%s762] sm:$0xff]
      %v764 = vld [vmem:[%s762 + $0x8] sm:$0xff]
      %765 = vrot.lane.b32.xlu0 %v171, 109
      %v766 = vpop.permute.xlu0 %765
      %767 = vrot.lane.b32.xlu0 %v172, 109
      %v768 = vpop.permute.xlu0 %767
      %vm769 = vcmask 891904
      %v770 = vsel %vm769, %v766, %v768
      %v774 = vsel %vm188, %v763, 0
      %v777 = vsel %vm188, %v764, 0
      %779 = vmatpush.msra.mxu0 0.0
      %780 = vmatpush.msra.mxu0 0.0
      %781 = vmatpush.msra.mxu0 0.0
      %782 = vmatpush.msra.mxu0 0.0
      %783 = vmatpush.msra.mxu0 0.0
      %784 = vmatpush.msra.mxu0 0.0
      %785 = vmatpush.msra.mxu0 0.0
      %786 = vmatpush.msra.mxu0 0.0
      %787 = vmatpush.msra.mxu0 0.0
      %788 = vmatpush.msra.mxu0 0.0
      %789 = vmatpush.msra.mxu0 0.0
      %790 = vmatpush.msra.mxu0 0.0
      %791 = vmatpush.msra.mxu0 0.0
      %792 = vmatpush.msra.mxu0 0.0
      %793 = vmatpush.msra.mxu0 0.0
      %794 = vmatpush.msra.mxu0 %v770
      %795 = vmatmul.f32.gmra.mxu0 %v774
      %v796 = vpop.f32.mrf.mxu0
      %v797 = vadd.f32 0.0, %v796
      %798 = vmatmul.f32.gmra.mxu0 %v777
      %v799 = vpop.f32.mrf.mxu0
      %v800 = vadd.f32 0.0, %v799
      %801 = vdwg.mxu0
      %802 = vmatpush.msra.mxu0 0.0
      %803 = vmatpush.msra.mxu0 0.0
      %804 = vmatpush.msra.mxu0 0.0
      %805 = vmatpush.msra.mxu0 0.0
      %806 = vmatpush.msra.mxu0 0.0
      %807 = vmatpush.msra.mxu0 0.0
      %808 = vmatpush.msra.mxu0 0.0
      %809 = vmatpush.msra.mxu0 0.0
      %810 = vmatpush.msra.mxu0 0.0
      %811 = vmatpush.msra.mxu0 0.0
      %812 = vmatpush.msra.mxu0 0.0
      %813 = vmatpush.msra.mxu0 0.0
      %814 = vmatpush.msra.mxu0 0.0
      %815 = vmatpush.msra.mxu0 0.0
      %816 = vmatpush.msra.mxu0 0.0
      %817 = vmatpush.msra.mxu0 %v768
      %818 = vmatmul.f32.gmra.mxu0 %v774
      %v819 = vpop.f32.mrf.mxu0
      %v820 = vadd.f32 0.0, %v819
      %821 = vmatmul.f32.gmra.mxu0 %v777
      %v822 = vpop.f32.mrf.mxu0
      %v823 = vadd.f32 0.0, %v822
      %824 = vdwg.mxu0
      %v825 = vadd.f32 %v758, %v797
      %v826 = vadd.f32 %v759, %v820
      %v827 = vadd.f32 %v760, %v800
      %v828 = vadd.f32 %v761, %v823
      %s829 = scalar_lea.vmem %s1, 160
      %v830 = vld [vmem:[%s829] sm:$0xff]
      %v831 = vld [vmem:[%s829 + $0x8] sm:$0xff]
      %832 = vrot.lane.b32.xlu0 %v171, 98
      %v833 = vpop.permute.xlu0 %832
      %834 = vrot.lane.b32.xlu0 %v172, 98
      %v835 = vpop.permute.xlu0 %834
      %vm836 = vcmask 801792
      %v837 = vsel %vm836, %v833, %v835
      %v841 = vsel %vm188, %v830, 0
      %v844 = vsel %vm188, %v831, 0
      %846 = vmatpush.msra.mxu0 0.0
      %847 = vmatpush.msra.mxu0 0.0
      %848 = vmatpush.msra.mxu0 0.0
      %849 = vmatpush.msra.mxu0 0.0
      %850 = vmatpush.msra.mxu0 0.0
      %851 = vmatpush.msra.mxu0 0.0
      %852 = vmatpush.msra.mxu0 0.0
      %853 = vmatpush.msra.mxu0 0.0
      %854 = vmatpush.msra.mxu0 0.0
      %855 = vmatpush.msra.mxu0 0.0
      %856 = vmatpush.msra.mxu0 0.0
      %857 = vmatpush.msra.mxu0 0.0
      %858 = vmatpush.msra.mxu0 0.0
      %859 = vmatpush.msra.mxu0 0.0
      %860 = vmatpush.msra.mxu0 0.0
      %861 = vmatpush.msra.mxu0 %v837
      %862 = vmatmul.f32.gmra.mxu0 %v841
      %v863 = vpop.f32.mrf.mxu0
      %v864 = vadd.f32 0.0, %v863
      %865 = vmatmul.f32.gmra.mxu0 %v844
      %v866 = vpop.f32.mrf.mxu0
      %v867 = vadd.f32 0.0, %v866
      %868 = vdwg.mxu0
      %869 = vmatpush.msra.mxu0 0.0
      %870 = vmatpush.msra.mxu0 0.0
      %871 = vmatpush.msra.mxu0 0.0
      %872 = vmatpush.msra.mxu0 0.0
      %873 = vmatpush.msra.mxu0 0.0
      %874 = vmatpush.msra.mxu0 0.0
      %875 = vmatpush.msra.mxu0 0.0
      %876 = vmatpush.msra.mxu0 0.0
      %877 = vmatpush.msra.mxu0 0.0
      %878 = vmatpush.msra.mxu0 0.0
      %879 = vmatpush.msra.mxu0 0.0
      %880 = vmatpush.msra.mxu0 0.0
      %881 = vmatpush.msra.mxu0 0.0
      %882 = vmatpush.msra.mxu0 0.0
      %883 = vmatpush.msra.mxu0 0.0
      %884 = vmatpush.msra.mxu0 %v835
      %885 = vmatmul.f32.gmra.mxu0 %v841
      %v886 = vpop.f32.mrf.mxu0
      %v887 = vadd.f32 0.0, %v886
      %888 = vmatmul.f32.gmra.mxu0 %v844
      %v889 = vpop.f32.mrf.mxu0
      %v890 = vadd.f32 0.0, %v889
      %891 = vdwg.mxu0
      %v892 = vadd.f32 %v825, %v864
      %v893 = vadd.f32 %v826, %v887
      %v894 = vadd.f32 %v827, %v867
      %v895 = vadd.f32 %v828, %v890
      %s896 = scalar_lea.vmem %s1, 176
      %v897 = vld [vmem:[%s896] sm:$0xff]
      %v898 = vld [vmem:[%s896 + $0x8] sm:$0xff]
      %899 = vrot.lane.b32.xlu0 %v171, 97
      %v900 = vpop.permute.xlu0 %899
      %901 = vrot.lane.b32.xlu0 %v172, 97
      %v902 = vpop.permute.xlu0 %901
      %vm903 = vcmask 793600
      %v904 = vsel %vm903, %v900, %v902
      %v908 = vsel %vm188, %v897, 0
      %v911 = vsel %vm188, %v898, 0
      %913 = vmatpush.msra.mxu0 0.0
      %914 = vmatpush.msra.mxu0 0.0
      %915 = vmatpush.msra.mxu0 0.0
      %916 = vmatpush.msra.mxu0 0.0
      %917 = vmatpush.msra.mxu0 0.0
      %918 = vmatpush.msra.mxu0 0.0
      %919 = vmatpush.msra.mxu0 0.0
      %920 = vmatpush.msra.mxu0 0.0
      %921 = vmatpush.msra.mxu0 0.0
      %922 = vmatpush.msra.mxu0 0.0
      %923 = vmatpush.msra.mxu0 0.0
      %924 = vmatpush.msra.mxu0 0.0
      %925 = vmatpush.msra.mxu0 0.0
      %926 = vmatpush.msra.mxu0 0.0
      %927 = vmatpush.msra.mxu0 0.0
      %928 = vmatpush.msra.mxu0 %v904
      %929 = vmatmul.f32.gmra.mxu0 %v908
      %v930 = vpop.f32.mrf.mxu0
      %v931 = vadd.f32 0.0, %v930
      %932 = vmatmul.f32.gmra.mxu0 %v911
      %v933 = vpop.f32.mrf.mxu0
      %v934 = vadd.f32 0.0, %v933
      %935 = vdwg.mxu0
      %936 = vmatpush.msra.mxu0 0.0
      %937 = vmatpush.msra.mxu0 0.0
      %938 = vmatpush.msra.mxu0 0.0
      %939 = vmatpush.msra.mxu0 0.0
      %940 = vmatpush.msra.mxu0 0.0
      %941 = vmatpush.msra.mxu0 0.0
      %942 = vmatpush.msra.mxu0 0.0
      %943 = vmatpush.msra.mxu0 0.0
      %944 = vmatpush.msra.mxu0 0.0
      %945 = vmatpush.msra.mxu0 0.0
      %946 = vmatpush.msra.mxu0 0.0
      %947 = vmatpush.msra.mxu0 0.0
      %948 = vmatpush.msra.mxu0 0.0
      %949 = vmatpush.msra.mxu0 0.0
      %950 = vmatpush.msra.mxu0 0.0
      %951 = vmatpush.msra.mxu0 %v902
      %952 = vmatmul.f32.gmra.mxu0 %v908
      %v953 = vpop.f32.mrf.mxu0
      %v954 = vadd.f32 0.0, %v953
      %955 = vmatmul.f32.gmra.mxu0 %v911
      %v956 = vpop.f32.mrf.mxu0
      %v957 = vadd.f32 0.0, %v956
      %958 = vdwg.mxu0
      %v959 = vadd.f32 %v892, %v931
      %v960 = vadd.f32 %v893, %v954
      %v961 = vadd.f32 %v894, %v934
      %v962 = vadd.f32 %v895, %v957
      %s963 = scalar_lea.vmem %s1, 192
      %v964 = vld [vmem:[%s963] sm:$0xff]
      %v965 = vld [vmem:[%s963 + $0x8] sm:$0xff]
      %966 = vrot.lane.b32.xlu0 %v171, 96
      %v967 = vpop.permute.xlu0 %966
      %968 = vrot.lane.b32.xlu0 %v172, 96
      %v969 = vpop.permute.xlu0 %968
      %vm970 = vcmask 785408
      %v971 = vsel %vm970, %v967, %v969
      %v975 = vsel %vm188, %v964, 0
      %v978 = vsel %vm188, %v965, 0
      %980 = vmatpush.msra.mxu0 0.0
      %981 = vmatpush.msra.mxu0 0.0
      %982 = vmatpush.msra.mxu0 0.0
      %983 = vmatpush.msra.mxu0 0.0
      %984 = vmatpush.msra.mxu0 0.0
      %985 = vmatpush.msra.mxu0 0.0
      %986 = vmatpush.msra.mxu0 0.0
      %987 = vmatpush.msra.mxu0 0.0
      %988 = vmatpush.msra.mxu0 0.0
      %989 = vmatpush.msra.mxu0 0.0
      %990 = vmatpush.msra.mxu0 0.0
      %991 = vmatpush.msra.mxu0 0.0
      %992 = vmatpush.msra.mxu0 0.0
      %993 = vmatpush.msra.mxu0 0.0
      %994 = vmatpush.msra.mxu0 0.0
      %995 = vmatpush.msra.mxu0 %v971
      %996 = vmatmul.f32.gmra.mxu0 %v975
      %v997 = vpop.f32.mrf.mxu0
      %v998 = vadd.f32 0.0, %v997
      %999 = vmatmul.f32.gmra.mxu0 %v978
      %v1000 = vpop.f32.mrf.mxu0
      %v1001 = vadd.f32 0.0, %v1000
      %1002 = vdwg.mxu0
      %1003 = vmatpush.msra.mxu0 0.0
      %1004 = vmatpush.msra.mxu0 0.0
      %1005 = vmatpush.msra.mxu0 0.0
      %1006 = vmatpush.msra.mxu0 0.0
      %1007 = vmatpush.msra.mxu0 0.0
      %1008 = vmatpush.msra.mxu0 0.0
      %1009 = vmatpush.msra.mxu0 0.0
      %1010 = vmatpush.msra.mxu0 0.0
      %1011 = vmatpush.msra.mxu0 0.0
      %1012 = vmatpush.msra.mxu0 0.0
      %1013 = vmatpush.msra.mxu0 0.0
      %1014 = vmatpush.msra.mxu0 0.0
      %1015 = vmatpush.msra.mxu0 0.0
      %1016 = vmatpush.msra.mxu0 0.0
      %1017 = vmatpush.msra.mxu0 0.0
      %1018 = vmatpush.msra.mxu0 %v969
      %1019 = vmatmul.f32.gmra.mxu0 %v975
      %v1020 = vpop.f32.mrf.mxu0
      %v1021 = vadd.f32 0.0, %v1020
      %1022 = vmatmul.f32.gmra.mxu0 %v978
      %v1023 = vpop.f32.mrf.mxu0
      %v1024 = vadd.f32 0.0, %v1023
      %1025 = vdwg.mxu0
      %v1026 = vadd.f32 %v959, %v998
      %v1027 = vadd.f32 %v960, %v1021
      %v1028 = vadd.f32 %v961, %v1001
      %v1029 = vadd.f32 %v962, %v1024
      %s1030 = scalar_lea.vmem %s1, 208
      %v1031 = vld [vmem:[%s1030] sm:$0xff]
      %v1032 = vld [vmem:[%s1030 + $0x8] sm:$0xff]
      %1033 = vrot.lane.b32.xlu0 %v171, 95
      %v1034 = vpop.permute.xlu0 %1033
      %1035 = vrot.lane.b32.xlu0 %v172, 95
      %v1036 = vpop.permute.xlu0 %1035
      %vm1037 = vcmask 777216
      %v1038 = vsel %vm1037, %v1034, %v1036
      %v1042 = vsel %vm188, %v1031, 0
      %v1045 = vsel %vm188, %v1032, 0
      %1047 = vmatpush.msra.mxu0 0.0
      %1048 = vmatpush.msra.mxu0 0.0
      %1049 = vmatpush.msra.mxu0 0.0
      %1050 = vmatpush.msra.mxu0 0.0
      %1051 = vmatpush.msra.mxu0 0.0
      %1052 = vmatpush.msra.mxu0 0.0
      %1053 = vmatpush.msra.mxu0 0.0
      %1054 = vmatpush.msra.mxu0 0.0
      %1055 = vmatpush.msra.mxu0 0.0
      %1056 = vmatpush.msra.mxu0 0.0
      %1057 = vmatpush.msra.mxu0 0.0
      %1058 = vmatpush.msra.mxu0 0.0
      %1059 = vmatpush.msra.mxu0 0.0
      %1060 = vmatpush.msra.mxu0 0.0
      %1061 = vmatpush.msra.mxu0 0.0
      %1062 = vmatpush.msra.mxu0 %v1038
      %1063 = vmatmul.f32.gmra.mxu0 %v1042
      %v1064 = vpop.f32.mrf.mxu0
      %v1065 = vadd.f32 0.0, %v1064
      %1066 = vmatmul.f32.gmra.mxu0 %v1045
      %v1067 = vpop.f32.mrf.mxu0
      %v1068 = vadd.f32 0.0, %v1067
      %1069 = vdwg.mxu0
      %1070 = vmatpush.msra.mxu0 0.0
      %1071 = vmatpush.msra.mxu0 0.0
      %1072 = vmatpush.msra.mxu0 0.0
      %1073 = vmatpush.msra.mxu0 0.0
      %1074 = vmatpush.msra.mxu0 0.0
      %1075 = vmatpush.msra.mxu0 0.0
      %1076 = vmatpush.msra.mxu0 0.0
      %1077 = vmatpush.msra.mxu0 0.0
      %1078 = vmatpush.msra.mxu0 0.0
      %1079 = vmatpush.msra.mxu0 0.0
      %1080 = vmatpush.msra.mxu0 0.0
      %1081 = vmatpush.msra.mxu0 0.0
      %1082 = vmatpush.msra.mxu0 0.0
      %1083 = vmatpush.msra.mxu0 0.0
      %1084 = vmatpush.msra.mxu0 0.0
      %1085 = vmatpush.msra.mxu0 %v1036
      %1086 = vmatmul.f32.gmra.mxu0 %v1042
      %v1087 = vpop.f32.mrf.mxu0
      %v1088 = vadd.f32 0.0, %v1087
      %1089 = vmatmul.f32.gmra.mxu0 %v1045
      %v1090 = vpop.f32.mrf.mxu0
      %v1091 = vadd.f32 0.0, %v1090
      %1092 = vdwg.mxu0
      %v1093 = vadd.f32 %v1026, %v1065
      %v1094 = vadd.f32 %v1027, %v1088
      %v1095 = vadd.f32 %v1028, %v1068
      %v1096 = vadd.f32 %v1029, %v1091
      %s1097 = scalar_lea.vmem %s1, 224
      %v1098 = vld [vmem:[%s1097] sm:$0xff]
      %v1099 = vld [vmem:[%s1097 + $0x8] sm:$0xff]
      %1100 = vrot.lane.b32.xlu0 %v171, 94
      %v1101 = vpop.permute.xlu0 %1100
      %1102 = vrot.lane.b32.xlu0 %v172, 94
      %v1103 = vpop.permute.xlu0 %1102
      %vm1104 = vcmask 769024
      %v1105 = vsel %vm1104, %v1101, %v1103
      %v1109 = vsel %vm188, %v1098, 0
      %v1112 = vsel %vm188, %v1099, 0
      %1114 = vmatpush.msra.mxu0 0.0
      %1115 = vmatpush.msra.mxu0 0.0
      %1116 = vmatpush.msra.mxu0 0.0
      %1117 = vmatpush.msra.mxu0 0.0
      %1118 = vmatpush.msra.mxu0 0.0
      %1119 = vmatpush.msra.mxu0 0.0
      %1120 = vmatpush.msra.mxu0 0.0
      %1121 = vmatpush.msra.mxu0 0.0
      %1122 = vmatpush.msra.mxu0 0.0
      %1123 = vmatpush.msra.mxu0 0.0
      %1124 = vmatpush.msra.mxu0 0.0
      %1125 = vmatpush.msra.mxu0 0.0
      %1126 = vmatpush.msra.mxu0 0.0
      %1127 = vmatpush.msra.mxu0 0.0
      %1128 = vmatpush.msra.mxu0 0.0
      %1129 = vmatpush.msra.mxu0 %v1105
      %1130 = vmatmul.f32.gmra.mxu0 %v1109
      %v1131 = vpop.f32.mrf.mxu0
      %v1132 = vadd.f32 0.0, %v1131
      %1133 = vmatmul.f32.gmra.mxu0 %v1112
      %v1134 = vpop.f32.mrf.mxu0
      %v1135 = vadd.f32 0.0, %v1134
      %1136 = vdwg.mxu0
      %1137 = vmatpush.msra.mxu0 0.0
      %1138 = vmatpush.msra.mxu0 0.0
      %1139 = vmatpush.msra.mxu0 0.0
      %1140 = vmatpush.msra.mxu0 0.0
      %1141 = vmatpush.msra.mxu0 0.0
      %1142 = vmatpush.msra.mxu0 0.0
      %1143 = vmatpush.msra.mxu0 0.0
      %1144 = vmatpush.msra.mxu0 0.0
      %1145 = vmatpush.msra.mxu0 0.0
      %1146 = vmatpush.msra.mxu0 0.0
      %1147 = vmatpush.msra.mxu0 0.0
      %1148 = vmatpush.msra.mxu0 0.0
      %1149 = vmatpush.msra.mxu0 0.0
      %1150 = vmatpush.msra.mxu0 0.0
      %1151 = vmatpush.msra.mxu0 0.0
      %1152 = vmatpush.msra.mxu0 %v1103
      %1153 = vmatmul.f32.gmra.mxu0 %v1109
      %v1154 = vpop.f32.mrf.mxu0
      %v1155 = vadd.f32 0.0, %v1154
      %1156 = vmatmul.f32.gmra.mxu0 %v1112
      %v1157 = vpop.f32.mrf.mxu0
      %v1158 = vadd.f32 0.0, %v1157
      %1159 = vdwg.mxu0
      %v1160 = vadd.f32 %v1093, %v1132
      %v1161 = vadd.f32 %v1094, %v1155
      %v1162 = vadd.f32 %v1095, %v1135
      %v1163 = vadd.f32 %v1096, %v1158
      %s1164 = scalar_lea.vmem %s1, 240
      %v1165 = vld [vmem:[%s1164] sm:$0xff]
      %v1166 = vld [vmem:[%s1164 + $0x8] sm:$0xff]
      %1167 = vrot.lane.b32.xlu0 %v171, 83
      %v1168 = vpop.permute.xlu0 %1167
      %1169 = vrot.lane.b32.xlu0 %v172, 83
      %v1170 = vpop.permute.xlu0 %1169
      %vm1171 = vcmask 678912
      %v1172 = vsel %vm1171, %v1168, %v1170
      %v1176 = vsel %vm188, %v1165, 0
      %v1179 = vsel %vm188, %v1166, 0
      %1181 = vmatpush.msra.mxu0 0.0
      %1182 = vmatpush.msra.mxu0 0.0
      %1183 = vmatpush.msra.mxu0 0.0
      %1184 = vmatpush.msra.mxu0 0.0
      %1185 = vmatpush.msra.mxu0 0.0
      %1186 = vmatpush.msra.mxu0 0.0
      %1187 = vmatpush.msra.mxu0 0.0
      %1188 = vmatpush.msra.mxu0 0.0
      %1189 = vmatpush.msra.mxu0 0.0
      %1190 = vmatpush.msra.mxu0 0.0
      %1191 = vmatpush.msra.mxu0 0.0
      %1192 = vmatpush.msra.mxu0 0.0
      %1193 = vmatpush.msra.mxu0 0.0
      %1194 = vmatpush.msra.mxu0 0.0
      %1195 = vmatpush.msra.mxu0 0.0
      %1196 = vmatpush.msra.mxu0 %v1172
      %1197 = vmatmul.f32.gmra.mxu0 %v1176
      %v1198 = vpop.f32.mrf.mxu0
      %v1199 = vadd.f32 0.0, %v1198
      %1200 = vmatmul.f32.gmra.mxu0 %v1179
      %v1201 = vpop.f32.mrf.mxu0
      %v1202 = vadd.f32 0.0, %v1201
      %1203 = vdwg.mxu0
      %1204 = vmatpush.msra.mxu0 0.0
      %1205 = vmatpush.msra.mxu0 0.0
      %1206 = vmatpush.msra.mxu0 0.0
      %1207 = vmatpush.msra.mxu0 0.0
      %1208 = vmatpush.msra.mxu0 0.0
      %1209 = vmatpush.msra.mxu0 0.0
      %1210 = vmatpush.msra.mxu0 0.0
      %1211 = vmatpush.msra.mxu0 0.0
      %1212 = vmatpush.msra.mxu0 0.0
      %1213 = vmatpush.msra.mxu0 0.0
      %1214 = vmatpush.msra.mxu0 0.0
      %1215 = vmatpush.msra.mxu0 0.0
      %1216 = vmatpush.msra.mxu0 0.0
      %1217 = vmatpush.msra.mxu0 0.0
      %1218 = vmatpush.msra.mxu0 0.0
      %1219 = vmatpush.msra.mxu0 %v1170
      %1220 = vmatmul.f32.gmra.mxu0 %v1176
      %v1221 = vpop.f32.mrf.mxu0
      %v1222 = vadd.f32 0.0, %v1221
      %1223 = vmatmul.f32.gmra.mxu0 %v1179
      %v1224 = vpop.f32.mrf.mxu0
      %v1225 = vadd.f32 0.0, %v1224
      %1226 = vdwg.mxu0
      %v1227 = vadd.f32 %v1160, %v1199
      %v1228 = vadd.f32 %v1161, %v1222
      %v1229 = vadd.f32 %v1162, %v1202
      %v1230 = vadd.f32 %v1163, %v1225
      %s1231 = scalar_lea.vmem %s1, 256
      %v1232 = vld [vmem:[%s1231] sm:$0xff]
      %v1233 = vld [vmem:[%s1231 + $0x8] sm:$0xff]
      %1234 = vrot.lane.b32.xlu0 %v171, 82
      %v1235 = vpop.permute.xlu0 %1234
      %1236 = vrot.lane.b32.xlu0 %v172, 82
      %v1237 = vpop.permute.xlu0 %1236
      %vm1238 = vcmask 670720
      %v1239 = vsel %vm1238, %v1235, %v1237
      %v1243 = vsel %vm188, %v1232, 0
      %v1246 = vsel %vm188, %v1233, 0
      %1248 = vmatpush.msra.mxu0 0.0
      %1249 = vmatpush.msra.mxu0 0.0
      %1250 = vmatpush.msra.mxu0 0.0
      %1251 = vmatpush.msra.mxu0 0.0
      %1252 = vmatpush.msra.mxu0 0.0
      %1253 = vmatpush.msra.mxu0 0.0
      %1254 = vmatpush.msra.mxu0 0.0
      %1255 = vmatpush.msra.mxu0 0.0
      %1256 = vmatpush.msra.mxu0 0.0
      %1257 = vmatpush.msra.mxu0 0.0
      %1258 = vmatpush.msra.mxu0 0.0
      %1259 = vmatpush.msra.mxu0 0.0
      %1260 = vmatpush.msra.mxu0 0.0
      %1261 = vmatpush.msra.mxu0 0.0
      %1262 = vmatpush.msra.mxu0 0.0
      %1263 = vmatpush.msra.mxu0 %v1239
      %1264 = vmatmul.f32.gmra.mxu0 %v1243
      %v1265 = vpop.f32.mrf.mxu0
      %v1266 = vadd.f32 0.0, %v1265
      %1267 = vmatmul.f32.gmra.mxu0 %v1246
      %v1268 = vpop.f32.mrf.mxu0
      %v1269 = vadd.f32 0.0, %v1268
      %1270 = vdwg.mxu0
      %1271 = vmatpush.msra.mxu0 0.0
      %1272 = vmatpush.msra.mxu0 0.0
      %1273 = vmatpush.msra.mxu0 0.0
      %1274 = vmatpush.msra.mxu0 0.0
      %1275 = vmatpush.msra.mxu0 0.0
      %1276 = vmatpush.msra.mxu0 0.0
      %1277 = vmatpush.msra.mxu0 0.0
      %1278 = vmatpush.msra.mxu0 0.0
      %1279 = vmatpush.msra.mxu0 0.0
      %1280 = vmatpush.msra.mxu0 0.0
      %1281 = vmatpush.msra.mxu0 0.0
      %1282 = vmatpush.msra.mxu0 0.0
      %1283 = vmatpush.msra.mxu0 0.0
      %1284 = vmatpush.msra.mxu0 0.0
      %1285 = vmatpush.msra.mxu0 0.0
      %1286 = vmatpush.msra.mxu0 %v1237
      %1287 = vmatmul.f32.gmra.mxu0 %v1243
      %v1288 = vpop.f32.mrf.mxu0
      %v1289 = vadd.f32 0.0, %v1288
      %1290 = vmatmul.f32.gmra.mxu0 %v1246
      %v1291 = vpop.f32.mrf.mxu0
      %v1292 = vadd.f32 0.0, %v1291
      %1293 = vdwg.mxu0
      %v1294 = vadd.f32 %v1227, %v1266
      %v1295 = vadd.f32 %v1228, %v1289
      %v1296 = vadd.f32 %v1229, %v1269
      %v1297 = vadd.f32 %v1230, %v1292
      %s1298 = scalar_lea.vmem %s1, 272
      %v1299 = vld [vmem:[%s1298] sm:$0xff]
      %v1300 = vld [vmem:[%s1298 + $0x8] sm:$0xff]
      %1301 = vrot.lane.b32.xlu0 %v171, 81
      %v1302 = vpop.permute.xlu0 %1301
      %1303 = vrot.lane.b32.xlu0 %v172, 81
      %v1304 = vpop.permute.xlu0 %1303
      %vm1305 = vcmask 662528
      %v1306 = vsel %vm1305, %v1302, %v1304
      %v1310 = vsel %vm188, %v1299, 0
      %v1313 = vsel %vm188, %v1300, 0
      %1315 = vmatpush.msra.mxu0 0.0
      %1316 = vmatpush.msra.mxu0 0.0
      %1317 = vmatpush.msra.mxu0 0.0
      %1318 = vmatpush.msra.mxu0 0.0
      %1319 = vmatpush.msra.mxu0 0.0
      %1320 = vmatpush.msra.mxu0 0.0
      %1321 = vmatpush.msra.mxu0 0.0
      %1322 = vmatpush.msra.mxu0 0.0
      %1323 = vmatpush.msra.mxu0 0.0
      %1324 = vmatpush.msra.mxu0 0.0
      %1325 = vmatpush.msra.mxu0 0.0
      %1326 = vmatpush.msra.mxu0 0.0
      %1327 = vmatpush.msra.mxu0 0.0
      %1328 = vmatpush.msra.mxu0 0.0
      %1329 = vmatpush.msra.mxu0 0.0
      %1330 = vmatpush.msra.mxu0 %v1306
      %1331 = vmatmul.f32.gmra.mxu0 %v1310
      %v1332 = vpop.f32.mrf.mxu0
      %v1333 = vadd.f32 0.0, %v1332
      %1334 = vmatmul.f32.gmra.mxu0 %v1313
      %v1335 = vpop.f32.mrf.mxu0
      %v1336 = vadd.f32 0.0, %v1335
      %1337 = vdwg.mxu0
      %1338 = vmatpush.msra.mxu0 0.0
      %1339 = vmatpush.msra.mxu0 0.0
      %1340 = vmatpush.msra.mxu0 0.0
      %1341 = vmatpush.msra.mxu0 0.0
      %1342 = vmatpush.msra.mxu0 0.0
      %1343 = vmatpush.msra.mxu0 0.0
      %1344 = vmatpush.msra.mxu0 0.0
      %1345 = vmatpush.msra.mxu0 0.0
      %1346 = vmatpush.msra.mxu0 0.0
      %1347 = vmatpush.msra.mxu0 0.0
      %1348 = vmatpush.msra.mxu0 0.0
      %1349 = vmatpush.msra.mxu0 0.0
      %1350 = vmatpush.msra.mxu0 0.0
      %1351 = vmatpush.msra.mxu0 0.0
      %1352 = vmatpush.msra.mxu0 0.0
      %1353 = vmatpush.msra.mxu0 %v1304
      %1354 = vmatmul.f32.gmra.mxu0 %v1310
      %v1355 = vpop.f32.mrf.mxu0
      %v1356 = vadd.f32 0.0, %v1355
      %1357 = vmatmul.f32.gmra.mxu0 %v1313
      %v1358 = vpop.f32.mrf.mxu0
      %v1359 = vadd.f32 0.0, %v1358
      %1360 = vdwg.mxu0
      %v1361 = vadd.f32 %v1294, %v1333
      %v1362 = vadd.f32 %v1295, %v1356
      %v1363 = vadd.f32 %v1296, %v1336
      %v1364 = vadd.f32 %v1297, %v1359
      %s1365 = scalar_lea.vmem %s1, 288
      %v1366 = vld [vmem:[%s1365] sm:$0xff]
      %v1367 = vld [vmem:[%s1365 + $0x8] sm:$0xff]
      %1368 = vrot.lane.b32.xlu0 %v171, 80
      %v1369 = vpop.permute.xlu0 %1368
      %1370 = vrot.lane.b32.xlu0 %v172, 80
      %v1371 = vpop.permute.xlu0 %1370
      %vm1372 = vcmask 654336
      %v1373 = vsel %vm1372, %v1369, %v1371
      %v1377 = vsel %vm188, %v1366, 0
      %v1380 = vsel %vm188, %v1367, 0
      %1382 = vmatpush.msra.mxu0 0.0
      %1383 = vmatpush.msra.mxu0 0.0
      %1384 = vmatpush.msra.mxu0 0.0
      %1385 = vmatpush.msra.mxu0 0.0
      %1386 = vmatpush.msra.mxu0 0.0
      %1387 = vmatpush.msra.mxu0 0.0
      %1388 = vmatpush.msra.mxu0 0.0
      %1389 = vmatpush.msra.mxu0 0.0
      %1390 = vmatpush.msra.mxu0 0.0
      %1391 = vmatpush.msra.mxu0 0.0
      %1392 = vmatpush.msra.mxu0 0.0
      %1393 = vmatpush.msra.mxu0 0.0
      %1394 = vmatpush.msra.mxu0 0.0
      %1395 = vmatpush.msra.mxu0 0.0
      %1396 = vmatpush.msra.mxu0 0.0
      %1397 = vmatpush.msra.mxu0 %v1373
      %1398 = vmatmul.f32.gmra.mxu0 %v1377
      %v1399 = vpop.f32.mrf.mxu0
      %v1400 = vadd.f32 0.0, %v1399
      %1401 = vmatmul.f32.gmra.mxu0 %v1380
      %v1402 = vpop.f32.mrf.mxu0
      %v1403 = vadd.f32 0.0, %v1402
      %1404 = vdwg.mxu0
      %1405 = vmatpush.msra.mxu0 0.0
      %1406 = vmatpush.msra.mxu0 0.0
      %1407 = vmatpush.msra.mxu0 0.0
      %1408 = vmatpush.msra.mxu0 0.0
      %1409 = vmatpush.msra.mxu0 0.0
      %1410 = vmatpush.msra.mxu0 0.0
      %1411 = vmatpush.msra.mxu0 0.0
      %1412 = vmatpush.msra.mxu0 0.0
      %1413 = vmatpush.msra.mxu0 0.0
      %1414 = vmatpush.msra.mxu0 0.0
      %1415 = vmatpush.msra.mxu0 0.0
      %1416 = vmatpush.msra.mxu0 0.0
      %1417 = vmatpush.msra.mxu0 0.0
      %1418 = vmatpush.msra.mxu0 0.0
      %1419 = vmatpush.msra.mxu0 0.0
      %1420 = vmatpush.msra.mxu0 %v1371
      %1421 = vmatmul.f32.gmra.mxu0 %v1377
      %v1422 = vpop.f32.mrf.mxu0
      %v1423 = vadd.f32 0.0, %v1422
      %1424 = vmatmul.f32.gmra.mxu0 %v1380
      %v1425 = vpop.f32.mrf.mxu0
      %v1426 = vadd.f32 0.0, %v1425
      %1427 = vdwg.mxu0
      %v1428 = vadd.f32 %v1361, %v1400
      %v1429 = vadd.f32 %v1362, %v1423
      %v1430 = vadd.f32 %v1363, %v1403
      %v1431 = vadd.f32 %v1364, %v1426
      %s1432 = scalar_lea.vmem %s1, 304
      %v1433 = vld [vmem:[%s1432] sm:$0xff]
      %v1434 = vld [vmem:[%s1432 + $0x8] sm:$0xff]
      %1435 = vrot.lane.b32.xlu0 %v171, 79
      %v1436 = vpop.permute.xlu0 %1435
      %1437 = vrot.lane.b32.xlu0 %v172, 79
      %v1438 = vpop.permute.xlu0 %1437
      %vm1439 = vcmask 646144
      %v1440 = vsel %vm1439, %v1436, %v1438
      %v1444 = vsel %vm188, %v1433, 0
      %v1447 = vsel %vm188, %v1434, 0
      %1449 = vmatpush.msra.mxu0 0.0
      %1450 = vmatpush.msra.mxu0 0.0
      %1451 = vmatpush.msra.mxu0 0.0
      %1452 = vmatpush.msra.mxu0 0.0
      %1453 = vmatpush.msra.mxu0 0.0
      %1454 = vmatpush.msra.mxu0 0.0
      %1455 = vmatpush.msra.mxu0 0.0
      %1456 = vmatpush.msra.mxu0 0.0
      %1457 = vmatpush.msra.mxu0 0.0
      %1458 = vmatpush.msra.mxu0 0.0
      %1459 = vmatpush.msra.mxu0 0.0
      %1460 = vmatpush.msra.mxu0 0.0
      %1461 = vmatpush.msra.mxu0 0.0
      %1462 = vmatpush.msra.mxu0 0.0
      %1463 = vmatpush.msra.mxu0 0.0
      %1464 = vmatpush.msra.mxu0 %v1440
      %1465 = vmatmul.f32.gmra.mxu0 %v1444
      %v1466 = vpop.f32.mrf.mxu0
      %v1467 = vadd.f32 0.0, %v1466
      %1468 = vmatmul.f32.gmra.mxu0 %v1447
      %v1469 = vpop.f32.mrf.mxu0
      %v1470 = vadd.f32 0.0, %v1469
      %1471 = vdwg.mxu0
      %1472 = vmatpush.msra.mxu0 0.0
      %1473 = vmatpush.msra.mxu0 0.0
      %1474 = vmatpush.msra.mxu0 0.0
      %1475 = vmatpush.msra.mxu0 0.0
      %1476 = vmatpush.msra.mxu0 0.0
      %1477 = vmatpush.msra.mxu0 0.0
      %1478 = vmatpush.msra.mxu0 0.0
      %1479 = vmatpush.msra.mxu0 0.0
      %1480 = vmatpush.msra.mxu0 0.0
      %1481 = vmatpush.msra.mxu0 0.0
      %1482 = vmatpush.msra.mxu0 0.0
      %1483 = vmatpush.msra.mxu0 0.0
      %1484 = vmatpush.msra.mxu0 0.0
      %1485 = vmatpush.msra.mxu0 0.0
      %1486 = vmatpush.msra.mxu0 0.0
      %1487 = vmatpush.msra.mxu0 %v1438
      %1488 = vmatmul.f32.gmra.mxu0 %v1444
      %v1489 = vpop.f32.mrf.mxu0
      %v1490 = vadd.f32 0.0, %v1489
      %1491 = vmatmul.f32.gmra.mxu0 %v1447
      %v1492 = vpop.f32.mrf.mxu0
      %v1493 = vadd.f32 0.0, %v1492
      %1494 = vdwg.mxu0
      %v1495 = vadd.f32 %v1428, %v1467
      %v1496 = vadd.f32 %v1429, %v1490
      %v1497 = vadd.f32 %v1430, %v1470
      %v1498 = vadd.f32 %v1431, %v1493
      %s1499 = scalar_lea.vmem %s1, 320
      %v1500 = vld [vmem:[%s1499] sm:$0xff]
      %v1501 = vld [vmem:[%s1499 + $0x8] sm:$0xff]
      %1502 = vrot.lane.b32.xlu0 %v171, 68
      %v1503 = vpop.permute.xlu0 %1502
      %1504 = vrot.lane.b32.xlu0 %v172, 68
      %v1505 = vpop.permute.xlu0 %1504
      %vm1506 = vcmask 556032
      %v1507 = vsel %vm1506, %v1503, %v1505
      %v1511 = vsel %vm188, %v1500, 0
      %v1514 = vsel %vm188, %v1501, 0
      %1516 = vmatpush.msra.mxu0 0.0
      %1517 = vmatpush.msra.mxu0 0.0
      %1518 = vmatpush.msra.mxu0 0.0
      %1519 = vmatpush.msra.mxu0 0.0
      %1520 = vmatpush.msra.mxu0 0.0
      %1521 = vmatpush.msra.mxu0 0.0
      %1522 = vmatpush.msra.mxu0 0.0
      %1523 = vmatpush.msra.mxu0 0.0
      %1524 = vmatpush.msra.mxu0 0.0
      %1525 = vmatpush.msra.mxu0 0.0
      %1526 = vmatpush.msra.mxu0 0.0
      %1527 = vmatpush.msra.mxu0 0.0
      %1528 = vmatpush.msra.mxu0 0.0
      %1529 = vmatpush.msra.mxu0 0.0
      %1530 = vmatpush.msra.mxu0 0.0
      %1531 = vmatpush.msra.mxu0 %v1507
      %1532 = vmatmul.f32.gmra.mxu0 %v1511
      %v1533 = vpop.f32.mrf.mxu0
      %v1534 = vadd.f32 0.0, %v1533
      %1535 = vmatmul.f32.gmra.mxu0 %v1514
      %v1536 = vpop.f32.mrf.mxu0
      %v1537 = vadd.f32 0.0, %v1536
      %1538 = vdwg.mxu0
      %1539 = vmatpush.msra.mxu0 0.0
      %1540 = vmatpush.msra.mxu0 0.0
      %1541 = vmatpush.msra.mxu0 0.0
      %1542 = vmatpush.msra.mxu0 0.0
      %1543 = vmatpush.msra.mxu0 0.0
      %1544 = vmatpush.msra.mxu0 0.0
      %1545 = vmatpush.msra.mxu0 0.0
      %1546 = vmatpush.msra.mxu0 0.0
      %1547 = vmatpush.msra.mxu0 0.0
      %1548 = vmatpush.msra.mxu0 0.0
      %1549 = vmatpush.msra.mxu0 0.0
      %1550 = vmatpush.msra.mxu0 0.0
      %1551 = vmatpush.msra.mxu0 0.0
      %1552 = vmatpush.msra.mxu0 0.0
      %1553 = vmatpush.msra.mxu0 0.0
      %1554 = vmatpush.msra.mxu0 %v1505
      %1555 = vmatmul.f32.gmra.mxu0 %v1511
      %v1556 = vpop.f32.mrf.mxu0
      %v1557 = vadd.f32 0.0, %v1556
      %1558 = vmatmul.f32.gmra.mxu0 %v1514
      %v1559 = vpop.f32.mrf.mxu0
      %v1560 = vadd.f32 0.0, %v1559
      %1561 = vdwg.mxu0
      %v1562 = vadd.f32 %v1495, %v1534
      %v1563 = vadd.f32 %v1496, %v1557
      %v1564 = vadd.f32 %v1497, %v1537
      %v1565 = vadd.f32 %v1498, %v1560
      %s1566 = scalar_lea.vmem %s1, 336
      %v1567 = vld [vmem:[%s1566] sm:$0xff]
      %v1568 = vld [vmem:[%s1566 + $0x8] sm:$0xff]
      %1569 = vrot.lane.b32.xlu0 %v171, 67
      %v1570 = vpop.permute.xlu0 %1569
      %1571 = vrot.lane.b32.xlu0 %v172, 67
      %v1572 = vpop.permute.xlu0 %1571
      %vm1573 = vcmask 547840
      %v1574 = vsel %vm1573, %v1570, %v1572
      %v1578 = vsel %vm188, %v1567, 0
      %v1581 = vsel %vm188, %v1568, 0
      %1583 = vmatpush.msra.mxu0 0.0
      %1584 = vmatpush.msra.mxu0 0.0
      %1585 = vmatpush.msra.mxu0 0.0
      %1586 = vmatpush.msra.mxu0 0.0
      %1587 = vmatpush.msra.mxu0 0.0
      %1588 = vmatpush.msra.mxu0 0.0
      %1589 = vmatpush.msra.mxu0 0.0
      %1590 = vmatpush.msra.mxu0 0.0
      %1591 = vmatpush.msra.mxu0 0.0
      %1592 = vmatpush.msra.mxu0 0.0
      %1593 = vmatpush.msra.mxu0 0.0
      %1594 = vmatpush.msra.mxu0 0.0
      %1595 = vmatpush.msra.mxu0 0.0
      %1596 = vmatpush.msra.mxu0 0.0
      %1597 = vmatpush.msra.mxu0 0.0
      %1598 = vmatpush.msra.mxu0 %v1574
      %1599 = vmatmul.f32.gmra.mxu0 %v1578
      %v1600 = vpop.f32.mrf.mxu0
      %v1601 = vadd.f32 0.0, %v1600
      %1602 = vmatmul.f32.gmra.mxu0 %v1581
      %v1603 = vpop.f32.mrf.mxu0
      %v1604 = vadd.f32 0.0, %v1603
      %1605 = vdwg.mxu0
      %1606 = vmatpush.msra.mxu0 0.0
      %1607 = vmatpush.msra.mxu0 0.0
      %1608 = vmatpush.msra.mxu0 0.0
      %1609 = vmatpush.msra.mxu0 0.0
      %1610 = vmatpush.msra.mxu0 0.0
      %1611 = vmatpush.msra.mxu0 0.0
      %1612 = vmatpush.msra.mxu0 0.0
      %1613 = vmatpush.msra.mxu0 0.0
      %1614 = vmatpush.msra.mxu0 0.0
      %1615 = vmatpush.msra.mxu0 0.0
      %1616 = vmatpush.msra.mxu0 0.0
      %1617 = vmatpush.msra.mxu0 0.0
      %1618 = vmatpush.msra.mxu0 0.0
      %1619 = vmatpush.msra.mxu0 0.0
      %1620 = vmatpush.msra.mxu0 0.0
      %1621 = vmatpush.msra.mxu0 %v1572
      %1622 = vmatmul.f32.gmra.mxu0 %v1578
      %v1623 = vpop.f32.mrf.mxu0
      %v1624 = vadd.f32 0.0, %v1623
      %1625 = vmatmul.f32.gmra.mxu0 %v1581
      %v1626 = vpop.f32.mrf.mxu0
      %v1627 = vadd.f32 0.0, %v1626
      %1628 = vdwg.mxu0
      %v1629 = vadd.f32 %v1562, %v1601
      %v1630 = vadd.f32 %v1563, %v1624
      %v1631 = vadd.f32 %v1564, %v1604
      %v1632 = vadd.f32 %v1565, %v1627
      %s1633 = scalar_lea.vmem %s1, 352
      %v1634 = vld [vmem:[%s1633] sm:$0xff]
      %v1635 = vld [vmem:[%s1633 + $0x8] sm:$0xff]
      %1636 = vrot.lane.b32.xlu0 %v171, 66
      %v1637 = vpop.permute.xlu0 %1636
      %1638 = vrot.lane.b32.xlu0 %v172, 66
      %v1639 = vpop.permute.xlu0 %1638
      %vm1640 = vcmask 539648
      %v1641 = vsel %vm1640, %v1637, %v1639
      %v1645 = vsel %vm188, %v1634, 0
      %v1648 = vsel %vm188, %v1635, 0
      %1650 = vmatpush.msra.mxu0 0.0
      %1651 = vmatpush.msra.mxu0 0.0
      %1652 = vmatpush.msra.mxu0 0.0
      %1653 = vmatpush.msra.mxu0 0.0
      %1654 = vmatpush.msra.mxu0 0.0
      %1655 = vmatpush.msra.mxu0 0.0
      %1656 = vmatpush.msra.mxu0 0.0
      %1657 = vmatpush.msra.mxu0 0.0
      %1658 = vmatpush.msra.mxu0 0.0
      %1659 = vmatpush.msra.mxu0 0.0
      %1660 = vmatpush.msra.mxu0 0.0
      %1661 = vmatpush.msra.mxu0 0.0
      %1662 = vmatpush.msra.mxu0 0.0
      %1663 = vmatpush.msra.mxu0 0.0
      %1664 = vmatpush.msra.mxu0 0.0
      %1665 = vmatpush.msra.mxu0 %v1641
      %1666 = vmatmul.f32.gmra.mxu0 %v1645
      %v1667 = vpop.f32.mrf.mxu0
      %v1668 = vadd.f32 0.0, %v1667
      %1669 = vmatmul.f32.gmra.mxu0 %v1648
      %v1670 = vpop.f32.mrf.mxu0
      %v1671 = vadd.f32 0.0, %v1670
      %1672 = vdwg.mxu0
      %1673 = vmatpush.msra.mxu0 0.0
      %1674 = vmatpush.msra.mxu0 0.0
      %1675 = vmatpush.msra.mxu0 0.0
      %1676 = vmatpush.msra.mxu0 0.0
      %1677 = vmatpush.msra.mxu0 0.0
      %1678 = vmatpush.msra.mxu0 0.0
      %1679 = vmatpush.msra.mxu0 0.0
      %1680 = vmatpush.msra.mxu0 0.0
      %1681 = vmatpush.msra.mxu0 0.0
      %1682 = vmatpush.msra.mxu0 0.0
      %1683 = vmatpush.msra.mxu0 0.0
      %1684 = vmatpush.msra.mxu0 0.0
      %1685 = vmatpush.msra.mxu0 0.0
      %1686 = vmatpush.msra.mxu0 0.0
      %1687 = vmatpush.msra.mxu0 0.0
      %1688 = vmatpush.msra.mxu0 %v1639
      %1689 = vmatmul.f32.gmra.mxu0 %v1645
      %v1690 = vpop.f32.mrf.mxu0
      %v1691 = vadd.f32 0.0, %v1690
      %1692 = vmatmul.f32.gmra.mxu0 %v1648
      %v1693 = vpop.f32.mrf.mxu0
      %v1694 = vadd.f32 0.0, %v1693
      %1695 = vdwg.mxu0
      %v1696 = vadd.f32 %v1629, %v1668
      %v1697 = vadd.f32 %v1630, %v1691
      %v1698 = vadd.f32 %v1631, %v1671
      %v1699 = vadd.f32 %v1632, %v1694
      %s1700 = scalar_lea.vmem %s1, 368
      %v1701 = vld [vmem:[%s1700] sm:$0xff]
      %v1702 = vld [vmem:[%s1700 + $0x8] sm:$0xff]
      %1703 = vrot.lane.b32.xlu0 %v171, 65
      %v1704 = vpop.permute.xlu0 %1703
      %1705 = vrot.lane.b32.xlu0 %v172, 65
      %v1706 = vpop.permute.xlu0 %1705
      %vm1707 = vcmask 531456
      %v1708 = vsel %vm1707, %v1704, %v1706
      %v1712 = vsel %vm188, %v1701, 0
      %v1715 = vsel %vm188, %v1702, 0
      %1717 = vmatpush.msra.mxu0 0.0
      %1718 = vmatpush.msra.mxu0 0.0
      %1719 = vmatpush.msra.mxu0 0.0
      %1720 = vmatpush.msra.mxu0 0.0
      %1721 = vmatpush.msra.mxu0 0.0
      %1722 = vmatpush.msra.mxu0 0.0
      %1723 = vmatpush.msra.mxu0 0.0
      %1724 = vmatpush.msra.mxu0 0.0
      %1725 = vmatpush.msra.mxu0 0.0
      %1726 = vmatpush.msra.mxu0 0.0
      %1727 = vmatpush.msra.mxu0 0.0
      %1728 = vmatpush.msra.mxu0 0.0
      %1729 = vmatpush.msra.mxu0 0.0
      %1730 = vmatpush.msra.mxu0 0.0
      %1731 = vmatpush.msra.mxu0 0.0
      %1732 = vmatpush.msra.mxu0 %v1708
      %1733 = vmatmul.f32.gmra.mxu0 %v1712
      %v1734 = vpop.f32.mrf.mxu0
      %v1735 = vadd.f32 0.0, %v1734
      %1736 = vmatmul.f32.gmra.mxu0 %v1715
      %v1737 = vpop.f32.mrf.mxu0
      %v1738 = vadd.f32 0.0, %v1737
      %1739 = vdwg.mxu0
      %1740 = vmatpush.msra.mxu0 0.0
      %1741 = vmatpush.msra.mxu0 0.0
      %1742 = vmatpush.msra.mxu0 0.0
      %1743 = vmatpush.msra.mxu0 0.0
      %1744 = vmatpush.msra.mxu0 0.0
      %1745 = vmatpush.msra.mxu0 0.0
      %1746 = vmatpush.msra.mxu0 0.0
      %1747 = vmatpush.msra.mxu0 0.0
      %1748 = vmatpush.msra.mxu0 0.0
      %1749 = vmatpush.msra.mxu0 0.0
      %1750 = vmatpush.msra.mxu0 0.0
      %1751 = vmatpush.msra.mxu0 0.0
      %1752 = vmatpush.msra.mxu0 0.0
      %1753 = vmatpush.msra.mxu0 0.0
      %1754 = vmatpush.msra.mxu0 0.0
      %1755 = vmatpush.msra.mxu0 %v1706
      %1756 = vmatmul.f32.gmra.mxu0 %v1712
      %v1757 = vpop.f32.mrf.mxu0
      %v1758 = vadd.f32 0.0, %v1757
      %1759 = vmatmul.f32.gmra.mxu0 %v1715
      %v1760 = vpop.f32.mrf.mxu0
      %v1761 = vadd.f32 0.0, %v1760
      %1762 = vdwg.mxu0
      %v1763 = vadd.f32 %v1696, %v1735
      %v1764 = vadd.f32 %v1697, %v1758
      %v1765 = vadd.f32 %v1698, %v1738
      %v1766 = vadd.f32 %v1699, %v1761
      %s1767 = scalar_lea.vmem %s1, 384
      %v1768 = vld [vmem:[%s1767] sm:$0xff]
      %v1769 = vld [vmem:[%s1767 + $0x8] sm:$0xff]
      %1770 = vrot.lane.b32.xlu0 %v171, 64
      %v1771 = vpop.permute.xlu0 %1770
      %1772 = vrot.lane.b32.xlu0 %v172, 64
      %v1773 = vpop.permute.xlu0 %1772
      %vm1774 = vcmask 523264
      %v1775 = vsel %vm1774, %v1771, %v1773
      %v1779 = vsel %vm188, %v1768, 0
      %v1782 = vsel %vm188, %v1769, 0
      %1784 = vmatpush.msra.mxu0 0.0
      %1785 = vmatpush.msra.mxu0 0.0
      %1786 = vmatpush.msra.mxu0 0.0
      %1787 = vmatpush.msra.mxu0 0.0
      %1788 = vmatpush.msra.mxu0 0.0
      %1789 = vmatpush.msra.mxu0 0.0
      %1790 = vmatpush.msra.mxu0 0.0
      %1791 = vmatpush.msra.mxu0 0.0
      %1792 = vmatpush.msra.mxu0 0.0
      %1793 = vmatpush.msra.mxu0 0.0
      %1794 = vmatpush.msra.mxu0 0.0
      %1795 = vmatpush.msra.mxu0 0.0
      %1796 = vmatpush.msra.mxu0 0.0
      %1797 = vmatpush.msra.mxu0 0.0
      %1798 = vmatpush.msra.mxu0 0.0
      %1799 = vmatpush.msra.mxu0 %v1775
      %1800 = vmatmul.f32.gmra.mxu0 %v1779
      %v1801 = vpop.f32.mrf.mxu0
      %v1802 = vadd.f32 0.0, %v1801
      %1803 = vmatmul.f32.gmra.mxu0 %v1782
      %v1804 = vpop.f32.mrf.mxu0
      %v1805 = vadd.f32 0.0, %v1804
      %1806 = vdwg.mxu0
      %1807 = vmatpush.msra.mxu0 0.0
      %1808 = vmatpush.msra.mxu0 0.0
      %1809 = vmatpush.msra.mxu0 0.0
      %1810 = vmatpush.msra.mxu0 0.0
      %1811 = vmatpush.msra.mxu0 0.0
      %1812 = vmatpush.msra.mxu0 0.0
      %1813 = vmatpush.msra.mxu0 0.0
      %1814 = vmatpush.msra.mxu0 0.0
      %1815 = vmatpush.msra.mxu0 0.0
      %1816 = vmatpush.msra.mxu0 0.0
      %1817 = vmatpush.msra.mxu0 0.0
      %1818 = vmatpush.msra.mxu0 0.0
      %1819 = vmatpush.msra.mxu0 0.0
      %1820 = vmatpush.msra.mxu0 0.0
      %1821 = vmatpush.msra.mxu0 0.0
      %1822 = vmatpush.msra.mxu0 %v1773
      %1823 = vmatmul.f32.gmra.mxu0 %v1779
      %v1824 = vpop.f32.mrf.mxu0
      %v1825 = vadd.f32 0.0, %v1824
      %1826 = vmatmul.f32.gmra.mxu0 %v1782
      %v1827 = vpop.f32.mrf.mxu0
      %v1828 = vadd.f32 0.0, %v1827
      %1829 = vdwg.mxu0
      %v1830 = vadd.f32 %v1763, %v1802
      %v1831 = vadd.f32 %v1764, %v1825
      %v1832 = vadd.f32 %v1765, %v1805
      %v1833 = vadd.f32 %v1766, %v1828
      %v1834 = vld [vmem:[%s2] sm:$0xff]
      %v1835 = vld [vmem:[%s2 + $0x8] sm:$0xff]
      %1837 = vset.pattern.permute.xlu0 0
      %1838 = vperm.xlu0 %1837, %v1834
      %v1839 = vpop.permute.xlu0 %1838
      %1842 = vset.pattern.permute.xlu0 0
      %1843 = vperm.xlu0 %1842, %v1835
      %v1844 = vpop.permute.xlu0 %1843
      %v1846 = vadd.f32 %v1830, %v1839
      %v1847 = vadd.f32 %v1831, %v1839
      %v1848 = vadd.f32 %v1832, %v1844
      %v1849 = vadd.f32 %v1833, %v1844
      %vm1850 = vcmp.gt.f32.partialorder %v1846, 0.0
      %vm1851 = vcmp.gt.f32.partialorder %v1847, 0.0
      %vm1852 = vcmp.gt.f32.partialorder %v1848, 0.0
      %vm1853 = vcmp.gt.f32.partialorder %v1849, 0.0
      %v1854 = vmul.f32 %v1846, 0.01
      %v1855 = vmul.f32 %v1847, 0.01
      %v1856 = vmul.f32 %v1848, 0.01
      %v1857 = vmul.f32 %v1849, 0.01
      %v1858 = vsel %vm1850, %v1846, %v1854
      %v1859 = vsel %vm1851, %v1847, %v1855
      %v1860 = vsel %vm1852, %v1848, %v1856
      %v1861 = vsel %vm1853, %v1849, %v1857
      %v1862 = vlaneseq
      %v1863 = vshrl.u32 %v1862, 7
      %v1864 = vadd.s32 %v1863, 8
      %v1865 = vlaneseq
      %v1866 = vand.u32 %v1865, 127
      %v1867 = vmul.u32 %v1866, 2
      %vm1868 = vcmp.eq.s32.totalorder %v1863, %v1867
      %vm1869 = vcmp.eq.s32.totalorder %v1864, %v1867
      %v1870 = vsel %vm1868, 1, 0
      %v1871 = vsel %vm1869, 1, 0
      %v1872 = vcvt.s32.f32 %v1870
      %v1873 = vcvt.s32.f32 %v1871
      %v1874 = vadd.s32 %v1867, 1
      %vm1875 = vcmp.eq.s32.totalorder %v1863, %v1874
      %vm1876 = vcmp.eq.s32.totalorder %v1864, %v1874
      %v1877 = vsel %vm1875, 1, 0
      %v1878 = vsel %vm1876, 1, 0
      %v1879 = vcvt.s32.f32 %v1877
      %v1880 = vcvt.s32.f32 %v1878
      %1883 = vrot.lane.b32.xlu0 %v1858, 113
      %v1884 = vpop.permute.xlu0 %1883
      %1885 = vrot.lane.b32.xlu0 %v1860, 113
      %v1886 = vpop.permute.xlu0 %1885
      %v1889 = vmax.f32 %v1858, %v1884
      %v1890 = vmax.f32 %v1860, %v1886
      %vm1891 = vcmask 80896
      %v1893 = vsel %vm1891, %v1889, 0
      %v1896 = vsel %vm1891, %v1890, 0
      %vm1898 = vcmask 1041408
      %v1900 = vsel %vm1898, %v1873, 0
      %1902 = vmatpush.msra.mxu0 0.0
      %1903 = vmatpush.msra.mxu0 0.0
      %1904 = vmatpush.msra.mxu0 0.0
      %1905 = vmatpush.msra.mxu0 0.0
      %1906 = vmatpush.msra.mxu0 0.0
      %1907 = vmatpush.msra.mxu0 0.0
      %1908 = vmatpush.msra.mxu0 0.0
      %1909 = vmatpush.msra.mxu0 0.0
      %1910 = vmatpush.msra.mxu0 0.0
      %1911 = vmatpush.msra.mxu0 0.0
      %1912 = vmatpush.msra.mxu0 0.0
      %1913 = vmatpush.msra.mxu0 0.0
      %1914 = vmatpush.msra.mxu0 0.0
      %1915 = vmatpush.msra.mxu0 0.0
      %1916 = vmatpush.msra.mxu0 %v1900
      %1917 = vmatpush.msra.mxu0 %v1872
      %1918 = vmatmul.f32.gmra.mxu0 %v1893
      %v1919 = vpop.f32.mrf.mxu0
      %v1920 = vadd.f32 0.0, %v1919
      %1921 = vmatmul.f32.gmra.mxu0 %v1896
      %v1922 = vpop.f32.mrf.mxu0
      %v1923 = vadd.f32 0.0, %v1922
      %1924 = vdwg.mxu0
      %v1926 = vsel %vm1898, %v1880, 0
      %1928 = vmatpush.msra.mxu0 0.0
      %1929 = vmatpush.msra.mxu0 0.0
      %1930 = vmatpush.msra.mxu0 0.0
      %1931 = vmatpush.msra.mxu0 0.0
      %1932 = vmatpush.msra.mxu0 0.0
      %1933 = vmatpush.msra.mxu0 0.0
      %1934 = vmatpush.msra.mxu0 0.0
      %1935 = vmatpush.msra.mxu0 0.0
      %1936 = vmatpush.msra.mxu0 0.0
      %1937 = vmatpush.msra.mxu0 0.0
      %1938 = vmatpush.msra.mxu0 0.0
      %1939 = vmatpush.msra.mxu0 0.0
      %1940 = vmatpush.msra.mxu0 0.0
      %1941 = vmatpush.msra.mxu0 0.0
      %1942 = vmatpush.msra.mxu0 %v1926
      %1943 = vmatpush.msra.mxu0 %v1879
      %1944 = vmatmul.f32.gmra.mxu0 %v1893
      %v1945 = vpop.f32.mrf.mxu0
      %v1946 = vadd.f32 0.0, %v1945
      %1947 = vmatmul.f32.gmra.mxu0 %v1896
      %v1948 = vpop.f32.mrf.mxu0
      %v1949 = vadd.f32 0.0, %v1948
      %1950 = vdwg.mxu0
      %v1951 = vmax.f32 %v1920, %v1946
      %v1952 = vmax.f32 %v1923, %v1949
      %vm1953 = vcmask 39936
      %1954 = vst.msk [vmem:[%s170] sm:$0xff] %vm1953, %v1951
      %1955 = vst.msk [vmem:[%s170 + $0x8] sm:$0xff] %vm1953, %v1952
      %1956 = vrot.lane.b32.xlu0 %v1889, 98
      %v1957 = vpop.permute.xlu0 %1956
      %1958 = vrot.lane.b32.xlu0 %v1890, 98
      %v1959 = vpop.permute.xlu0 %1958
      %v1960 = vsel %vm1891, %v1957, 0
      %v1962 = vsel %vm1891, %v1959, 0
      %1964 = vmatpush.msra.mxu0 0.0
      %1965 = vmatpush.msra.mxu0 0.0
      %1966 = vmatpush.msra.mxu0 0.0
      %1967 = vmatpush.msra.mxu0 0.0
      %1968 = vmatpush.msra.mxu0 0.0
      %1969 = vmatpush.msra.mxu0 0.0
      %1970 = vmatpush.msra.mxu0 0.0
      %1971 = vmatpush.msra.mxu0 0.0
      %1972 = vmatpush.msra.mxu0 0.0
      %1973 = vmatpush.msra.mxu0 0.0
      %1974 = vmatpush.msra.mxu0 0.0
      %1975 = vmatpush.msra.mxu0 0.0
      %1976 = vmatpush.msra.mxu0 0.0
      %1977 = vmatpush.msra.mxu0 0.0
      %1978 = vmatpush.msra.mxu0 %v1900
      %1979 = vmatpush.msra.mxu0 %v1872
      %1980 = vmatmul.f32.gmra.mxu0 %v1960
      %v1981 = vpop.f32.mrf.mxu0
      %v1982 = vadd.f32 0.0, %v1981
      %1983 = vmatmul.f32.gmra.mxu0 %v1962
      %v1984 = vpop.f32.mrf.mxu0
      %v1985 = vadd.f32 0.0, %v1984
      %1986 = vdwg.mxu0
      %1987 = vmatpush.msra.mxu0 0.0
      %1988 = vmatpush.msra.mxu0 0.0
      %1989 = vmatpush.msra.mxu0 0.0
      %1990 = vmatpush.msra.mxu0 0.0
      %1991 = vmatpush.msra.mxu0 0.0
      %1992 = vmatpush.msra.mxu0 0.0
      %1993 = vmatpush.msra.mxu0 0.0
      %1994 = vmatpush.msra.mxu0 0.0
      %1995 = vmatpush.msra.mxu0 0.0
      %1996 = vmatpush.msra.mxu0 0.0
      %1997 = vmatpush.msra.mxu0 0.0
      %1998 = vmatpush.msra.mxu0 0.0
      %1999 = vmatpush.msra.mxu0 0.0
      %2000 = vmatpush.msra.mxu0 0.0
      %2001 = vmatpush.msra.mxu0 %v1926
      %2002 = vmatpush.msra.mxu0 %v1879
      %2003 = vmatmul.f32.gmra.mxu0 %v1960
      %v2004 = vpop.f32.mrf.mxu0
      %v2005 = vadd.f32 0.0, %v2004
      %2006 = vmatmul.f32.gmra.mxu0 %v1962
      %v2007 = vpop.f32.mrf.mxu0
      %v2008 = vadd.f32 0.0, %v2007
      %2009 = vdwg.mxu0
      %v2010 = vmax.f32 %v1982, %v2005
      %v2011 = vmax.f32 %v1985, %v2008
      %2014 = vrot.lane.b32.xlu0 %v2010, 5
      %v2015 = vpop.permute.xlu0 %2014
      %2016 = vrot.lane.b32.xlu0 %v2011, 5
      %v2017 = vpop.permute.xlu0 %2016
      %vm2020 = vcmask 80936
      %2021 = vst.msk [vmem:[%s170] sm:$0xff] %vm2020, %v2015
      %2022 = vst.msk [vmem:[%s170 + $0x8] sm:$0xff] %vm2020, %v2017
      %2023 = vrot.lane.b32.xlu0 %v1889, 68
      %v2024 = vpop.permute.xlu0 %2023
      %2025 = vrot.lane.b32.xlu0 %v1890, 68
      %v2026 = vpop.permute.xlu0 %2025
      %v2027 = vsel %vm1891, %v2024, 0
      %v2029 = vsel %vm1891, %v2026, 0
      %2031 = vmatpush.msra.mxu0 0.0
      %2032 = vmatpush.msra.mxu0 0.0
      %2033 = vmatpush.msra.mxu0 0.0
      %2034 = vmatpush.msra.mxu0 0.0
      %2035 = vmatpush.msra.mxu0 0.0
      %2036 = vmatpush.msra.mxu0 0.0
      %2037 = vmatpush.msra.mxu0 0.0
      %2038 = vmatpush.msra.mxu0 0.0
      %2039 = vmatpush.msra.mxu0 0.0
      %2040 = vmatpush.msra.mxu0 0.0
      %2041 = vmatpush.msra.mxu0 0.0
      %2042 = vmatpush.msra.mxu0 0.0
      %2043 = vmatpush.msra.mxu0 0.0
      %2044 = vmatpush.msra.mxu0 0.0
      %2045 = vmatpush.msra.mxu0 %v1900
      %2046 = vmatpush.msra.mxu0 %v1872
      %2047 = vmatmul.f32.gmra.mxu0 %v2027
      %v2048 = vpop.f32.mrf.mxu0
      %v2049 = vadd.f32 0.0, %v2048
      %2050 = vmatmul.f32.gmra.mxu0 %v2029
      %v2051 = vpop.f32.mrf.mxu0
      %v2052 = vadd.f32 0.0, %v2051
      %2053 = vdwg.mxu0
      %2054 = vmatpush.msra.mxu0 0.0
      %2055 = vmatpush.msra.mxu0 0.0
      %2056 = vmatpush.msra.mxu0 0.0
      %2057 = vmatpush.msra.mxu0 0.0
      %2058 = vmatpush.msra.mxu0 0.0
      %2059 = vmatpush.msra.mxu0 0.0
      %2060 = vmatpush.msra.mxu0 0.0
      %2061 = vmatpush.msra.mxu0 0.0
      %2062 = vmatpush.msra.mxu0 0.0
      %2063 = vmatpush.msra.mxu0 0.0
      %2064 = vmatpush.msra.mxu0 0.0
      %2065 = vmatpush.msra.mxu0 0.0
      %2066 = vmatpush.msra.mxu0 0.0
      %2067 = vmatpush.msra.mxu0 0.0
      %2068 = vmatpush.msra.mxu0 %v1926
      %2069 = vmatpush.msra.mxu0 %v1879
      %2070 = vmatmul.f32.gmra.mxu0 %v2027
      %v2071 = vpop.f32.mrf.mxu0
      %v2072 = vadd.f32 0.0, %v2071
      %2073 = vmatmul.f32.gmra.mxu0 %v2029
      %v2074 = vpop.f32.mrf.mxu0
      %v2075 = vadd.f32 0.0, %v2074
      %2076 = vdwg.mxu0
      %v2077 = vmax.f32 %v2049, %v2072
      %v2078 = vmax.f32 %v2052, %v2075
      %2081 = vrot.lane.b32.xlu0 %v2077, 10
      %v2082 = vpop.permute.xlu0 %2081
      %2083 = vrot.lane.b32.xlu0 %v2078, 10
      %v2084 = vpop.permute.xlu0 %2083
      %vm2087 = vcmask 121936
      %2088 = vst.msk [vmem:[%s170] sm:$0xff] %vm2087, %v2082
      %2089 = vst.msk [vmem:[%s170 + $0x8] sm:$0xff] %vm2087, %v2084
      %2090 = vrot.lane.b32.xlu0 %v1889, 38
      %v2091 = vpop.permute.xlu0 %2090
      %2092 = vrot.lane.b32.xlu0 %v1890, 38
      %v2093 = vpop.permute.xlu0 %2092
      %v2094 = vsel %vm1891, %v2091, 0
      %v2096 = vsel %vm1891, %v2093, 0
      %2098 = vmatpush.msra.mxu0 0.0
      %2099 = vmatpush.msra.mxu0 0.0
      %2100 = vmatpush.msra.mxu0 0.0
      %2101 = vmatpush.msra.mxu0 0.0
      %2102 = vmatpush.msra.mxu0 0.0
      %2103 = vmatpush.msra.mxu0 0.0
      %2104 = vmatpush.msra.mxu0 0.0
      %2105 = vmatpush.msra.mxu0 0.0
      %2106 = vmatpush.msra.mxu0 0.0
      %2107 = vmatpush.msra.mxu0 0.0
      %2108 = vmatpush.msra.mxu0 0.0
      %2109 = vmatpush.msra.mxu0 0.0
      %2110 = vmatpush.msra.mxu0 0.0
      %2111 = vmatpush.msra.mxu0 0.0
      %2112 = vmatpush.msra.mxu0 %v1900
      %2113 = vmatpush.msra.mxu0 %v1872
      %2114 = vmatmul.f32.gmra.mxu0 %v2094
      %v2115 = vpop.f32.mrf.mxu0
      %v2116 = vadd.f32 0.0, %v2115
      %2117 = vmatmul.f32.gmra.mxu0 %v2096
      %v2118 = vpop.f32.mrf.mxu0
      %v2119 = vadd.f32 0.0, %v2118
      %2120 = vdwg.mxu0
      %2121 = vmatpush.msra.mxu0 0.0
      %2122 = vmatpush.msra.mxu0 0.0
      %2123 = vmatpush.msra.mxu0 0.0
      %2124 = vmatpush.msra.mxu0 0.0
      %2125 = vmatpush.msra.mxu0 0.0
      %2126 = vmatpush.msra.mxu0 0.0
      %2127 = vmatpush.msra.mxu0 0.0
      %2128 = vmatpush.msra.mxu0 0.0
      %2129 = vmatpush.msra.mxu0 0.0
      %2130 = vmatpush.msra.mxu0 0.0
      %2131 = vmatpush.msra.mxu0 0.0
      %2132 = vmatpush.msra.mxu0 0.0
      %2133 = vmatpush.msra.mxu0 0.0
      %2134 = vmatpush.msra.mxu0 0.0
      %2135 = vmatpush.msra.mxu0 %v1926
      %2136 = vmatpush.msra.mxu0 %v1879
      %2137 = vmatmul.f32.gmra.mxu0 %v2094
      %v2138 = vpop.f32.mrf.mxu0
      %v2139 = vadd.f32 0.0, %v2138
      %2140 = vmatmul.f32.gmra.mxu0 %v2096
      %v2141 = vpop.f32.mrf.mxu0
      %v2142 = vadd.f32 0.0, %v2141
      %2143 = vdwg.mxu0
      %v2144 = vmax.f32 %v2116, %v2139
      %v2145 = vmax.f32 %v2119, %v2142
      %2148 = vrot.lane.b32.xlu0 %v2144, 15
      %v2149 = vpop.permute.xlu0 %2148
      %2150 = vrot.lane.b32.xlu0 %v2145, 15
      %v2151 = vpop.permute.xlu0 %2150
      %vm2154 = vcmask 162936
      %2155 = vst.msk [vmem:[%s170] sm:$0xff] %vm2154, %v2149
      %2156 = vst.msk [vmem:[%s170 + $0x8] sm:$0xff] %vm2154, %v2151
      %2159 = vrot.lane.b32.xlu0 %v1859, 113
      %v2160 = vpop.permute.xlu0 %2159
      %2161 = vrot.lane.b32.xlu0 %v1861, 113
      %v2162 = vpop.permute.xlu0 %2161
      %v2165 = vmax.f32 %v1858, %v2160
      %v2166 = vmax.f32 %v1859, %v2160
      %v2167 = vmax.f32 %v1860, %v2162
      %v2168 = vmax.f32 %v1861, %v2162
      %2173 = vrot.lane.b32.xlu0 %v2165, 8
      %v2174 = vpop.permute.xlu0 %2173
      %2175 = vrot.lane.b32.xlu0 %v2166, 8
      %v2176 = vpop.permute.xlu0 %2175
      %2177 = vrot.lane.b32.xlu0 %v2167, 8
      %v2178 = vpop.permute.xlu0 %2177
      %2179 = vrot.lane.b32.xlu0 %v2168, 8
      %v2180 = vpop.permute.xlu0 %2179
      %v2181 = vsel %vm188, %v2174, %v2176
      %v2182 = vsel %vm188, %v2178, %v2180
      %v2183 = vsel %vm1891, %v2181, 0
      %v2185 = vsel %vm1891, %v2182, 0
      %2187 = vmatpush.msra.mxu0 0.0
      %2188 = vmatpush.msra.mxu0 0.0
      %2189 = vmatpush.msra.mxu0 0.0
      %2190 = vmatpush.msra.mxu0 0.0
      %2191 = vmatpush.msra.mxu0 0.0
      %2192 = vmatpush.msra.mxu0 0.0
      %2193 = vmatpush.msra.mxu0 0.0
      %2194 = vmatpush.msra.mxu0 0.0
      %2195 = vmatpush.msra.mxu0 0.0
      %2196 = vmatpush.msra.mxu0 0.0
      %2197 = vmatpush.msra.mxu0 0.0
      %2198 = vmatpush.msra.mxu0 0.0
      %2199 = vmatpush.msra.mxu0 0.0
      %2200 = vmatpush.msra.mxu0 0.0
      %2201 = vmatpush.msra.mxu0 %v1900
      %2202 = vmatpush.msra.mxu0 %v1872
      %2203 = vmatmul.f32.gmra.mxu0 %v2183
      %v2204 = vpop.f32.mrf.mxu0
      %v2205 = vadd.f32 0.0, %v2204
      %2206 = vmatmul.f32.gmra.mxu0 %v2185
      %v2207 = vpop.f32.mrf.mxu0
      %v2208 = vadd.f32 0.0, %v2207
      %2209 = vdwg.mxu0
      %2210 = vmatpush.msra.mxu0 0.0
      %2211 = vmatpush.msra.mxu0 0.0
      %2212 = vmatpush.msra.mxu0 0.0
      %2213 = vmatpush.msra.mxu0 0.0
      %2214 = vmatpush.msra.mxu0 0.0
      %2215 = vmatpush.msra.mxu0 0.0
      %2216 = vmatpush.msra.mxu0 0.0
      %2217 = vmatpush.msra.mxu0 0.0
      %2218 = vmatpush.msra.mxu0 0.0
      %2219 = vmatpush.msra.mxu0 0.0
      %2220 = vmatpush.msra.mxu0 0.0
      %2221 = vmatpush.msra.mxu0 0.0
      %2222 = vmatpush.msra.mxu0 0.0
      %2223 = vmatpush.msra.mxu0 0.0
      %2224 = vmatpush.msra.mxu0 %v1926
      %2225 = vmatpush.msra.mxu0 %v1879
      %2226 = vmatmul.f32.gmra.mxu0 %v2183
      %v2227 = vpop.f32.mrf.mxu0
      %v2228 = vadd.f32 0.0, %v2227
      %2229 = vmatmul.f32.gmra.mxu0 %v2185
      %v2230 = vpop.f32.mrf.mxu0
      %v2231 = vadd.f32 0.0, %v2230
      %2232 = vdwg.mxu0
      %v2233 = vmax.f32 %v2205, %v2228
      %v2234 = vmax.f32 %v2208, %v2231
      %2237 = vrot.lane.b32.xlu0 %v2233, 20
      %v2238 = vpop.permute.xlu0 %2237
      %2239 = vrot.lane.b32.xlu0 %v2234, 20
      %v2240 = vpop.permute.xlu0 %2239
      %vm2243 = vcmask 203936
      %2244 = vst.msk [vmem:[%s170] sm:$0xff] %vm2243, %v2238
      %2245 = vst.msk [vmem:[%s170 + $0x8] sm:$0xff] %vm2243, %v2240
      %p2246 = scmp.lt.s32.totalorder %s14, 1
      %s2247 = scalar_select %p2246, %s14, 1
      %s2248 = smul.addr %s2247, 2
      %s2249 = smul.addr %s2248, 8
      %s2250 = scalar_lea.vmem %s3, %s2249
      // Predicated region
      $region33: #{neural_net_forward.4} parent=31 // pred_check
        %p2251 = pneg %p100
      $region34: #{neural_net_forward.4} parent=31 // pred_check_branch
        %2253 = sbr.rel (%p2251) target = $region36
      $region35: #{neural_net_forward.4} parent=31 // pred_region
        _
      $region36: #{neural_net_forward.4} parent=31 // pred_fallthru
        _
    $region32: #{neural_net_forward.4} parent=5 // pred_fallthru
      _
    %p2254 = scmp.le.s32.totalorder 2, %s9
    // Predicated region
    $region37: #{neural_net_forward.4} parent=5 // pred_check
      %p2255 = pneg %p2254
    $region38: #{neural_net_forward.4} parent=5 // pred_check_branch
      %2257 = sbr.rel (%p2255) target = $region40
    $region39: #{neural_net_forward.4} parent=5 // pred_region
      %s2258 = ssub.s32 %s9, 2
      // Predicated region
      $region41: #{neural_net_forward.4} parent=39 // pred_check
        %p2259 = pneg %p106
      $region42: #{neural_net_forward.4} parent=39 // pred_check_branch
        %2261 = sbr.rel (%p2259) target = $region44
      $region43: #{neural_net_forward.4} parent=39 // pred_region
        %p2262 = scmp.lt.s32.totalorder %s15, 1
        %s2263 = scalar_select %p2262, %s15, 1
        %s2264 = smul.addr %s2263, 2
        %s2265 = smul.addr %s2264, 8
        %s2266 = scalar_lea.vmem %s3, %s2265
      $region44: #{neural_net_forward.4} parent=39 // pred_fallthru
        _
    $region40: #{neural_net_forward.4} parent=5 // pred_fallthru
      _
  $region6: #{neural_net_forward.4} parent=0 // loop_footer
    %s13 = sadd.s32 1, %s9
  $region7: #{neural_net_forward.4} parent=0 // loop_footer_branch
    %8 = sbr.rel target = $region3
  $region8: #{neural_net_forward.4} parent=0 // loop_exit
    _

</llo_original>
